<compile_context>
chip_gen: v5e
topology: v5e:2x2
jax: 0.10.0
libtpu: 0.0.40
codegen_flags: <defaults>
</compile_context>

<pallas_src>
import functools

import numpy as np
import jax
import jax.numpy as jnp
from jax.experimental import pallas as pl
from jax.experimental.pallas import tpu as pltpu


_LN_EPS = 1e-5
_VMEM_LIMIT = 32 * 1024 * 1024  # explicit scoped-VMEM budget (safe on v5e/v6e/v7x)


def _round_up(n, m):
    return ((n + m - 1) // m) * m


# ----------------------------- shared in-kernel epilogue ----------------------
def _ln_act(y, *, n_real, act, ln, eps):
    """Per-batch whole-slab LayerNorm (no affine, biased var) + activation.

    y: (B, N, O_pad) float32.  Padded output columns are exactly zero before
    this point (zero weight columns, zero bias), so one-pass sum / sum-of-
    squares over the padded slab equals the sums over the real N*O elements;
    we divide by the true count `n_real`.
    """
    if ln:
        s = jnp.sum(jnp.sum(y, axis=2, keepdims=True), axis=1, keepdims=True)
        ss = jnp.sum(jnp.sum(y * y, axis=2, keepdims=True), axis=1, keepdims=True)
        inv_n = 1.0 / float(n_real)
        mean = s * inv_n
        var = jnp.maximum(ss * inv_n - mean * mean, 0.0)   # one-pass stats, clamped
        y = (y - mean) * jax.lax.rsqrt(var + eps)
    if act == "relu":
        y = jnp.maximum(y, 0.0)
    elif act == "sigmoid":
        y = jax.nn.sigmoid(y)
    return y


# ----------------------------- conv branch kernel -----------------------------
def _conv_fused_kernel(d_ref, w_ref, b_ref, o_ref, *, act, ln, eps, n_real, Ho, Qo):
    """Upsample+pad+Conv2d(k=4,s=2,p=1) as 16 accumulated sub-matmuls, fused
    with bias + per-batch LayerNorm + activation.

    d_ref : (4*B, Qo+1, Ho+1, C)  de-interleaved windowed input:
              d[(r*2+s)*B + b, j, i, c] == up_padded[b, 2*i + r, 2*j + s, c]
    w_ref : (16, C, O_pad)        per-(kh,kw) weight matrices, zero-padded in O
    b_ref : (1, 1, O_pad)         zero-padded bias
    o_ref : (B, Qo*Ho, O_pad)     rows ordered (ow, oh) => final (B,2W,2H,O)
    """
    B = o_ref.shape[0]
    N = o_ref.shape[1]
    O_pad = o_ref.shape[2]
    C = d_ref.shape[-1]

    acc = jnp.zeros((B * N, O_pad), jnp.float32)
    # 16 accumulated sub-matmuls (in-kernel im2col); all slices are static and
    # contiguous windows of the de-interleaved gather.
    for kh in range(4):
        a, r = kh // 2, kh % 2
        for kw in range(4):
            c2, s2 = kw // 2, kw % 2
            base = (r * 2 + s2) * B
            tap = d_ref[pl.ds(base, B), pl.ds(c2, Qo), pl.ds(a, Ho), :]  # (B,Qo,Ho,C)
            acc = acc + jnp.dot(tap.reshape(B * N, C), w_ref[kh * 4 + kw],
                                preferred_element_type=jnp.float32)
    y = acc.reshape(B, N, O_pad) + b_ref[...].astype(jnp.float32)
    y = _ln_act(y, n_real=n_real, act=act, ln=ln, eps=eps)
    o_ref[...] = y.astype(o_ref.dtype)


# ----------------------------- linear branch kernel ---------------------------
def _linear_fused_kernel(x_ref, w_ref, b_ref, o_ref, *, act, ln, eps, n_real):
    """Fused (B*N, K) @ (K, O_pad) + bias + per-batch LayerNorm + activation."""
    B, N, K = x_ref.shape
    O_pad = o_ref.shape[-1]
    y = jnp.dot(x_ref[...].reshape(B * N, K), w_ref[...],
                preferred_element_type=jnp.float32)
    y = y.reshape(B, N, O_pad) + b_ref[...].astype(jnp.float32)
    y = _ln_act(y, n_real=n_real, act=act, ln=ln, eps=eps)
    o_ref[...] = y.astype(o_ref.dtype)


# ----------------------------- conv branch wrapper ----------------------------
@functools.partial(jax.jit, static_argnames=("act", "layer_norm"))
def output_wrapper_conv(x, conv_w, conv_b, state, act="relu", layer_norm=True):
    """x: (B, H, W, C); conv_w: (O, C, 4, 4); conv_b: (O,).
    Returns ((B, 2W, 2H, O), state), matching OutputWrapper's conv branch."""
    B, H, W, C = x.shape
    O = conv_w.shape[0]
    P, Q = 4 * H, 4 * W          # F.interpolate target size (4*x.size(1), 4*x.size(2))
    Ho, Qo = 2 * H, 2 * W        # conv output spatial dims (k=4, s=2, p=1)
    N = Qo * Ho
    O_pad = _round_up(O, 128)    # lane-dense output / weight columns

    # Glue: ONE compact gather straight from x (no 16x upsampled tensor and no
    # 16x im2col patches in HBM).  The nearest-upsampled conv input (after the
    # module's permute + F.interpolate) is
    #     up[p', q', c] = x[b, (q'*H)//Q, (p'*W)//P, c]
    # and the zero-padded version is sampled on the (2i+r, 2j+s) lattice so the
    # kernel's 16 taps become contiguous window slices.
    i_idx = jnp.arange(Ho + 1)
    j_idx = jnp.arange(Qo + 1)
    parts = []
    for r in range(2):
        p_src = 2 * i_idx + r - 1                       # row in the upsampled image
        vp = (p_src >= 0) & (p_src < P)
        ix = jnp.clip((p_src * W) // P, 0, W - 1)       # -> x's W axis
        for s in range(2):
            q_src = 2 * j_idx + s - 1                   # col in the upsampled image
            vq = (q_src >= 0) & (q_src < Q)
            iy = jnp.clip((q_src * H) // Q, 0, H - 1)   # -> x's H axis
            g = jnp.take(jnp.take(x, iy, axis=1), ix, axis=2)   # (B, Qo+1, Ho+1, C)
            mask = (vq[:, None] & vp[None, :]).astype(x.dtype)
            parts.append(g * mask[None, :, :, None])
    d = jnp.concatenate(parts, axis=0)                  # (4B, Qo+1, Ho+1, C)

    # Per-tap weight matrices (kh, kw) -> (C, O), zero-padded to O_pad lanes.
    w_taps = jnp.transpose(conv_w, (2, 3, 1, 0)).reshape(16, C, O)
    w_taps = jnp.pad(w_taps, ((0, 0), (0, 0), (0, O_pad - O)))
    b_pad = jnp.pad(conv_b, (0, O_pad - O)).reshape(1, 1, O_pad)

    kernel = functools.partial(_conv_fused_kernel, act=act, ln=layer_norm,
                               eps=_LN_EPS, n_real=N * O, Ho=Ho, Qo=Qo)
    itemsize = jnp.dtype(x.dtype).itemsize
    cost = pl.CostEstimate(
        flops=2 * B * N * 16 * C * O_pad + 10 * B * N * O_pad,
        transcendentals=B * N * O_pad if act == "sigmoid" else 0,
        bytes_accessed=(d.size + w_taps.size + b_pad.size + B * N * O_pad) * itemsize)

    y = pl.pallas_call(
        kernel,
        out_shape=jax.ShapeDtypeStruct((B, N, O_pad), x.dtype),
        compiler_params=pltpu.CompilerParams(vmem_limit_bytes=_VMEM_LIMIT),
        cost_estimate=cost,
    )(d, w_taps, b_pad)

    # Kernel rows already enumerate (ow, oh): this reshape IS the final
    # (B, 2W, 2H, O) layout; only the lane padding is sliced away.
    y = y.reshape(B, Qo, Ho, O_pad)[..., :O]
    return y, state


# ----------------------------- linear branch wrapper --------------------------
@functools.partial(jax.jit, static_argnames=("act", "layer_norm"))
def output_wrapper_linear(x, lin_w, lin_b, state, act="relu", layer_norm=True):
    """x: (B, ..., D); lin_w: (F, D); lin_b: (F,). Returns ((B, ..., F), state)."""
    B, D = x.shape[0], x.shape[-1]
    Fo = lin_w.shape[0]
    mid = x.shape[1:-1]
    N = int(np.prod(mid)) if mid else 1
    O_pad = _round_up(Fo, 128)

    x_bnk = x.reshape(B, N, D)
    w_pad = jnp.pad(jnp.transpose(lin_w), ((0, 0), (0, O_pad - Fo)))   # (D, O_pad)
    b_pad = jnp.pad(lin_b, (0, O_pad - Fo)).reshape(1, 1, O_pad)

    kernel = functools.partial(_linear_fused_kernel, act=act, ln=layer_norm,
                               eps=_LN_EPS, n_real=N * Fo)
    itemsize = jnp.dtype(x.dtype).itemsize
    cost = pl.CostEstimate(
        flops=2 * B * N * D * O_pad + 10 * B * N * O_pad,
        transcendentals=B * N * O_pad if act == "sigmoid" else 0,
        bytes_accessed=(x_bnk.size + w_pad.size + b_pad.size + B * N * O_pad) * itemsize)

    y = pl.pallas_call(
        kernel,
        out_shape=jax.ShapeDtypeStruct((B, N, O_pad), x.dtype),
        compiler_params=pltpu.CompilerParams(vmem_limit_bytes=_VMEM_LIMIT),
        cost_estimate=cost,
    )(x_bnk, w_pad, b_pad)
    y = y[..., :Fo].reshape((B,) + mid + (Fo,))
    return y, state


# ----------------------------- pure-JAX references ----------------------------
def _conv_mode_ref(x, conv_w, conv_b, eps=_LN_EPS):
    B, H, W, C = x.shape
    P, Q = 4 * H, 4 * W
    idx_q = (jnp.arange(Q) * H) // Q
    idx_p = (jnp.arange(P) * W) // P
    up = jnp.take(jnp.take(x, idx_q, axis=1), idx_p, axis=2)
    up = jnp.transpose(up, (0, 2, 1, 3))                 # (B, 4H, 4W, C)
    up_nchw = jnp.transpose(up, (0, 3, 1, 2))
    out = jax.lax.conv_general_dilated(
        up_nchw, conv_w, window_strides=(2, 2), padding=((1, 1), (1, 1)),
        dimension_numbers=("NCHW", "OIHW", "NCHW"))
    out = out + conv_b[None, :, None, None]
    proj = jnp.transpose(out, (0, 3, 2, 1))              # (B, 2W, 2H, O)
    m = proj.mean(axis=(1, 2, 3), keepdims=True)
    v = ((proj - m) ** 2).mean(axis=(1, 2, 3), keepdims=True)
    return jnp.maximum((proj - m) / jnp.sqrt(v + eps), 0.0)


def _linear_mode_ref(x, lin_w, lin_b, eps=_LN_EPS, act="relu"):
    proj = x @ lin_w.T + lin_b
    axes = tuple(range(1, proj.ndim))
    m = proj.mean(axis=axes, keepdims=True)
    v = ((proj - m) ** 2).mean(axis=axes, keepdims=True)
    y = (proj - m) / jnp.sqrt(v + eps)
    return jnp.maximum(y, 0.0) if act == "relu" else jax.nn.sigmoid(y)


if __name__ == "__main__":
    key = jax.random.PRNGKey(0)
    k1, k2, k3, k4, k5, k6 = jax.random.split(key, 6)

    # ----- conv mode: OutputWrapper(input_size=(..., 4), output_size=8) -----
    B, H, W, C, O = 2, 8, 8, 4, 8
    x = jax.random.normal(k1, (B, H, W, C), jnp.float32)
    conv_w = jax.random.normal(k2, (O, C, 4, 4), jnp.float32) * 0.1
    conv_b = jax.random.normal(k3, (O,), jnp.float32) * 0.1
    state = jnp.zeros((B, 4), jnp.float32)

    y_conv, state_out = output_wrapper_conv(x, conv_w, conv_b, state)
    y_conv = jax.block_until_ready(y_conv)
    ref_conv = _conv_mode_ref(x, conv_w, conv_b)
    np.testing.assert_allclose(np.asarray(y_conv), np.asarray(ref_conv),
                               atol=1e-3, rtol=1e-3)

    # ----- conv mode, rectangular input (H != W): exercises the crossed
    #       permute+interpolate index math -----
    Hr, Wr = 8, 4
    xr = jax.random.normal(k4, (B, Hr, Wr, C), jnp.float32)
    y_rect, _ = output_wrapper_conv(xr, conv_w, conv_b, state)
    y_rect = jax.block_until_ready(y_rect)
    ref_rect = _conv_mode_ref(xr, conv_w, conv_b)
    np.testing.assert_allclose(np.asarray(y_rect), np.asarray(ref_rect),
                               atol=1e-3, rtol=1e-3)

    # ----- linear mode: OutputWrapper(input_size=(..., 32), fc_output_size=16) -----
    T, D, Fo = 8, 32, 16
    xl = jax.random.normal(k5, (B, T, D), jnp.float32)
    lin_w = jax.random.normal(k6, (Fo, D), jnp.float32) * 0.1
    lin_b = jax.random.normal(k1, (Fo,), jnp.float32) * 0.1

    y_lin, _ = output_wrapper_linear(xl, lin_w, lin_b, state)
    y_lin = jax.block_until_ready(y_lin)
    ref_lin = _linear_mode_ref(xl, lin_w, lin_b)
    np.testing.assert_allclose(np.asarray(y_lin), np.asarray(ref_lin),
                               atol=1e-3, rtol=1e-3)

    # ----- linear mode, sigmoid activation path -----
    y_sig, _ = output_wrapper_linear(xl, lin_w, lin_b, state, act="sigmoid")
    y_sig = jax.block_until_ready(y_sig)
    ref_sig = _linear_mode_ref(xl, lin_w, lin_b, act="sigmoid")
    np.testing.assert_allclose(np.asarray(y_sig), np.asarray(ref_sig),
                               atol=1e-3, rtol=1e-3)

    print("KERNEL_OK")
</pallas_src>

<mosaic_0001>
module attributes {stable_mosaic.version = 11 : i64} {
  func.func @_conv_fused_kernel(%arg0: memref<8x17x17x4xf32, #tpu.memory_space<vmem>>, %arg1: memref<16x4x128xf32, #tpu.memory_space<vmem>>, %arg2: memref<1x1x128xf32, #tpu.memory_space<vmem>>, %arg3: memref<2x256x128xf32, #tpu.memory_space<vmem>>) attributes {dimension_semantics = [], scalar_prefetch = 0 : i64, scratch_operands = 0 : i64, tpu.core_type = #tpu.core_type<tc>} {
    %cst = arith.constant 0.000000e+00 : f32
    %0 = vector.broadcast %cst : f32 to vector<512x128xf32>
    %c0 = arith.constant 0 : index
    %c0_0 = arith.constant 0 : index
    %c0_1 = arith.constant 0 : index
    %c0_2 = arith.constant 0 : index
    %1 = vector.load %arg0[%c0, %c0_0, %c0_1, %c0_2] : memref<8x17x17x4xf32, #tpu.memory_space<vmem>>, vector<2x16x16x4xf32>
    %2 = vector.shape_cast %1 : vector<2x16x16x4xf32> to vector<512x4xf32>
    %c0_3 = arith.constant 0 : index
    %c0_4 = arith.constant 0 : index
    %c0_5 = arith.constant 0 : index
    %3 = vector.load %arg1[%c0_3, %c0_4, %c0_5] : memref<16x4x128xf32, #tpu.memory_space<vmem>>, vector<1x4x128xf32>
    %4 = vector.shape_cast %3 : vector<1x4x128xf32> to vector<4x128xf32>
    %cst_6 = arith.constant dense<0.000000e+00> : vector<512x128xf32>
    %5 = tpu.matmul %2, %4, %cst_6 {dimension_numbers = #tpu.dot_dimension_numbers<[1], [0], [0], [1], [0, 0, 1, 1], [], []>} : vector<512x4xf32>, vector<4x128xf32>, vector<512x128xf32> -> vector<512x128xf32>
    %6 = arith.addf %0, %5 : vector<512x128xf32>
    %c2 = arith.constant 2 : index
    %c0_7 = arith.constant 0 : index
    %c0_8 = arith.constant 0 : index
    %c0_9 = arith.constant 0 : index
    %7 = vector.load %arg0[%c2, %c0_7, %c0_8, %c0_9] : memref<8x17x17x4xf32, #tpu.memory_space<vmem>>, vector<2x16x16x4xf32>
    %8 = vector.shape_cast %7 : vector<2x16x16x4xf32> to vector<512x4xf32>
    %c1 = arith.constant 1 : index
    %c0_10 = arith.constant 0 : index
    %c0_11 = arith.constant 0 : index
    %9 = vector.load %arg1[%c1, %c0_10, %c0_11] : memref<16x4x128xf32, #tpu.memory_space<vmem>>, vector<1x4x128xf32>
    %10 = vector.shape_cast %9 : vector<1x4x128xf32> to vector<4x128xf32>
    %cst_12 = arith.constant dense<0.000000e+00> : vector<512x128xf32>
    %11 = tpu.matmul %8, %10, %cst_12 {dimension_numbers = #tpu.dot_dimension_numbers<[1], [0], [0], [1], [0, 0, 1, 1], [], []>} : vector<512x4xf32>, vector<4x128xf32>, vector<512x128xf32> -> vector<512x128xf32>
    %12 = arith.addf %6, %11 : vector<512x128xf32>
    %c0_13 = arith.constant 0 : index
    %c1_14 = arith.constant 1 : index
    %c0_15 = arith.constant 0 : index
    %c0_16 = arith.constant 0 : index
    %13 = vector.load %arg0[%c0_13, %c1_14, %c0_15, %c0_16] : memref<8x17x17x4xf32, #tpu.memory_space<vmem>>, vector<2x16x16x4xf32>
    %14 = vector.shape_cast %13 : vector<2x16x16x4xf32> to vector<512x4xf32>
    %c2_17 = arith.constant 2 : index
    %c0_18 = arith.constant 0 : index
    %c0_19 = arith.constant 0 : index
    %15 = vector.load %arg1[%c2_17, %c0_18, %c0_19] : memref<16x4x128xf32, #tpu.memory_space<vmem>>, vector<1x4x128xf32>
    %16 = vector.shape_cast %15 : vector<1x4x128xf32> to vector<4x128xf32>
    %cst_20 = arith.constant dense<0.000000e+00> : vector<512x128xf32>
    %17 = tpu.matmul %14, %16, %cst_20 {dimension_numbers = #tpu.dot_dimension_numbers<[1], [0], [0], [1], [0, 0, 1, 1], [], []>} : vector<512x4xf32>, vector<4x128xf32>, vector<512x128xf32> -> vector<512x128xf32>
    %18 = arith.addf %12, %17 : vector<512x128xf32>
    %c2_21 = arith.constant 2 : index
    %c1_22 = arith.constant 1 : index
    %c0_23 = arith.constant 0 : index
    %c0_24 = arith.constant 0 : index
    %19 = vector.load %arg0[%c2_21, %c1_22, %c0_23, %c0_24] : memref<8x17x17x4xf32, #tpu.memory_space<vmem>>, vector<2x16x16x4xf32>
    %20 = vector.shape_cast %19 : vector<2x16x16x4xf32> to vector<512x4xf32>
    %c3 = arith.constant 3 : index
    %c0_25 = arith.constant 0 : index
    %c0_26 = arith.constant 0 : index
    %21 = vector.load %arg1[%c3, %c0_25, %c0_26] : memref<16x4x128xf32, #tpu.memory_space<vmem>>, vector<1x4x128xf32>
    %22 = vector.shape_cast %21 : vector<1x4x128xf32> to vector<4x128xf32>
    %cst_27 = arith.constant dense<0.000000e+00> : vector<512x128xf32>
    %23 = tpu.matmul %20, %22, %cst_27 {dimension_numbers = #tpu.dot_dimension_numbers<[1], [0], [0], [1], [0, 0, 1, 1], [], []>} : vector<512x4xf32>, vector<4x128xf32>, vector<512x128xf32> -> vector<512x128xf32>
    %24 = arith.addf %18, %23 : vector<512x128xf32>
    %c4 = arith.constant 4 : index
    %c0_28 = arith.constant 0 : index
    %c0_29 = arith.constant 0 : index
    %c0_30 = arith.constant 0 : index
    %25 = vector.load %arg0[%c4, %c0_28, %c0_29, %c0_30] : memref<8x17x17x4xf32, #tpu.memory_space<vmem>>, vector<2x16x16x4xf32>
    %26 = vector.shape_cast %25 : vector<2x16x16x4xf32> to vector<512x4xf32>
    %c4_31 = arith.constant 4 : index
    %c0_32 = arith.constant 0 : index
    %c0_33 = arith.constant 0 : index
    %27 = vector.load %arg1[%c4_31, %c0_32, %c0_33] : memref<16x4x128xf32, #tpu.memory_space<vmem>>, vector<1x4x128xf32>
    %28 = vector.shape_cast %27 : vector<1x4x128xf32> to vector<4x128xf32>
    %cst_34 = arith.constant dense<0.000000e+00> : vector<512x128xf32>
    %29 = tpu.matmul %26, %28, %cst_34 {dimension_numbers = #tpu.dot_dimension_numbers<[1], [0], [0], [1], [0, 0, 1, 1], [], []>} : vector<512x4xf32>, vector<4x128xf32>, vector<512x128xf32> -> vector<512x128xf32>
    %30 = arith.addf %24, %29 : vector<512x128xf32>
    %c6 = arith.constant 6 : index
    %c0_35 = arith.constant 0 : index
    %c0_36 = arith.constant 0 : index
    %c0_37 = arith.constant 0 : index
    %31 = vector.load %arg0[%c6, %c0_35, %c0_36, %c0_37] : memref<8x17x17x4xf32, #tpu.memory_space<vmem>>, vector<2x16x16x4xf32>
    %32 = vector.shape_cast %31 : vector<2x16x16x4xf32> to vector<512x4xf32>
    %c5 = arith.constant 5 : index
    %c0_38 = arith.constant 0 : index
    %c0_39 = arith.constant 0 : index
    %33 = vector.load %arg1[%c5, %c0_38, %c0_39] : memref<16x4x128xf32, #tpu.memory_space<vmem>>, vector<1x4x128xf32>
    %34 = vector.shape_cast %33 : vector<1x4x128xf32> to vector<4x128xf32>
    %cst_40 = arith.constant dense<0.000000e+00> : vector<512x128xf32>
    %35 = tpu.matmul %32, %34, %cst_40 {dimension_numbers = #tpu.dot_dimension_numbers<[1], [0], [0], [1], [0, 0, 1, 1], [], []>} : vector<512x4xf32>, vector<4x128xf32>, vector<512x128xf32> -> vector<512x128xf32>
    %36 = arith.addf %30, %35 : vector<512x128xf32>
    %c4_41 = arith.constant 4 : index
    %c1_42 = arith.constant 1 : index
    %c0_43 = arith.constant 0 : index
    %c0_44 = arith.constant 0 : index
    %37 = vector.load %arg0[%c4_41, %c1_42, %c0_43, %c0_44] : memref<8x17x17x4xf32, #tpu.memory_space<vmem>>, vector<2x16x16x4xf32>
    %38 = vector.shape_cast %37 : vector<2x16x16x4xf32> to vector<512x4xf32>
    %c6_45 = arith.constant 6 : index
    %c0_46 = arith.constant 0 : index
    %c0_47 = arith.constant 0 : index
    %39 = vector.load %arg1[%c6_45, %c0_46, %c0_47] : memref<16x4x128xf32, #tpu.memory_space<vmem>>, vector<1x4x128xf32>
    %40 = vector.shape_cast %39 : vector<1x4x128xf32> to vector<4x128xf32>
    %cst_48 = arith.constant dense<0.000000e+00> : vector<512x128xf32>
    %41 = tpu.matmul %38, %40, %cst_48 {dimension_numbers = #tpu.dot_dimension_numbers<[1], [0], [0], [1], [0, 0, 1, 1], [], []>} : vector<512x4xf32>, vector<4x128xf32>, vector<512x128xf32> -> vector<512x128xf32>
    %42 = arith.addf %36, %41 : vector<512x128xf32>
    %c6_49 = arith.constant 6 : index
    %c1_50 = arith.constant 1 : index
    %c0_51 = arith.constant 0 : index
    %c0_52 = arith.constant 0 : index
    %43 = vector.load %arg0[%c6_49, %c1_50, %c0_51, %c0_52] : memref<8x17x17x4xf32, #tpu.memory_space<vmem>>, vector<2x16x16x4xf32>
    %44 = vector.shape_cast %43 : vector<2x16x16x4xf32> to vector<512x4xf32>
    %c7 = arith.constant 7 : index
    %c0_53 = arith.constant 0 : index
    %c0_54 = arith.constant 0 : index
    %45 = vector.load %arg1[%c7, %c0_53, %c0_54] : memref<16x4x128xf32, #tpu.memory_space<vmem>>, vector<1x4x128xf32>
    %46 = vector.shape_cast %45 : vector<1x4x128xf32> to vector<4x128xf32>
    %cst_55 = arith.constant dense<0.000000e+00> : vector<512x128xf32>
    %47 = tpu.matmul %44, %46, %cst_55 {dimension_numbers = #tpu.dot_dimension_numbers<[1], [0], [0], [1], [0, 0, 1, 1], [], []>} : vector<512x4xf32>, vector<4x128xf32>, vector<512x128xf32> -> vector<512x128xf32>
    %48 = arith.addf %42, %47 : vector<512x128xf32>
    %c0_56 = arith.constant 0 : index
    %c0_57 = arith.constant 0 : index
    %c1_58 = arith.constant 1 : index
    %c0_59 = arith.constant 0 : index
    %49 = vector.load %arg0[%c0_56, %c0_57, %c1_58, %c0_59] : memref<8x17x17x4xf32, #tpu.memory_space<vmem>>, vector<2x16x16x4xf32>
    %50 = vector.shape_cast %49 : vector<2x16x16x4xf32> to vector<512x4xf32>
    %c8 = arith.constant 8 : index
    %c0_60 = arith.constant 0 : index
    %c0_61 = arith.constant 0 : index
    %51 = vector.load %arg1[%c8, %c0_60, %c0_61] : memref<16x4x128xf32, #tpu.memory_space<vmem>>, vector<1x4x128xf32>
    %52 = vector.shape_cast %51 : vector<1x4x128xf32> to vector<4x128xf32>
    %cst_62 = arith.constant dense<0.000000e+00> : vector<512x128xf32>
    %53 = tpu.matmul %50, %52, %cst_62 {dimension_numbers = #tpu.dot_dimension_numbers<[1], [0], [0], [1], [0, 0, 1, 1], [], []>} : vector<512x4xf32>, vector<4x128xf32>, vector<512x128xf32> -> vector<512x128xf32>
    %54 = arith.addf %48, %53 : vector<512x128xf32>
    %c2_63 = arith.constant 2 : index
    %c0_64 = arith.constant 0 : index
    %c1_65 = arith.constant 1 : index
    %c0_66 = arith.constant 0 : index
    %55 = vector.load %arg0[%c2_63, %c0_64, %c1_65, %c0_66] : memref<8x17x17x4xf32, #tpu.memory_space<vmem>>, vector<2x16x16x4xf32>
    %56 = vector.shape_cast %55 : vector<2x16x16x4xf32> to vector<512x4xf32>
    %c9 = arith.constant 9 : index
    %c0_67 = arith.constant 0 : index
    %c0_68 = arith.constant 0 : index
    %57 = vector.load %arg1[%c9, %c0_67, %c0_68] : memref<16x4x128xf32, #tpu.memory_space<vmem>>, vector<1x4x128xf32>
    %58 = vector.shape_cast %57 : vector<1x4x128xf32> to vector<4x128xf32>
    %cst_69 = arith.constant dense<0.000000e+00> : vector<512x128xf32>
    %59 = tpu.matmul %56, %58, %cst_69 {dimension_numbers = #tpu.dot_dimension_numbers<[1], [0], [0], [1], [0, 0, 1, 1], [], []>} : vector<512x4xf32>, vector<4x128xf32>, vector<512x128xf32> -> vector<512x128xf32>
    %60 = arith.addf %54, %59 : vector<512x128xf32>
    %c0_70 = arith.constant 0 : index
    %c1_71 = arith.constant 1 : index
    %c1_72 = arith.constant 1 : index
    %c0_73 = arith.constant 0 : index
    %61 = vector.load %arg0[%c0_70, %c1_71, %c1_72, %c0_73] : memref<8x17x17x4xf32, #tpu.memory_space<vmem>>, vector<2x16x16x4xf32>
    %62 = vector.shape_cast %61 : vector<2x16x16x4xf32> to vector<512x4xf32>
    %c10 = arith.constant 10 : index
    %c0_74 = arith.constant 0 : index
    %c0_75 = arith.constant 0 : index
    %63 = vector.load %arg1[%c10, %c0_74, %c0_75] : memref<16x4x128xf32, #tpu.memory_space<vmem>>, vector<1x4x128xf32>
    %64 = vector.shape_cast %63 : vector<1x4x128xf32> to vector<4x128xf32>
    %cst_76 = arith.constant dense<0.000000e+00> : vector<512x128xf32>
    %65 = tpu.matmul %62, %64, %cst_76 {dimension_numbers = #tpu.dot_dimension_numbers<[1], [0], [0], [1], [0, 0, 1, 1], [], []>} : vector<512x4xf32>, vector<4x128xf32>, vector<512x128xf32> -> vector<512x128xf32>
    %66 = arith.addf %60, %65 : vector<512x128xf32>
    %c2_77 = arith.constant 2 : index
    %c1_78 = arith.constant 1 : index
    %c1_79 = arith.constant 1 : index
    %c0_80 = arith.constant 0 : index
    %67 = vector.load %arg0[%c2_77, %c1_78, %c1_79, %c0_80] : memref<8x17x17x4xf32, #tpu.memory_space<vmem>>, vector<2x16x16x4xf32>
    %68 = vector.shape_cast %67 : vector<2x16x16x4xf32> to vector<512x4xf32>
    %c11 = arith.constant 11 : index
    %c0_81 = arith.constant 0 : index
    %c0_82 = arith.constant 0 : index
    %69 = vector.load %arg1[%c11, %c0_81, %c0_82] : memref<16x4x128xf32, #tpu.memory_space<vmem>>, vector<1x4x128xf32>
    %70 = vector.shape_cast %69 : vector<1x4x128xf32> to vector<4x128xf32>
    %cst_83 = arith.constant dense<0.000000e+00> : vector<512x128xf32>
    %71 = tpu.matmul %68, %70, %cst_83 {dimension_numbers = #tpu.dot_dimension_numbers<[1], [0], [0], [1], [0, 0, 1, 1], [], []>} : vector<512x4xf32>, vector<4x128xf32>, vector<512x128xf32> -> vector<512x128xf32>
    %72 = arith.addf %66, %71 : vector<512x128xf32>
    %c4_84 = arith.constant 4 : index
    %c0_85 = arith.constant 0 : index
    %c1_86 = arith.constant 1 : index
    %c0_87 = arith.constant 0 : index
    %73 = vector.load %arg0[%c4_84, %c0_85, %c1_86, %c0_87] : memref<8x17x17x4xf32, #tpu.memory_space<vmem>>, vector<2x16x16x4xf32>
    %74 = vector.shape_cast %73 : vector<2x16x16x4xf32> to vector<512x4xf32>
    %c12 = arith.constant 12 : index
    %c0_88 = arith.constant 0 : index
    %c0_89 = arith.constant 0 : index
    %75 = vector.load %arg1[%c12, %c0_88, %c0_89] : memref<16x4x128xf32, #tpu.memory_space<vmem>>, vector<1x4x128xf32>
    %76 = vector.shape_cast %75 : vector<1x4x128xf32> to vector<4x128xf32>
    %cst_90 = arith.constant dense<0.000000e+00> : vector<512x128xf32>
    %77 = tpu.matmul %74, %76, %cst_90 {dimension_numbers = #tpu.dot_dimension_numbers<[1], [0], [0], [1], [0, 0, 1, 1], [], []>} : vector<512x4xf32>, vector<4x128xf32>, vector<512x128xf32> -> vector<512x128xf32>
    %78 = arith.addf %72, %77 : vector<512x128xf32>
    %c6_91 = arith.constant 6 : index
    %c0_92 = arith.constant 0 : index
    %c1_93 = arith.constant 1 : index
    %c0_94 = arith.constant 0 : index
    %79 = vector.load %arg0[%c6_91, %c0_92, %c1_93, %c0_94] : memref<8x17x17x4xf32, #tpu.memory_space<vmem>>, vector<2x16x16x4xf32>
    %80 = vector.shape_cast %79 : vector<2x16x16x4xf32> to vector<512x4xf32>
    %c13 = arith.constant 13 : index
    %c0_95 = arith.constant 0 : index
    %c0_96 = arith.constant 0 : index
    %81 = vector.load %arg1[%c13, %c0_95, %c0_96] : memref<16x4x128xf32, #tpu.memory_space<vmem>>, vector<1x4x128xf32>
    %82 = vector.shape_cast %81 : vector<1x4x128xf32> to vector<4x128xf32>
    %cst_97 = arith.constant dense<0.000000e+00> : vector<512x128xf32>
    %83 = tpu.matmul %80, %82, %cst_97 {dimension_numbers = #tpu.dot_dimension_numbers<[1], [0], [0], [1], [0, 0, 1, 1], [], []>} : vector<512x4xf32>, vector<4x128xf32>, vector<512x128xf32> -> vector<512x128xf32>
    %84 = arith.addf %78, %83 : vector<512x128xf32>
    %c4_98 = arith.constant 4 : index
    %c1_99 = arith.constant 1 : index
    %c1_100 = arith.constant 1 : index
    %c0_101 = arith.constant 0 : index
    %85 = vector.load %arg0[%c4_98, %c1_99, %c1_100, %c0_101] : memref<8x17x17x4xf32, #tpu.memory_space<vmem>>, vector<2x16x16x4xf32>
    %86 = vector.shape_cast %85 : vector<2x16x16x4xf32> to vector<512x4xf32>
    %c14 = arith.constant 14 : index
    %c0_102 = arith.constant 0 : index
    %c0_103 = arith.constant 0 : index
    %87 = vector.load %arg1[%c14, %c0_102, %c0_103] : memref<16x4x128xf32, #tpu.memory_space<vmem>>, vector<1x4x128xf32>
    %88 = vector.shape_cast %87 : vector<1x4x128xf32> to vector<4x128xf32>
    %cst_104 = arith.constant dense<0.000000e+00> : vector<512x128xf32>
    %89 = tpu.matmul %86, %88, %cst_104 {dimension_numbers = #tpu.dot_dimension_numbers<[1], [0], [0], [1], [0, 0, 1, 1], [], []>} : vector<512x4xf32>, vector<4x128xf32>, vector<512x128xf32> -> vector<512x128xf32>
    %90 = arith.addf %84, %89 : vector<512x128xf32>
    %c6_105 = arith.constant 6 : index
    %c1_106 = arith.constant 1 : index
    %c1_107 = arith.constant 1 : index
    %c0_108 = arith.constant 0 : index
    %91 = vector.load %arg0[%c6_105, %c1_106, %c1_107, %c0_108] : memref<8x17x17x4xf32, #tpu.memory_space<vmem>>, vector<2x16x16x4xf32>
    %92 = vector.shape_cast %91 : vector<2x16x16x4xf32> to vector<512x4xf32>
    %c15 = arith.constant 15 : index
    %c0_109 = arith.constant 0 : index
    %c0_110 = arith.constant 0 : index
    %93 = vector.load %arg1[%c15, %c0_109, %c0_110] : memref<16x4x128xf32, #tpu.memory_space<vmem>>, vector<1x4x128xf32>
    %94 = vector.shape_cast %93 : vector<1x4x128xf32> to vector<4x128xf32>
    %cst_111 = arith.constant dense<0.000000e+00> : vector<512x128xf32>
    %95 = tpu.matmul %92, %94, %cst_111 {dimension_numbers = #tpu.dot_dimension_numbers<[1], [0], [0], [1], [0, 0, 1, 1], [], []>} : vector<512x4xf32>, vector<4x128xf32>, vector<512x128xf32> -> vector<512x128xf32>
    %96 = arith.addf %90, %95 : vector<512x128xf32>
    %97 = vector.shape_cast %96 : vector<512x128xf32> to vector<2x256x128xf32>
    %c0_112 = arith.constant 0 : index
    %c0_113 = arith.constant 0 : index
    %c0_114 = arith.constant 0 : index
    %98 = vector.load %arg2[%c0_112, %c0_113, %c0_114] : memref<1x1x128xf32, #tpu.memory_space<vmem>>, vector<1x1x128xf32>
    %99 = vector.broadcast %98 : vector<1x1x128xf32> to vector<2x256x128xf32>
    %100 = arith.addf %97, %99 : vector<2x256x128xf32>
    %cst_115 = arith.constant dense<0.000000e+00> : vector<2x256xf32>
    %101 = vector.multi_reduction <add>, %100, %cst_115 [2] : vector<2x256x128xf32> to vector<2x256xf32>
    %102 = vector.shape_cast %101 : vector<2x256xf32> to vector<2x256x1xf32>
    %cst_116 = arith.constant dense<0.000000e+00> : vector<2x1xf32>
    %103 = vector.multi_reduction <add>, %102, %cst_116 [1] : vector<2x256x1xf32> to vector<2x1xf32>
    %104 = vector.shape_cast %103 : vector<2x1xf32> to vector<2x1x1xf32>
    %105 = arith.mulf %100, %100 : vector<2x256x128xf32>
    %cst_117 = arith.constant dense<0.000000e+00> : vector<2x256xf32>
    %106 = vector.multi_reduction <add>, %105, %cst_117 [2] : vector<2x256x128xf32> to vector<2x256xf32>
    %107 = vector.shape_cast %106 : vector<2x256xf32> to vector<2x256x1xf32>
    %cst_118 = arith.constant dense<0.000000e+00> : vector<2x1xf32>
    %108 = vector.multi_reduction <add>, %107, %cst_118 [1] : vector<2x256x1xf32> to vector<2x1xf32>
    %109 = vector.shape_cast %108 : vector<2x1xf32> to vector<2x1x1xf32>
    %cst_119 = arith.constant 4.8828125E-4 : f32
    %110 = vector.broadcast %cst_119 : f32 to vector<2x1x1xf32>
    %111 = arith.mulf %104, %110 : vector<2x1x1xf32>
    %cst_120 = arith.constant 4.8828125E-4 : f32
    %112 = vector.broadcast %cst_120 : f32 to vector<2x1x1xf32>
    %113 = arith.mulf %109, %112 : vector<2x1x1xf32>
    %114 = arith.mulf %111, %111 : vector<2x1x1xf32>
    %115 = arith.subf %113, %114 : vector<2x1x1xf32>
    %cst_121 = arith.constant 0.000000e+00 : f32
    %116 = vector.broadcast %cst_121 : f32 to vector<2x1x1xf32>
    %117 = arith.maximumf %115, %116 : vector<2x1x1xf32>
    %118 = vector.broadcast %111 : vector<2x1x1xf32> to vector<2x256x128xf32>
    %119 = arith.subf %100, %118 : vector<2x256x128xf32>
    %cst_122 = arith.constant 9.99999974E-6 : f32
    %120 = vector.broadcast %cst_122 : f32 to vector<2x1x1xf32>
    %121 = arith.addf %117, %120 : vector<2x1x1xf32>
    %122 = math.rsqrt %121 : vector<2x1x1xf32>
    %123 = vector.broadcast %122 : vector<2x1x1xf32> to vector<2x256x128xf32>
    %124 = arith.mulf %119, %123 : vector<2x256x128xf32>
    %cst_123 = arith.constant 0.000000e+00 : f32
    %125 = vector.broadcast %cst_123 : f32 to vector<2x256x128xf32>
    %126 = arith.maximumf %124, %125 : vector<2x256x128xf32>
    %c0_124 = arith.constant 0 : index
    %c0_125 = arith.constant 0 : index
    %c0_126 = arith.constant 0 : index
    %127 = vector.load %arg3[%c0_124, %c0_125, %c0_126] : memref<2x256x128xf32, #tpu.memory_space<vmem>>, vector<2x256x128xf32>
    tpu.vector_store %arg3[%c0_124, %c0_125, %c0_126], %126 {strides = array<i32>} : memref<2x256x128xf32, #tpu.memory_space<vmem>>, vector<2x256x128xf32>,
    return
  }
}

</mosaic_0001>

<llo_original>
// kernel: output_wrapper_conv.1
$region0: #{output_wrapper_conv.1}
  #allocation0 [shape = 'u32[]', space=smem, size = 0x4, offset = 0x4, fixed_abs, tag = 'smem constant byte address 0x4 - core index']
  #allocation1 [shape = 'u32[72,128]{1,0:T(1,128)}', space=vmem, size = 0x9000, scoped, tag = 'internal scratch']
  %s0 = inlined_call_operand.vmem [shape: f32[8,17,17,4], index: 0, kind: input, shape index: {}]
  %s1 = inlined_call_operand.vmem [shape: f32[16,4,128], index: 1, kind: input, shape index: {}]
  %s2 = inlined_call_operand.vmem [shape: f32[1,1,128], index: 2, kind: input, shape index: {}]
  %s3 = inlined_call_operand.vmem [shape: f32[2,256,128], index: 3, kind: output, shape index: {}]
  %s4 = sld [smem:[#allocation0]]
  $region22: #{output_wrapper_conv.1} parent=0
    _
  %s6 = ssub.s32 1, %s4
  %s7 = scalar_select 0, %s6, %s4
  // Predicated region
  $region2: #{output_wrapper_conv.1} parent=0 // pred_check
    _
  $region3: #{output_wrapper_conv.1} parent=0 // pred_check_branch
    %9 = sbr.rel (0) target = $region5
  $region4: #{output_wrapper_conv.1} parent=0 // pred_region
    _
  $region5: #{output_wrapper_conv.1} parent=0 // pred_fallthru
    _
  // Predicated region
  $region6: #{output_wrapper_conv.1} parent=0 // pred_check
    _
  $region7: #{output_wrapper_conv.1} parent=0 // pred_check_branch
    %11 = sbr.rel (0) target = $region9
  $region8: #{output_wrapper_conv.1} parent=0 // pred_region
    _
  $region9: #{output_wrapper_conv.1} parent=0 // pred_fallthru
    _
  // Predicated region
  $region10: #{output_wrapper_conv.1} parent=0 // pred_check
    _
  $region11: #{output_wrapper_conv.1} parent=0 // pred_check_branch
    %13 = sbr.rel (0) target = $region13
  $region12: #{output_wrapper_conv.1} parent=0 // pred_region
    _
  $region13: #{output_wrapper_conv.1} parent=0 // pred_fallthru
    _
  %v14 = vld [vmem:[%s0] sm:$0xff]
  %v15 = vld [vmem:[%s0 + $0x8] sm:$0xff]
  %v16 = vld [vmem:[%s0 + $0x18] sm:$0xff]
  %v17 = vld [vmem:[%s0 + $0x20] sm:$0xff]
  %v18 = vld [vmem:[%s0 + $0x30] sm:$0xff]
  %v19 = vld [vmem:[%s0 + $0x38] sm:$0xff]
  %v20 = vld [vmem:[%s0 + $0x48] sm:$0xff]
  %v21 = vld [vmem:[%s0 + $0x50] sm:$0xff]
  %v22 = vld [vmem:[%s0 + $0x60] sm:$0xff]
  %v23 = vld [vmem:[%s0 + $0x68] sm:$0xff]
  %v24 = vld [vmem:[%s0 + $0x78] sm:$0xff]
  %v25 = vld [vmem:[%s0 + $0x80] sm:$0xff]
  %v26 = vld [vmem:[%s0 + $0x90] sm:$0xff]
  %v27 = vld [vmem:[%s0 + $0x98] sm:$0xff]
  %v28 = vld [vmem:[%s0 + $0xa8] sm:$0xff]
  %v29 = vld [vmem:[%s0 + $0xb0] sm:$0xff]
  %v30 = vld [vmem:[%s0 + $0xc0] sm:$0xff]
  %v31 = vld [vmem:[%s0 + $0xc8] sm:$0xff]
  %v32 = vld [vmem:[%s0 + $0xd8] sm:$0xff]
  %v33 = vld [vmem:[%s0 + $0xe0] sm:$0xff]
  %v34 = vld [vmem:[%s0 + $0xf0] sm:$0xff]
  %v35 = vld [vmem:[%s0 + $0xf8] sm:$0xff]
  %v36 = vld [vmem:[%s0 + $0x108] sm:$0xff]
  %v37 = vld [vmem:[%s0 + $0x110] sm:$0xff]
  %v38 = vld [vmem:[%s0 + $0x120] sm:$0xff]
  %v39 = vld [vmem:[%s0 + $0x128] sm:$0xff]
  %v40 = vld [vmem:[%s0 + $0x138] sm:$0xff]
  %v41 = vld [vmem:[%s0 + $0x140] sm:$0xff]
  %v42 = vld [vmem:[%s0 + $0x150] sm:$0xff]
  %v43 = vld [vmem:[%s0 + $0x158] sm:$0xff]
  %v44 = vld [vmem:[%s0 + $0x168] sm:$0xff]
  %v45 = vld [vmem:[%s0 + $0x170] sm:$0xff]
  %v46 = vld [vmem:[%s0 + $0x198] sm:$0xff]
  %v47 = vld [vmem:[%s0 + $0x1a0] sm:$0xff]
  %v48 = vld [vmem:[%s0 + $0x1b0] sm:$0xff]
  %v49 = vld [vmem:[%s0 + $0x1b8] sm:$0xff]
  %v50 = vld [vmem:[%s0 + $0x1c8] sm:$0xff]
  %v51 = vld [vmem:[%s0 + $0x1d0] sm:$0xff]
  %v52 = vld [vmem:[%s0 + $0x1e0] sm:$0xff]
  %v53 = vld [vmem:[%s0 + $0x1e8] sm:$0xff]
  %v54 = vld [vmem:[%s0 + $0x1f8] sm:$0xff]
  %v55 = vld [vmem:[%s0 + $0x200] sm:$0xff]
  %v56 = vld [vmem:[%s0 + $0x210] sm:$0xff]
  %v57 = vld [vmem:[%s0 + $0x218] sm:$0xff]
  %v58 = vld [vmem:[%s0 + $0x228] sm:$0xff]
  %v59 = vld [vmem:[%s0 + $0x230] sm:$0xff]
  %v60 = vld [vmem:[%s0 + $0x240] sm:$0xff]
  %v61 = vld [vmem:[%s0 + $0x248] sm:$0xff]
  %v62 = vld [vmem:[%s0 + $0x258] sm:$0xff]
  %v63 = vld [vmem:[%s0 + $0x260] sm:$0xff]
  %v64 = vld [vmem:[%s0 + $0x270] sm:$0xff]
  %v65 = vld [vmem:[%s0 + $0x278] sm:$0xff]
  %v66 = vld [vmem:[%s0 + $0x288] sm:$0xff]
  %v67 = vld [vmem:[%s0 + $0x290] sm:$0xff]
  %v68 = vld [vmem:[%s0 + $0x2a0] sm:$0xff]
  %v69 = vld [vmem:[%s0 + $0x2a8] sm:$0xff]
  %v70 = vld [vmem:[%s0 + $0x2b8] sm:$0xff]
  %v71 = vld [vmem:[%s0 + $0x2c0] sm:$0xff]
  %v72 = vld [vmem:[%s0 + $0x2d0] sm:$0xff]
  %v73 = vld [vmem:[%s0 + $0x2d8] sm:$0xff]
  %v74 = vld [vmem:[%s0 + $0x2e8] sm:$0xff]
  %v75 = vld [vmem:[%s0 + $0x2f0] sm:$0xff]
  %v76 = vld [vmem:[%s0 + $0x300] sm:$0xff]
  %v77 = vld [vmem:[%s0 + $0x308] sm:$0xff]
  %v78 = vld [vmem:[%s1] sm:$0xf]
  %s79 = scalar_lea.vmem %s0, 816
  %v80 = vld [vmem:[%s79] sm:$0xff]
  %v81 = vld [vmem:[%s79 + $0x8] sm:$0xff]
  %v82 = vld [vmem:[%s79 + $0x18] sm:$0xff]
  %v83 = vld [vmem:[%s79 + $0x20] sm:$0xff]
  %v84 = vld [vmem:[%s79 + $0x30] sm:$0xff]
  %v85 = vld [vmem:[%s79 + $0x38] sm:$0xff]
  %v86 = vld [vmem:[%s79 + $0x48] sm:$0xff]
  %v87 = vld [vmem:[%s79 + $0x50] sm:$0xff]
  %v88 = vld [vmem:[%s79 + $0x60] sm:$0xff]
  %v89 = vld [vmem:[%s79 + $0x68] sm:$0xff]
  %v90 = vld [vmem:[%s79 + $0x78] sm:$0xff]
  %v91 = vld [vmem:[%s79 + $0x80] sm:$0xff]
  %v92 = vld [vmem:[%s79 + $0x90] sm:$0xff]
  %v93 = vld [vmem:[%s79 + $0x98] sm:$0xff]
  %v94 = vld [vmem:[%s79 + $0xa8] sm:$0xff]
  %v95 = vld [vmem:[%s79 + $0xb0] sm:$0xff]
  %v96 = vld [vmem:[%s79 + $0xc0] sm:$0xff]
  %v97 = vld [vmem:[%s79 + $0xc8] sm:$0xff]
  %v98 = vld [vmem:[%s79 + $0xd8] sm:$0xff]
  %v99 = vld [vmem:[%s79 + $0xe0] sm:$0xff]
  %v100 = vld [vmem:[%s79 + $0xf0] sm:$0xff]
  %v101 = vld [vmem:[%s79 + $0xf8] sm:$0xff]
  %v102 = vld [vmem:[%s79 + $0x108] sm:$0xff]
  %v103 = vld [vmem:[%s79 + $0x110] sm:$0xff]
  %v104 = vld [vmem:[%s79 + $0x120] sm:$0xff]
  %v105 = vld [vmem:[%s79 + $0x128] sm:$0xff]
  %v106 = vld [vmem:[%s79 + $0x138] sm:$0xff]
  %v107 = vld [vmem:[%s79 + $0x140] sm:$0xff]
  %v108 = vld [vmem:[%s79 + $0x150] sm:$0xff]
  %v109 = vld [vmem:[%s79 + $0x158] sm:$0xff]
  %v110 = vld [vmem:[%s79 + $0x168] sm:$0xff]
  %v111 = vld [vmem:[%s79 + $0x170] sm:$0xff]
  %v112 = vld [vmem:[%s79 + $0x198] sm:$0xff]
  %v113 = vld [vmem:[%s79 + $0x1a0] sm:$0xff]
  %v114 = vld [vmem:[%s79 + $0x1b0] sm:$0xff]
  %v115 = vld [vmem:[%s79 + $0x1b8] sm:$0xff]
  %v116 = vld [vmem:[%s79 + $0x1c8] sm:$0xff]
  %v117 = vld [vmem:[%s79 + $0x1d0] sm:$0xff]
  %v118 = vld [vmem:[%s79 + $0x1e0] sm:$0xff]
  %v119 = vld [vmem:[%s79 + $0x1e8] sm:$0xff]
  %v120 = vld [vmem:[%s79 + $0x1f8] sm:$0xff]
  %v121 = vld [vmem:[%s79 + $0x200] sm:$0xff]
  %v122 = vld [vmem:[%s79 + $0x210] sm:$0xff]
  %v123 = vld [vmem:[%s79 + $0x218] sm:$0xff]
  %v124 = vld [vmem:[%s79 + $0x228] sm:$0xff]
  %v125 = vld [vmem:[%s79 + $0x230] sm:$0xff]
  %v126 = vld [vmem:[%s79 + $0x240] sm:$0xff]
  %v127 = vld [vmem:[%s79 + $0x248] sm:$0xff]
  %v128 = vld [vmem:[%s79 + $0x258] sm:$0xff]
  %v129 = vld [vmem:[%s79 + $0x260] sm:$0xff]
  %v130 = vld [vmem:[%s79 + $0x270] sm:$0xff]
  %v131 = vld [vmem:[%s79 + $0x278] sm:$0xff]
  %v132 = vld [vmem:[%s79 + $0x288] sm:$0xff]
  %v133 = vld [vmem:[%s79 + $0x290] sm:$0xff]
  %v134 = vld [vmem:[%s79 + $0x2a0] sm:$0xff]
  %v135 = vld [vmem:[%s79 + $0x2a8] sm:$0xff]
  %v136 = vld [vmem:[%s79 + $0x2b8] sm:$0xff]
  %v137 = vld [vmem:[%s79 + $0x2c0] sm:$0xff]
  %v138 = vld [vmem:[%s79 + $0x2d0] sm:$0xff]
  %v139 = vld [vmem:[%s79 + $0x2d8] sm:$0xff]
  %v140 = vld [vmem:[%s79 + $0x2e8] sm:$0xff]
  %v141 = vld [vmem:[%s79 + $0x2f0] sm:$0xff]
  %v142 = vld [vmem:[%s79 + $0x300] sm:$0xff]
  %v143 = vld [vmem:[%s79 + $0x308] sm:$0xff]
  %s144 = scalar_lea.vmem %s1, 4
  %v145 = vld [vmem:[%s144] sm:$0xf]
  %vm146 = vcmask 31744
  %v148 = vsel %vm146, %v80, 0
  %v151 = vsel %vm146, %v81, 0
  %v154 = vsel %vm146, %v82, 0
  %v157 = vsel %vm146, %v83, 0
  %v160 = vsel %vm146, %v84, 0
  %v163 = vsel %vm146, %v85, 0
  %v166 = vsel %vm146, %v86, 0
  %v169 = vsel %vm146, %v87, 0
  %v172 = vsel %vm146, %v88, 0
  %v175 = vsel %vm146, %v89, 0
  %v178 = vsel %vm146, %v90, 0
  %v181 = vsel %vm146, %v91, 0
  %v184 = vsel %vm146, %v92, 0
  %v187 = vsel %vm146, %v93, 0
  %v190 = vsel %vm146, %v94, 0
  %v193 = vsel %vm146, %v95, 0
  %v196 = vsel %vm146, %v96, 0
  %v199 = vsel %vm146, %v97, 0
  %v202 = vsel %vm146, %v98, 0
  %v205 = vsel %vm146, %v99, 0
  %v208 = vsel %vm146, %v100, 0
  %v211 = vsel %vm146, %v101, 0
  %v214 = vsel %vm146, %v102, 0
  %v217 = vsel %vm146, %v103, 0
  %v220 = vsel %vm146, %v104, 0
  %v223 = vsel %vm146, %v105, 0
  %v226 = vsel %vm146, %v106, 0
  %v229 = vsel %vm146, %v107, 0
  %v232 = vsel %vm146, %v108, 0
  %v235 = vsel %vm146, %v109, 0
  %v238 = vsel %vm146, %v110, 0
  %v241 = vsel %vm146, %v111, 0
  %v244 = vsel %vm146, %v112, 0
  %v247 = vsel %vm146, %v113, 0
  %v250 = vsel %vm146, %v114, 0
  %v253 = vsel %vm146, %v115, 0
  %v256 = vsel %vm146, %v116, 0
  %v259 = vsel %vm146, %v117, 0
  %v262 = vsel %vm146, %v118, 0
  %v265 = vsel %vm146, %v119, 0
  %v268 = vsel %vm146, %v120, 0
  %v271 = vsel %vm146, %v121, 0
  %v274 = vsel %vm146, %v122, 0
  %v277 = vsel %vm146, %v123, 0
  %v280 = vsel %vm146, %v124, 0
  %v283 = vsel %vm146, %v125, 0
  %v286 = vsel %vm146, %v126, 0
  %v289 = vsel %vm146, %v127, 0
  %v292 = vsel %vm146, %v128, 0
  %v295 = vsel %vm146, %v129, 0
  %v298 = vsel %vm146, %v130, 0
  %v301 = vsel %vm146, %v131, 0
  %v304 = vsel %vm146, %v132, 0
  %v307 = vsel %vm146, %v133, 0
  %v310 = vsel %vm146, %v134, 0
  %v313 = vsel %vm146, %v135, 0
  %v316 = vsel %vm146, %v136, 0
  %v319 = vsel %vm146, %v137, 0
  %v322 = vsel %vm146, %v138, 0
  %v325 = vsel %vm146, %v139, 0
  %v328 = vsel %vm146, %v140, 0
  %v331 = vsel %vm146, %v141, 0
  %v334 = vsel %vm146, %v142, 0
  %v337 = vsel %vm146, %v143, 0
  %vm339 = vcmask 1043456
  %v341 = vsel %vm339, %v145, 0
  %343 = vmatpush.msra.mxu0 0.0
  %344 = vmatpush.msra.mxu0 0.0
  %345 = vmatpush.msra.mxu0 0.0
  %346 = vmatpush.msra.mxu0 0.0
  %347 = vmatpush.msra.mxu0 0.0
  %348 = vmatpush.msra.mxu0 0.0
  %349 = vmatpush.msra.mxu0 0.0
  %350 = vmatpush.msra.mxu0 0.0
  %351 = vmatpush.msra.mxu0 0.0
  %352 = vmatpush.msra.mxu0 0.0
  %353 = vmatpush.msra.mxu0 0.0
  %354 = vmatpush.msra.mxu0 0.0
  %355 = vmatpush.msra.mxu0 0.0
  %356 = vmatpush.msra.mxu0 0.0
  %357 = vmatpush.msra.mxu0 0.0
  %358 = vmatpush.msra.mxu0 %v341
  %359 = vmatmul.f32.gmra.mxu0 %v148
  %v360 = vpop.f32.mrf.mxu0
  %v361 = vadd.f32 0.0, %v360
  %362 = vmatmul.f32.gmra.mxu0 %v151
  %v363 = vpop.f32.mrf.mxu0
  %v364 = vadd.f32 0.0, %v363
  %365 = vmatmul.f32.gmra.mxu0 %v154
  %v366 = vpop.f32.mrf.mxu0
  %v367 = vadd.f32 0.0, %v366
  %368 = vmatmul.f32.gmra.mxu0 %v157
  %v369 = vpop.f32.mrf.mxu0
  %v370 = vadd.f32 0.0, %v369
  %371 = vmatmul.f32.gmra.mxu0 %v160
  %v372 = vpop.f32.mrf.mxu0
  %v373 = vadd.f32 0.0, %v372
  %374 = vmatmul.f32.gmra.mxu0 %v163
  %v375 = vpop.f32.mrf.mxu0
  %v376 = vadd.f32 0.0, %v375
  %377 = vmatmul.f32.gmra.mxu0 %v166
  %v378 = vpop.f32.mrf.mxu0
  %v379 = vadd.f32 0.0, %v378
  %380 = vmatmul.f32.gmra.mxu0 %v169
  %v381 = vpop.f32.mrf.mxu0
  %v382 = vadd.f32 0.0, %v381
  %383 = vmatmul.f32.gmra.mxu0 %v172
  %v384 = vpop.f32.mrf.mxu0
  %v385 = vadd.f32 0.0, %v384
  %386 = vmatmul.f32.gmra.mxu0 %v175
  %v387 = vpop.f32.mrf.mxu0
  %v388 = vadd.f32 0.0, %v387
  %389 = vmatmul.f32.gmra.mxu0 %v178
  %v390 = vpop.f32.mrf.mxu0
  %v391 = vadd.f32 0.0, %v390
  %392 = vmatmul.f32.gmra.mxu0 %v181
  %v393 = vpop.f32.mrf.mxu0
  %v394 = vadd.f32 0.0, %v393
  %395 = vmatmul.f32.gmra.mxu0 %v184
  %v396 = vpop.f32.mrf.mxu0
  %v397 = vadd.f32 0.0, %v396
  %398 = vmatmul.f32.gmra.mxu0 %v187
  %v399 = vpop.f32.mrf.mxu0
  %v400 = vadd.f32 0.0, %v399
  %401 = vmatmul.f32.gmra.mxu0 %v190
  %v402 = vpop.f32.mrf.mxu0
  %v403 = vadd.f32 0.0, %v402
  %404 = vmatmul.f32.gmra.mxu0 %v193
  %v405 = vpop.f32.mrf.mxu0
  %v406 = vadd.f32 0.0, %v405
  %407 = vmatmul.f32.gmra.mxu0 %v196
  %v408 = vpop.f32.mrf.mxu0
  %v409 = vadd.f32 0.0, %v408
  %410 = vmatmul.f32.gmra.mxu0 %v199
  %v411 = vpop.f32.mrf.mxu0
  %v412 = vadd.f32 0.0, %v411
  %413 = vmatmul.f32.gmra.mxu0 %v202
  %v414 = vpop.f32.mrf.mxu0
  %v415 = vadd.f32 0.0, %v414
  %416 = vmatmul.f32.gmra.mxu0 %v205
  %v417 = vpop.f32.mrf.mxu0
  %v418 = vadd.f32 0.0, %v417
  %419 = vmatmul.f32.gmra.mxu0 %v208
  %v420 = vpop.f32.mrf.mxu0
  %v421 = vadd.f32 0.0, %v420
  %422 = vmatmul.f32.gmra.mxu0 %v211
  %v423 = vpop.f32.mrf.mxu0
  %v424 = vadd.f32 0.0, %v423
  %425 = vmatmul.f32.gmra.mxu0 %v214
  %v426 = vpop.f32.mrf.mxu0
  %v427 = vadd.f32 0.0, %v426
  %428 = vmatmul.f32.gmra.mxu0 %v217
  %v429 = vpop.f32.mrf.mxu0
  %v430 = vadd.f32 0.0, %v429
  %431 = vmatmul.f32.gmra.mxu0 %v220
  %v432 = vpop.f32.mrf.mxu0
  %v433 = vadd.f32 0.0, %v432
  %434 = vmatmul.f32.gmra.mxu0 %v223
  %v435 = vpop.f32.mrf.mxu0
  %v436 = vadd.f32 0.0, %v435
  %437 = vmatmul.f32.gmra.mxu0 %v226
  %v438 = vpop.f32.mrf.mxu0
  %v439 = vadd.f32 0.0, %v438
  %440 = vmatmul.f32.gmra.mxu0 %v229
  %v441 = vpop.f32.mrf.mxu0
  %v442 = vadd.f32 0.0, %v441
  %443 = vmatmul.f32.gmra.mxu0 %v232
  %v444 = vpop.f32.mrf.mxu0
  %v445 = vadd.f32 0.0, %v444
  %446 = vmatmul.f32.gmra.mxu0 %v235
  %v447 = vpop.f32.mrf.mxu0
  %v448 = vadd.f32 0.0, %v447
  %449 = vmatmul.f32.gmra.mxu0 %v238
  %v450 = vpop.f32.mrf.mxu0
  %v451 = vadd.f32 0.0, %v450
  %452 = vmatmul.f32.gmra.mxu0 %v241
  %v453 = vpop.f32.mrf.mxu0
  %v454 = vadd.f32 0.0, %v453
  %455 = vmatmul.f32.gmra.mxu0 %v244
  %v456 = vpop.f32.mrf.mxu0
  %v457 = vadd.f32 0.0, %v456
  %458 = vmatmul.f32.gmra.mxu0 %v247
  %v459 = vpop.f32.mrf.mxu0
  %v460 = vadd.f32 0.0, %v459
  %461 = vmatmul.f32.gmra.mxu0 %v250
  %v462 = vpop.f32.mrf.mxu0
  %v463 = vadd.f32 0.0, %v462
  %464 = vmatmul.f32.gmra.mxu0 %v253
  %v465 = vpop.f32.mrf.mxu0
  %v466 = vadd.f32 0.0, %v465
  %467 = vmatmul.f32.gmra.mxu0 %v256
  %v468 = vpop.f32.mrf.mxu0
  %v469 = vadd.f32 0.0, %v468
  %470 = vmatmul.f32.gmra.mxu0 %v259
  %v471 = vpop.f32.mrf.mxu0
  %v472 = vadd.f32 0.0, %v471
  %473 = vmatmul.f32.gmra.mxu0 %v262
  %v474 = vpop.f32.mrf.mxu0
  %v475 = vadd.f32 0.0, %v474
  %476 = vmatmul.f32.gmra.mxu0 %v265
  %v477 = vpop.f32.mrf.mxu0
  %v478 = vadd.f32 0.0, %v477
  %479 = vmatmul.f32.gmra.mxu0 %v268
  %v480 = vpop.f32.mrf.mxu0
  %v481 = vadd.f32 0.0, %v480
  %482 = vmatmul.f32.gmra.mxu0 %v271
  %v483 = vpop.f32.mrf.mxu0
  %v484 = vadd.f32 0.0, %v483
  %485 = vmatmul.f32.gmra.mxu0 %v274
  %v486 = vpop.f32.mrf.mxu0
  %v487 = vadd.f32 0.0, %v486
  %488 = vmatmul.f32.gmra.mxu0 %v277
  %v489 = vpop.f32.mrf.mxu0
  %v490 = vadd.f32 0.0, %v489
  %491 = vmatmul.f32.gmra.mxu0 %v280
  %v492 = vpop.f32.mrf.mxu0
  %v493 = vadd.f32 0.0, %v492
  %494 = vmatmul.f32.gmra.mxu0 %v283
  %v495 = vpop.f32.mrf.mxu0
  %v496 = vadd.f32 0.0, %v495
  %497 = vmatmul.f32.gmra.mxu0 %v286
  %v498 = vpop.f32.mrf.mxu0
  %v499 = vadd.f32 0.0, %v498
  %500 = vmatmul.f32.gmra.mxu0 %v289
  %v501 = vpop.f32.mrf.mxu0
  %v502 = vadd.f32 0.0, %v501
  %503 = vmatmul.f32.gmra.mxu0 %v292
  %v504 = vpop.f32.mrf.mxu0
  %v505 = vadd.f32 0.0, %v504
  %506 = vmatmul.f32.gmra.mxu0 %v295
  %v507 = vpop.f32.mrf.mxu0
  %v508 = vadd.f32 0.0, %v507
  %509 = vmatmul.f32.gmra.mxu0 %v298
  %v510 = vpop.f32.mrf.mxu0
  %v511 = vadd.f32 0.0, %v510
  %512 = vmatmul.f32.gmra.mxu0 %v301
  %v513 = vpop.f32.mrf.mxu0
  %v514 = vadd.f32 0.0, %v513
  %515 = vmatmul.f32.gmra.mxu0 %v304
  %v516 = vpop.f32.mrf.mxu0
  %v517 = vadd.f32 0.0, %v516
  %518 = vmatmul.f32.gmra.mxu0 %v307
  %v519 = vpop.f32.mrf.mxu0
  %v520 = vadd.f32 0.0, %v519
  %521 = vmatmul.f32.gmra.mxu0 %v310
  %v522 = vpop.f32.mrf.mxu0
  %v523 = vadd.f32 0.0, %v522
  %524 = vmatmul.f32.gmra.mxu0 %v313
  %v525 = vpop.f32.mrf.mxu0
  %v526 = vadd.f32 0.0, %v525
  %527 = vmatmul.f32.gmra.mxu0 %v316
  %v528 = vpop.f32.mrf.mxu0
  %v529 = vadd.f32 0.0, %v528
  %530 = vmatmul.f32.gmra.mxu0 %v319
  %v531 = vpop.f32.mrf.mxu0
  %v532 = vadd.f32 0.0, %v531
  %533 = vmatmul.f32.gmra.mxu0 %v322
  %v534 = vpop.f32.mrf.mxu0
  %v535 = vadd.f32 0.0, %v534
  %536 = vmatmul.f32.gmra.mxu0 %v325
  %v537 = vpop.f32.mrf.mxu0
  %v538 = vadd.f32 0.0, %v537
  %539 = vmatmul.f32.gmra.mxu0 %v328
  %v540 = vpop.f32.mrf.mxu0
  %v541 = vadd.f32 0.0, %v540
  %542 = vmatmul.f32.gmra.mxu0 %v331
  %v543 = vpop.f32.mrf.mxu0
  %v544 = vadd.f32 0.0, %v543
  %545 = vmatmul.f32.gmra.mxu0 %v334
  %v546 = vpop.f32.mrf.mxu0
  %v547 = vadd.f32 0.0, %v546
  %548 = vmatmul.f32.gmra.mxu0 %v337
  %v549 = vpop.f32.mrf.mxu0
  %v550 = vadd.f32 0.0, %v549
  %551 = vdwg.mxu0
  %v553 = vsel %vm146, %v14, 0
  %v556 = vsel %vm146, %v15, 0
  %v559 = vsel %vm146, %v16, 0
  %v562 = vsel %vm146, %v17, 0
  %v565 = vsel %vm146, %v18, 0
  %v568 = vsel %vm146, %v19, 0
  %v571 = vsel %vm146, %v20, 0
  %v574 = vsel %vm146, %v21, 0
  %v577 = vsel %vm146, %v22, 0
  %v580 = vsel %vm146, %v23, 0
  %v583 = vsel %vm146, %v24, 0
  %v586 = vsel %vm146, %v25, 0
  %v589 = vsel %vm146, %v26, 0
  %v592 = vsel %vm146, %v27, 0
  %v595 = vsel %vm146, %v28, 0
  %v598 = vsel %vm146, %v29, 0
  %v601 = vsel %vm146, %v30, 0
  %v604 = vsel %vm146, %v31, 0
  %v607 = vsel %vm146, %v32, 0
  %v610 = vsel %vm146, %v33, 0
  %v613 = vsel %vm146, %v34, 0
  %v616 = vsel %vm146, %v35, 0
  %v619 = vsel %vm146, %v36, 0
  %v622 = vsel %vm146, %v37, 0
  %v625 = vsel %vm146, %v38, 0
  %v628 = vsel %vm146, %v39, 0
  %v631 = vsel %vm146, %v40, 0
  %v634 = vsel %vm146, %v41, 0
  %v637 = vsel %vm146, %v42, 0
  %v640 = vsel %vm146, %v43, 0
  %v643 = vsel %vm146, %v44, 0
  %v646 = vsel %vm146, %v45, 0
  %v649 = vsel %vm146, %v46, 0
  %v652 = vsel %vm146, %v47, 0
  %v655 = vsel %vm146, %v48, 0
  %v658 = vsel %vm146, %v49, 0
  %v661 = vsel %vm146, %v50, 0
  %v664 = vsel %vm146, %v51, 0
  %v667 = vsel %vm146, %v52, 0
  %v670 = vsel %vm146, %v53, 0
  %v673 = vsel %vm146, %v54, 0
  %v676 = vsel %vm146, %v55, 0
  %v679 = vsel %vm146, %v56, 0
  %v682 = vsel %vm146, %v57, 0
  %v685 = vsel %vm146, %v58, 0
  %v688 = vsel %vm146, %v59, 0
  %v691 = vsel %vm146, %v60, 0
  %v694 = vsel %vm146, %v61, 0
  %v697 = vsel %vm146, %v62, 0
  %v700 = vsel %vm146, %v63, 0
  %v703 = vsel %vm146, %v64, 0
  %v706 = vsel %vm146, %v65, 0
  %v709 = vsel %vm146, %v66, 0
  %v712 = vsel %vm146, %v67, 0
  %v715 = vsel %vm146, %v68, 0
  %v718 = vsel %vm146, %v69, 0
  %v721 = vsel %vm146, %v70, 0
  %v724 = vsel %vm146, %v71, 0
  %v727 = vsel %vm146, %v72, 0
  %v730 = vsel %vm146, %v73, 0
  %v733 = vsel %vm146, %v74, 0
  %v736 = vsel %vm146, %v75, 0
  %v739 = vsel %vm146, %v76, 0
  %v742 = vsel %vm146, %v77, 0
  %v745 = vsel %vm339, %v78, 0
  %747 = vmatpush.msra.mxu0 0.0
  %748 = vmatpush.msra.mxu0 0.0
  %749 = vmatpush.msra.mxu0 0.0
  %750 = vmatpush.msra.mxu0 0.0
  %751 = vmatpush.msra.mxu0 0.0
  %752 = vmatpush.msra.mxu0 0.0
  %753 = vmatpush.msra.mxu0 0.0
  %754 = vmatpush.msra.mxu0 0.0
  %755 = vmatpush.msra.mxu0 0.0
  %756 = vmatpush.msra.mxu0 0.0
  %757 = vmatpush.msra.mxu0 0.0
  %758 = vmatpush.msra.mxu0 0.0
  %759 = vmatpush.msra.mxu0 0.0
  %760 = vmatpush.msra.mxu0 0.0
  %761 = vmatpush.msra.mxu0 0.0
  %762 = vmatpush.msra.mxu0 %v745
  %763 = vmatmul.f32.gmra.mxu0 %v553
  %v764 = vpop.f32.mrf.mxu0
  %v765 = vadd.f32 %v361, %v764
  %766 = vmatmul.f32.gmra.mxu0 %v556
  %v767 = vpop.f32.mrf.mxu0
  %v768 = vadd.f32 %v364, %v767
  %769 = vmatmul.f32.gmra.mxu0 %v559
  %v770 = vpop.f32.mrf.mxu0
  %v771 = vadd.f32 %v367, %v770
  %772 = vmatmul.f32.gmra.mxu0 %v562
  %v773 = vpop.f32.mrf.mxu0
  %v774 = vadd.f32 %v370, %v773
  %775 = vmatmul.f32.gmra.mxu0 %v565
  %v776 = vpop.f32.mrf.mxu0
  %v777 = vadd.f32 %v373, %v776
  %778 = vmatmul.f32.gmra.mxu0 %v568
  %v779 = vpop.f32.mrf.mxu0
  %v780 = vadd.f32 %v376, %v779
  %781 = vmatmul.f32.gmra.mxu0 %v571
  %v782 = vpop.f32.mrf.mxu0
  %v783 = vadd.f32 %v379, %v782
  %784 = vmatmul.f32.gmra.mxu0 %v574
  %v785 = vpop.f32.mrf.mxu0
  %v786 = vadd.f32 %v382, %v785
  %787 = vmatmul.f32.gmra.mxu0 %v577
  %v788 = vpop.f32.mrf.mxu0
  %v789 = vadd.f32 %v385, %v788
  %790 = vmatmul.f32.gmra.mxu0 %v580
  %v791 = vpop.f32.mrf.mxu0
  %v792 = vadd.f32 %v388, %v791
  %793 = vmatmul.f32.gmra.mxu0 %v583
  %v794 = vpop.f32.mrf.mxu0
  %v795 = vadd.f32 %v391, %v794
  %796 = vmatmul.f32.gmra.mxu0 %v586
  %v797 = vpop.f32.mrf.mxu0
  %v798 = vadd.f32 %v394, %v797
  %799 = vmatmul.f32.gmra.mxu0 %v589
  %v800 = vpop.f32.mrf.mxu0
  %v801 = vadd.f32 %v397, %v800
  %802 = vmatmul.f32.gmra.mxu0 %v592
  %v803 = vpop.f32.mrf.mxu0
  %v804 = vadd.f32 %v400, %v803
  %805 = vmatmul.f32.gmra.mxu0 %v595
  %v806 = vpop.f32.mrf.mxu0
  %v807 = vadd.f32 %v403, %v806
  %808 = vmatmul.f32.gmra.mxu0 %v598
  %v809 = vpop.f32.mrf.mxu0
  %v810 = vadd.f32 %v406, %v809
  %811 = vmatmul.f32.gmra.mxu0 %v601
  %v812 = vpop.f32.mrf.mxu0
  %v813 = vadd.f32 %v409, %v812
  %814 = vmatmul.f32.gmra.mxu0 %v604
  %v815 = vpop.f32.mrf.mxu0
  %v816 = vadd.f32 %v412, %v815
  %817 = vmatmul.f32.gmra.mxu0 %v607
  %v818 = vpop.f32.mrf.mxu0
  %v819 = vadd.f32 %v415, %v818
  %820 = vmatmul.f32.gmra.mxu0 %v610
  %v821 = vpop.f32.mrf.mxu0
  %v822 = vadd.f32 %v418, %v821
  %823 = vmatmul.f32.gmra.mxu0 %v613
  %v824 = vpop.f32.mrf.mxu0
  %v825 = vadd.f32 %v421, %v824
  %826 = vmatmul.f32.gmra.mxu0 %v616
  %v827 = vpop.f32.mrf.mxu0
  %v828 = vadd.f32 %v424, %v827
  %829 = vmatmul.f32.gmra.mxu0 %v619
  %v830 = vpop.f32.mrf.mxu0
  %v831 = vadd.f32 %v427, %v830
  %832 = vmatmul.f32.gmra.mxu0 %v622
  %v833 = vpop.f32.mrf.mxu0
  %v834 = vadd.f32 %v430, %v833
  %835 = vmatmul.f32.gmra.mxu0 %v625
  %v836 = vpop.f32.mrf.mxu0
  %v837 = vadd.f32 %v433, %v836
  %838 = vmatmul.f32.gmra.mxu0 %v628
  %v839 = vpop.f32.mrf.mxu0
  %v840 = vadd.f32 %v436, %v839
  %841 = vmatmul.f32.gmra.mxu0 %v631
  %v842 = vpop.f32.mrf.mxu0
  %v843 = vadd.f32 %v439, %v842
  %844 = vmatmul.f32.gmra.mxu0 %v634
  %v845 = vpop.f32.mrf.mxu0
  %v846 = vadd.f32 %v442, %v845
  %847 = vmatmul.f32.gmra.mxu0 %v637
  %v848 = vpop.f32.mrf.mxu0
  %v849 = vadd.f32 %v445, %v848
  %850 = vmatmul.f32.gmra.mxu0 %v640
  %v851 = vpop.f32.mrf.mxu0
  %v852 = vadd.f32 %v448, %v851
  %853 = vmatmul.f32.gmra.mxu0 %v643
  %v854 = vpop.f32.mrf.mxu0
  %v855 = vadd.f32 %v451, %v854
  %856 = vmatmul.f32.gmra.mxu0 %v646
  %v857 = vpop.f32.mrf.mxu0
  %v858 = vadd.f32 %v454, %v857
  %859 = vmatmul.f32.gmra.mxu0 %v649
  %v860 = vpop.f32.mrf.mxu0
  %v861 = vadd.f32 %v457, %v860
  %862 = vmatmul.f32.gmra.mxu0 %v652
  %v863 = vpop.f32.mrf.mxu0
  %v864 = vadd.f32 %v460, %v863
  %865 = vmatmul.f32.gmra.mxu0 %v655
  %v866 = vpop.f32.mrf.mxu0
  %v867 = vadd.f32 %v463, %v866
  %868 = vmatmul.f32.gmra.mxu0 %v658
  %v869 = vpop.f32.mrf.mxu0
  %v870 = vadd.f32 %v466, %v869
  %871 = vmatmul.f32.gmra.mxu0 %v661
  %v872 = vpop.f32.mrf.mxu0
  %v873 = vadd.f32 %v469, %v872
  %874 = vmatmul.f32.gmra.mxu0 %v664
  %v875 = vpop.f32.mrf.mxu0
  %v876 = vadd.f32 %v472, %v875
  %877 = vmatmul.f32.gmra.mxu0 %v667
  %v878 = vpop.f32.mrf.mxu0
  %v879 = vadd.f32 %v475, %v878
  %880 = vmatmul.f32.gmra.mxu0 %v670
  %v881 = vpop.f32.mrf.mxu0
  %v882 = vadd.f32 %v478, %v881
  %883 = vmatmul.f32.gmra.mxu0 %v673
  %v884 = vpop.f32.mrf.mxu0
  %v885 = vadd.f32 %v481, %v884
  %886 = vmatmul.f32.gmra.mxu0 %v676
  %v887 = vpop.f32.mrf.mxu0
  %v888 = vadd.f32 %v484, %v887
  %889 = vmatmul.f32.gmra.mxu0 %v679
  %v890 = vpop.f32.mrf.mxu0
  %v891 = vadd.f32 %v487, %v890
  %892 = vmatmul.f32.gmra.mxu0 %v682
  %v893 = vpop.f32.mrf.mxu0
  %v894 = vadd.f32 %v490, %v893
  %895 = vmatmul.f32.gmra.mxu0 %v685
  %v896 = vpop.f32.mrf.mxu0
  %v897 = vadd.f32 %v493, %v896
  %898 = vmatmul.f32.gmra.mxu0 %v688
  %v899 = vpop.f32.mrf.mxu0
  %v900 = vadd.f32 %v496, %v899
  %901 = vmatmul.f32.gmra.mxu0 %v691
  %v902 = vpop.f32.mrf.mxu0
  %v903 = vadd.f32 %v499, %v902
  %904 = vmatmul.f32.gmra.mxu0 %v694
  %v905 = vpop.f32.mrf.mxu0
  %v906 = vadd.f32 %v502, %v905
  %907 = vmatmul.f32.gmra.mxu0 %v697
  %v908 = vpop.f32.mrf.mxu0
  %v909 = vadd.f32 %v505, %v908
  %910 = vmatmul.f32.gmra.mxu0 %v700
  %v911 = vpop.f32.mrf.mxu0
  %v912 = vadd.f32 %v508, %v911
  %913 = vmatmul.f32.gmra.mxu0 %v703
  %v914 = vpop.f32.mrf.mxu0
  %v915 = vadd.f32 %v511, %v914
  %916 = vmatmul.f32.gmra.mxu0 %v706
  %v917 = vpop.f32.mrf.mxu0
  %v918 = vadd.f32 %v514, %v917
  %919 = vmatmul.f32.gmra.mxu0 %v709
  %v920 = vpop.f32.mrf.mxu0
  %v921 = vadd.f32 %v517, %v920
  %922 = vmatmul.f32.gmra.mxu0 %v712
  %v923 = vpop.f32.mrf.mxu0
  %v924 = vadd.f32 %v520, %v923
  %925 = vmatmul.f32.gmra.mxu0 %v715
  %v926 = vpop.f32.mrf.mxu0
  %v927 = vadd.f32 %v523, %v926
  %928 = vmatmul.f32.gmra.mxu0 %v718
  %v929 = vpop.f32.mrf.mxu0
  %v930 = vadd.f32 %v526, %v929
  %931 = vmatmul.f32.gmra.mxu0 %v721
  %v932 = vpop.f32.mrf.mxu0
  %v933 = vadd.f32 %v529, %v932
  %934 = vmatmul.f32.gmra.mxu0 %v724
  %v935 = vpop.f32.mrf.mxu0
  %v936 = vadd.f32 %v532, %v935
  %937 = vmatmul.f32.gmra.mxu0 %v727
  %v938 = vpop.f32.mrf.mxu0
  %v939 = vadd.f32 %v535, %v938
  %940 = vmatmul.f32.gmra.mxu0 %v730
  %v941 = vpop.f32.mrf.mxu0
  %v942 = vadd.f32 %v538, %v941
  %943 = vmatmul.f32.gmra.mxu0 %v733
  %v944 = vpop.f32.mrf.mxu0
  %v945 = vadd.f32 %v541, %v944
  %946 = vmatmul.f32.gmra.mxu0 %v736
  %v947 = vpop.f32.mrf.mxu0
  %v948 = vadd.f32 %v544, %v947
  %949 = vmatmul.f32.gmra.mxu0 %v739
  %v950 = vpop.f32.mrf.mxu0
  %v951 = vadd.f32 %v547, %v950
  %952 = vmatmul.f32.gmra.mxu0 %v742
  %v953 = vpop.f32.mrf.mxu0
  %v954 = vadd.f32 %v550, %v953
  %955 = vdwg.mxu0
  %s956 = scalar_lea.vmem %s0, 24
  %v957 = vld [vmem:[%s956] sm:$0xff]
  %v958 = vld [vmem:[%s956 + $0x8] sm:$0xff]
  %v959 = vld [vmem:[%s956 + $0x18] sm:$0xff]
  %v960 = vld [vmem:[%s956 + $0x20] sm:$0xff]
  %v961 = vld [vmem:[%s956 + $0x30] sm:$0xff]
  %v962 = vld [vmem:[%s956 + $0x38] sm:$0xff]
  %v963 = vld [vmem:[%s956 + $0x48] sm:$0xff]
  %v964 = vld [vmem:[%s956 + $0x50] sm:$0xff]
  %v965 = vld [vmem:[%s956 + $0x60] sm:$0xff]
  %v966 = vld [vmem:[%s956 + $0x68] sm:$0xff]
  %v967 = vld [vmem:[%s956 + $0x78] sm:$0xff]
  %v968 = vld [vmem:[%s956 + $0x80] sm:$0xff]
  %v969 = vld [vmem:[%s956 + $0x90] sm:$0xff]
  %v970 = vld [vmem:[%s956 + $0x98] sm:$0xff]
  %v971 = vld [vmem:[%s956 + $0xa8] sm:$0xff]
  %v972 = vld [vmem:[%s956 + $0xb0] sm:$0xff]
  %v973 = vld [vmem:[%s956 + $0xc0] sm:$0xff]
  %v974 = vld [vmem:[%s956 + $0xc8] sm:$0xff]
  %v975 = vld [vmem:[%s956 + $0xd8] sm:$0xff]
  %v976 = vld [vmem:[%s956 + $0xe0] sm:$0xff]
  %v977 = vld [vmem:[%s956 + $0xf0] sm:$0xff]
  %v978 = vld [vmem:[%s956 + $0xf8] sm:$0xff]
  %v979 = vld [vmem:[%s956 + $0x108] sm:$0xff]
  %v980 = vld [vmem:[%s956 + $0x110] sm:$0xff]
  %v981 = vld [vmem:[%s956 + $0x120] sm:$0xff]
  %v982 = vld [vmem:[%s956 + $0x128] sm:$0xff]
  %v983 = vld [vmem:[%s956 + $0x138] sm:$0xff]
  %v984 = vld [vmem:[%s956 + $0x140] sm:$0xff]
  %v985 = vld [vmem:[%s956 + $0x150] sm:$0xff]
  %v986 = vld [vmem:[%s956 + $0x158] sm:$0xff]
  %v987 = vld [vmem:[%s956 + $0x168] sm:$0xff]
  %v988 = vld [vmem:[%s956 + $0x170] sm:$0xff]
  %v989 = vld [vmem:[%s956 + $0x198] sm:$0xff]
  %v990 = vld [vmem:[%s956 + $0x1a0] sm:$0xff]
  %v991 = vld [vmem:[%s956 + $0x1b0] sm:$0xff]
  %v992 = vld [vmem:[%s956 + $0x1b8] sm:$0xff]
  %v993 = vld [vmem:[%s956 + $0x1c8] sm:$0xff]
  %v994 = vld [vmem:[%s956 + $0x1d0] sm:$0xff]
  %v995 = vld [vmem:[%s956 + $0x1e0] sm:$0xff]
  %v996 = vld [vmem:[%s956 + $0x1e8] sm:$0xff]
  %v997 = vld [vmem:[%s956 + $0x1f8] sm:$0xff]
  %v998 = vld [vmem:[%s956 + $0x200] sm:$0xff]
  %v999 = vld [vmem:[%s956 + $0x210] sm:$0xff]
  %v1000 = vld [vmem:[%s956 + $0x218] sm:$0xff]
  %v1001 = vld [vmem:[%s956 + $0x228] sm:$0xff]
  %v1002 = vld [vmem:[%s956 + $0x230] sm:$0xff]
  %v1003 = vld [vmem:[%s956 + $0x240] sm:$0xff]
  %v1004 = vld [vmem:[%s956 + $0x248] sm:$0xff]
  %v1005 = vld [vmem:[%s956 + $0x258] sm:$0xff]
  %v1006 = vld [vmem:[%s956 + $0x260] sm:$0xff]
  %v1007 = vld [vmem:[%s956 + $0x270] sm:$0xff]
  %v1008 = vld [vmem:[%s956 + $0x278] sm:$0xff]
  %v1009 = vld [vmem:[%s956 + $0x288] sm:$0xff]
  %v1010 = vld [vmem:[%s956 + $0x290] sm:$0xff]
  %v1011 = vld [vmem:[%s956 + $0x2a0] sm:$0xff]
  %v1012 = vld [vmem:[%s956 + $0x2a8] sm:$0xff]
  %v1013 = vld [vmem:[%s956 + $0x2b8] sm:$0xff]
  %v1014 = vld [vmem:[%s956 + $0x2c0] sm:$0xff]
  %v1015 = vld [vmem:[%s956 + $0x2d0] sm:$0xff]
  %v1016 = vld [vmem:[%s956 + $0x2d8] sm:$0xff]
  %v1017 = vld [vmem:[%s956 + $0x2e8] sm:$0xff]
  %v1018 = vld [vmem:[%s956 + $0x2f0] sm:$0xff]
  %v1019 = vld [vmem:[%s956 + $0x300] sm:$0xff]
  %v1020 = vld [vmem:[%s956 + $0x308] sm:$0xff]
  %s1021 = scalar_lea.vmem %s1, 8
  %v1022 = vld [vmem:[%s1021] sm:$0xf]
  %v1024 = vsel %vm146, %v957, 0
  %v1027 = vsel %vm146, %v958, 0
  %v1030 = vsel %vm146, %v959, 0
  %v1033 = vsel %vm146, %v960, 0
  %v1036 = vsel %vm146, %v961, 0
  %v1039 = vsel %vm146, %v962, 0
  %v1042 = vsel %vm146, %v963, 0
  %v1045 = vsel %vm146, %v964, 0
  %v1048 = vsel %vm146, %v965, 0
  %v1051 = vsel %vm146, %v966, 0
  %v1054 = vsel %vm146, %v967, 0
  %v1057 = vsel %vm146, %v968, 0
  %v1060 = vsel %vm146, %v969, 0
  %v1063 = vsel %vm146, %v970, 0
  %v1066 = vsel %vm146, %v971, 0
  %v1069 = vsel %vm146, %v972, 0
  %v1072 = vsel %vm146, %v973, 0
  %v1075 = vsel %vm146, %v974, 0
  %v1078 = vsel %vm146, %v975, 0
  %v1081 = vsel %vm146, %v976, 0
  %v1084 = vsel %vm146, %v977, 0
  %v1087 = vsel %vm146, %v978, 0
  %v1090 = vsel %vm146, %v979, 0
  %v1093 = vsel %vm146, %v980, 0
  %v1096 = vsel %vm146, %v981, 0
  %v1099 = vsel %vm146, %v982, 0
  %v1102 = vsel %vm146, %v983, 0
  %v1105 = vsel %vm146, %v984, 0
  %v1108 = vsel %vm146, %v985, 0
  %v1111 = vsel %vm146, %v986, 0
  %v1114 = vsel %vm146, %v987, 0
  %v1117 = vsel %vm146, %v988, 0
  %v1120 = vsel %vm146, %v989, 0
  %v1123 = vsel %vm146, %v990, 0
  %v1126 = vsel %vm146, %v991, 0
  %v1129 = vsel %vm146, %v992, 0
  %v1132 = vsel %vm146, %v993, 0
  %v1135 = vsel %vm146, %v994, 0
  %v1138 = vsel %vm146, %v995, 0
  %v1141 = vsel %vm146, %v996, 0
  %v1144 = vsel %vm146, %v997, 0
  %v1147 = vsel %vm146, %v998, 0
  %v1150 = vsel %vm146, %v999, 0
  %v1153 = vsel %vm146, %v1000, 0
  %v1156 = vsel %vm146, %v1001, 0
  %v1159 = vsel %vm146, %v1002, 0
  %v1162 = vsel %vm146, %v1003, 0
  %v1165 = vsel %vm146, %v1004, 0
  %v1168 = vsel %vm146, %v1005, 0
  %v1171 = vsel %vm146, %v1006, 0
  %v1174 = vsel %vm146, %v1007, 0
  %v1177 = vsel %vm146, %v1008, 0
  %v1180 = vsel %vm146, %v1009, 0
  %v1183 = vsel %vm146, %v1010, 0
  %v1186 = vsel %vm146, %v1011, 0
  %v1189 = vsel %vm146, %v1012, 0
  %v1192 = vsel %vm146, %v1013, 0
  %v1195 = vsel %vm146, %v1014, 0
  %v1198 = vsel %vm146, %v1015, 0
  %v1201 = vsel %vm146, %v1016, 0
  %v1204 = vsel %vm146, %v1017, 0
  %v1207 = vsel %vm146, %v1018, 0
  %v1210 = vsel %vm146, %v1019, 0
  %v1213 = vsel %vm146, %v1020, 0
  %v1216 = vsel %vm339, %v1022, 0
  %1218 = vmatpush.msra.mxu0 0.0
  %1219 = vmatpush.msra.mxu0 0.0
  %1220 = vmatpush.msra.mxu0 0.0
  %1221 = vmatpush.msra.mxu0 0.0
  %1222 = vmatpush.msra.mxu0 0.0
  %1223 = vmatpush.msra.mxu0 0.0
  %1224 = vmatpush.msra.mxu0 0.0
  %1225 = vmatpush.msra.mxu0 0.0
  %1226 = vmatpush.msra.mxu0 0.0
  %1227 = vmatpush.msra.mxu0 0.0
  %1228 = vmatpush.msra.mxu0 0.0
  %1229 = vmatpush.msra.mxu0 0.0
  %1230 = vmatpush.msra.mxu0 0.0
  %1231 = vmatpush.msra.mxu0 0.0
  %1232 = vmatpush.msra.mxu0 0.0
  %1233 = vmatpush.msra.mxu0 %v1216
  %1234 = vmatmul.f32.gmra.mxu0 %v1024
  %v1235 = vpop.f32.mrf.mxu0
  %v1236 = vadd.f32 0.0, %v1235
  %1237 = vmatmul.f32.gmra.mxu0 %v1027
  %v1238 = vpop.f32.mrf.mxu0
  %v1239 = vadd.f32 0.0, %v1238
  %1240 = vmatmul.f32.gmra.mxu0 %v1030
  %v1241 = vpop.f32.mrf.mxu0
  %v1242 = vadd.f32 0.0, %v1241
  %1243 = vmatmul.f32.gmra.mxu0 %v1033
  %v1244 = vpop.f32.mrf.mxu0
  %v1245 = vadd.f32 0.0, %v1244
  %1246 = vmatmul.f32.gmra.mxu0 %v1036
  %v1247 = vpop.f32.mrf.mxu0
  %v1248 = vadd.f32 0.0, %v1247
  %1249 = vmatmul.f32.gmra.mxu0 %v1039
  %v1250 = vpop.f32.mrf.mxu0
  %v1251 = vadd.f32 0.0, %v1250
  %1252 = vmatmul.f32.gmra.mxu0 %v1042
  %v1253 = vpop.f32.mrf.mxu0
  %v1254 = vadd.f32 0.0, %v1253
  %1255 = vmatmul.f32.gmra.mxu0 %v1045
  %v1256 = vpop.f32.mrf.mxu0
  %v1257 = vadd.f32 0.0, %v1256
  %1258 = vmatmul.f32.gmra.mxu0 %v1048
  %v1259 = vpop.f32.mrf.mxu0
  %v1260 = vadd.f32 0.0, %v1259
  %1261 = vmatmul.f32.gmra.mxu0 %v1051
  %v1262 = vpop.f32.mrf.mxu0
  %v1263 = vadd.f32 0.0, %v1262
  %1264 = vmatmul.f32.gmra.mxu0 %v1054
  %v1265 = vpop.f32.mrf.mxu0
  %v1266 = vadd.f32 0.0, %v1265
  %1267 = vmatmul.f32.gmra.mxu0 %v1057
  %v1268 = vpop.f32.mrf.mxu0
  %v1269 = vadd.f32 0.0, %v1268
  %1270 = vmatmul.f32.gmra.mxu0 %v1060
  %v1271 = vpop.f32.mrf.mxu0
  %v1272 = vadd.f32 0.0, %v1271
  %1273 = vmatmul.f32.gmra.mxu0 %v1063
  %v1274 = vpop.f32.mrf.mxu0
  %v1275 = vadd.f32 0.0, %v1274
  %1276 = vmatmul.f32.gmra.mxu0 %v1066
  %v1277 = vpop.f32.mrf.mxu0
  %v1278 = vadd.f32 0.0, %v1277
  %1279 = vmatmul.f32.gmra.mxu0 %v1069
  %v1280 = vpop.f32.mrf.mxu0
  %v1281 = vadd.f32 0.0, %v1280
  %1282 = vmatmul.f32.gmra.mxu0 %v1072
  %v1283 = vpop.f32.mrf.mxu0
  %v1284 = vadd.f32 0.0, %v1283
  %1285 = vmatmul.f32.gmra.mxu0 %v1075
  %v1286 = vpop.f32.mrf.mxu0
  %v1287 = vadd.f32 0.0, %v1286
  %1288 = vmatmul.f32.gmra.mxu0 %v1078
  %v1289 = vpop.f32.mrf.mxu0
  %v1290 = vadd.f32 0.0, %v1289
  %1291 = vmatmul.f32.gmra.mxu0 %v1081
  %v1292 = vpop.f32.mrf.mxu0
  %v1293 = vadd.f32 0.0, %v1292
  %1294 = vmatmul.f32.gmra.mxu0 %v1084
  %v1295 = vpop.f32.mrf.mxu0
  %v1296 = vadd.f32 0.0, %v1295
  %1297 = vmatmul.f32.gmra.mxu0 %v1087
  %v1298 = vpop.f32.mrf.mxu0
  %v1299 = vadd.f32 0.0, %v1298
  %1300 = vmatmul.f32.gmra.mxu0 %v1090
  %v1301 = vpop.f32.mrf.mxu0
  %v1302 = vadd.f32 0.0, %v1301
  %1303 = vmatmul.f32.gmra.mxu0 %v1093
  %v1304 = vpop.f32.mrf.mxu0
  %v1305 = vadd.f32 0.0, %v1304
  %1306 = vmatmul.f32.gmra.mxu0 %v1096
  %v1307 = vpop.f32.mrf.mxu0
  %v1308 = vadd.f32 0.0, %v1307
  %1309 = vmatmul.f32.gmra.mxu0 %v1099
  %v1310 = vpop.f32.mrf.mxu0
  %v1311 = vadd.f32 0.0, %v1310
  %1312 = vmatmul.f32.gmra.mxu0 %v1102
  %v1313 = vpop.f32.mrf.mxu0
  %v1314 = vadd.f32 0.0, %v1313
  %1315 = vmatmul.f32.gmra.mxu0 %v1105
  %v1316 = vpop.f32.mrf.mxu0
  %v1317 = vadd.f32 0.0, %v1316
  %1318 = vmatmul.f32.gmra.mxu0 %v1108
  %v1319 = vpop.f32.mrf.mxu0
  %v1320 = vadd.f32 0.0, %v1319
  %1321 = vmatmul.f32.gmra.mxu0 %v1111
  %v1322 = vpop.f32.mrf.mxu0
  %v1323 = vadd.f32 0.0, %v1322
  %1324 = vmatmul.f32.gmra.mxu0 %v1114
  %v1325 = vpop.f32.mrf.mxu0
  %v1326 = vadd.f32 0.0, %v1325
  %1327 = vmatmul.f32.gmra.mxu0 %v1117
  %v1328 = vpop.f32.mrf.mxu0
  %v1329 = vadd.f32 0.0, %v1328
  %1330 = vmatmul.f32.gmra.mxu0 %v1120
  %v1331 = vpop.f32.mrf.mxu0
  %v1332 = vadd.f32 0.0, %v1331
  %1333 = vmatmul.f32.gmra.mxu0 %v1123
  %v1334 = vpop.f32.mrf.mxu0
  %v1335 = vadd.f32 0.0, %v1334
  %1336 = vmatmul.f32.gmra.mxu0 %v1126
  %v1337 = vpop.f32.mrf.mxu0
  %v1338 = vadd.f32 0.0, %v1337
  %1339 = vmatmul.f32.gmra.mxu0 %v1129
  %v1340 = vpop.f32.mrf.mxu0
  %v1341 = vadd.f32 0.0, %v1340
  %1342 = vmatmul.f32.gmra.mxu0 %v1132
  %v1343 = vpop.f32.mrf.mxu0
  %v1344 = vadd.f32 0.0, %v1343
  %1345 = vmatmul.f32.gmra.mxu0 %v1135
  %v1346 = vpop.f32.mrf.mxu0
  %v1347 = vadd.f32 0.0, %v1346
  %1348 = vmatmul.f32.gmra.mxu0 %v1138
  %v1349 = vpop.f32.mrf.mxu0
  %v1350 = vadd.f32 0.0, %v1349
  %1351 = vmatmul.f32.gmra.mxu0 %v1141
  %v1352 = vpop.f32.mrf.mxu0
  %v1353 = vadd.f32 0.0, %v1352
  %1354 = vmatmul.f32.gmra.mxu0 %v1144
  %v1355 = vpop.f32.mrf.mxu0
  %v1356 = vadd.f32 0.0, %v1355
  %1357 = vmatmul.f32.gmra.mxu0 %v1147
  %v1358 = vpop.f32.mrf.mxu0
  %v1359 = vadd.f32 0.0, %v1358
  %1360 = vmatmul.f32.gmra.mxu0 %v1150
  %v1361 = vpop.f32.mrf.mxu0
  %v1362 = vadd.f32 0.0, %v1361
  %1363 = vmatmul.f32.gmra.mxu0 %v1153
  %v1364 = vpop.f32.mrf.mxu0
  %v1365 = vadd.f32 0.0, %v1364
  %1366 = vmatmul.f32.gmra.mxu0 %v1156
  %v1367 = vpop.f32.mrf.mxu0
  %v1368 = vadd.f32 0.0, %v1367
  %1369 = vmatmul.f32.gmra.mxu0 %v1159
  %v1370 = vpop.f32.mrf.mxu0
  %v1371 = vadd.f32 0.0, %v1370
  %1372 = vmatmul.f32.gmra.mxu0 %v1162
  %v1373 = vpop.f32.mrf.mxu0
  %v1374 = vadd.f32 0.0, %v1373
  %1375 = vmatmul.f32.gmra.mxu0 %v1165
  %v1376 = vpop.f32.mrf.mxu0
  %v1377 = vadd.f32 0.0, %v1376
  %1378 = vmatmul.f32.gmra.mxu0 %v1168
  %v1379 = vpop.f32.mrf.mxu0
  %v1380 = vadd.f32 0.0, %v1379
  %1381 = vmatmul.f32.gmra.mxu0 %v1171
  %v1382 = vpop.f32.mrf.mxu0
  %v1383 = vadd.f32 0.0, %v1382
  %1384 = vmatmul.f32.gmra.mxu0 %v1174
  %v1385 = vpop.f32.mrf.mxu0
  %v1386 = vadd.f32 0.0, %v1385
  %1387 = vmatmul.f32.gmra.mxu0 %v1177
  %v1388 = vpop.f32.mrf.mxu0
  %v1389 = vadd.f32 0.0, %v1388
  %1390 = vmatmul.f32.gmra.mxu0 %v1180
  %v1391 = vpop.f32.mrf.mxu0
  %v1392 = vadd.f32 0.0, %v1391
  %1393 = vmatmul.f32.gmra.mxu0 %v1183
  %v1394 = vpop.f32.mrf.mxu0
  %v1395 = vadd.f32 0.0, %v1394
  %1396 = vmatmul.f32.gmra.mxu0 %v1186
  %v1397 = vpop.f32.mrf.mxu0
  %v1398 = vadd.f32 0.0, %v1397
  %1399 = vmatmul.f32.gmra.mxu0 %v1189
  %v1400 = vpop.f32.mrf.mxu0
  %v1401 = vadd.f32 0.0, %v1400
  %1402 = vmatmul.f32.gmra.mxu0 %v1192
  %v1403 = vpop.f32.mrf.mxu0
  %v1404 = vadd.f32 0.0, %v1403
  %1405 = vmatmul.f32.gmra.mxu0 %v1195
  %v1406 = vpop.f32.mrf.mxu0
  %v1407 = vadd.f32 0.0, %v1406
  %1408 = vmatmul.f32.gmra.mxu0 %v1198
  %v1409 = vpop.f32.mrf.mxu0
  %v1410 = vadd.f32 0.0, %v1409
  %1411 = vmatmul.f32.gmra.mxu0 %v1201
  %v1412 = vpop.f32.mrf.mxu0
  %v1413 = vadd.f32 0.0, %v1412
  %1414 = vmatmul.f32.gmra.mxu0 %v1204
  %v1415 = vpop.f32.mrf.mxu0
  %v1416 = vadd.f32 0.0, %v1415
  %1417 = vmatmul.f32.gmra.mxu0 %v1207
  %v1418 = vpop.f32.mrf.mxu0
  %v1419 = vadd.f32 0.0, %v1418
  %1420 = vmatmul.f32.gmra.mxu0 %v1210
  %v1421 = vpop.f32.mrf.mxu0
  %v1422 = vadd.f32 0.0, %v1421
  %1423 = vmatmul.f32.gmra.mxu0 %v1213
  %v1424 = vpop.f32.mrf.mxu0
  %v1425 = vadd.f32 0.0, %v1424
  %1426 = vdwg.mxu0
  %v1427 = vadd.f32 %v765, %v1236
  %v1428 = vadd.f32 %v768, %v1239
  %v1429 = vadd.f32 %v771, %v1242
  %v1430 = vadd.f32 %v774, %v1245
  %v1431 = vadd.f32 %v777, %v1248
  %v1432 = vadd.f32 %v780, %v1251
  %v1433 = vadd.f32 %v783, %v1254
  %v1434 = vadd.f32 %v786, %v1257
  %v1435 = vadd.f32 %v789, %v1260
  %v1436 = vadd.f32 %v792, %v1263
  %v1437 = vadd.f32 %v795, %v1266
  %v1438 = vadd.f32 %v798, %v1269
  %v1439 = vadd.f32 %v801, %v1272
  %v1440 = vadd.f32 %v804, %v1275
  %v1441 = vadd.f32 %v807, %v1278
  %v1442 = vadd.f32 %v810, %v1281
  %v1443 = vadd.f32 %v813, %v1284
  %v1444 = vadd.f32 %v816, %v1287
  %v1445 = vadd.f32 %v819, %v1290
  %v1446 = vadd.f32 %v822, %v1293
  %v1447 = vadd.f32 %v825, %v1296
  %v1448 = vadd.f32 %v828, %v1299
  %v1449 = vadd.f32 %v831, %v1302
  %v1450 = vadd.f32 %v834, %v1305
  %v1451 = vadd.f32 %v837, %v1308
  %v1452 = vadd.f32 %v840, %v1311
  %v1453 = vadd.f32 %v843, %v1314
  %v1454 = vadd.f32 %v846, %v1317
  %v1455 = vadd.f32 %v849, %v1320
  %v1456 = vadd.f32 %v852, %v1323
  %v1457 = vadd.f32 %v855, %v1326
  %v1458 = vadd.f32 %v858, %v1329
  %v1459 = vadd.f32 %v861, %v1332
  %v1460 = vadd.f32 %v864, %v1335
  %v1461 = vadd.f32 %v867, %v1338
  %v1462 = vadd.f32 %v870, %v1341
  %v1463 = vadd.f32 %v873, %v1344
  %v1464 = vadd.f32 %v876, %v1347
  %v1465 = vadd.f32 %v879, %v1350
  %v1466 = vadd.f32 %v882, %v1353
  %v1467 = vadd.f32 %v885, %v1356
  %v1468 = vadd.f32 %v888, %v1359
  %v1469 = vadd.f32 %v891, %v1362
  %v1470 = vadd.f32 %v894, %v1365
  %v1471 = vadd.f32 %v897, %v1368
  %v1472 = vadd.f32 %v900, %v1371
  %v1473 = vadd.f32 %v903, %v1374
  %v1474 = vadd.f32 %v906, %v1377
  %v1475 = vadd.f32 %v909, %v1380
  %v1476 = vadd.f32 %v912, %v1383
  %v1477 = vadd.f32 %v915, %v1386
  %v1478 = vadd.f32 %v918, %v1389
  %v1479 = vadd.f32 %v921, %v1392
  %v1480 = vadd.f32 %v924, %v1395
  %v1481 = vadd.f32 %v927, %v1398
  %v1482 = vadd.f32 %v930, %v1401
  %v1483 = vadd.f32 %v933, %v1404
  %v1484 = vadd.f32 %v936, %v1407
  %v1485 = vadd.f32 %v939, %v1410
  %v1486 = vadd.f32 %v942, %v1413
  %v1487 = vadd.f32 %v945, %v1416
  %v1488 = vadd.f32 %v948, %v1419
  %v1489 = vadd.f32 %v951, %v1422
  %v1490 = vadd.f32 %v954, %v1425
  %s1491 = scalar_lea.vmem %s0, 840
  %v1492 = vld [vmem:[%s1491] sm:$0xff]
  %v1493 = vld [vmem:[%s1491 + $0x8] sm:$0xff]
  %v1494 = vld [vmem:[%s1491 + $0x18] sm:$0xff]
  %v1495 = vld [vmem:[%s1491 + $0x20] sm:$0xff]
  %v1496 = vld [vmem:[%s1491 + $0x30] sm:$0xff]
  %v1497 = vld [vmem:[%s1491 + $0x38] sm:$0xff]
  %v1498 = vld [vmem:[%s1491 + $0x48] sm:$0xff]
  %v1499 = vld [vmem:[%s1491 + $0x50] sm:$0xff]
  %v1500 = vld [vmem:[%s1491 + $0x60] sm:$0xff]
  %v1501 = vld [vmem:[%s1491 + $0x68] sm:$0xff]
  %v1502 = vld [vmem:[%s1491 + $0x78] sm:$0xff]
  %v1503 = vld [vmem:[%s1491 + $0x80] sm:$0xff]
  %v1504 = vld [vmem:[%s1491 + $0x90] sm:$0xff]
  %v1505 = vld [vmem:[%s1491 + $0x98] sm:$0xff]
  %v1506 = vld [vmem:[%s1491 + $0xa8] sm:$0xff]
  %v1507 = vld [vmem:[%s1491 + $0xb0] sm:$0xff]
  %v1508 = vld [vmem:[%s1491 + $0xc0] sm:$0xff]
  %v1509 = vld [vmem:[%s1491 + $0xc8] sm:$0xff]
  %v1510 = vld [vmem:[%s1491 + $0xd8] sm:$0xff]
  %v1511 = vld [vmem:[%s1491 + $0xe0] sm:$0xff]
  %v1512 = vld [vmem:[%s1491 + $0xf0] sm:$0xff]
  %v1513 = vld [vmem:[%s1491 + $0xf8] sm:$0xff]
  %v1514 = vld [vmem:[%s1491 + $0x108] sm:$0xff]
  %v1515 = vld [vmem:[%s1491 + $0x110] sm:$0xff]
  %v1516 = vld [vmem:[%s1491 + $0x120] sm:$0xff]
  %v1517 = vld [vmem:[%s1491 + $0x128] sm:$0xff]
  %v1518 = vld [vmem:[%s1491 + $0x138] sm:$0xff]
  %v1519 = vld [vmem:[%s1491 + $0x140] sm:$0xff]
  %v1520 = vld [vmem:[%s1491 + $0x150] sm:$0xff]
  %v1521 = vld [vmem:[%s1491 + $0x158] sm:$0xff]
  %v1522 = vld [vmem:[%s1491 + $0x168] sm:$0xff]
  %v1523 = vld [vmem:[%s1491 + $0x170] sm:$0xff]
  %v1524 = vld [vmem:[%s1491 + $0x198] sm:$0xff]
  %v1525 = vld [vmem:[%s1491 + $0x1a0] sm:$0xff]
  %v1526 = vld [vmem:[%s1491 + $0x1b0] sm:$0xff]
  %v1527 = vld [vmem:[%s1491 + $0x1b8] sm:$0xff]
  %v1528 = vld [vmem:[%s1491 + $0x1c8] sm:$0xff]
  %v1529 = vld [vmem:[%s1491 + $0x1d0] sm:$0xff]
  %v1530 = vld [vmem:[%s1491 + $0x1e0] sm:$0xff]
  %v1531 = vld [vmem:[%s1491 + $0x1e8] sm:$0xff]
  %v1532 = vld [vmem:[%s1491 + $0x1f8] sm:$0xff]
  %v1533 = vld [vmem:[%s1491 + $0x200] sm:$0xff]
  %v1534 = vld [vmem:[%s1491 + $0x210] sm:$0xff]
  %v1535 = vld [vmem:[%s1491 + $0x218] sm:$0xff]
  %v1536 = vld [vmem:[%s1491 + $0x228] sm:$0xff]
  %v1537 = vld [vmem:[%s1491 + $0x230] sm:$0xff]
  %v1538 = vld [vmem:[%s1491 + $0x240] sm:$0xff]
  %v1539 = vld [vmem:[%s1491 + $0x248] sm:$0xff]
  %v1540 = vld [vmem:[%s1491 + $0x258] sm:$0xff]
  %v1541 = vld [vmem:[%s1491 + $0x260] sm:$0xff]
  %v1542 = vld [vmem:[%s1491 + $0x270] sm:$0xff]
  %v1543 = vld [vmem:[%s1491 + $0x278] sm:$0xff]
  %v1544 = vld [vmem:[%s1491 + $0x288] sm:$0xff]
  %v1545 = vld [vmem:[%s1491 + $0x290] sm:$0xff]
  %v1546 = vld [vmem:[%s1491 + $0x2a0] sm:$0xff]
  %v1547 = vld [vmem:[%s1491 + $0x2a8] sm:$0xff]
  %v1548 = vld [vmem:[%s1491 + $0x2b8] sm:$0xff]
  %v1549 = vld [vmem:[%s1491 + $0x2c0] sm:$0xff]
  %v1550 = vld [vmem:[%s1491 + $0x2d0] sm:$0xff]
  %v1551 = vld [vmem:[%s1491 + $0x2d8] sm:$0xff]
  %v1552 = vld [vmem:[%s1491 + $0x2e8] sm:$0xff]
  %v1553 = vld [vmem:[%s1491 + $0x2f0] sm:$0xff]
  %v1554 = vld [vmem:[%s1491 + $0x300] sm:$0xff]
  %v1555 = vld [vmem:[%s1491 + $0x308] sm:$0xff]
  %s1556 = scalar_lea.vmem %s1, 12
  %v1557 = vld [vmem:[%s1556] sm:$0xf]
  %v1559 = vsel %vm146, %v1492, 0
  %v1562 = vsel %vm146, %v1493, 0
  %v1565 = vsel %vm146, %v1494, 0
  %v1568 = vsel %vm146, %v1495, 0
  %v1571 = vsel %vm146, %v1496, 0
  %v1574 = vsel %vm146, %v1497, 0
  %v1577 = vsel %vm146, %v1498, 0
  %v1580 = vsel %vm146, %v1499, 0
  %v1583 = vsel %vm146, %v1500, 0
  %v1586 = vsel %vm146, %v1501, 0
  %v1589 = vsel %vm146, %v1502, 0
  %v1592 = vsel %vm146, %v1503, 0
  %v1595 = vsel %vm146, %v1504, 0
  %v1598 = vsel %vm146, %v1505, 0
  %v1601 = vsel %vm146, %v1506, 0
  %v1604 = vsel %vm146, %v1507, 0
  %v1607 = vsel %vm146, %v1508, 0
  %v1610 = vsel %vm146, %v1509, 0
  %v1613 = vsel %vm146, %v1510, 0
  %v1616 = vsel %vm146, %v1511, 0
  %v1619 = vsel %vm146, %v1512, 0
  %v1622 = vsel %vm146, %v1513, 0
  %v1625 = vsel %vm146, %v1514, 0
  %v1628 = vsel %vm146, %v1515, 0
  %v1631 = vsel %vm146, %v1516, 0
  %v1634 = vsel %vm146, %v1517, 0
  %v1637 = vsel %vm146, %v1518, 0
  %v1640 = vsel %vm146, %v1519, 0
  %v1643 = vsel %vm146, %v1520, 0
  %v1646 = vsel %vm146, %v1521, 0
  %v1649 = vsel %vm146, %v1522, 0
  %v1652 = vsel %vm146, %v1523, 0
  %v1655 = vsel %vm146, %v1524, 0
  %v1658 = vsel %vm146, %v1525, 0
  %v1661 = vsel %vm146, %v1526, 0
  %v1664 = vsel %vm146, %v1527, 0
  %v1667 = vsel %vm146, %v1528, 0
  %v1670 = vsel %vm146, %v1529, 0
  %v1673 = vsel %vm146, %v1530, 0
  %v1676 = vsel %vm146, %v1531, 0
  %v1679 = vsel %vm146, %v1532, 0
  %v1682 = vsel %vm146, %v1533, 0
  %v1685 = vsel %vm146, %v1534, 0
  %v1688 = vsel %vm146, %v1535, 0
  %v1691 = vsel %vm146, %v1536, 0
  %v1694 = vsel %vm146, %v1537, 0
  %v1697 = vsel %vm146, %v1538, 0
  %v1700 = vsel %vm146, %v1539, 0
  %v1703 = vsel %vm146, %v1540, 0
  %v1706 = vsel %vm146, %v1541, 0
  %v1709 = vsel %vm146, %v1542, 0
  %v1712 = vsel %vm146, %v1543, 0
  %v1715 = vsel %vm146, %v1544, 0
  %v1718 = vsel %vm146, %v1545, 0
  %v1721 = vsel %vm146, %v1546, 0
  %v1724 = vsel %vm146, %v1547, 0
  %v1727 = vsel %vm146, %v1548, 0
  %v1730 = vsel %vm146, %v1549, 0
  %v1733 = vsel %vm146, %v1550, 0
  %v1736 = vsel %vm146, %v1551, 0
  %v1739 = vsel %vm146, %v1552, 0
  %v1742 = vsel %vm146, %v1553, 0
  %v1745 = vsel %vm146, %v1554, 0
  %v1748 = vsel %vm146, %v1555, 0
  %v1751 = vsel %vm339, %v1557, 0
  %1753 = vmatpush.msra.mxu0 0.0
  %1754 = vmatpush.msra.mxu0 0.0
  %1755 = vmatpush.msra.mxu0 0.0
  %1756 = vmatpush.msra.mxu0 0.0
  %1757 = vmatpush.msra.mxu0 0.0
  %1758 = vmatpush.msra.mxu0 0.0
  %1759 = vmatpush.msra.mxu0 0.0
  %1760 = vmatpush.msra.mxu0 0.0
  %1761 = vmatpush.msra.mxu0 0.0
  %1762 = vmatpush.msra.mxu0 0.0
  %1763 = vmatpush.msra.mxu0 0.0
  %1764 = vmatpush.msra.mxu0 0.0
  %1765 = vmatpush.msra.mxu0 0.0
  %1766 = vmatpush.msra.mxu0 0.0
  %1767 = vmatpush.msra.mxu0 0.0
  %1768 = vmatpush.msra.mxu0 %v1751
  %1769 = vmatmul.f32.gmra.mxu0 %v1559
  %v1770 = vpop.f32.mrf.mxu0
  %v1771 = vadd.f32 0.0, %v1770
  %1772 = vmatmul.f32.gmra.mxu0 %v1562
  %v1773 = vpop.f32.mrf.mxu0
  %v1774 = vadd.f32 0.0, %v1773
  %1775 = vmatmul.f32.gmra.mxu0 %v1565
  %v1776 = vpop.f32.mrf.mxu0
  %v1777 = vadd.f32 0.0, %v1776
  %1778 = vmatmul.f32.gmra.mxu0 %v1568
  %v1779 = vpop.f32.mrf.mxu0
  %v1780 = vadd.f32 0.0, %v1779
  %1781 = vmatmul.f32.gmra.mxu0 %v1571
  %v1782 = vpop.f32.mrf.mxu0
  %v1783 = vadd.f32 0.0, %v1782
  %1784 = vmatmul.f32.gmra.mxu0 %v1574
  %v1785 = vpop.f32.mrf.mxu0
  %v1786 = vadd.f32 0.0, %v1785
  %1787 = vmatmul.f32.gmra.mxu0 %v1577
  %v1788 = vpop.f32.mrf.mxu0
  %v1789 = vadd.f32 0.0, %v1788
  %1790 = vmatmul.f32.gmra.mxu0 %v1580
  %v1791 = vpop.f32.mrf.mxu0
  %v1792 = vadd.f32 0.0, %v1791
  %1793 = vmatmul.f32.gmra.mxu0 %v1583
  %v1794 = vpop.f32.mrf.mxu0
  %v1795 = vadd.f32 0.0, %v1794
  %1796 = vmatmul.f32.gmra.mxu0 %v1586
  %v1797 = vpop.f32.mrf.mxu0
  %v1798 = vadd.f32 0.0, %v1797
  %1799 = vmatmul.f32.gmra.mxu0 %v1589
  %v1800 = vpop.f32.mrf.mxu0
  %v1801 = vadd.f32 0.0, %v1800
  %1802 = vmatmul.f32.gmra.mxu0 %v1592
  %v1803 = vpop.f32.mrf.mxu0
  %v1804 = vadd.f32 0.0, %v1803
  %1805 = vmatmul.f32.gmra.mxu0 %v1595
  %v1806 = vpop.f32.mrf.mxu0
  %v1807 = vadd.f32 0.0, %v1806
  %1808 = vmatmul.f32.gmra.mxu0 %v1598
  %v1809 = vpop.f32.mrf.mxu0
  %v1810 = vadd.f32 0.0, %v1809
  %1811 = vmatmul.f32.gmra.mxu0 %v1601
  %v1812 = vpop.f32.mrf.mxu0
  %v1813 = vadd.f32 0.0, %v1812
  %1814 = vmatmul.f32.gmra.mxu0 %v1604
  %v1815 = vpop.f32.mrf.mxu0
  %v1816 = vadd.f32 0.0, %v1815
  %1817 = vmatmul.f32.gmra.mxu0 %v1607
  %v1818 = vpop.f32.mrf.mxu0
  %v1819 = vadd.f32 0.0, %v1818
  %1820 = vmatmul.f32.gmra.mxu0 %v1610
  %v1821 = vpop.f32.mrf.mxu0
  %v1822 = vadd.f32 0.0, %v1821
  %1823 = vmatmul.f32.gmra.mxu0 %v1613
  %v1824 = vpop.f32.mrf.mxu0
  %v1825 = vadd.f32 0.0, %v1824
  %1826 = vmatmul.f32.gmra.mxu0 %v1616
  %v1827 = vpop.f32.mrf.mxu0
  %v1828 = vadd.f32 0.0, %v1827
  %1829 = vmatmul.f32.gmra.mxu0 %v1619
  %v1830 = vpop.f32.mrf.mxu0
  %v1831 = vadd.f32 0.0, %v1830
  %1832 = vmatmul.f32.gmra.mxu0 %v1622
  %v1833 = vpop.f32.mrf.mxu0
  %v1834 = vadd.f32 0.0, %v1833
  %1835 = vmatmul.f32.gmra.mxu0 %v1625
  %v1836 = vpop.f32.mrf.mxu0
  %v1837 = vadd.f32 0.0, %v1836
  %1838 = vmatmul.f32.gmra.mxu0 %v1628
  %v1839 = vpop.f32.mrf.mxu0
  %v1840 = vadd.f32 0.0, %v1839
  %1841 = vmatmul.f32.gmra.mxu0 %v1631
  %v1842 = vpop.f32.mrf.mxu0
  %v1843 = vadd.f32 0.0, %v1842
  %1844 = vmatmul.f32.gmra.mxu0 %v1634
  %v1845 = vpop.f32.mrf.mxu0
  %v1846 = vadd.f32 0.0, %v1845
  %1847 = vmatmul.f32.gmra.mxu0 %v1637
  %v1848 = vpop.f32.mrf.mxu0
  %v1849 = vadd.f32 0.0, %v1848
  %1850 = vmatmul.f32.gmra.mxu0 %v1640
  %v1851 = vpop.f32.mrf.mxu0
  %v1852 = vadd.f32 0.0, %v1851
  %1853 = vmatmul.f32.gmra.mxu0 %v1643
  %v1854 = vpop.f32.mrf.mxu0
  %v1855 = vadd.f32 0.0, %v1854
  %1856 = vmatmul.f32.gmra.mxu0 %v1646
  %v1857 = vpop.f32.mrf.mxu0
  %v1858 = vadd.f32 0.0, %v1857
  %1859 = vmatmul.f32.gmra.mxu0 %v1649
  %v1860 = vpop.f32.mrf.mxu0
  %v1861 = vadd.f32 0.0, %v1860
  %1862 = vmatmul.f32.gmra.mxu0 %v1652
  %v1863 = vpop.f32.mrf.mxu0
  %v1864 = vadd.f32 0.0, %v1863
  %1865 = vmatmul.f32.gmra.mxu0 %v1655
  %v1866 = vpop.f32.mrf.mxu0
  %v1867 = vadd.f32 0.0, %v1866
  %1868 = vmatmul.f32.gmra.mxu0 %v1658
  %v1869 = vpop.f32.mrf.mxu0
  %v1870 = vadd.f32 0.0, %v1869
  %1871 = vmatmul.f32.gmra.mxu0 %v1661
  %v1872 = vpop.f32.mrf.mxu0
  %v1873 = vadd.f32 0.0, %v1872
  %1874 = vmatmul.f32.gmra.mxu0 %v1664
  %v1875 = vpop.f32.mrf.mxu0
  %v1876 = vadd.f32 0.0, %v1875
  %1877 = vmatmul.f32.gmra.mxu0 %v1667
  %v1878 = vpop.f32.mrf.mxu0
  %v1879 = vadd.f32 0.0, %v1878
  %1880 = vmatmul.f32.gmra.mxu0 %v1670
  %v1881 = vpop.f32.mrf.mxu0
  %v1882 = vadd.f32 0.0, %v1881
  %1883 = vmatmul.f32.gmra.mxu0 %v1673
  %v1884 = vpop.f32.mrf.mxu0
  %v1885 = vadd.f32 0.0, %v1884
  %1886 = vmatmul.f32.gmra.mxu0 %v1676
  %v1887 = vpop.f32.mrf.mxu0
  %v1888 = vadd.f32 0.0, %v1887
  %1889 = vmatmul.f32.gmra.mxu0 %v1679
  %v1890 = vpop.f32.mrf.mxu0
  %v1891 = vadd.f32 0.0, %v1890
  %1892 = vmatmul.f32.gmra.mxu0 %v1682
  %v1893 = vpop.f32.mrf.mxu0
  %v1894 = vadd.f32 0.0, %v1893
  %1895 = vmatmul.f32.gmra.mxu0 %v1685
  %v1896 = vpop.f32.mrf.mxu0
  %v1897 = vadd.f32 0.0, %v1896
  %1898 = vmatmul.f32.gmra.mxu0 %v1688
  %v1899 = vpop.f32.mrf.mxu0
  %v1900 = vadd.f32 0.0, %v1899
  %1901 = vmatmul.f32.gmra.mxu0 %v1691
  %v1902 = vpop.f32.mrf.mxu0
  %v1903 = vadd.f32 0.0, %v1902
  %1904 = vmatmul.f32.gmra.mxu0 %v1694
  %v1905 = vpop.f32.mrf.mxu0
  %v1906 = vadd.f32 0.0, %v1905
  %1907 = vmatmul.f32.gmra.mxu0 %v1697
  %v1908 = vpop.f32.mrf.mxu0
  %v1909 = vadd.f32 0.0, %v1908
  %1910 = vmatmul.f32.gmra.mxu0 %v1700
  %v1911 = vpop.f32.mrf.mxu0
  %v1912 = vadd.f32 0.0, %v1911
  %1913 = vmatmul.f32.gmra.mxu0 %v1703
  %v1914 = vpop.f32.mrf.mxu0
  %v1915 = vadd.f32 0.0, %v1914
  %1916 = vmatmul.f32.gmra.mxu0 %v1706
  %v1917 = vpop.f32.mrf.mxu0
  %v1918 = vadd.f32 0.0, %v1917
  %1919 = vmatmul.f32.gmra.mxu0 %v1709
  %v1920 = vpop.f32.mrf.mxu0
  %v1921 = vadd.f32 0.0, %v1920
  %1922 = vmatmul.f32.gmra.mxu0 %v1712
  %v1923 = vpop.f32.mrf.mxu0
  %v1924 = vadd.f32 0.0, %v1923
  %1925 = vmatmul.f32.gmra.mxu0 %v1715
  %v1926 = vpop.f32.mrf.mxu0
  %v1927 = vadd.f32 0.0, %v1926
  %1928 = vmatmul.f32.gmra.mxu0 %v1718
  %v1929 = vpop.f32.mrf.mxu0
  %v1930 = vadd.f32 0.0, %v1929
  %1931 = vmatmul.f32.gmra.mxu0 %v1721
  %v1932 = vpop.f32.mrf.mxu0
  %v1933 = vadd.f32 0.0, %v1932
  %1934 = vmatmul.f32.gmra.mxu0 %v1724
  %v1935 = vpop.f32.mrf.mxu0
  %v1936 = vadd.f32 0.0, %v1935
  %1937 = vmatmul.f32.gmra.mxu0 %v1727
  %v1938 = vpop.f32.mrf.mxu0
  %v1939 = vadd.f32 0.0, %v1938
  %1940 = vmatmul.f32.gmra.mxu0 %v1730
  %v1941 = vpop.f32.mrf.mxu0
  %v1942 = vadd.f32 0.0, %v1941
  %1943 = vmatmul.f32.gmra.mxu0 %v1733
  %v1944 = vpop.f32.mrf.mxu0
  %v1945 = vadd.f32 0.0, %v1944
  %1946 = vmatmul.f32.gmra.mxu0 %v1736
  %v1947 = vpop.f32.mrf.mxu0
  %v1948 = vadd.f32 0.0, %v1947
  %1949 = vmatmul.f32.gmra.mxu0 %v1739
  %v1950 = vpop.f32.mrf.mxu0
  %v1951 = vadd.f32 0.0, %v1950
  %1952 = vmatmul.f32.gmra.mxu0 %v1742
  %v1953 = vpop.f32.mrf.mxu0
  %v1954 = vadd.f32 0.0, %v1953
  %1955 = vmatmul.f32.gmra.mxu0 %v1745
  %v1956 = vpop.f32.mrf.mxu0
  %v1957 = vadd.f32 0.0, %v1956
  %1958 = vmatmul.f32.gmra.mxu0 %v1748
  %v1959 = vpop.f32.mrf.mxu0
  %v1960 = vadd.f32 0.0, %v1959
  %1961 = vdwg.mxu0
  %v1962 = vadd.f32 %v1427, %v1771
  %v1963 = vadd.f32 %v1428, %v1774
  %v1964 = vadd.f32 %v1429, %v1777
  %v1965 = vadd.f32 %v1430, %v1780
  %v1966 = vadd.f32 %v1431, %v1783
  %v1967 = vadd.f32 %v1432, %v1786
  %v1968 = vadd.f32 %v1433, %v1789
  %v1969 = vadd.f32 %v1434, %v1792
  %v1970 = vadd.f32 %v1435, %v1795
  %v1971 = vadd.f32 %v1436, %v1798
  %v1972 = vadd.f32 %v1437, %v1801
  %v1973 = vadd.f32 %v1438, %v1804
  %v1974 = vadd.f32 %v1439, %v1807
  %v1975 = vadd.f32 %v1440, %v1810
  %v1976 = vadd.f32 %v1441, %v1813
  %v1977 = vadd.f32 %v1442, %v1816
  %v1978 = vadd.f32 %v1443, %v1819
  %v1979 = vadd.f32 %v1444, %v1822
  %v1980 = vadd.f32 %v1445, %v1825
  %v1981 = vadd.f32 %v1446, %v1828
  %v1982 = vadd.f32 %v1447, %v1831
  %v1983 = vadd.f32 %v1448, %v1834
  %v1984 = vadd.f32 %v1449, %v1837
  %v1985 = vadd.f32 %v1450, %v1840
  %v1986 = vadd.f32 %v1451, %v1843
  %v1987 = vadd.f32 %v1452, %v1846
  %v1988 = vadd.f32 %v1453, %v1849
  %v1989 = vadd.f32 %v1454, %v1852
  %v1990 = vadd.f32 %v1455, %v1855
  %v1991 = vadd.f32 %v1456, %v1858
  %v1992 = vadd.f32 %v1457, %v1861
  %v1993 = vadd.f32 %v1458, %v1864
  %v1994 = vadd.f32 %v1459, %v1867
  %v1995 = vadd.f32 %v1460, %v1870
  %v1996 = vadd.f32 %v1461, %v1873
  %v1997 = vadd.f32 %v1462, %v1876
  %v1998 = vadd.f32 %v1463, %v1879
  %v1999 = vadd.f32 %v1464, %v1882
  %v2000 = vadd.f32 %v1465, %v1885
  %v2001 = vadd.f32 %v1466, %v1888
  %v2002 = vadd.f32 %v1467, %v1891
  %v2003 = vadd.f32 %v1468, %v1894
  %v2004 = vadd.f32 %v1469, %v1897
  %v2005 = vadd.f32 %v1470, %v1900
  %v2006 = vadd.f32 %v1471, %v1903
  %v2007 = vadd.f32 %v1472, %v1906
  %v2008 = vadd.f32 %v1473, %v1909
  %v2009 = vadd.f32 %v1474, %v1912
  %v2010 = vadd.f32 %v1475, %v1915
  %v2011 = vadd.f32 %v1476, %v1918
  %v2012 = vadd.f32 %v1477, %v1921
  %v2013 = vadd.f32 %v1478, %v1924
  %v2014 = vadd.f32 %v1479, %v1927
  %v2015 = vadd.f32 %v1480, %v1930
  %v2016 = vadd.f32 %v1481, %v1933
  %v2017 = vadd.f32 %v1482, %v1936
  %v2018 = vadd.f32 %v1483, %v1939
  %v2019 = vadd.f32 %v1484, %v1942
  %v2020 = vadd.f32 %v1485, %v1945
  %v2021 = vadd.f32 %v1486, %v1948
  %v2022 = vadd.f32 %v1487, %v1951
  %v2023 = vadd.f32 %v1488, %v1954
  %v2024 = vadd.f32 %v1489, %v1957
  %v2025 = vadd.f32 %v1490, %v1960
  %s2026 = scalar_lea.vmem %s0, 1632
  %v2027 = vld [vmem:[%s2026] sm:$0xff]
  %v2028 = vld [vmem:[%s2026 + $0x8] sm:$0xff]
  %v2029 = vld [vmem:[%s2026 + $0x18] sm:$0xff]
  %v2030 = vld [vmem:[%s2026 + $0x20] sm:$0xff]
  %v2031 = vld [vmem:[%s2026 + $0x30] sm:$0xff]
  %v2032 = vld [vmem:[%s2026 + $0x38] sm:$0xff]
  %v2033 = vld [vmem:[%s2026 + $0x48] sm:$0xff]
  %v2034 = vld [vmem:[%s2026 + $0x50] sm:$0xff]
  %v2035 = vld [vmem:[%s2026 + $0x60] sm:$0xff]
  %v2036 = vld [vmem:[%s2026 + $0x68] sm:$0xff]
  %v2037 = vld [vmem:[%s2026 + $0x78] sm:$0xff]
  %v2038 = vld [vmem:[%s2026 + $0x80] sm:$0xff]
  %v2039 = vld [vmem:[%s2026 + $0x90] sm:$0xff]
  %v2040 = vld [vmem:[%s2026 + $0x98] sm:$0xff]
  %v2041 = vld [vmem:[%s2026 + $0xa8] sm:$0xff]
  %v2042 = vld [vmem:[%s2026 + $0xb0] sm:$0xff]
  %v2043 = vld [vmem:[%s2026 + $0xc0] sm:$0xff]
  %v2044 = vld [vmem:[%s2026 + $0xc8] sm:$0xff]
  %v2045 = vld [vmem:[%s2026 + $0xd8] sm:$0xff]
  %v2046 = vld [vmem:[%s2026 + $0xe0] sm:$0xff]
  %v2047 = vld [vmem:[%s2026 + $0xf0] sm:$0xff]
  %v2048 = vld [vmem:[%s2026 + $0xf8] sm:$0xff]
  %v2049 = vld [vmem:[%s2026 + $0x108] sm:$0xff]
  %v2050 = vld [vmem:[%s2026 + $0x110] sm:$0xff]
  %v2051 = vld [vmem:[%s2026 + $0x120] sm:$0xff]
  %v2052 = vld [vmem:[%s2026 + $0x128] sm:$0xff]
  %v2053 = vld [vmem:[%s2026 + $0x138] sm:$0xff]
  %v2054 = vld [vmem:[%s2026 + $0x140] sm:$0xff]
  %v2055 = vld [vmem:[%s2026 + $0x150] sm:$0xff]
  %v2056 = vld [vmem:[%s2026 + $0x158] sm:$0xff]
  %v2057 = vld [vmem:[%s2026 + $0x168] sm:$0xff]
  %v2058 = vld [vmem:[%s2026 + $0x170] sm:$0xff]
  %v2059 = vld [vmem:[%s2026 + $0x198] sm:$0xff]
  %v2060 = vld [vmem:[%s2026 + $0x1a0] sm:$0xff]
  %v2061 = vld [vmem:[%s2026 + $0x1b0] sm:$0xff]
  %v2062 = vld [vmem:[%s2026 + $0x1b8] sm:$0xff]
  %v2063 = vld [vmem:[%s2026 + $0x1c8] sm:$0xff]
  %v2064 = vld [vmem:[%s2026 + $0x1d0] sm:$0xff]
  %v2065 = vld [vmem:[%s2026 + $0x1e0] sm:$0xff]
  %v2066 = vld [vmem:[%s2026 + $0x1e8] sm:$0xff]
  %v2067 = vld [vmem:[%s2026 + $0x1f8] sm:$0xff]
  %v2068 = vld [vmem:[%s2026 + $0x200] sm:$0xff]
  %v2069 = vld [vmem:[%s2026 + $0x210] sm:$0xff]
  %v2070 = vld [vmem:[%s2026 + $0x218] sm:$0xff]
  %v2071 = vld [vmem:[%s2026 + $0x228] sm:$0xff]
  %v2072 = vld [vmem:[%s2026 + $0x230] sm:$0xff]
  %v2073 = vld [vmem:[%s2026 + $0x240] sm:$0xff]
  %v2074 = vld [vmem:[%s2026 + $0x248] sm:$0xff]
  %v2075 = vld [vmem:[%s2026 + $0x258] sm:$0xff]
  %v2076 = vld [vmem:[%s2026 + $0x260] sm:$0xff]
  %v2077 = vld [vmem:[%s2026 + $0x270] sm:$0xff]
  %v2078 = vld [vmem:[%s2026 + $0x278] sm:$0xff]
  %v2079 = vld [vmem:[%s2026 + $0x288] sm:$0xff]
  %v2080 = vld [vmem:[%s2026 + $0x290] sm:$0xff]
  %v2081 = vld [vmem:[%s2026 + $0x2a0] sm:$0xff]
  %v2082 = vld [vmem:[%s2026 + $0x2a8] sm:$0xff]
  %v2083 = vld [vmem:[%s2026 + $0x2b8] sm:$0xff]
  %v2084 = vld [vmem:[%s2026 + $0x2c0] sm:$0xff]
  %v2085 = vld [vmem:[%s2026 + $0x2d0] sm:$0xff]
  %v2086 = vld [vmem:[%s2026 + $0x2d8] sm:$0xff]
  %v2087 = vld [vmem:[%s2026 + $0x2e8] sm:$0xff]
  %v2088 = vld [vmem:[%s2026 + $0x2f0] sm:$0xff]
  %v2089 = vld [vmem:[%s2026 + $0x300] sm:$0xff]
  %v2090 = vld [vmem:[%s2026 + $0x308] sm:$0xff]
  %s2091 = scalar_lea.vmem %s1, 16
  %v2092 = vld [vmem:[%s2091] sm:$0xf]
  %v2094 = vsel %vm146, %v2027, 0
  %v2097 = vsel %vm146, %v2028, 0
  %v2100 = vsel %vm146, %v2029, 0
  %v2103 = vsel %vm146, %v2030, 0
  %v2106 = vsel %vm146, %v2031, 0
  %v2109 = vsel %vm146, %v2032, 0
  %v2112 = vsel %vm146, %v2033, 0
  %v2115 = vsel %vm146, %v2034, 0
  %v2118 = vsel %vm146, %v2035, 0
  %v2121 = vsel %vm146, %v2036, 0
  %v2124 = vsel %vm146, %v2037, 0
  %v2127 = vsel %vm146, %v2038, 0
  %v2130 = vsel %vm146, %v2039, 0
  %v2133 = vsel %vm146, %v2040, 0
  %v2136 = vsel %vm146, %v2041, 0
  %v2139 = vsel %vm146, %v2042, 0
  %v2142 = vsel %vm146, %v2043, 0
  %v2145 = vsel %vm146, %v2044, 0
  %v2148 = vsel %vm146, %v2045, 0
  %v2151 = vsel %vm146, %v2046, 0
  %v2154 = vsel %vm146, %v2047, 0
  %v2157 = vsel %vm146, %v2048, 0
  %v2160 = vsel %vm146, %v2049, 0
  %v2163 = vsel %vm146, %v2050, 0
  %v2166 = vsel %vm146, %v2051, 0
  %v2169 = vsel %vm146, %v2052, 0
  %v2172 = vsel %vm146, %v2053, 0
  %v2175 = vsel %vm146, %v2054, 0
  %v2178 = vsel %vm146, %v2055, 0
  %v2181 = vsel %vm146, %v2056, 0
  %v2184 = vsel %vm146, %v2057, 0
  %v2187 = vsel %vm146, %v2058, 0
  %v2190 = vsel %vm146, %v2059, 0
  %v2193 = vsel %vm146, %v2060, 0
  %v2196 = vsel %vm146, %v2061, 0
  %v2199 = vsel %vm146, %v2062, 0
  %v2202 = vsel %vm146, %v2063, 0
  %v2205 = vsel %vm146, %v2064, 0
  %v2208 = vsel %vm146, %v2065, 0
  %v2211 = vsel %vm146, %v2066, 0
  %v2214 = vsel %vm146, %v2067, 0
  %v2217 = vsel %vm146, %v2068, 0
  %v2220 = vsel %vm146, %v2069, 0
  %v2223 = vsel %vm146, %v2070, 0
  %v2226 = vsel %vm146, %v2071, 0
  %v2229 = vsel %vm146, %v2072, 0
  %v2232 = vsel %vm146, %v2073, 0
  %v2235 = vsel %vm146, %v2074, 0
  %v2238 = vsel %vm146, %v2075, 0
  %v2241 = vsel %vm146, %v2076, 0
  %v2244 = vsel %vm146, %v2077, 0
  %v2247 = vsel %vm146, %v2078, 0
  %v2250 = vsel %vm146, %v2079, 0
  %v2253 = vsel %vm146, %v2080, 0
  %v2256 = vsel %vm146, %v2081, 0
  %v2259 = vsel %vm146, %v2082, 0
  %v2262 = vsel %vm146, %v2083, 0
  %v2265 = vsel %vm146, %v2084, 0
  %v2268 = vsel %vm146, %v2085, 0
  %v2271 = vsel %vm146, %v2086, 0
  %v2274 = vsel %vm146, %v2087, 0
  %v2277 = vsel %vm146, %v2088, 0
  %v2280 = vsel %vm146, %v2089, 0
  %v2283 = vsel %vm146, %v2090, 0
  %v2286 = vsel %vm339, %v2092, 0
  %2288 = vmatpush.msra.mxu0 0.0
  %2289 = vmatpush.msra.mxu0 0.0
  %2290 = vmatpush.msra.mxu0 0.0
  %2291 = vmatpush.msra.mxu0 0.0
  %2292 = vmatpush.msra.mxu0 0.0
  %2293 = vmatpush.msra.mxu0 0.0
  %2294 = vmatpush.msra.mxu0 0.0
  %2295 = vmatpush.msra.mxu0 0.0
  %2296 = vmatpush.msra.mxu0 0.0
  %2297 = vmatpush.msra.mxu0 0.0
  %2298 = vmatpush.msra.mxu0 0.0
  %2299 = vmatpush.msra.mxu0 0.0
  %2300 = vmatpush.msra.mxu0 0.0
  %2301 = vmatpush.msra.mxu0 0.0
  %2302 = vmatpush.msra.mxu0 0.0
  %2303 = vmatpush.msra.mxu0 %v2286
  %2304 = vmatmul.f32.gmra.mxu0 %v2094
  %v2305 = vpop.f32.mrf.mxu0
  %v2306 = vadd.f32 0.0, %v2305
  %2307 = vmatmul.f32.gmra.mxu0 %v2097
  %v2308 = vpop.f32.mrf.mxu0
  %v2309 = vadd.f32 0.0, %v2308
  %2310 = vmatmul.f32.gmra.mxu0 %v2100
  %v2311 = vpop.f32.mrf.mxu0
  %v2312 = vadd.f32 0.0, %v2311
  %2313 = vmatmul.f32.gmra.mxu0 %v2103
  %v2314 = vpop.f32.mrf.mxu0
  %v2315 = vadd.f32 0.0, %v2314
  %2316 = vmatmul.f32.gmra.mxu0 %v2106
  %v2317 = vpop.f32.mrf.mxu0
  %v2318 = vadd.f32 0.0, %v2317
  %2319 = vmatmul.f32.gmra.mxu0 %v2109
  %v2320 = vpop.f32.mrf.mxu0
  %v2321 = vadd.f32 0.0, %v2320
  %2322 = vmatmul.f32.gmra.mxu0 %v2112
  %v2323 = vpop.f32.mrf.mxu0
  %v2324 = vadd.f32 0.0, %v2323
  %2325 = vmatmul.f32.gmra.mxu0 %v2115
  %v2326 = vpop.f32.mrf.mxu0
  %v2327 = vadd.f32 0.0, %v2326
  %2328 = vmatmul.f32.gmra.mxu0 %v2118
  %v2329 = vpop.f32.mrf.mxu0
  %v2330 = vadd.f32 0.0, %v2329
  %2331 = vmatmul.f32.gmra.mxu0 %v2121
  %v2332 = vpop.f32.mrf.mxu0
  %v2333 = vadd.f32 0.0, %v2332
  %2334 = vmatmul.f32.gmra.mxu0 %v2124
  %v2335 = vpop.f32.mrf.mxu0
  %v2336 = vadd.f32 0.0, %v2335
  %2337 = vmatmul.f32.gmra.mxu0 %v2127
  %v2338 = vpop.f32.mrf.mxu0
  %v2339 = vadd.f32 0.0, %v2338
  %2340 = vmatmul.f32.gmra.mxu0 %v2130
  %v2341 = vpop.f32.mrf.mxu0
  %v2342 = vadd.f32 0.0, %v2341
  %2343 = vmatmul.f32.gmra.mxu0 %v2133
  %v2344 = vpop.f32.mrf.mxu0
  %v2345 = vadd.f32 0.0, %v2344
  %2346 = vmatmul.f32.gmra.mxu0 %v2136
  %v2347 = vpop.f32.mrf.mxu0
  %v2348 = vadd.f32 0.0, %v2347
  %2349 = vmatmul.f32.gmra.mxu0 %v2139
  %v2350 = vpop.f32.mrf.mxu0
  %v2351 = vadd.f32 0.0, %v2350
  %2352 = vmatmul.f32.gmra.mxu0 %v2142
  %v2353 = vpop.f32.mrf.mxu0
  %v2354 = vadd.f32 0.0, %v2353
  %2355 = vmatmul.f32.gmra.mxu0 %v2145
  %v2356 = vpop.f32.mrf.mxu0
  %v2357 = vadd.f32 0.0, %v2356
  %2358 = vmatmul.f32.gmra.mxu0 %v2148
  %v2359 = vpop.f32.mrf.mxu0
  %v2360 = vadd.f32 0.0, %v2359
  %2361 = vmatmul.f32.gmra.mxu0 %v2151
  %v2362 = vpop.f32.mrf.mxu0
  %v2363 = vadd.f32 0.0, %v2362
  %2364 = vmatmul.f32.gmra.mxu0 %v2154
  %v2365 = vpop.f32.mrf.mxu0
  %v2366 = vadd.f32 0.0, %v2365
  %2367 = vmatmul.f32.gmra.mxu0 %v2157
  %v2368 = vpop.f32.mrf.mxu0
  %v2369 = vadd.f32 0.0, %v2368
  %2370 = vmatmul.f32.gmra.mxu0 %v2160
  %v2371 = vpop.f32.mrf.mxu0
  %v2372 = vadd.f32 0.0, %v2371
  %2373 = vmatmul.f32.gmra.mxu0 %v2163
  %v2374 = vpop.f32.mrf.mxu0
  %v2375 = vadd.f32 0.0, %v2374
  %2376 = vmatmul.f32.gmra.mxu0 %v2166
  %v2377 = vpop.f32.mrf.mxu0
  %v2378 = vadd.f32 0.0, %v2377
  %2379 = vmatmul.f32.gmra.mxu0 %v2169
  %v2380 = vpop.f32.mrf.mxu0
  %v2381 = vadd.f32 0.0, %v2380
  %2382 = vmatmul.f32.gmra.mxu0 %v2172
  %v2383 = vpop.f32.mrf.mxu0
  %v2384 = vadd.f32 0.0, %v2383
  %2385 = vmatmul.f32.gmra.mxu0 %v2175
  %v2386 = vpop.f32.mrf.mxu0
  %v2387 = vadd.f32 0.0, %v2386
  %2388 = vmatmul.f32.gmra.mxu0 %v2178
  %v2389 = vpop.f32.mrf.mxu0
  %v2390 = vadd.f32 0.0, %v2389
  %2391 = vmatmul.f32.gmra.mxu0 %v2181
  %v2392 = vpop.f32.mrf.mxu0
  %v2393 = vadd.f32 0.0, %v2392
  %2394 = vmatmul.f32.gmra.mxu0 %v2184
  %v2395 = vpop.f32.mrf.mxu0
  %v2396 = vadd.f32 0.0, %v2395
  %2397 = vmatmul.f32.gmra.mxu0 %v2187
  %v2398 = vpop.f32.mrf.mxu0
  %v2399 = vadd.f32 0.0, %v2398
  %2400 = vmatmul.f32.gmra.mxu0 %v2190
  %v2401 = vpop.f32.mrf.mxu0
  %v2402 = vadd.f32 0.0, %v2401
  %2403 = vmatmul.f32.gmra.mxu0 %v2193
  %v2404 = vpop.f32.mrf.mxu0
  %v2405 = vadd.f32 0.0, %v2404
  %2406 = vmatmul.f32.gmra.mxu0 %v2196
  %v2407 = vpop.f32.mrf.mxu0
  %v2408 = vadd.f32 0.0, %v2407
  %2409 = vmatmul.f32.gmra.mxu0 %v2199
  %v2410 = vpop.f32.mrf.mxu0
  %v2411 = vadd.f32 0.0, %v2410
  %2412 = vmatmul.f32.gmra.mxu0 %v2202
  %v2413 = vpop.f32.mrf.mxu0
  %v2414 = vadd.f32 0.0, %v2413
  %2415 = vmatmul.f32.gmra.mxu0 %v2205
  %v2416 = vpop.f32.mrf.mxu0
  %v2417 = vadd.f32 0.0, %v2416
  %2418 = vmatmul.f32.gmra.mxu0 %v2208
  %v2419 = vpop.f32.mrf.mxu0
  %v2420 = vadd.f32 0.0, %v2419
  %2421 = vmatmul.f32.gmra.mxu0 %v2211
  %v2422 = vpop.f32.mrf.mxu0
  %v2423 = vadd.f32 0.0, %v2422
  %2424 = vmatmul.f32.gmra.mxu0 %v2214
  %v2425 = vpop.f32.mrf.mxu0
  %v2426 = vadd.f32 0.0, %v2425
  %2427 = vmatmul.f32.gmra.mxu0 %v2217
  %v2428 = vpop.f32.mrf.mxu0
  %v2429 = vadd.f32 0.0, %v2428
  %2430 = vmatmul.f32.gmra.mxu0 %v2220
  %v2431 = vpop.f32.mrf.mxu0
  %v2432 = vadd.f32 0.0, %v2431
  %2433 = vmatmul.f32.gmra.mxu0 %v2223
  %v2434 = vpop.f32.mrf.mxu0
  %v2435 = vadd.f32 0.0, %v2434
  %2436 = vmatmul.f32.gmra.mxu0 %v2226
  %v2437 = vpop.f32.mrf.mxu0
  %v2438 = vadd.f32 0.0, %v2437
  %2439 = vmatmul.f32.gmra.mxu0 %v2229
  %v2440 = vpop.f32.mrf.mxu0
  %v2441 = vadd.f32 0.0, %v2440
  %2442 = vmatmul.f32.gmra.mxu0 %v2232
  %v2443 = vpop.f32.mrf.mxu0
  %v2444 = vadd.f32 0.0, %v2443
  %2445 = vmatmul.f32.gmra.mxu0 %v2235
  %v2446 = vpop.f32.mrf.mxu0
  %v2447 = vadd.f32 0.0, %v2446
  %2448 = vmatmul.f32.gmra.mxu0 %v2238
  %v2449 = vpop.f32.mrf.mxu0
  %v2450 = vadd.f32 0.0, %v2449
  %2451 = vmatmul.f32.gmra.mxu0 %v2241
  %v2452 = vpop.f32.mrf.mxu0
  %v2453 = vadd.f32 0.0, %v2452
  %2454 = vmatmul.f32.gmra.mxu0 %v2244
  %v2455 = vpop.f32.mrf.mxu0
  %v2456 = vadd.f32 0.0, %v2455
  %2457 = vmatmul.f32.gmra.mxu0 %v2247
  %v2458 = vpop.f32.mrf.mxu0
  %v2459 = vadd.f32 0.0, %v2458
  %2460 = vmatmul.f32.gmra.mxu0 %v2250
  %v2461 = vpop.f32.mrf.mxu0
  %v2462 = vadd.f32 0.0, %v2461
  %2463 = vmatmul.f32.gmra.mxu0 %v2253
  %v2464 = vpop.f32.mrf.mxu0
  %v2465 = vadd.f32 0.0, %v2464
  %2466 = vmatmul.f32.gmra.mxu0 %v2256
  %v2467 = vpop.f32.mrf.mxu0
  %v2468 = vadd.f32 0.0, %v2467
  %2469 = vmatmul.f32.gmra.mxu0 %v2259
  %v2470 = vpop.f32.mrf.mxu0
  %v2471 = vadd.f32 0.0, %v2470
  %2472 = vmatmul.f32.gmra.mxu0 %v2262
  %v2473 = vpop.f32.mrf.mxu0
  %v2474 = vadd.f32 0.0, %v2473
  %2475 = vmatmul.f32.gmra.mxu0 %v2265
  %v2476 = vpop.f32.mrf.mxu0
  %v2477 = vadd.f32 0.0, %v2476
  %2478 = vmatmul.f32.gmra.mxu0 %v2268
  %v2479 = vpop.f32.mrf.mxu0
  %v2480 = vadd.f32 0.0, %v2479
  %2481 = vmatmul.f32.gmra.mxu0 %v2271
  %v2482 = vpop.f32.mrf.mxu0
  %v2483 = vadd.f32 0.0, %v2482
  %2484 = vmatmul.f32.gmra.mxu0 %v2274
  %v2485 = vpop.f32.mrf.mxu0
  %v2486 = vadd.f32 0.0, %v2485
  %2487 = vmatmul.f32.gmra.mxu0 %v2277
  %v2488 = vpop.f32.mrf.mxu0
  %v2489 = vadd.f32 0.0, %v2488
  %2490 = vmatmul.f32.gmra.mxu0 %v2280
  %v2491 = vpop.f32.mrf.mxu0
  %v2492 = vadd.f32 0.0, %v2491
  %2493 = vmatmul.f32.gmra.mxu0 %v2283
  %v2494 = vpop.f32.mrf.mxu0
  %v2495 = vadd.f32 0.0, %v2494
  %2496 = vdwg.mxu0
  %v2497 = vadd.f32 %v1962, %v2306
  %v2498 = vadd.f32 %v1963, %v2309
  %v2499 = vadd.f32 %v1964, %v2312
  %v2500 = vadd.f32 %v1965, %v2315
  %v2501 = vadd.f32 %v1966, %v2318
  %v2502 = vadd.f32 %v1967, %v2321
  %v2503 = vadd.f32 %v1968, %v2324
  %v2504 = vadd.f32 %v1969, %v2327
  %v2505 = vadd.f32 %v1970, %v2330
  %v2506 = vadd.f32 %v1971, %v2333
  %v2507 = vadd.f32 %v1972, %v2336
  %v2508 = vadd.f32 %v1973, %v2339
  %v2509 = vadd.f32 %v1974, %v2342
  %v2510 = vadd.f32 %v1975, %v2345
  %v2511 = vadd.f32 %v1976, %v2348
  %v2512 = vadd.f32 %v1977, %v2351
  %v2513 = vadd.f32 %v1978, %v2354
  %v2514 = vadd.f32 %v1979, %v2357
  %v2515 = vadd.f32 %v1980, %v2360
  %v2516 = vadd.f32 %v1981, %v2363
  %v2517 = vadd.f32 %v1982, %v2366
  %v2518 = vadd.f32 %v1983, %v2369
  %v2519 = vadd.f32 %v1984, %v2372
  %v2520 = vadd.f32 %v1985, %v2375
  %v2521 = vadd.f32 %v1986, %v2378
  %v2522 = vadd.f32 %v1987, %v2381
  %v2523 = vadd.f32 %v1988, %v2384
  %v2524 = vadd.f32 %v1989, %v2387
  %v2525 = vadd.f32 %v1990, %v2390
  %v2526 = vadd.f32 %v1991, %v2393
  %v2527 = vadd.f32 %v1992, %v2396
  %v2528 = vadd.f32 %v1993, %v2399
  %v2529 = vadd.f32 %v1994, %v2402
  %v2530 = vadd.f32 %v1995, %v2405
  %v2531 = vadd.f32 %v1996, %v2408
  %v2532 = vadd.f32 %v1997, %v2411
  %v2533 = vadd.f32 %v1998, %v2414
  %v2534 = vadd.f32 %v1999, %v2417
  %v2535 = vadd.f32 %v2000, %v2420
  %v2536 = vadd.f32 %v2001, %v2423
  %v2537 = vadd.f32 %v2002, %v2426
  %v2538 = vadd.f32 %v2003, %v2429
  %v2539 = vadd.f32 %v2004, %v2432
  %v2540 = vadd.f32 %v2005, %v2435
  %v2541 = vadd.f32 %v2006, %v2438
  %v2542 = vadd.f32 %v2007, %v2441
  %v2543 = vadd.f32 %v2008, %v2444
  %v2544 = vadd.f32 %v2009, %v2447
  %v2545 = vadd.f32 %v2010, %v2450
  %v2546 = vadd.f32 %v2011, %v2453
  %v2547 = vadd.f32 %v2012, %v2456
  %v2548 = vadd.f32 %v2013, %v2459
  %v2549 = vadd.f32 %v2014, %v2462
  %v2550 = vadd.f32 %v2015, %v2465
  %v2551 = vadd.f32 %v2016, %v2468
  %v2552 = vadd.f32 %v2017, %v2471
  %v2553 = vadd.f32 %v2018, %v2474
  %v2554 = vadd.f32 %v2019, %v2477
  %v2555 = vadd.f32 %v2020, %v2480
  %v2556 = vadd.f32 %v2021, %v2483
  %v2557 = vadd.f32 %v2022, %v2486
  %v2558 = vadd.f32 %v2023, %v2489
  %v2559 = vadd.f32 %v2024, %v2492
  %v2560 = vadd.f32 %v2025, %v2495
  %s2561 = scalar_lea.vmem %s0, 2448
  %v2562 = vld [vmem:[%s2561] sm:$0xff]
  %v2563 = vld [vmem:[%s2561 + $0x8] sm:$0xff]
  %v2564 = vld [vmem:[%s2561 + $0x18] sm:$0xff]
  %v2565 = vld [vmem:[%s2561 + $0x20] sm:$0xff]
  %v2566 = vld [vmem:[%s2561 + $0x30] sm:$0xff]
  %v2567 = vld [vmem:[%s2561 + $0x38] sm:$0xff]
  %v2568 = vld [vmem:[%s2561 + $0x48] sm:$0xff]
  %v2569 = vld [vmem:[%s2561 + $0x50] sm:$0xff]
  %v2570 = vld [vmem:[%s2561 + $0x60] sm:$0xff]
  %v2571 = vld [vmem:[%s2561 + $0x68] sm:$0xff]
  %v2572 = vld [vmem:[%s2561 + $0x78] sm:$0xff]
  %v2573 = vld [vmem:[%s2561 + $0x80] sm:$0xff]
  %v2574 = vld [vmem:[%s2561 + $0x90] sm:$0xff]
  %v2575 = vld [vmem:[%s2561 + $0x98] sm:$0xff]
  %v2576 = vld [vmem:[%s2561 + $0xa8] sm:$0xff]
  %v2577 = vld [vmem:[%s2561 + $0xb0] sm:$0xff]
  %v2578 = vld [vmem:[%s2561 + $0xc0] sm:$0xff]
  %v2579 = vld [vmem:[%s2561 + $0xc8] sm:$0xff]
  %v2580 = vld [vmem:[%s2561 + $0xd8] sm:$0xff]
  %v2581 = vld [vmem:[%s2561 + $0xe0] sm:$0xff]
  %v2582 = vld [vmem:[%s2561 + $0xf0] sm:$0xff]
  %v2583 = vld [vmem:[%s2561 + $0xf8] sm:$0xff]
  %v2584 = vld [vmem:[%s2561 + $0x108] sm:$0xff]
  %v2585 = vld [vmem:[%s2561 + $0x110] sm:$0xff]
  %v2586 = vld [vmem:[%s2561 + $0x120] sm:$0xff]
  %v2587 = vld [vmem:[%s2561 + $0x128] sm:$0xff]
  %v2588 = vld [vmem:[%s2561 + $0x138] sm:$0xff]
  %v2589 = vld [vmem:[%s2561 + $0x140] sm:$0xff]
  %v2590 = vld [vmem:[%s2561 + $0x150] sm:$0xff]
  %v2591 = vld [vmem:[%s2561 + $0x158] sm:$0xff]
  %v2592 = vld [vmem:[%s2561 + $0x168] sm:$0xff]
  %v2593 = vld [vmem:[%s2561 + $0x170] sm:$0xff]
  %v2594 = vld [vmem:[%s2561 + $0x198] sm:$0xff]
  %v2595 = vld [vmem:[%s2561 + $0x1a0] sm:$0xff]
  %v2596 = vld [vmem:[%s2561 + $0x1b0] sm:$0xff]
  %v2597 = vld [vmem:[%s2561 + $0x1b8] sm:$0xff]
  %v2598 = vld [vmem:[%s2561 + $0x1c8] sm:$0xff]
  %v2599 = vld [vmem:[%s2561 + $0x1d0] sm:$0xff]
  %v2600 = vld [vmem:[%s2561 + $0x1e0] sm:$0xff]
  %v2601 = vld [vmem:[%s2561 + $0x1e8] sm:$0xff]
  %v2602 = vld [vmem:[%s2561 + $0x1f8] sm:$0xff]
  %v2603 = vld [vmem:[%s2561 + $0x200] sm:$0xff]
  %v2604 = vld [vmem:[%s2561 + $0x210] sm:$0xff]
  %v2605 = vld [vmem:[%s2561 + $0x218] sm:$0xff]
  %v2606 = vld [vmem:[%s2561 + $0x228] sm:$0xff]
  %v2607 = vld [vmem:[%s2561 + $0x230] sm:$0xff]
  %v2608 = vld [vmem:[%s2561 + $0x240] sm:$0xff]
  %v2609 = vld [vmem:[%s2561 + $0x248] sm:$0xff]
  %v2610 = vld [vmem:[%s2561 + $0x258] sm:$0xff]
  %v2611 = vld [vmem:[%s2561 + $0x260] sm:$0xff]
  %v2612 = vld [vmem:[%s2561 + $0x270] sm:$0xff]
  %v2613 = vld [vmem:[%s2561 + $0x278] sm:$0xff]
  %v2614 = vld [vmem:[%s2561 + $0x288] sm:$0xff]
  %v2615 = vld [vmem:[%s2561 + $0x290] sm:$0xff]
  %v2616 = vld [vmem:[%s2561 + $0x2a0] sm:$0xff]
  %v2617 = vld [vmem:[%s2561 + $0x2a8] sm:$0xff]
  %v2618 = vld [vmem:[%s2561 + $0x2b8] sm:$0xff]
  %v2619 = vld [vmem:[%s2561 + $0x2c0] sm:$0xff]
  %v2620 = vld [vmem:[%s2561 + $0x2d0] sm:$0xff]
  %v2621 = vld [vmem:[%s2561 + $0x2d8] sm:$0xff]
  %v2622 = vld [vmem:[%s2561 + $0x2e8] sm:$0xff]
  %v2623 = vld [vmem:[%s2561 + $0x2f0] sm:$0xff]
  %v2624 = vld [vmem:[%s2561 + $0x300] sm:$0xff]
  %v2625 = vld [vmem:[%s2561 + $0x308] sm:$0xff]
  %s2626 = scalar_lea.vmem %s1, 20
  %v2627 = vld [vmem:[%s2626] sm:$0xf]
  %v2629 = vsel %vm146, %v2562, 0
  %v2632 = vsel %vm146, %v2563, 0
  %v2635 = vsel %vm146, %v2564, 0
  %v2638 = vsel %vm146, %v2565, 0
  %v2641 = vsel %vm146, %v2566, 0
  %v2644 = vsel %vm146, %v2567, 0
  %v2647 = vsel %vm146, %v2568, 0
  %v2650 = vsel %vm146, %v2569, 0
  %v2653 = vsel %vm146, %v2570, 0
  %v2656 = vsel %vm146, %v2571, 0
  %v2659 = vsel %vm146, %v2572, 0
  %v2662 = vsel %vm146, %v2573, 0
  %v2665 = vsel %vm146, %v2574, 0
  %v2668 = vsel %vm146, %v2575, 0
  %v2671 = vsel %vm146, %v2576, 0
  %v2674 = vsel %vm146, %v2577, 0
  %v2677 = vsel %vm146, %v2578, 0
  %v2680 = vsel %vm146, %v2579, 0
  %v2683 = vsel %vm146, %v2580, 0
  %v2686 = vsel %vm146, %v2581, 0
  %v2689 = vsel %vm146, %v2582, 0
  %v2692 = vsel %vm146, %v2583, 0
  %v2695 = vsel %vm146, %v2584, 0
  %v2698 = vsel %vm146, %v2585, 0
  %v2701 = vsel %vm146, %v2586, 0
  %v2704 = vsel %vm146, %v2587, 0
  %v2707 = vsel %vm146, %v2588, 0
  %v2710 = vsel %vm146, %v2589, 0
  %v2713 = vsel %vm146, %v2590, 0
  %v2716 = vsel %vm146, %v2591, 0
  %v2719 = vsel %vm146, %v2592, 0
  %v2722 = vsel %vm146, %v2593, 0
  %v2725 = vsel %vm146, %v2594, 0
  %v2728 = vsel %vm146, %v2595, 0
  %v2731 = vsel %vm146, %v2596, 0
  %v2734 = vsel %vm146, %v2597, 0
  %v2737 = vsel %vm146, %v2598, 0
  %v2740 = vsel %vm146, %v2599, 0
  %v2743 = vsel %vm146, %v2600, 0
  %v2746 = vsel %vm146, %v2601, 0
  %v2749 = vsel %vm146, %v2602, 0
  %v2752 = vsel %vm146, %v2603, 0
  %v2755 = vsel %vm146, %v2604, 0
  %v2758 = vsel %vm146, %v2605, 0
  %v2761 = vsel %vm146, %v2606, 0
  %v2764 = vsel %vm146, %v2607, 0
  %v2767 = vsel %vm146, %v2608, 0
  %v2770 = vsel %vm146, %v2609, 0
  %v2773 = vsel %vm146, %v2610, 0
  %v2776 = vsel %vm146, %v2611, 0
  %v2779 = vsel %vm146, %v2612, 0
  %v2782 = vsel %vm146, %v2613, 0
  %v2785 = vsel %vm146, %v2614, 0
  %v2788 = vsel %vm146, %v2615, 0
  %v2791 = vsel %vm146, %v2616, 0
  %v2794 = vsel %vm146, %v2617, 0
  %v2797 = vsel %vm146, %v2618, 0
  %v2800 = vsel %vm146, %v2619, 0
  %v2803 = vsel %vm146, %v2620, 0
  %v2806 = vsel %vm146, %v2621, 0
  %v2809 = vsel %vm146, %v2622, 0
  %v2812 = vsel %vm146, %v2623, 0
  %v2815 = vsel %vm146, %v2624, 0
  %v2818 = vsel %vm146, %v2625, 0
  %v2821 = vsel %vm339, %v2627, 0
  %2823 = vmatpush.msra.mxu0 0.0
  %2824 = vmatpush.msra.mxu0 0.0
  %2825 = vmatpush.msra.mxu0 0.0
  %2826 = vmatpush.msra.mxu0 0.0
  %2827 = vmatpush.msra.mxu0 0.0
  %2828 = vmatpush.msra.mxu0 0.0
  %2829 = vmatpush.msra.mxu0 0.0
  %2830 = vmatpush.msra.mxu0 0.0
  %2831 = vmatpush.msra.mxu0 0.0
  %2832 = vmatpush.msra.mxu0 0.0
  %2833 = vmatpush.msra.mxu0 0.0
  %2834 = vmatpush.msra.mxu0 0.0
  %2835 = vmatpush.msra.mxu0 0.0
  %2836 = vmatpush.msra.mxu0 0.0
  %2837 = vmatpush.msra.mxu0 0.0
  %2838 = vmatpush.msra.mxu0 %v2821
  %2839 = vmatmul.f32.gmra.mxu0 %v2629
  %v2840 = vpop.f32.mrf.mxu0
  %v2841 = vadd.f32 0.0, %v2840
  %2842 = vmatmul.f32.gmra.mxu0 %v2632
  %v2843 = vpop.f32.mrf.mxu0
  %v2844 = vadd.f32 0.0, %v2843
  %2845 = vmatmul.f32.gmra.mxu0 %v2635
  %v2846 = vpop.f32.mrf.mxu0
  %v2847 = vadd.f32 0.0, %v2846
  %2848 = vmatmul.f32.gmra.mxu0 %v2638
  %v2849 = vpop.f32.mrf.mxu0
  %v2850 = vadd.f32 0.0, %v2849
  %2851 = vmatmul.f32.gmra.mxu0 %v2641
  %v2852 = vpop.f32.mrf.mxu0
  %v2853 = vadd.f32 0.0, %v2852
  %2854 = vmatmul.f32.gmra.mxu0 %v2644
  %v2855 = vpop.f32.mrf.mxu0
  %v2856 = vadd.f32 0.0, %v2855
  %2857 = vmatmul.f32.gmra.mxu0 %v2647
  %v2858 = vpop.f32.mrf.mxu0
  %v2859 = vadd.f32 0.0, %v2858
  %2860 = vmatmul.f32.gmra.mxu0 %v2650
  %v2861 = vpop.f32.mrf.mxu0
  %v2862 = vadd.f32 0.0, %v2861
  %2863 = vmatmul.f32.gmra.mxu0 %v2653
  %v2864 = vpop.f32.mrf.mxu0
  %v2865 = vadd.f32 0.0, %v2864
  %2866 = vmatmul.f32.gmra.mxu0 %v2656
  %v2867 = vpop.f32.mrf.mxu0
  %v2868 = vadd.f32 0.0, %v2867
  %2869 = vmatmul.f32.gmra.mxu0 %v2659
  %v2870 = vpop.f32.mrf.mxu0
  %v2871 = vadd.f32 0.0, %v2870
  %2872 = vmatmul.f32.gmra.mxu0 %v2662
  %v2873 = vpop.f32.mrf.mxu0
  %v2874 = vadd.f32 0.0, %v2873
  %2875 = vmatmul.f32.gmra.mxu0 %v2665
  %v2876 = vpop.f32.mrf.mxu0
  %v2877 = vadd.f32 0.0, %v2876
  %2878 = vmatmul.f32.gmra.mxu0 %v2668
  %v2879 = vpop.f32.mrf.mxu0
  %v2880 = vadd.f32 0.0, %v2879
  %2881 = vmatmul.f32.gmra.mxu0 %v2671
  %v2882 = vpop.f32.mrf.mxu0
  %v2883 = vadd.f32 0.0, %v2882
  %2884 = vmatmul.f32.gmra.mxu0 %v2674
  %v2885 = vpop.f32.mrf.mxu0
  %v2886 = vadd.f32 0.0, %v2885
  %2887 = vmatmul.f32.gmra.mxu0 %v2677
  %v2888 = vpop.f32.mrf.mxu0
  %v2889 = vadd.f32 0.0, %v2888
  %2890 = vmatmul.f32.gmra.mxu0 %v2680
  %v2891 = vpop.f32.mrf.mxu0
  %v2892 = vadd.f32 0.0, %v2891
  %2893 = vmatmul.f32.gmra.mxu0 %v2683
  %v2894 = vpop.f32.mrf.mxu0
  %v2895 = vadd.f32 0.0, %v2894
  %2896 = vmatmul.f32.gmra.mxu0 %v2686
  %v2897 = vpop.f32.mrf.mxu0
  %v2898 = vadd.f32 0.0, %v2897
  %2899 = vmatmul.f32.gmra.mxu0 %v2689
  %v2900 = vpop.f32.mrf.mxu0
  %v2901 = vadd.f32 0.0, %v2900
  %2902 = vmatmul.f32.gmra.mxu0 %v2692
  %v2903 = vpop.f32.mrf.mxu0
  %v2904 = vadd.f32 0.0, %v2903
  %2905 = vmatmul.f32.gmra.mxu0 %v2695
  %v2906 = vpop.f32.mrf.mxu0
  %v2907 = vadd.f32 0.0, %v2906
  %2908 = vmatmul.f32.gmra.mxu0 %v2698
  %v2909 = vpop.f32.mrf.mxu0
  %v2910 = vadd.f32 0.0, %v2909
  %2911 = vmatmul.f32.gmra.mxu0 %v2701
  %v2912 = vpop.f32.mrf.mxu0
  %v2913 = vadd.f32 0.0, %v2912
  %2914 = vmatmul.f32.gmra.mxu0 %v2704
  %v2915 = vpop.f32.mrf.mxu0
  %v2916 = vadd.f32 0.0, %v2915
  %2917 = vmatmul.f32.gmra.mxu0 %v2707
  %v2918 = vpop.f32.mrf.mxu0
  %v2919 = vadd.f32 0.0, %v2918
  %2920 = vmatmul.f32.gmra.mxu0 %v2710
  %v2921 = vpop.f32.mrf.mxu0
  %v2922 = vadd.f32 0.0, %v2921
  %2923 = vmatmul.f32.gmra.mxu0 %v2713
  %v2924 = vpop.f32.mrf.mxu0
  %v2925 = vadd.f32 0.0, %v2924
  %2926 = vmatmul.f32.gmra.mxu0 %v2716
  %v2927 = vpop.f32.mrf.mxu0
  %v2928 = vadd.f32 0.0, %v2927
  %2929 = vmatmul.f32.gmra.mxu0 %v2719
  %v2930 = vpop.f32.mrf.mxu0
  %v2931 = vadd.f32 0.0, %v2930
  %2932 = vmatmul.f32.gmra.mxu0 %v2722
  %v2933 = vpop.f32.mrf.mxu0
  %v2934 = vadd.f32 0.0, %v2933
  %2935 = vmatmul.f32.gmra.mxu0 %v2725
  %v2936 = vpop.f32.mrf.mxu0
  %v2937 = vadd.f32 0.0, %v2936
  %2938 = vmatmul.f32.gmra.mxu0 %v2728
  %v2939 = vpop.f32.mrf.mxu0
  %v2940 = vadd.f32 0.0, %v2939
  %2941 = vmatmul.f32.gmra.mxu0 %v2731
  %v2942 = vpop.f32.mrf.mxu0
  %v2943 = vadd.f32 0.0, %v2942
  %2944 = vmatmul.f32.gmra.mxu0 %v2734
  %v2945 = vpop.f32.mrf.mxu0
  %v2946 = vadd.f32 0.0, %v2945
  %2947 = vmatmul.f32.gmra.mxu0 %v2737
  %v2948 = vpop.f32.mrf.mxu0
  %v2949 = vadd.f32 0.0, %v2948
  %2950 = vmatmul.f32.gmra.mxu0 %v2740
  %v2951 = vpop.f32.mrf.mxu0
  %v2952 = vadd.f32 0.0, %v2951
  %2953 = vmatmul.f32.gmra.mxu0 %v2743
  %v2954 = vpop.f32.mrf.mxu0
  %v2955 = vadd.f32 0.0, %v2954
  %2956 = vmatmul.f32.gmra.mxu0 %v2746
  %v2957 = vpop.f32.mrf.mxu0
  %v2958 = vadd.f32 0.0, %v2957
  %2959 = vmatmul.f32.gmra.mxu0 %v2749
  %v2960 = vpop.f32.mrf.mxu0
  %v2961 = vadd.f32 0.0, %v2960
  %2962 = vmatmul.f32.gmra.mxu0 %v2752
  %v2963 = vpop.f32.mrf.mxu0
  %v2964 = vadd.f32 0.0, %v2963
  %2965 = vmatmul.f32.gmra.mxu0 %v2755
  %v2966 = vpop.f32.mrf.mxu0
  %v2967 = vadd.f32 0.0, %v2966
  %2968 = vmatmul.f32.gmra.mxu0 %v2758
  %v2969 = vpop.f32.mrf.mxu0
  %v2970 = vadd.f32 0.0, %v2969
  %2971 = vmatmul.f32.gmra.mxu0 %v2761
  %v2972 = vpop.f32.mrf.mxu0
  %v2973 = vadd.f32 0.0, %v2972
  %2974 = vmatmul.f32.gmra.mxu0 %v2764
  %v2975 = vpop.f32.mrf.mxu0
  %v2976 = vadd.f32 0.0, %v2975
  %2977 = vmatmul.f32.gmra.mxu0 %v2767
  %v2978 = vpop.f32.mrf.mxu0
  %v2979 = vadd.f32 0.0, %v2978
  %2980 = vmatmul.f32.gmra.mxu0 %v2770
  %v2981 = vpop.f32.mrf.mxu0
  %v2982 = vadd.f32 0.0, %v2981
  %2983 = vmatmul.f32.gmra.mxu0 %v2773
  %v2984 = vpop.f32.mrf.mxu0
  %v2985 = vadd.f32 0.0, %v2984
  %2986 = vmatmul.f32.gmra.mxu0 %v2776
  %v2987 = vpop.f32.mrf.mxu0
  %v2988 = vadd.f32 0.0, %v2987
  %2989 = vmatmul.f32.gmra.mxu0 %v2779
  %v2990 = vpop.f32.mrf.mxu0
  %v2991 = vadd.f32 0.0, %v2990
  %2992 = vmatmul.f32.gmra.mxu0 %v2782
  %v2993 = vpop.f32.mrf.mxu0
  %v2994 = vadd.f32 0.0, %v2993
  %2995 = vmatmul.f32.gmra.mxu0 %v2785
  %v2996 = vpop.f32.mrf.mxu0
  %v2997 = vadd.f32 0.0, %v2996
  %2998 = vmatmul.f32.gmra.mxu0 %v2788
  %v2999 = vpop.f32.mrf.mxu0
  %v3000 = vadd.f32 0.0, %v2999
  %3001 = vmatmul.f32.gmra.mxu0 %v2791
  %v3002 = vpop.f32.mrf.mxu0
  %v3003 = vadd.f32 0.0, %v3002
  %3004 = vmatmul.f32.gmra.mxu0 %v2794
  %v3005 = vpop.f32.mrf.mxu0
  %v3006 = vadd.f32 0.0, %v3005
  %3007 = vmatmul.f32.gmra.mxu0 %v2797
  %v3008 = vpop.f32.mrf.mxu0
  %v3009 = vadd.f32 0.0, %v3008
  %3010 = vmatmul.f32.gmra.mxu0 %v2800
  %v3011 = vpop.f32.mrf.mxu0
  %v3012 = vadd.f32 0.0, %v3011
  %3013 = vmatmul.f32.gmra.mxu0 %v2803
  %v3014 = vpop.f32.mrf.mxu0
  %v3015 = vadd.f32 0.0, %v3014
  %3016 = vmatmul.f32.gmra.mxu0 %v2806
  %v3017 = vpop.f32.mrf.mxu0
  %v3018 = vadd.f32 0.0, %v3017
  %3019 = vmatmul.f32.gmra.mxu0 %v2809
  %v3020 = vpop.f32.mrf.mxu0
  %v3021 = vadd.f32 0.0, %v3020
  %3022 = vmatmul.f32.gmra.mxu0 %v2812
  %v3023 = vpop.f32.mrf.mxu0
  %v3024 = vadd.f32 0.0, %v3023
  %3025 = vmatmul.f32.gmra.mxu0 %v2815
  %v3026 = vpop.f32.mrf.mxu0
  %v3027 = vadd.f32 0.0, %v3026
  %3028 = vmatmul.f32.gmra.mxu0 %v2818
  %v3029 = vpop.f32.mrf.mxu0
  %v3030 = vadd.f32 0.0, %v3029
  %3031 = vdwg.mxu0
  %v3032 = vadd.f32 %v2497, %v2841
  %v3033 = vadd.f32 %v2498, %v2844
  %v3034 = vadd.f32 %v2499, %v2847
  %v3035 = vadd.f32 %v2500, %v2850
  %v3036 = vadd.f32 %v2501, %v2853
  %v3037 = vadd.f32 %v2502, %v2856
  %v3038 = vadd.f32 %v2503, %v2859
  %v3039 = vadd.f32 %v2504, %v2862
  %v3040 = vadd.f32 %v2505, %v2865
  %v3041 = vadd.f32 %v2506, %v2868
  %v3042 = vadd.f32 %v2507, %v2871
  %v3043 = vadd.f32 %v2508, %v2874
  %v3044 = vadd.f32 %v2509, %v2877
  %v3045 = vadd.f32 %v2510, %v2880
  %v3046 = vadd.f32 %v2511, %v2883
  %v3047 = vadd.f32 %v2512, %v2886
  %v3048 = vadd.f32 %v2513, %v2889
  %v3049 = vadd.f32 %v2514, %v2892
  %v3050 = vadd.f32 %v2515, %v2895
  %v3051 = vadd.f32 %v2516, %v2898
  %v3052 = vadd.f32 %v2517, %v2901
  %v3053 = vadd.f32 %v2518, %v2904
  %v3054 = vadd.f32 %v2519, %v2907
  %v3055 = vadd.f32 %v2520, %v2910
  %v3056 = vadd.f32 %v2521, %v2913
  %v3057 = vadd.f32 %v2522, %v2916
  %v3058 = vadd.f32 %v2523, %v2919
  %v3059 = vadd.f32 %v2524, %v2922
  %v3060 = vadd.f32 %v2525, %v2925
  %v3061 = vadd.f32 %v2526, %v2928
  %v3062 = vadd.f32 %v2527, %v2931
  %v3063 = vadd.f32 %v2528, %v2934
  %v3064 = vadd.f32 %v2529, %v2937
  %v3065 = vadd.f32 %v2530, %v2940
  %v3066 = vadd.f32 %v2531, %v2943
  %v3067 = vadd.f32 %v2532, %v2946
  %v3068 = vadd.f32 %v2533, %v2949
  %v3069 = vadd.f32 %v2534, %v2952
  %v3070 = vadd.f32 %v2535, %v2955
  %v3071 = vadd.f32 %v2536, %v2958
  %v3072 = vadd.f32 %v2537, %v2961
  %v3073 = vadd.f32 %v2538, %v2964
  %v3074 = vadd.f32 %v2539, %v2967
  %v3075 = vadd.f32 %v2540, %v2970
  %v3076 = vadd.f32 %v2541, %v2973
  %v3077 = vadd.f32 %v2542, %v2976
  %v3078 = vadd.f32 %v2543, %v2979
  %v3079 = vadd.f32 %v2544, %v2982
  %v3080 = vadd.f32 %v2545, %v2985
  %v3081 = vadd.f32 %v2546, %v2988
  %v3082 = vadd.f32 %v2547, %v2991
  %v3083 = vadd.f32 %v2548, %v2994
  %v3084 = vadd.f32 %v2549, %v2997
  %v3085 = vadd.f32 %v2550, %v3000
  %v3086 = vadd.f32 %v2551, %v3003
  %v3087 = vadd.f32 %v2552, %v3006
  %v3088 = vadd.f32 %v2553, %v3009
  %v3089 = vadd.f32 %v2554, %v3012
  %v3090 = vadd.f32 %v2555, %v3015
  %v3091 = vadd.f32 %v2556, %v3018
  %v3092 = vadd.f32 %v2557, %v3021
  %v3093 = vadd.f32 %v2558, %v3024
  %v3094 = vadd.f32 %v2559, %v3027
  %v3095 = vadd.f32 %v2560, %v3030
  %s3096 = scalar_lea.vmem %s0, 1656
  %v3097 = vld [vmem:[%s3096] sm:$0xff]
  %v3098 = vld [vmem:[%s3096 + $0x8] sm:$0xff]
  %v3099 = vld [vmem:[%s3096 + $0x18] sm:$0xff]
  %v3100 = vld [vmem:[%s3096 + $0x20] sm:$0xff]
  %v3101 = vld [vmem:[%s3096 + $0x30] sm:$0xff]
  %v3102 = vld [vmem:[%s3096 + $0x38] sm:$0xff]
  %v3103 = vld [vmem:[%s3096 + $0x48] sm:$0xff]
  %v3104 = vld [vmem:[%s3096 + $0x50] sm:$0xff]
  %v3105 = vld [vmem:[%s3096 + $0x60] sm:$0xff]
  %v3106 = vld [vmem:[%s3096 + $0x68] sm:$0xff]
  %v3107 = vld [vmem:[%s3096 + $0x78] sm:$0xff]
  %v3108 = vld [vmem:[%s3096 + $0x80] sm:$0xff]
  %v3109 = vld [vmem:[%s3096 + $0x90] sm:$0xff]
  %v3110 = vld [vmem:[%s3096 + $0x98] sm:$0xff]
  %v3111 = vld [vmem:[%s3096 + $0xa8] sm:$0xff]
  %v3112 = vld [vmem:[%s3096 + $0xb0] sm:$0xff]
  %v3113 = vld [vmem:[%s3096 + $0xc0] sm:$0xff]
  %v3114 = vld [vmem:[%s3096 + $0xc8] sm:$0xff]
  %v3115 = vld [vmem:[%s3096 + $0xd8] sm:$0xff]
  %v3116 = vld [vmem:[%s3096 + $0xe0] sm:$0xff]
  %v3117 = vld [vmem:[%s3096 + $0xf0] sm:$0xff]
  %v3118 = vld [vmem:[%s3096 + $0xf8] sm:$0xff]
  %v3119 = vld [vmem:[%s3096 + $0x108] sm:$0xff]
  %v3120 = vld [vmem:[%s3096 + $0x110] sm:$0xff]
  %v3121 = vld [vmem:[%s3096 + $0x120] sm:$0xff]
  %v3122 = vld [vmem:[%s3096 + $0x128] sm:$0xff]
  %v3123 = vld [vmem:[%s3096 + $0x138] sm:$0xff]
  %v3124 = vld [vmem:[%s3096 + $0x140] sm:$0xff]
  %v3125 = vld [vmem:[%s3096 + $0x150] sm:$0xff]
  %v3126 = vld [vmem:[%s3096 + $0x158] sm:$0xff]
  %v3127 = vld [vmem:[%s3096 + $0x168] sm:$0xff]
  %v3128 = vld [vmem:[%s3096 + $0x170] sm:$0xff]
  %v3129 = vld [vmem:[%s3096 + $0x198] sm:$0xff]
  %v3130 = vld [vmem:[%s3096 + $0x1a0] sm:$0xff]
  %v3131 = vld [vmem:[%s3096 + $0x1b0] sm:$0xff]
  %v3132 = vld [vmem:[%s3096 + $0x1b8] sm:$0xff]
  %v3133 = vld [vmem:[%s3096 + $0x1c8] sm:$0xff]
  %v3134 = vld [vmem:[%s3096 + $0x1d0] sm:$0xff]
  %v3135 = vld [vmem:[%s3096 + $0x1e0] sm:$0xff]
  %v3136 = vld [vmem:[%s3096 + $0x1e8] sm:$0xff]
  %v3137 = vld [vmem:[%s3096 + $0x1f8] sm:$0xff]
  %v3138 = vld [vmem:[%s3096 + $0x200] sm:$0xff]
  %v3139 = vld [vmem:[%s3096 + $0x210] sm:$0xff]
  %v3140 = vld [vmem:[%s3096 + $0x218] sm:$0xff]
  %v3141 = vld [vmem:[%s3096 + $0x228] sm:$0xff]
  %v3142 = vld [vmem:[%s3096 + $0x230] sm:$0xff]
  %v3143 = vld [vmem:[%s3096 + $0x240] sm:$0xff]
  %v3144 = vld [vmem:[%s3096 + $0x248] sm:$0xff]
  %v3145 = vld [vmem:[%s3096 + $0x258] sm:$0xff]
  %v3146 = vld [vmem:[%s3096 + $0x260] sm:$0xff]
  %v3147 = vld [vmem:[%s3096 + $0x270] sm:$0xff]
  %v3148 = vld [vmem:[%s3096 + $0x278] sm:$0xff]
  %v3149 = vld [vmem:[%s3096 + $0x288] sm:$0xff]
  %v3150 = vld [vmem:[%s3096 + $0x290] sm:$0xff]
  %v3151 = vld [vmem:[%s3096 + $0x2a0] sm:$0xff]
  %v3152 = vld [vmem:[%s3096 + $0x2a8] sm:$0xff]
  %v3153 = vld [vmem:[%s3096 + $0x2b8] sm:$0xff]
  %v3154 = vld [vmem:[%s3096 + $0x2c0] sm:$0xff]
  %v3155 = vld [vmem:[%s3096 + $0x2d0] sm:$0xff]
  %v3156 = vld [vmem:[%s3096 + $0x2d8] sm:$0xff]
  %v3157 = vld [vmem:[%s3096 + $0x2e8] sm:$0xff]
  %v3158 = vld [vmem:[%s3096 + $0x2f0] sm:$0xff]
  %v3159 = vld [vmem:[%s3096 + $0x300] sm:$0xff]
  %v3160 = vld [vmem:[%s3096 + $0x308] sm:$0xff]
  %s3161 = scalar_lea.vmem %s1, 24
  %v3162 = vld [vmem:[%s3161] sm:$0xf]
  %v3164 = vsel %vm146, %v3097, 0
  %v3167 = vsel %vm146, %v3098, 0
  %v3170 = vsel %vm146, %v3099, 0
  %v3173 = vsel %vm146, %v3100, 0
  %v3176 = vsel %vm146, %v3101, 0
  %v3179 = vsel %vm146, %v3102, 0
  %v3182 = vsel %vm146, %v3103, 0
  %v3185 = vsel %vm146, %v3104, 0
  %v3188 = vsel %vm146, %v3105, 0
  %v3191 = vsel %vm146, %v3106, 0
  %v3194 = vsel %vm146, %v3107, 0
  %v3197 = vsel %vm146, %v3108, 0
  %v3200 = vsel %vm146, %v3109, 0
  %v3203 = vsel %vm146, %v3110, 0
  %v3206 = vsel %vm146, %v3111, 0
  %v3209 = vsel %vm146, %v3112, 0
  %v3212 = vsel %vm146, %v3113, 0
  %v3215 = vsel %vm146, %v3114, 0
  %v3218 = vsel %vm146, %v3115, 0
  %v3221 = vsel %vm146, %v3116, 0
  %v3224 = vsel %vm146, %v3117, 0
  %v3227 = vsel %vm146, %v3118, 0
  %v3230 = vsel %vm146, %v3119, 0
  %v3233 = vsel %vm146, %v3120, 0
  %v3236 = vsel %vm146, %v3121, 0
  %v3239 = vsel %vm146, %v3122, 0
  %v3242 = vsel %vm146, %v3123, 0
  %v3245 = vsel %vm146, %v3124, 0
  %v3248 = vsel %vm146, %v3125, 0
  %v3251 = vsel %vm146, %v3126, 0
  %v3254 = vsel %vm146, %v3127, 0
  %v3257 = vsel %vm146, %v3128, 0
  %v3260 = vsel %vm146, %v3129, 0
  %v3263 = vsel %vm146, %v3130, 0
  %v3266 = vsel %vm146, %v3131, 0
  %v3269 = vsel %vm146, %v3132, 0
  %v3272 = vsel %vm146, %v3133, 0
  %v3275 = vsel %vm146, %v3134, 0
  %v3278 = vsel %vm146, %v3135, 0
  %v3281 = vsel %vm146, %v3136, 0
  %v3284 = vsel %vm146, %v3137, 0
  %v3287 = vsel %vm146, %v3138, 0
  %v3290 = vsel %vm146, %v3139, 0
  %v3293 = vsel %vm146, %v3140, 0
  %v3296 = vsel %vm146, %v3141, 0
  %v3299 = vsel %vm146, %v3142, 0
  %v3302 = vsel %vm146, %v3143, 0
  %v3305 = vsel %vm146, %v3144, 0
  %v3308 = vsel %vm146, %v3145, 0
  %v3311 = vsel %vm146, %v3146, 0
  %v3314 = vsel %vm146, %v3147, 0
  %v3317 = vsel %vm146, %v3148, 0
  %v3320 = vsel %vm146, %v3149, 0
  %v3323 = vsel %vm146, %v3150, 0
  %v3326 = vsel %vm146, %v3151, 0
  %v3329 = vsel %vm146, %v3152, 0
  %v3332 = vsel %vm146, %v3153, 0
  %v3335 = vsel %vm146, %v3154, 0
  %v3338 = vsel %vm146, %v3155, 0
  %v3341 = vsel %vm146, %v3156, 0
  %v3344 = vsel %vm146, %v3157, 0
  %v3347 = vsel %vm146, %v3158, 0
  %v3350 = vsel %vm146, %v3159, 0
  %v3353 = vsel %vm146, %v3160, 0
  %v3356 = vsel %vm339, %v3162, 0
  %3358 = vmatpush.msra.mxu0 0.0
  %3359 = vmatpush.msra.mxu0 0.0
  %3360 = vmatpush.msra.mxu0 0.0
  %3361 = vmatpush.msra.mxu0 0.0
  %3362 = vmatpush.msra.mxu0 0.0
  %3363 = vmatpush.msra.mxu0 0.0
  %3364 = vmatpush.msra.mxu0 0.0
  %3365 = vmatpush.msra.mxu0 0.0
  %3366 = vmatpush.msra.mxu0 0.0
  %3367 = vmatpush.msra.mxu0 0.0
  %3368 = vmatpush.msra.mxu0 0.0
  %3369 = vmatpush.msra.mxu0 0.0
  %3370 = vmatpush.msra.mxu0 0.0
  %3371 = vmatpush.msra.mxu0 0.0
  %3372 = vmatpush.msra.mxu0 0.0
  %3373 = vmatpush.msra.mxu0 %v3356
  %3374 = vmatmul.f32.gmra.mxu0 %v3164
  %v3375 = vpop.f32.mrf.mxu0
  %v3376 = vadd.f32 0.0, %v3375
  %3377 = vmatmul.f32.gmra.mxu0 %v3167
  %v3378 = vpop.f32.mrf.mxu0
  %v3379 = vadd.f32 0.0, %v3378
  %3380 = vmatmul.f32.gmra.mxu0 %v3170
  %v3381 = vpop.f32.mrf.mxu0
  %v3382 = vadd.f32 0.0, %v3381
  %3383 = vmatmul.f32.gmra.mxu0 %v3173
  %v3384 = vpop.f32.mrf.mxu0
  %v3385 = vadd.f32 0.0, %v3384
  %3386 = vmatmul.f32.gmra.mxu0 %v3176
  %v3387 = vpop.f32.mrf.mxu0
  %v3388 = vadd.f32 0.0, %v3387
  %3389 = vmatmul.f32.gmra.mxu0 %v3179
  %v3390 = vpop.f32.mrf.mxu0
  %v3391 = vadd.f32 0.0, %v3390
  %3392 = vmatmul.f32.gmra.mxu0 %v3182
  %v3393 = vpop.f32.mrf.mxu0
  %v3394 = vadd.f32 0.0, %v3393
  %3395 = vmatmul.f32.gmra.mxu0 %v3185
  %v3396 = vpop.f32.mrf.mxu0
  %v3397 = vadd.f32 0.0, %v3396
  %3398 = vmatmul.f32.gmra.mxu0 %v3188
  %v3399 = vpop.f32.mrf.mxu0
  %v3400 = vadd.f32 0.0, %v3399
  %3401 = vmatmul.f32.gmra.mxu0 %v3191
  %v3402 = vpop.f32.mrf.mxu0
  %v3403 = vadd.f32 0.0, %v3402
  %3404 = vmatmul.f32.gmra.mxu0 %v3194
  %v3405 = vpop.f32.mrf.mxu0
  %v3406 = vadd.f32 0.0, %v3405
  %3407 = vmatmul.f32.gmra.mxu0 %v3197
  %v3408 = vpop.f32.mrf.mxu0
  %v3409 = vadd.f32 0.0, %v3408
  %3410 = vmatmul.f32.gmra.mxu0 %v3200
  %v3411 = vpop.f32.mrf.mxu0
  %v3412 = vadd.f32 0.0, %v3411
  %3413 = vmatmul.f32.gmra.mxu0 %v3203
  %v3414 = vpop.f32.mrf.mxu0
  %v3415 = vadd.f32 0.0, %v3414
  %3416 = vmatmul.f32.gmra.mxu0 %v3206
  %v3417 = vpop.f32.mrf.mxu0
  %v3418 = vadd.f32 0.0, %v3417
  %3419 = vmatmul.f32.gmra.mxu0 %v3209
  %v3420 = vpop.f32.mrf.mxu0
  %v3421 = vadd.f32 0.0, %v3420
  %3422 = vmatmul.f32.gmra.mxu0 %v3212
  %v3423 = vpop.f32.mrf.mxu0
  %v3424 = vadd.f32 0.0, %v3423
  %3425 = vmatmul.f32.gmra.mxu0 %v3215
  %v3426 = vpop.f32.mrf.mxu0
  %v3427 = vadd.f32 0.0, %v3426
  %3428 = vmatmul.f32.gmra.mxu0 %v3218
  %v3429 = vpop.f32.mrf.mxu0
  %v3430 = vadd.f32 0.0, %v3429
  %3431 = vmatmul.f32.gmra.mxu0 %v3221
  %v3432 = vpop.f32.mrf.mxu0
  %v3433 = vadd.f32 0.0, %v3432
  %3434 = vmatmul.f32.gmra.mxu0 %v3224
  %v3435 = vpop.f32.mrf.mxu0
  %v3436 = vadd.f32 0.0, %v3435
  %3437 = vmatmul.f32.gmra.mxu0 %v3227
  %v3438 = vpop.f32.mrf.mxu0
  %v3439 = vadd.f32 0.0, %v3438
  %3440 = vmatmul.f32.gmra.mxu0 %v3230
  %v3441 = vpop.f32.mrf.mxu0
  %v3442 = vadd.f32 0.0, %v3441
  %3443 = vmatmul.f32.gmra.mxu0 %v3233
  %v3444 = vpop.f32.mrf.mxu0
  %v3445 = vadd.f32 0.0, %v3444
  %3446 = vmatmul.f32.gmra.mxu0 %v3236
  %v3447 = vpop.f32.mrf.mxu0
  %v3448 = vadd.f32 0.0, %v3447
  %3449 = vmatmul.f32.gmra.mxu0 %v3239
  %v3450 = vpop.f32.mrf.mxu0
  %v3451 = vadd.f32 0.0, %v3450
  %3452 = vmatmul.f32.gmra.mxu0 %v3242
  %v3453 = vpop.f32.mrf.mxu0
  %v3454 = vadd.f32 0.0, %v3453
  %3455 = vmatmul.f32.gmra.mxu0 %v3245
  %v3456 = vpop.f32.mrf.mxu0
  %v3457 = vadd.f32 0.0, %v3456
  %3458 = vmatmul.f32.gmra.mxu0 %v3248
  %v3459 = vpop.f32.mrf.mxu0
  %v3460 = vadd.f32 0.0, %v3459
  %3461 = vmatmul.f32.gmra.mxu0 %v3251
  %v3462 = vpop.f32.mrf.mxu0
  %v3463 = vadd.f32 0.0, %v3462
  %3464 = vmatmul.f32.gmra.mxu0 %v3254
  %v3465 = vpop.f32.mrf.mxu0
  %v3466 = vadd.f32 0.0, %v3465
  %3467 = vmatmul.f32.gmra.mxu0 %v3257
  %v3468 = vpop.f32.mrf.mxu0
  %v3469 = vadd.f32 0.0, %v3468
  %3470 = vmatmul.f32.gmra.mxu0 %v3260
  %v3471 = vpop.f32.mrf.mxu0
  %v3472 = vadd.f32 0.0, %v3471
  %3473 = vmatmul.f32.gmra.mxu0 %v3263
  %v3474 = vpop.f32.mrf.mxu0
  %v3475 = vadd.f32 0.0, %v3474
  %3476 = vmatmul.f32.gmra.mxu0 %v3266
  %v3477 = vpop.f32.mrf.mxu0
  %v3478 = vadd.f32 0.0, %v3477
  %3479 = vmatmul.f32.gmra.mxu0 %v3269
  %v3480 = vpop.f32.mrf.mxu0
  %v3481 = vadd.f32 0.0, %v3480
  %3482 = vmatmul.f32.gmra.mxu0 %v3272
  %v3483 = vpop.f32.mrf.mxu0
  %v3484 = vadd.f32 0.0, %v3483
  %3485 = vmatmul.f32.gmra.mxu0 %v3275
  %v3486 = vpop.f32.mrf.mxu0
  %v3487 = vadd.f32 0.0, %v3486
  %3488 = vmatmul.f32.gmra.mxu0 %v3278
  %v3489 = vpop.f32.mrf.mxu0
  %v3490 = vadd.f32 0.0, %v3489
  %3491 = vmatmul.f32.gmra.mxu0 %v3281
  %v3492 = vpop.f32.mrf.mxu0
  %v3493 = vadd.f32 0.0, %v3492
  %3494 = vmatmul.f32.gmra.mxu0 %v3284
  %v3495 = vpop.f32.mrf.mxu0
  %v3496 = vadd.f32 0.0, %v3495
  %3497 = vmatmul.f32.gmra.mxu0 %v3287
  %v3498 = vpop.f32.mrf.mxu0
  %v3499 = vadd.f32 0.0, %v3498
  %3500 = vmatmul.f32.gmra.mxu0 %v3290
  %v3501 = vpop.f32.mrf.mxu0
  %v3502 = vadd.f32 0.0, %v3501
  %3503 = vmatmul.f32.gmra.mxu0 %v3293
  %v3504 = vpop.f32.mrf.mxu0
  %v3505 = vadd.f32 0.0, %v3504
  %3506 = vmatmul.f32.gmra.mxu0 %v3296
  %v3507 = vpop.f32.mrf.mxu0
  %v3508 = vadd.f32 0.0, %v3507
  %3509 = vmatmul.f32.gmra.mxu0 %v3299
  %v3510 = vpop.f32.mrf.mxu0
  %v3511 = vadd.f32 0.0, %v3510
  %3512 = vmatmul.f32.gmra.mxu0 %v3302
  %v3513 = vpop.f32.mrf.mxu0
  %v3514 = vadd.f32 0.0, %v3513
  %3515 = vmatmul.f32.gmra.mxu0 %v3305
  %v3516 = vpop.f32.mrf.mxu0
  %v3517 = vadd.f32 0.0, %v3516
  %3518 = vmatmul.f32.gmra.mxu0 %v3308
  %v3519 = vpop.f32.mrf.mxu0
  %v3520 = vadd.f32 0.0, %v3519
  %3521 = vmatmul.f32.gmra.mxu0 %v3311
  %v3522 = vpop.f32.mrf.mxu0
  %v3523 = vadd.f32 0.0, %v3522
  %3524 = vmatmul.f32.gmra.mxu0 %v3314
  %v3525 = vpop.f32.mrf.mxu0
  %v3526 = vadd.f32 0.0, %v3525
  %3527 = vmatmul.f32.gmra.mxu0 %v3317
  %v3528 = vpop.f32.mrf.mxu0
  %v3529 = vadd.f32 0.0, %v3528
  %3530 = vmatmul.f32.gmra.mxu0 %v3320
  %v3531 = vpop.f32.mrf.mxu0
  %v3532 = vadd.f32 0.0, %v3531
  %3533 = vmatmul.f32.gmra.mxu0 %v3323
  %v3534 = vpop.f32.mrf.mxu0
  %v3535 = vadd.f32 0.0, %v3534
  %3536 = vmatmul.f32.gmra.mxu0 %v3326
  %v3537 = vpop.f32.mrf.mxu0
  %v3538 = vadd.f32 0.0, %v3537
  %3539 = vmatmul.f32.gmra.mxu0 %v3329
  %v3540 = vpop.f32.mrf.mxu0
  %v3541 = vadd.f32 0.0, %v3540
  %3542 = vmatmul.f32.gmra.mxu0 %v3332
  %v3543 = vpop.f32.mrf.mxu0
  %v3544 = vadd.f32 0.0, %v3543
  %3545 = vmatmul.f32.gmra.mxu0 %v3335
  %v3546 = vpop.f32.mrf.mxu0
  %v3547 = vadd.f32 0.0, %v3546
  %3548 = vmatmul.f32.gmra.mxu0 %v3338
  %v3549 = vpop.f32.mrf.mxu0
  %v3550 = vadd.f32 0.0, %v3549
  %3551 = vmatmul.f32.gmra.mxu0 %v3341
  %v3552 = vpop.f32.mrf.mxu0
  %v3553 = vadd.f32 0.0, %v3552
  %3554 = vmatmul.f32.gmra.mxu0 %v3344
  %v3555 = vpop.f32.mrf.mxu0
  %v3556 = vadd.f32 0.0, %v3555
  %3557 = vmatmul.f32.gmra.mxu0 %v3347
  %v3558 = vpop.f32.mrf.mxu0
  %v3559 = vadd.f32 0.0, %v3558
  %3560 = vmatmul.f32.gmra.mxu0 %v3350
  %v3561 = vpop.f32.mrf.mxu0
  %v3562 = vadd.f32 0.0, %v3561
  %3563 = vmatmul.f32.gmra.mxu0 %v3353
  %v3564 = vpop.f32.mrf.mxu0
  %v3565 = vadd.f32 0.0, %v3564
  %3566 = vdwg.mxu0
  %v3567 = vadd.f32 %v3032, %v3376
  %v3568 = vadd.f32 %v3033, %v3379
  %v3569 = vadd.f32 %v3034, %v3382
  %v3570 = vadd.f32 %v3035, %v3385
  %v3571 = vadd.f32 %v3036, %v3388
  %v3572 = vadd.f32 %v3037, %v3391
  %v3573 = vadd.f32 %v3038, %v3394
  %v3574 = vadd.f32 %v3039, %v3397
  %v3575 = vadd.f32 %v3040, %v3400
  %v3576 = vadd.f32 %v3041, %v3403
  %v3577 = vadd.f32 %v3042, %v3406
  %v3578 = vadd.f32 %v3043, %v3409
  %v3579 = vadd.f32 %v3044, %v3412
  %v3580 = vadd.f32 %v3045, %v3415
  %v3581 = vadd.f32 %v3046, %v3418
  %v3582 = vadd.f32 %v3047, %v3421
  %v3583 = vadd.f32 %v3048, %v3424
  %v3584 = vadd.f32 %v3049, %v3427
  %v3585 = vadd.f32 %v3050, %v3430
  %v3586 = vadd.f32 %v3051, %v3433
  %v3587 = vadd.f32 %v3052, %v3436
  %v3588 = vadd.f32 %v3053, %v3439
  %v3589 = vadd.f32 %v3054, %v3442
  %v3590 = vadd.f32 %v3055, %v3445
  %v3591 = vadd.f32 %v3056, %v3448
  %v3592 = vadd.f32 %v3057, %v3451
  %v3593 = vadd.f32 %v3058, %v3454
  %v3594 = vadd.f32 %v3059, %v3457
  %v3595 = vadd.f32 %v3060, %v3460
  %v3596 = vadd.f32 %v3061, %v3463
  %v3597 = vadd.f32 %v3062, %v3466
  %v3598 = vadd.f32 %v3063, %v3469
  %v3599 = vadd.f32 %v3064, %v3472
  %v3600 = vadd.f32 %v3065, %v3475
  %v3601 = vadd.f32 %v3066, %v3478
  %v3602 = vadd.f32 %v3067, %v3481
  %v3603 = vadd.f32 %v3068, %v3484
  %v3604 = vadd.f32 %v3069, %v3487
  %v3605 = vadd.f32 %v3070, %v3490
  %v3606 = vadd.f32 %v3071, %v3493
  %v3607 = vadd.f32 %v3072, %v3496
  %v3608 = vadd.f32 %v3073, %v3499
  %v3609 = vadd.f32 %v3074, %v3502
  %v3610 = vadd.f32 %v3075, %v3505
  %v3611 = vadd.f32 %v3076, %v3508
  %v3612 = vadd.f32 %v3077, %v3511
  %v3613 = vadd.f32 %v3078, %v3514
  %v3614 = vadd.f32 %v3079, %v3517
  %v3615 = vadd.f32 %v3080, %v3520
  %v3616 = vadd.f32 %v3081, %v3523
  %v3617 = vadd.f32 %v3082, %v3526
  %v3618 = vadd.f32 %v3083, %v3529
  %v3619 = vadd.f32 %v3084, %v3532
  %v3620 = vadd.f32 %v3085, %v3535
  %v3621 = vadd.f32 %v3086, %v3538
  %v3622 = vadd.f32 %v3087, %v3541
  %v3623 = vadd.f32 %v3088, %v3544
  %v3624 = vadd.f32 %v3089, %v3547
  %v3625 = vadd.f32 %v3090, %v3550
  %v3626 = vadd.f32 %v3091, %v3553
  %v3627 = vadd.f32 %v3092, %v3556
  %v3628 = vadd.f32 %v3093, %v3559
  %v3629 = vadd.f32 %v3094, %v3562
  %v3630 = vadd.f32 %v3095, %v3565
  %s3631 = scalar_lea.vmem %s0, 2472
  %v3632 = vld [vmem:[%s3631] sm:$0xff]
  %v3633 = vld [vmem:[%s3631 + $0x8] sm:$0xff]
  %v3634 = vld [vmem:[%s3631 + $0x18] sm:$0xff]
  %v3635 = vld [vmem:[%s3631 + $0x20] sm:$0xff]
  %v3636 = vld [vmem:[%s3631 + $0x30] sm:$0xff]
  %v3637 = vld [vmem:[%s3631 + $0x38] sm:$0xff]
  %v3638 = vld [vmem:[%s3631 + $0x48] sm:$0xff]
  %v3639 = vld [vmem:[%s3631 + $0x50] sm:$0xff]
  %v3640 = vld [vmem:[%s3631 + $0x60] sm:$0xff]
  %v3641 = vld [vmem:[%s3631 + $0x68] sm:$0xff]
  %v3642 = vld [vmem:[%s3631 + $0x78] sm:$0xff]
  %v3643 = vld [vmem:[%s3631 + $0x80] sm:$0xff]
  %v3644 = vld [vmem:[%s3631 + $0x90] sm:$0xff]
  %v3645 = vld [vmem:[%s3631 + $0x98] sm:$0xff]
  %v3646 = vld [vmem:[%s3631 + $0xa8] sm:$0xff]
  %v3647 = vld [vmem:[%s3631 + $0xb0] sm:$0xff]
  %v3648 = vld [vmem:[%s3631 + $0xc0] sm:$0xff]
  %v3649 = vld [vmem:[%s3631 + $0xc8] sm:$0xff]
  %v3650 = vld [vmem:[%s3631 + $0xd8] sm:$0xff]
  %v3651 = vld [vmem:[%s3631 + $0xe0] sm:$0xff]
  %v3652 = vld [vmem:[%s3631 + $0xf0] sm:$0xff]
  %v3653 = vld [vmem:[%s3631 + $0xf8] sm:$0xff]
  %v3654 = vld [vmem:[%s3631 + $0x108] sm:$0xff]
  %v3655 = vld [vmem:[%s3631 + $0x110] sm:$0xff]
  %v3656 = vld [vmem:[%s3631 + $0x120] sm:$0xff]
  %v3657 = vld [vmem:[%s3631 + $0x128] sm:$0xff]
  %v3658 = vld [vmem:[%s3631 + $0x138] sm:$0xff]
  %v3659 = vld [vmem:[%s3631 + $0x140] sm:$0xff]
  %v3660 = vld [vmem:[%s3631 + $0x150] sm:$0xff]
  %v3661 = vld [vmem:[%s3631 + $0x158] sm:$0xff]
  %v3662 = vld [vmem:[%s3631 + $0x168] sm:$0xff]
  %v3663 = vld [vmem:[%s3631 + $0x170] sm:$0xff]
  %v3664 = vld [vmem:[%s3631 + $0x198] sm:$0xff]
  %v3665 = vld [vmem:[%s3631 + $0x1a0] sm:$0xff]
  %v3666 = vld [vmem:[%s3631 + $0x1b0] sm:$0xff]
  %v3667 = vld [vmem:[%s3631 + $0x1b8] sm:$0xff]
  %v3668 = vld [vmem:[%s3631 + $0x1c8] sm:$0xff]
  %v3669 = vld [vmem:[%s3631 + $0x1d0] sm:$0xff]
  %v3670 = vld [vmem:[%s3631 + $0x1e0] sm:$0xff]
  %v3671 = vld [vmem:[%s3631 + $0x1e8] sm:$0xff]
  %v3672 = vld [vmem:[%s3631 + $0x1f8] sm:$0xff]
  %v3673 = vld [vmem:[%s3631 + $0x200] sm:$0xff]
  %v3674 = vld [vmem:[%s3631 + $0x210] sm:$0xff]
  %v3675 = vld [vmem:[%s3631 + $0x218] sm:$0xff]
  %v3676 = vld [vmem:[%s3631 + $0x228] sm:$0xff]
  %v3677 = vld [vmem:[%s3631 + $0x230] sm:$0xff]
  %v3678 = vld [vmem:[%s3631 + $0x240] sm:$0xff]
  %v3679 = vld [vmem:[%s3631 + $0x248] sm:$0xff]
  %v3680 = vld [vmem:[%s3631 + $0x258] sm:$0xff]
  %v3681 = vld [vmem:[%s3631 + $0x260] sm:$0xff]
  %v3682 = vld [vmem:[%s3631 + $0x270] sm:$0xff]
  %v3683 = vld [vmem:[%s3631 + $0x278] sm:$0xff]
  %v3684 = vld [vmem:[%s3631 + $0x288] sm:$0xff]
  %v3685 = vld [vmem:[%s3631 + $0x290] sm:$0xff]
  %v3686 = vld [vmem:[%s3631 + $0x2a0] sm:$0xff]
  %v3687 = vld [vmem:[%s3631 + $0x2a8] sm:$0xff]
  %v3688 = vld [vmem:[%s3631 + $0x2b8] sm:$0xff]
  %v3689 = vld [vmem:[%s3631 + $0x2c0] sm:$0xff]
  %v3690 = vld [vmem:[%s3631 + $0x2d0] sm:$0xff]
  %v3691 = vld [vmem:[%s3631 + $0x2d8] sm:$0xff]
  %v3692 = vld [vmem:[%s3631 + $0x2e8] sm:$0xff]
  %v3693 = vld [vmem:[%s3631 + $0x2f0] sm:$0xff]
  %v3694 = vld [vmem:[%s3631 + $0x300] sm:$0xff]
  %v3695 = vld [vmem:[%s3631 + $0x308] sm:$0xff]
  %s3696 = scalar_lea.vmem %s1, 28
  %v3697 = vld [vmem:[%s3696] sm:$0xf]
  %v3699 = vsel %vm146, %v3632, 0
  %v3702 = vsel %vm146, %v3633, 0
  %v3705 = vsel %vm146, %v3634, 0
  %v3708 = vsel %vm146, %v3635, 0
  %v3711 = vsel %vm146, %v3636, 0
  %v3714 = vsel %vm146, %v3637, 0
  %v3717 = vsel %vm146, %v3638, 0
  %v3720 = vsel %vm146, %v3639, 0
  %v3723 = vsel %vm146, %v3640, 0
  %v3726 = vsel %vm146, %v3641, 0
  %v3729 = vsel %vm146, %v3642, 0
  %v3732 = vsel %vm146, %v3643, 0
  %v3735 = vsel %vm146, %v3644, 0
  %v3738 = vsel %vm146, %v3645, 0
  %v3741 = vsel %vm146, %v3646, 0
  %v3744 = vsel %vm146, %v3647, 0
  %v3747 = vsel %vm146, %v3648, 0
  %v3750 = vsel %vm146, %v3649, 0
  %v3753 = vsel %vm146, %v3650, 0
  %v3756 = vsel %vm146, %v3651, 0
  %v3759 = vsel %vm146, %v3652, 0
  %v3762 = vsel %vm146, %v3653, 0
  %v3765 = vsel %vm146, %v3654, 0
  %v3768 = vsel %vm146, %v3655, 0
  %v3771 = vsel %vm146, %v3656, 0
  %v3774 = vsel %vm146, %v3657, 0
  %v3777 = vsel %vm146, %v3658, 0
  %v3780 = vsel %vm146, %v3659, 0
  %v3783 = vsel %vm146, %v3660, 0
  %v3786 = vsel %vm146, %v3661, 0
  %v3789 = vsel %vm146, %v3662, 0
  %v3792 = vsel %vm146, %v3663, 0
  %v3795 = vsel %vm146, %v3664, 0
  %v3798 = vsel %vm146, %v3665, 0
  %v3801 = vsel %vm146, %v3666, 0
  %v3804 = vsel %vm146, %v3667, 0
  %v3807 = vsel %vm146, %v3668, 0
  %v3810 = vsel %vm146, %v3669, 0
  %v3813 = vsel %vm146, %v3670, 0
  %v3816 = vsel %vm146, %v3671, 0
  %v3819 = vsel %vm146, %v3672, 0
  %v3822 = vsel %vm146, %v3673, 0
  %v3825 = vsel %vm146, %v3674, 0
  %v3828 = vsel %vm146, %v3675, 0
  %v3831 = vsel %vm146, %v3676, 0
  %v3834 = vsel %vm146, %v3677, 0
  %v3837 = vsel %vm146, %v3678, 0
  %v3840 = vsel %vm146, %v3679, 0
  %v3843 = vsel %vm146, %v3680, 0
  %v3846 = vsel %vm146, %v3681, 0
  %v3849 = vsel %vm146, %v3682, 0
  %v3852 = vsel %vm146, %v3683, 0
  %v3855 = vsel %vm146, %v3684, 0
  %v3858 = vsel %vm146, %v3685, 0
  %v3861 = vsel %vm146, %v3686, 0
  %v3864 = vsel %vm146, %v3687, 0
  %v3867 = vsel %vm146, %v3688, 0
  %v3870 = vsel %vm146, %v3689, 0
  %v3873 = vsel %vm146, %v3690, 0
  %v3876 = vsel %vm146, %v3691, 0
  %v3879 = vsel %vm146, %v3692, 0
  %v3882 = vsel %vm146, %v3693, 0
  %v3885 = vsel %vm146, %v3694, 0
  %v3888 = vsel %vm146, %v3695, 0
  %v3891 = vsel %vm339, %v3697, 0
  %3893 = vmatpush.msra.mxu0 0.0
  %3894 = vmatpush.msra.mxu0 0.0
  %3895 = vmatpush.msra.mxu0 0.0
  %3896 = vmatpush.msra.mxu0 0.0
  %3897 = vmatpush.msra.mxu0 0.0
  %3898 = vmatpush.msra.mxu0 0.0
  %3899 = vmatpush.msra.mxu0 0.0
  %3900 = vmatpush.msra.mxu0 0.0
  %3901 = vmatpush.msra.mxu0 0.0
  %3902 = vmatpush.msra.mxu0 0.0
  %3903 = vmatpush.msra.mxu0 0.0
  %3904 = vmatpush.msra.mxu0 0.0
  %3905 = vmatpush.msra.mxu0 0.0
  %3906 = vmatpush.msra.mxu0 0.0
  %3907 = vmatpush.msra.mxu0 0.0
  %3908 = vmatpush.msra.mxu0 %v3891
  %3909 = vmatmul.f32.gmra.mxu0 %v3699
  %v3910 = vpop.f32.mrf.mxu0
  %v3911 = vadd.f32 0.0, %v3910
  %3912 = vmatmul.f32.gmra.mxu0 %v3702
  %v3913 = vpop.f32.mrf.mxu0
  %v3914 = vadd.f32 0.0, %v3913
  %3915 = vmatmul.f32.gmra.mxu0 %v3705
  %v3916 = vpop.f32.mrf.mxu0
  %v3917 = vadd.f32 0.0, %v3916
  %3918 = vmatmul.f32.gmra.mxu0 %v3708
  %v3919 = vpop.f32.mrf.mxu0
  %v3920 = vadd.f32 0.0, %v3919
  %3921 = vmatmul.f32.gmra.mxu0 %v3711
  %v3922 = vpop.f32.mrf.mxu0
  %v3923 = vadd.f32 0.0, %v3922
  %3924 = vmatmul.f32.gmra.mxu0 %v3714
  %v3925 = vpop.f32.mrf.mxu0
  %v3926 = vadd.f32 0.0, %v3925
  %3927 = vmatmul.f32.gmra.mxu0 %v3717
  %v3928 = vpop.f32.mrf.mxu0
  %v3929 = vadd.f32 0.0, %v3928
  %3930 = vmatmul.f32.gmra.mxu0 %v3720
  %v3931 = vpop.f32.mrf.mxu0
  %v3932 = vadd.f32 0.0, %v3931
  %3933 = vmatmul.f32.gmra.mxu0 %v3723
  %v3934 = vpop.f32.mrf.mxu0
  %v3935 = vadd.f32 0.0, %v3934
  %3936 = vmatmul.f32.gmra.mxu0 %v3726
  %v3937 = vpop.f32.mrf.mxu0
  %v3938 = vadd.f32 0.0, %v3937
  %3939 = vmatmul.f32.gmra.mxu0 %v3729
  %v3940 = vpop.f32.mrf.mxu0
  %v3941 = vadd.f32 0.0, %v3940
  %3942 = vmatmul.f32.gmra.mxu0 %v3732
  %v3943 = vpop.f32.mrf.mxu0
  %v3944 = vadd.f32 0.0, %v3943
  %3945 = vmatmul.f32.gmra.mxu0 %v3735
  %v3946 = vpop.f32.mrf.mxu0
  %v3947 = vadd.f32 0.0, %v3946
  %3948 = vmatmul.f32.gmra.mxu0 %v3738
  %v3949 = vpop.f32.mrf.mxu0
  %v3950 = vadd.f32 0.0, %v3949
  %3951 = vmatmul.f32.gmra.mxu0 %v3741
  %v3952 = vpop.f32.mrf.mxu0
  %v3953 = vadd.f32 0.0, %v3952
  %3954 = vmatmul.f32.gmra.mxu0 %v3744
  %v3955 = vpop.f32.mrf.mxu0
  %v3956 = vadd.f32 0.0, %v3955
  %3957 = vmatmul.f32.gmra.mxu0 %v3747
  %v3958 = vpop.f32.mrf.mxu0
  %v3959 = vadd.f32 0.0, %v3958
  %3960 = vmatmul.f32.gmra.mxu0 %v3750
  %v3961 = vpop.f32.mrf.mxu0
  %v3962 = vadd.f32 0.0, %v3961
  %3963 = vmatmul.f32.gmra.mxu0 %v3753
  %v3964 = vpop.f32.mrf.mxu0
  %v3965 = vadd.f32 0.0, %v3964
  %3966 = vmatmul.f32.gmra.mxu0 %v3756
  %v3967 = vpop.f32.mrf.mxu0
  %v3968 = vadd.f32 0.0, %v3967
  %3969 = vmatmul.f32.gmra.mxu0 %v3759
  %v3970 = vpop.f32.mrf.mxu0
  %v3971 = vadd.f32 0.0, %v3970
  %3972 = vmatmul.f32.gmra.mxu0 %v3762
  %v3973 = vpop.f32.mrf.mxu0
  %v3974 = vadd.f32 0.0, %v3973
  %3975 = vmatmul.f32.gmra.mxu0 %v3765
  %v3976 = vpop.f32.mrf.mxu0
  %v3977 = vadd.f32 0.0, %v3976
  %3978 = vmatmul.f32.gmra.mxu0 %v3768
  %v3979 = vpop.f32.mrf.mxu0
  %v3980 = vadd.f32 0.0, %v3979
  %3981 = vmatmul.f32.gmra.mxu0 %v3771
  %v3982 = vpop.f32.mrf.mxu0
  %v3983 = vadd.f32 0.0, %v3982
  %3984 = vmatmul.f32.gmra.mxu0 %v3774
  %v3985 = vpop.f32.mrf.mxu0
  %v3986 = vadd.f32 0.0, %v3985
  %3987 = vmatmul.f32.gmra.mxu0 %v3777
  %v3988 = vpop.f32.mrf.mxu0
  %v3989 = vadd.f32 0.0, %v3988
  %3990 = vmatmul.f32.gmra.mxu0 %v3780
  %v3991 = vpop.f32.mrf.mxu0
  %v3992 = vadd.f32 0.0, %v3991
  %3993 = vmatmul.f32.gmra.mxu0 %v3783
  %v3994 = vpop.f32.mrf.mxu0
  %v3995 = vadd.f32 0.0, %v3994
  %3996 = vmatmul.f32.gmra.mxu0 %v3786
  %v3997 = vpop.f32.mrf.mxu0
  %v3998 = vadd.f32 0.0, %v3997
  %3999 = vmatmul.f32.gmra.mxu0 %v3789
  %v4000 = vpop.f32.mrf.mxu0
  %v4001 = vadd.f32 0.0, %v4000
  %4002 = vmatmul.f32.gmra.mxu0 %v3792
  %v4003 = vpop.f32.mrf.mxu0
  %v4004 = vadd.f32 0.0, %v4003
  %4005 = vmatmul.f32.gmra.mxu0 %v3795
  %v4006 = vpop.f32.mrf.mxu0
  %v4007 = vadd.f32 0.0, %v4006
  %4008 = vmatmul.f32.gmra.mxu0 %v3798
  %v4009 = vpop.f32.mrf.mxu0
  %v4010 = vadd.f32 0.0, %v4009
  %4011 = vmatmul.f32.gmra.mxu0 %v3801
  %v4012 = vpop.f32.mrf.mxu0
  %v4013 = vadd.f32 0.0, %v4012
  %4014 = vmatmul.f32.gmra.mxu0 %v3804
  %v4015 = vpop.f32.mrf.mxu0
  %v4016 = vadd.f32 0.0, %v4015
  %4017 = vmatmul.f32.gmra.mxu0 %v3807
  %v4018 = vpop.f32.mrf.mxu0
  %v4019 = vadd.f32 0.0, %v4018
  %4020 = vmatmul.f32.gmra.mxu0 %v3810
  %v4021 = vpop.f32.mrf.mxu0
  %v4022 = vadd.f32 0.0, %v4021
  %4023 = vmatmul.f32.gmra.mxu0 %v3813
  %v4024 = vpop.f32.mrf.mxu0
  %v4025 = vadd.f32 0.0, %v4024
  %4026 = vmatmul.f32.gmra.mxu0 %v3816
  %v4027 = vpop.f32.mrf.mxu0
  %v4028 = vadd.f32 0.0, %v4027
  %4029 = vmatmul.f32.gmra.mxu0 %v3819
  %v4030 = vpop.f32.mrf.mxu0
  %v4031 = vadd.f32 0.0, %v4030
  %4032 = vmatmul.f32.gmra.mxu0 %v3822
  %v4033 = vpop.f32.mrf.mxu0
  %v4034 = vadd.f32 0.0, %v4033
  %4035 = vmatmul.f32.gmra.mxu0 %v3825
  %v4036 = vpop.f32.mrf.mxu0
  %v4037 = vadd.f32 0.0, %v4036
  %4038 = vmatmul.f32.gmra.mxu0 %v3828
  %v4039 = vpop.f32.mrf.mxu0
  %v4040 = vadd.f32 0.0, %v4039
  %4041 = vmatmul.f32.gmra.mxu0 %v3831
  %v4042 = vpop.f32.mrf.mxu0
  %v4043 = vadd.f32 0.0, %v4042
  %4044 = vmatmul.f32.gmra.mxu0 %v3834
  %v4045 = vpop.f32.mrf.mxu0
  %v4046 = vadd.f32 0.0, %v4045
  %4047 = vmatmul.f32.gmra.mxu0 %v3837
  %v4048 = vpop.f32.mrf.mxu0
  %v4049 = vadd.f32 0.0, %v4048
  %4050 = vmatmul.f32.gmra.mxu0 %v3840
  %v4051 = vpop.f32.mrf.mxu0
  %v4052 = vadd.f32 0.0, %v4051
  %4053 = vmatmul.f32.gmra.mxu0 %v3843
  %v4054 = vpop.f32.mrf.mxu0
  %v4055 = vadd.f32 0.0, %v4054
  %4056 = vmatmul.f32.gmra.mxu0 %v3846
  %v4057 = vpop.f32.mrf.mxu0
  %v4058 = vadd.f32 0.0, %v4057
  %4059 = vmatmul.f32.gmra.mxu0 %v3849
  %v4060 = vpop.f32.mrf.mxu0
  %v4061 = vadd.f32 0.0, %v4060
  %4062 = vmatmul.f32.gmra.mxu0 %v3852
  %v4063 = vpop.f32.mrf.mxu0
  %v4064 = vadd.f32 0.0, %v4063
  %4065 = vmatmul.f32.gmra.mxu0 %v3855
  %v4066 = vpop.f32.mrf.mxu0
  %v4067 = vadd.f32 0.0, %v4066
  %4068 = vmatmul.f32.gmra.mxu0 %v3858
  %v4069 = vpop.f32.mrf.mxu0
  %v4070 = vadd.f32 0.0, %v4069
  %4071 = vmatmul.f32.gmra.mxu0 %v3861
  %v4072 = vpop.f32.mrf.mxu0
  %v4073 = vadd.f32 0.0, %v4072
  %4074 = vmatmul.f32.gmra.mxu0 %v3864
  %v4075 = vpop.f32.mrf.mxu0
  %v4076 = vadd.f32 0.0, %v4075
  %4077 = vmatmul.f32.gmra.mxu0 %v3867
  %v4078 = vpop.f32.mrf.mxu0
  %v4079 = vadd.f32 0.0, %v4078
  %4080 = vmatmul.f32.gmra.mxu0 %v3870
  %v4081 = vpop.f32.mrf.mxu0
  %v4082 = vadd.f32 0.0, %v4081
  %4083 = vmatmul.f32.gmra.mxu0 %v3873
  %v4084 = vpop.f32.mrf.mxu0
  %v4085 = vadd.f32 0.0, %v4084
  %4086 = vmatmul.f32.gmra.mxu0 %v3876
  %v4087 = vpop.f32.mrf.mxu0
  %v4088 = vadd.f32 0.0, %v4087
  %4089 = vmatmul.f32.gmra.mxu0 %v3879
  %v4090 = vpop.f32.mrf.mxu0
  %v4091 = vadd.f32 0.0, %v4090
  %4092 = vmatmul.f32.gmra.mxu0 %v3882
  %v4093 = vpop.f32.mrf.mxu0
  %v4094 = vadd.f32 0.0, %v4093
  %4095 = vmatmul.f32.gmra.mxu0 %v3885
  %v4096 = vpop.f32.mrf.mxu0
  %v4097 = vadd.f32 0.0, %v4096
  %4098 = vmatmul.f32.gmra.mxu0 %v3888
  %v4099 = vpop.f32.mrf.mxu0
  %v4100 = vadd.f32 0.0, %v4099
  %4101 = vdwg.mxu0
  %v4102 = vadd.f32 %v3567, %v3911
  %v4103 = vadd.f32 %v3568, %v3914
  %v4104 = vadd.f32 %v3569, %v3917
  %v4105 = vadd.f32 %v3570, %v3920
  %v4106 = vadd.f32 %v3571, %v3923
  %v4107 = vadd.f32 %v3572, %v3926
  %v4108 = vadd.f32 %v3573, %v3929
  %v4109 = vadd.f32 %v3574, %v3932
  %v4110 = vadd.f32 %v3575, %v3935
  %v4111 = vadd.f32 %v3576, %v3938
  %v4112 = vadd.f32 %v3577, %v3941
  %v4113 = vadd.f32 %v3578, %v3944
  %v4114 = vadd.f32 %v3579, %v3947
  %v4115 = vadd.f32 %v3580, %v3950
  %v4116 = vadd.f32 %v3581, %v3953
  %v4117 = vadd.f32 %v3582, %v3956
  %v4118 = vadd.f32 %v3583, %v3959
  %v4119 = vadd.f32 %v3584, %v3962
  %v4120 = vadd.f32 %v3585, %v3965
  %v4121 = vadd.f32 %v3586, %v3968
  %v4122 = vadd.f32 %v3587, %v3971
  %v4123 = vadd.f32 %v3588, %v3974
  %v4124 = vadd.f32 %v3589, %v3977
  %v4125 = vadd.f32 %v3590, %v3980
  %v4126 = vadd.f32 %v3591, %v3983
  %v4127 = vadd.f32 %v3592, %v3986
  %v4128 = vadd.f32 %v3593, %v3989
  %v4129 = vadd.f32 %v3594, %v3992
  %v4130 = vadd.f32 %v3595, %v3995
  %v4131 = vadd.f32 %v3596, %v3998
  %v4132 = vadd.f32 %v3597, %v4001
  %v4133 = vadd.f32 %v3598, %v4004
  %v4134 = vadd.f32 %v3599, %v4007
  %v4135 = vadd.f32 %v3600, %v4010
  %v4136 = vadd.f32 %v3601, %v4013
  %v4137 = vadd.f32 %v3602, %v4016
  %v4138 = vadd.f32 %v3603, %v4019
  %v4139 = vadd.f32 %v3604, %v4022
  %v4140 = vadd.f32 %v3605, %v4025
  %v4141 = vadd.f32 %v3606, %v4028
  %v4142 = vadd.f32 %v3607, %v4031
  %v4143 = vadd.f32 %v3608, %v4034
  %v4144 = vadd.f32 %v3609, %v4037
  %v4145 = vadd.f32 %v3610, %v4040
  %v4146 = vadd.f32 %v3611, %v4043
  %v4147 = vadd.f32 %v3612, %v4046
  %v4148 = vadd.f32 %v3613, %v4049
  %v4149 = vadd.f32 %v3614, %v4052
  %v4150 = vadd.f32 %v3615, %v4055
  %v4151 = vadd.f32 %v3616, %v4058
  %v4152 = vadd.f32 %v3617, %v4061
  %v4153 = vadd.f32 %v3618, %v4064
  %v4154 = vadd.f32 %v3619, %v4067
  %v4155 = vadd.f32 %v3620, %v4070
  %v4156 = vadd.f32 %v3621, %v4073
  %v4157 = vadd.f32 %v3622, %v4076
  %v4158 = vadd.f32 %v3623, %v4079
  %v4159 = vadd.f32 %v3624, %v4082
  %v4160 = vadd.f32 %v3625, %v4085
  %v4161 = vadd.f32 %v3626, %v4088
  %v4162 = vadd.f32 %v3627, %v4091
  %v4163 = vadd.f32 %v3628, %v4094
  %v4164 = vadd.f32 %v3629, %v4097
  %v4165 = vadd.f32 %v3630, %v4100
  %v4166 = vld [vmem:[%s0 + $0x1] sm:$0xff]
  %v4167 = vld [vmem:[%s0 + $0x9] sm:$0xff]
  %v4168 = vld [vmem:[%s0 + $0x19] sm:$0xff]
  %v4169 = vld [vmem:[%s0 + $0x21] sm:$0xff]
  %v4170 = vld [vmem:[%s0 + $0x31] sm:$0xff]
  %v4171 = vld [vmem:[%s0 + $0x39] sm:$0xff]
  %v4172 = vld [vmem:[%s0 + $0x49] sm:$0xff]
  %v4173 = vld [vmem:[%s0 + $0x51] sm:$0xff]
  %v4174 = vld [vmem:[%s0 + $0x61] sm:$0xff]
  %v4175 = vld [vmem:[%s0 + $0x69] sm:$0xff]
  %v4176 = vld [vmem:[%s0 + $0x79] sm:$0xff]
  %v4177 = vld [vmem:[%s0 + $0x81] sm:$0xff]
  %v4178 = vld [vmem:[%s0 + $0x91] sm:$0xff]
  %v4179 = vld [vmem:[%s0 + $0x99] sm:$0xff]
  %v4180 = vld [vmem:[%s0 + $0xa9] sm:$0xff]
  %v4181 = vld [vmem:[%s0 + $0xb1] sm:$0xff]
  %v4182 = vld [vmem:[%s0 + $0xc1] sm:$0xff]
  %v4183 = vld [vmem:[%s0 + $0xc9] sm:$0xff]
  %v4184 = vld [vmem:[%s0 + $0xd9] sm:$0xff]
  %v4185 = vld [vmem:[%s0 + $0xe1] sm:$0xff]
  %v4186 = vld [vmem:[%s0 + $0xf1] sm:$0xff]
  %v4187 = vld [vmem:[%s0 + $0xf9] sm:$0xff]
  %v4188 = vld [vmem:[%s0 + $0x109] sm:$0xff]
  %v4189 = vld [vmem:[%s0 + $0x111] sm:$0xff]
  %v4190 = vld [vmem:[%s0 + $0x121] sm:$0xff]
  %v4191 = vld [vmem:[%s0 + $0x129] sm:$0xff]
  %v4192 = vld [vmem:[%s0 + $0x139] sm:$0xff]
  %v4193 = vld [vmem:[%s0 + $0x141] sm:$0xff]
  %v4194 = vld [vmem:[%s0 + $0x151] sm:$0xff]
  %v4195 = vld [vmem:[%s0 + $0x159] sm:$0xff]
  %v4196 = vld [vmem:[%s0 + $0x169] sm:$0xff]
  %v4197 = vld [vmem:[%s0 + $0x171] sm:$0xff]
  %v4198 = vld [vmem:[%s0 + $0x199] sm:$0xff]
  %v4199 = vld [vmem:[%s0 + $0x1a1] sm:$0xff]
  %v4200 = vld [vmem:[%s0 + $0x1b1] sm:$0xff]
  %v4201 = vld [vmem:[%s0 + $0x1b9] sm:$0xff]
  %v4202 = vld [vmem:[%s0 + $0x1c9] sm:$0xff]
  %v4203 = vld [vmem:[%s0 + $0x1d1] sm:$0xff]
  %v4204 = vld [vmem:[%s0 + $0x1e1] sm:$0xff]
  %v4205 = vld [vmem:[%s0 + $0x1e9] sm:$0xff]
  %v4206 = vld [vmem:[%s0 + $0x1f9] sm:$0xff]
  %v4207 = vld [vmem:[%s0 + $0x201] sm:$0xff]
  %v4208 = vld [vmem:[%s0 + $0x211] sm:$0xff]
  %v4209 = vld [vmem:[%s0 + $0x219] sm:$0xff]
  %v4210 = vld [vmem:[%s0 + $0x229] sm:$0xff]
  %v4211 = vld [vmem:[%s0 + $0x231] sm:$0xff]
  %v4212 = vld [vmem:[%s0 + $0x241] sm:$0xff]
  %v4213 = vld [vmem:[%s0 + $0x249] sm:$0xff]
  %v4214 = vld [vmem:[%s0 + $0x259] sm:$0xff]
  %v4215 = vld [vmem:[%s0 + $0x261] sm:$0xff]
  %v4216 = vld [vmem:[%s0 + $0x271] sm:$0xff]
  %v4217 = vld [vmem:[%s0 + $0x279] sm:$0xff]
  %v4218 = vld [vmem:[%s0 + $0x289] sm:$0xff]
  %v4219 = vld [vmem:[%s0 + $0x291] sm:$0xff]
  %v4220 = vld [vmem:[%s0 + $0x2a1] sm:$0xff]
  %v4221 = vld [vmem:[%s0 + $0x2a9] sm:$0xff]
  %v4222 = vld [vmem:[%s0 + $0x2b9] sm:$0xff]
  %v4223 = vld [vmem:[%s0 + $0x2c1] sm:$0xff]
  %v4224 = vld [vmem:[%s0 + $0x2d1] sm:$0xff]
  %v4225 = vld [vmem:[%s0 + $0x2d9] sm:$0xff]
  %v4226 = vld [vmem:[%s0 + $0x2e9] sm:$0xff]
  %v4227 = vld [vmem:[%s0 + $0x2f1] sm:$0xff]
  %v4228 = vld [vmem:[%s0 + $0x301] sm:$0xff]
  %v4229 = vld [vmem:[%s0 + $0x309] sm:$0xff]
  %s4230 = scalar_lea.vmem %s1, 32
  %v4231 = vld [vmem:[%s4230] sm:$0xf]
  %v4233 = vsel %vm146, %v4166, 0
  %v4236 = vsel %vm146, %v4167, 0
  %v4239 = vsel %vm146, %v4168, 0
  %v4242 = vsel %vm146, %v4169, 0
  %v4245 = vsel %vm146, %v4170, 0
  %v4248 = vsel %vm146, %v4171, 0
  %v4251 = vsel %vm146, %v4172, 0
  %v4254 = vsel %vm146, %v4173, 0
  %v4257 = vsel %vm146, %v4174, 0
  %v4260 = vsel %vm146, %v4175, 0
  %v4263 = vsel %vm146, %v4176, 0
  %v4266 = vsel %vm146, %v4177, 0
  %v4269 = vsel %vm146, %v4178, 0
  %v4272 = vsel %vm146, %v4179, 0
  %v4275 = vsel %vm146, %v4180, 0
  %v4278 = vsel %vm146, %v4181, 0
  %v4281 = vsel %vm146, %v4182, 0
  %v4284 = vsel %vm146, %v4183, 0
  %v4287 = vsel %vm146, %v4184, 0
  %v4290 = vsel %vm146, %v4185, 0
  %v4293 = vsel %vm146, %v4186, 0
  %v4296 = vsel %vm146, %v4187, 0
  %v4299 = vsel %vm146, %v4188, 0
  %v4302 = vsel %vm146, %v4189, 0
  %v4305 = vsel %vm146, %v4190, 0
  %v4308 = vsel %vm146, %v4191, 0
  %v4311 = vsel %vm146, %v4192, 0
  %v4314 = vsel %vm146, %v4193, 0
  %v4317 = vsel %vm146, %v4194, 0
  %v4320 = vsel %vm146, %v4195, 0
  %v4323 = vsel %vm146, %v4196, 0
  %v4326 = vsel %vm146, %v4197, 0
  %v4329 = vsel %vm146, %v4198, 0
  %v4332 = vsel %vm146, %v4199, 0
  %v4335 = vsel %vm146, %v4200, 0
  %v4338 = vsel %vm146, %v4201, 0
  %v4341 = vsel %vm146, %v4202, 0
  %v4344 = vsel %vm146, %v4203, 0
  %v4347 = vsel %vm146, %v4204, 0
  %v4350 = vsel %vm146, %v4205, 0
  %v4353 = vsel %vm146, %v4206, 0
  %v4356 = vsel %vm146, %v4207, 0
  %v4359 = vsel %vm146, %v4208, 0
  %v4362 = vsel %vm146, %v4209, 0
  %v4365 = vsel %vm146, %v4210, 0
  %v4368 = vsel %vm146, %v4211, 0
  %v4371 = vsel %vm146, %v4212, 0
  %v4374 = vsel %vm146, %v4213, 0
  %v4377 = vsel %vm146, %v4214, 0
  %v4380 = vsel %vm146, %v4215, 0
  %v4383 = vsel %vm146, %v4216, 0
  %v4386 = vsel %vm146, %v4217, 0
  %v4389 = vsel %vm146, %v4218, 0
  %v4392 = vsel %vm146, %v4219, 0
  %v4395 = vsel %vm146, %v4220, 0
  %v4398 = vsel %vm146, %v4221, 0
  %v4401 = vsel %vm146, %v4222, 0
  %v4404 = vsel %vm146, %v4223, 0
  %v4407 = vsel %vm146, %v4224, 0
  %v4410 = vsel %vm146, %v4225, 0
  %v4413 = vsel %vm146, %v4226, 0
  %v4416 = vsel %vm146, %v4227, 0
  %v4419 = vsel %vm146, %v4228, 0
  %v4422 = vsel %vm146, %v4229, 0
  %v4425 = vsel %vm339, %v4231, 0
  %4427 = vmatpush.msra.mxu0 0.0
  %4428 = vmatpush.msra.mxu0 0.0
  %4429 = vmatpush.msra.mxu0 0.0
  %4430 = vmatpush.msra.mxu0 0.0
  %4431 = vmatpush.msra.mxu0 0.0
  %4432 = vmatpush.msra.mxu0 0.0
  %4433 = vmatpush.msra.mxu0 0.0
  %4434 = vmatpush.msra.mxu0 0.0
  %4435 = vmatpush.msra.mxu0 0.0
  %4436 = vmatpush.msra.mxu0 0.0
  %4437 = vmatpush.msra.mxu0 0.0
  %4438 = vmatpush.msra.mxu0 0.0
  %4439 = vmatpush.msra.mxu0 0.0
  %4440 = vmatpush.msra.mxu0 0.0
  %4441 = vmatpush.msra.mxu0 0.0
  %4442 = vmatpush.msra.mxu0 %v4425
  %4443 = vmatmul.f32.gmra.mxu0 %v4233
  %v4444 = vpop.f32.mrf.mxu0
  %v4445 = vadd.f32 0.0, %v4444
  %4446 = vmatmul.f32.gmra.mxu0 %v4236
  %v4447 = vpop.f32.mrf.mxu0
  %v4448 = vadd.f32 0.0, %v4447
  %4449 = vmatmul.f32.gmra.mxu0 %v4239
  %v4450 = vpop.f32.mrf.mxu0
  %v4451 = vadd.f32 0.0, %v4450
  %4452 = vmatmul.f32.gmra.mxu0 %v4242
  %v4453 = vpop.f32.mrf.mxu0
  %v4454 = vadd.f32 0.0, %v4453
  %4455 = vmatmul.f32.gmra.mxu0 %v4245
  %v4456 = vpop.f32.mrf.mxu0
  %v4457 = vadd.f32 0.0, %v4456
  %4458 = vmatmul.f32.gmra.mxu0 %v4248
  %v4459 = vpop.f32.mrf.mxu0
  %v4460 = vadd.f32 0.0, %v4459
  %4461 = vmatmul.f32.gmra.mxu0 %v4251
  %v4462 = vpop.f32.mrf.mxu0
  %v4463 = vadd.f32 0.0, %v4462
  %4464 = vmatmul.f32.gmra.mxu0 %v4254
  %v4465 = vpop.f32.mrf.mxu0
  %v4466 = vadd.f32 0.0, %v4465
  %4467 = vmatmul.f32.gmra.mxu0 %v4257
  %v4468 = vpop.f32.mrf.mxu0
  %v4469 = vadd.f32 0.0, %v4468
  %4470 = vmatmul.f32.gmra.mxu0 %v4260
  %v4471 = vpop.f32.mrf.mxu0
  %v4472 = vadd.f32 0.0, %v4471
  %4473 = vmatmul.f32.gmra.mxu0 %v4263
  %v4474 = vpop.f32.mrf.mxu0
  %v4475 = vadd.f32 0.0, %v4474
  %4476 = vmatmul.f32.gmra.mxu0 %v4266
  %v4477 = vpop.f32.mrf.mxu0
  %v4478 = vadd.f32 0.0, %v4477
  %4479 = vmatmul.f32.gmra.mxu0 %v4269
  %v4480 = vpop.f32.mrf.mxu0
  %v4481 = vadd.f32 0.0, %v4480
  %4482 = vmatmul.f32.gmra.mxu0 %v4272
  %v4483 = vpop.f32.mrf.mxu0
  %v4484 = vadd.f32 0.0, %v4483
  %4485 = vmatmul.f32.gmra.mxu0 %v4275
  %v4486 = vpop.f32.mrf.mxu0
  %v4487 = vadd.f32 0.0, %v4486
  %4488 = vmatmul.f32.gmra.mxu0 %v4278
  %v4489 = vpop.f32.mrf.mxu0
  %v4490 = vadd.f32 0.0, %v4489
  %4491 = vmatmul.f32.gmra.mxu0 %v4281
  %v4492 = vpop.f32.mrf.mxu0
  %v4493 = vadd.f32 0.0, %v4492
  %4494 = vmatmul.f32.gmra.mxu0 %v4284
  %v4495 = vpop.f32.mrf.mxu0
  %v4496 = vadd.f32 0.0, %v4495
  %4497 = vmatmul.f32.gmra.mxu0 %v4287
  %v4498 = vpop.f32.mrf.mxu0
  %v4499 = vadd.f32 0.0, %v4498
  %4500 = vmatmul.f32.gmra.mxu0 %v4290
  %v4501 = vpop.f32.mrf.mxu0
  %v4502 = vadd.f32 0.0, %v4501
  %4503 = vmatmul.f32.gmra.mxu0 %v4293
  %v4504 = vpop.f32.mrf.mxu0
  %v4505 = vadd.f32 0.0, %v4504
  %4506 = vmatmul.f32.gmra.mxu0 %v4296
  %v4507 = vpop.f32.mrf.mxu0
  %v4508 = vadd.f32 0.0, %v4507
  %4509 = vmatmul.f32.gmra.mxu0 %v4299
  %v4510 = vpop.f32.mrf.mxu0
  %v4511 = vadd.f32 0.0, %v4510
  %4512 = vmatmul.f32.gmra.mxu0 %v4302
  %v4513 = vpop.f32.mrf.mxu0
  %v4514 = vadd.f32 0.0, %v4513
  %4515 = vmatmul.f32.gmra.mxu0 %v4305
  %v4516 = vpop.f32.mrf.mxu0
  %v4517 = vadd.f32 0.0, %v4516
  %4518 = vmatmul.f32.gmra.mxu0 %v4308
  %v4519 = vpop.f32.mrf.mxu0
  %v4520 = vadd.f32 0.0, %v4519
  %4521 = vmatmul.f32.gmra.mxu0 %v4311
  %v4522 = vpop.f32.mrf.mxu0
  %v4523 = vadd.f32 0.0, %v4522
  %4524 = vmatmul.f32.gmra.mxu0 %v4314
  %v4525 = vpop.f32.mrf.mxu0
  %v4526 = vadd.f32 0.0, %v4525
  %4527 = vmatmul.f32.gmra.mxu0 %v4317
  %v4528 = vpop.f32.mrf.mxu0
  %v4529 = vadd.f32 0.0, %v4528
  %4530 = vmatmul.f32.gmra.mxu0 %v4320
  %v4531 = vpop.f32.mrf.mxu0
  %v4532 = vadd.f32 0.0, %v4531
  %4533 = vmatmul.f32.gmra.mxu0 %v4323
  %v4534 = vpop.f32.mrf.mxu0
  %v4535 = vadd.f32 0.0, %v4534
  %4536 = vmatmul.f32.gmra.mxu0 %v4326
  %v4537 = vpop.f32.mrf.mxu0
  %v4538 = vadd.f32 0.0, %v4537
  %4539 = vmatmul.f32.gmra.mxu0 %v4329
  %v4540 = vpop.f32.mrf.mxu0
  %v4541 = vadd.f32 0.0, %v4540
  %4542 = vmatmul.f32.gmra.mxu0 %v4332
  %v4543 = vpop.f32.mrf.mxu0
  %v4544 = vadd.f32 0.0, %v4543
  %4545 = vmatmul.f32.gmra.mxu0 %v4335
  %v4546 = vpop.f32.mrf.mxu0
  %v4547 = vadd.f32 0.0, %v4546
  %4548 = vmatmul.f32.gmra.mxu0 %v4338
  %v4549 = vpop.f32.mrf.mxu0
  %v4550 = vadd.f32 0.0, %v4549
  %4551 = vmatmul.f32.gmra.mxu0 %v4341
  %v4552 = vpop.f32.mrf.mxu0
  %v4553 = vadd.f32 0.0, %v4552
  %4554 = vmatmul.f32.gmra.mxu0 %v4344
  %v4555 = vpop.f32.mrf.mxu0
  %v4556 = vadd.f32 0.0, %v4555
  %4557 = vmatmul.f32.gmra.mxu0 %v4347
  %v4558 = vpop.f32.mrf.mxu0
  %v4559 = vadd.f32 0.0, %v4558
  %4560 = vmatmul.f32.gmra.mxu0 %v4350
  %v4561 = vpop.f32.mrf.mxu0
  %v4562 = vadd.f32 0.0, %v4561
  %4563 = vmatmul.f32.gmra.mxu0 %v4353
  %v4564 = vpop.f32.mrf.mxu0
  %v4565 = vadd.f32 0.0, %v4564
  %4566 = vmatmul.f32.gmra.mxu0 %v4356
  %v4567 = vpop.f32.mrf.mxu0
  %v4568 = vadd.f32 0.0, %v4567
  %4569 = vmatmul.f32.gmra.mxu0 %v4359
  %v4570 = vpop.f32.mrf.mxu0
  %v4571 = vadd.f32 0.0, %v4570
  %4572 = vmatmul.f32.gmra.mxu0 %v4362
  %v4573 = vpop.f32.mrf.mxu0
  %v4574 = vadd.f32 0.0, %v4573
  %4575 = vmatmul.f32.gmra.mxu0 %v4365
  %v4576 = vpop.f32.mrf.mxu0
  %v4577 = vadd.f32 0.0, %v4576
  %4578 = vmatmul.f32.gmra.mxu0 %v4368
  %v4579 = vpop.f32.mrf.mxu0
  %v4580 = vadd.f32 0.0, %v4579
  %4581 = vmatmul.f32.gmra.mxu0 %v4371
  %v4582 = vpop.f32.mrf.mxu0
  %v4583 = vadd.f32 0.0, %v4582
  %4584 = vmatmul.f32.gmra.mxu0 %v4374
  %v4585 = vpop.f32.mrf.mxu0
  %v4586 = vadd.f32 0.0, %v4585
  %4587 = vmatmul.f32.gmra.mxu0 %v4377
  %v4588 = vpop.f32.mrf.mxu0
  %v4589 = vadd.f32 0.0, %v4588
  %4590 = vmatmul.f32.gmra.mxu0 %v4380
  %v4591 = vpop.f32.mrf.mxu0
  %v4592 = vadd.f32 0.0, %v4591
  %4593 = vmatmul.f32.gmra.mxu0 %v4383
  %v4594 = vpop.f32.mrf.mxu0
  %v4595 = vadd.f32 0.0, %v4594
  %4596 = vmatmul.f32.gmra.mxu0 %v4386
  %v4597 = vpop.f32.mrf.mxu0
  %v4598 = vadd.f32 0.0, %v4597
  %4599 = vmatmul.f32.gmra.mxu0 %v4389
  %v4600 = vpop.f32.mrf.mxu0
  %v4601 = vadd.f32 0.0, %v4600
  %4602 = vmatmul.f32.gmra.mxu0 %v4392
  %v4603 = vpop.f32.mrf.mxu0
  %v4604 = vadd.f32 0.0, %v4603
  %4605 = vmatmul.f32.gmra.mxu0 %v4395
  %v4606 = vpop.f32.mrf.mxu0
  %v4607 = vadd.f32 0.0, %v4606
  %4608 = vmatmul.f32.gmra.mxu0 %v4398
  %v4609 = vpop.f32.mrf.mxu0
  %v4610 = vadd.f32 0.0, %v4609
  %4611 = vmatmul.f32.gmra.mxu0 %v4401
  %v4612 = vpop.f32.mrf.mxu0
  %v4613 = vadd.f32 0.0, %v4612
  %4614 = vmatmul.f32.gmra.mxu0 %v4404
  %v4615 = vpop.f32.mrf.mxu0
  %v4616 = vadd.f32 0.0, %v4615
  %4617 = vmatmul.f32.gmra.mxu0 %v4407
  %v4618 = vpop.f32.mrf.mxu0
  %v4619 = vadd.f32 0.0, %v4618
  %4620 = vmatmul.f32.gmra.mxu0 %v4410
  %v4621 = vpop.f32.mrf.mxu0
  %v4622 = vadd.f32 0.0, %v4621
  %4623 = vmatmul.f32.gmra.mxu0 %v4413
  %v4624 = vpop.f32.mrf.mxu0
  %v4625 = vadd.f32 0.0, %v4624
  %4626 = vmatmul.f32.gmra.mxu0 %v4416
  %v4627 = vpop.f32.mrf.mxu0
  %v4628 = vadd.f32 0.0, %v4627
  %4629 = vmatmul.f32.gmra.mxu0 %v4419
  %v4630 = vpop.f32.mrf.mxu0
  %v4631 = vadd.f32 0.0, %v4630
  %4632 = vmatmul.f32.gmra.mxu0 %v4422
  %v4633 = vpop.f32.mrf.mxu0
  %v4634 = vadd.f32 0.0, %v4633
  %4635 = vdwg.mxu0
  %v4636 = vadd.f32 %v4102, %v4445
  %v4637 = vadd.f32 %v4103, %v4448
  %v4638 = vadd.f32 %v4104, %v4451
  %v4639 = vadd.f32 %v4105, %v4454
  %v4640 = vadd.f32 %v4106, %v4457
  %v4641 = vadd.f32 %v4107, %v4460
  %v4642 = vadd.f32 %v4108, %v4463
  %v4643 = vadd.f32 %v4109, %v4466
  %v4644 = vadd.f32 %v4110, %v4469
  %v4645 = vadd.f32 %v4111, %v4472
  %v4646 = vadd.f32 %v4112, %v4475
  %v4647 = vadd.f32 %v4113, %v4478
  %v4648 = vadd.f32 %v4114, %v4481
  %v4649 = vadd.f32 %v4115, %v4484
  %v4650 = vadd.f32 %v4116, %v4487
  %v4651 = vadd.f32 %v4117, %v4490
  %v4652 = vadd.f32 %v4118, %v4493
  %v4653 = vadd.f32 %v4119, %v4496
  %v4654 = vadd.f32 %v4120, %v4499
  %v4655 = vadd.f32 %v4121, %v4502
  %v4656 = vadd.f32 %v4122, %v4505
  %v4657 = vadd.f32 %v4123, %v4508
  %v4658 = vadd.f32 %v4124, %v4511
  %v4659 = vadd.f32 %v4125, %v4514
  %v4660 = vadd.f32 %v4126, %v4517
  %v4661 = vadd.f32 %v4127, %v4520
  %v4662 = vadd.f32 %v4128, %v4523
  %v4663 = vadd.f32 %v4129, %v4526
  %v4664 = vadd.f32 %v4130, %v4529
  %v4665 = vadd.f32 %v4131, %v4532
  %v4666 = vadd.f32 %v4132, %v4535
  %v4667 = vadd.f32 %v4133, %v4538
  %v4668 = vadd.f32 %v4134, %v4541
  %v4669 = vadd.f32 %v4135, %v4544
  %v4670 = vadd.f32 %v4136, %v4547
  %v4671 = vadd.f32 %v4137, %v4550
  %v4672 = vadd.f32 %v4138, %v4553
  %v4673 = vadd.f32 %v4139, %v4556
  %v4674 = vadd.f32 %v4140, %v4559
  %v4675 = vadd.f32 %v4141, %v4562
  %v4676 = vadd.f32 %v4142, %v4565
  %v4677 = vadd.f32 %v4143, %v4568
  %v4678 = vadd.f32 %v4144, %v4571
  %v4679 = vadd.f32 %v4145, %v4574
  %v4680 = vadd.f32 %v4146, %v4577
  %v4681 = vadd.f32 %v4147, %v4580
  %v4682 = vadd.f32 %v4148, %v4583
  %v4683 = vadd.f32 %v4149, %v4586
  %v4684 = vadd.f32 %v4150, %v4589
  %v4685 = vadd.f32 %v4151, %v4592
  %v4686 = vadd.f32 %v4152, %v4595
  %v4687 = vadd.f32 %v4153, %v4598
  %v4688 = vadd.f32 %v4154, %v4601
  %v4689 = vadd.f32 %v4155, %v4604
  %v4690 = vadd.f32 %v4156, %v4607
  %v4691 = vadd.f32 %v4157, %v4610
  %v4692 = vadd.f32 %v4158, %v4613
  %v4693 = vadd.f32 %v4159, %v4616
  %v4694 = vadd.f32 %v4160, %v4619
  %v4695 = vadd.f32 %v4161, %v4622
  %v4696 = vadd.f32 %v4162, %v4625
  %v4697 = vadd.f32 %v4163, %v4628
  %v4698 = vadd.f32 %v4164, %v4631
  %v4699 = vadd.f32 %v4165, %v4634
  %v4700 = vld [vmem:[%s79 + $0x1] sm:$0xff]
  %v4701 = vld [vmem:[%s79 + $0x9] sm:$0xff]
  %v4702 = vld [vmem:[%s79 + $0x19] sm:$0xff]
  %v4703 = vld [vmem:[%s79 + $0x21] sm:$0xff]
  %v4704 = vld [vmem:[%s79 + $0x31] sm:$0xff]
  %v4705 = vld [vmem:[%s79 + $0x39] sm:$0xff]
  %v4706 = vld [vmem:[%s79 + $0x49] sm:$0xff]
  %v4707 = vld [vmem:[%s79 + $0x51] sm:$0xff]
  %v4708 = vld [vmem:[%s79 + $0x61] sm:$0xff]
  %v4709 = vld [vmem:[%s79 + $0x69] sm:$0xff]
  %v4710 = vld [vmem:[%s79 + $0x79] sm:$0xff]
  %v4711 = vld [vmem:[%s79 + $0x81] sm:$0xff]
  %v4712 = vld [vmem:[%s79 + $0x91] sm:$0xff]
  %v4713 = vld [vmem:[%s79 + $0x99] sm:$0xff]
  %v4714 = vld [vmem:[%s79 + $0xa9] sm:$0xff]
  %v4715 = vld [vmem:[%s79 + $0xb1] sm:$0xff]
  %v4716 = vld [vmem:[%s79 + $0xc1] sm:$0xff]
  %v4717 = vld [vmem:[%s79 + $0xc9] sm:$0xff]
  %v4718 = vld [vmem:[%s79 + $0xd9] sm:$0xff]
  %v4719 = vld [vmem:[%s79 + $0xe1] sm:$0xff]
  %v4720 = vld [vmem:[%s79 + $0xf1] sm:$0xff]
  %v4721 = vld [vmem:[%s79 + $0xf9] sm:$0xff]
  %v4722 = vld [vmem:[%s79 + $0x109] sm:$0xff]
  %v4723 = vld [vmem:[%s79 + $0x111] sm:$0xff]
  %v4724 = vld [vmem:[%s79 + $0x121] sm:$0xff]
  %v4725 = vld [vmem:[%s79 + $0x129] sm:$0xff]
  %v4726 = vld [vmem:[%s79 + $0x139] sm:$0xff]
  %v4727 = vld [vmem:[%s79 + $0x141] sm:$0xff]
  %v4728 = vld [vmem:[%s79 + $0x151] sm:$0xff]
  %v4729 = vld [vmem:[%s79 + $0x159] sm:$0xff]
  %v4730 = vld [vmem:[%s79 + $0x169] sm:$0xff]
  %v4731 = vld [vmem:[%s79 + $0x171] sm:$0xff]
  %v4732 = vld [vmem:[%s79 + $0x199] sm:$0xff]
  %v4733 = vld [vmem:[%s79 + $0x1a1] sm:$0xff]
  %v4734 = vld [vmem:[%s79 + $0x1b1] sm:$0xff]
  %v4735 = vld [vmem:[%s79 + $0x1b9] sm:$0xff]
  %v4736 = vld [vmem:[%s79 + $0x1c9] sm:$0xff]
  %v4737 = vld [vmem:[%s79 + $0x1d1] sm:$0xff]
  %v4738 = vld [vmem:[%s79 + $0x1e1] sm:$0xff]
  %v4739 = vld [vmem:[%s79 + $0x1e9] sm:$0xff]
  %v4740 = vld [vmem:[%s79 + $0x1f9] sm:$0xff]
  %v4741 = vld [vmem:[%s79 + $0x201] sm:$0xff]
  %v4742 = vld [vmem:[%s79 + $0x211] sm:$0xff]
  %v4743 = vld [vmem:[%s79 + $0x219] sm:$0xff]
  %v4744 = vld [vmem:[%s79 + $0x229] sm:$0xff]
  %v4745 = vld [vmem:[%s79 + $0x231] sm:$0xff]
  %v4746 = vld [vmem:[%s79 + $0x241] sm:$0xff]
  %v4747 = vld [vmem:[%s79 + $0x249] sm:$0xff]
  %v4748 = vld [vmem:[%s79 + $0x259] sm:$0xff]
  %v4749 = vld [vmem:[%s79 + $0x261] sm:$0xff]
  %v4750 = vld [vmem:[%s79 + $0x271] sm:$0xff]
  %v4751 = vld [vmem:[%s79 + $0x279] sm:$0xff]
  %v4752 = vld [vmem:[%s79 + $0x289] sm:$0xff]
  %v4753 = vld [vmem:[%s79 + $0x291] sm:$0xff]
  %v4754 = vld [vmem:[%s79 + $0x2a1] sm:$0xff]
  %v4755 = vld [vmem:[%s79 + $0x2a9] sm:$0xff]
  %v4756 = vld [vmem:[%s79 + $0x2b9] sm:$0xff]
  %v4757 = vld [vmem:[%s79 + $0x2c1] sm:$0xff]
  %v4758 = vld [vmem:[%s79 + $0x2d1] sm:$0xff]
  %v4759 = vld [vmem:[%s79 + $0x2d9] sm:$0xff]
  %v4760 = vld [vmem:[%s79 + $0x2e9] sm:$0xff]
  %v4761 = vld [vmem:[%s79 + $0x2f1] sm:$0xff]
  %v4762 = vld [vmem:[%s79 + $0x301] sm:$0xff]
  %v4763 = vld [vmem:[%s79 + $0x309] sm:$0xff]
  %s4764 = scalar_lea.vmem %s1, 36
  %v4765 = vld [vmem:[%s4764] sm:$0xf]
  %v4767 = vsel %vm146, %v4700, 0
  %v4770 = vsel %vm146, %v4701, 0
  %v4773 = vsel %vm146, %v4702, 0
  %v4776 = vsel %vm146, %v4703, 0
  %v4779 = vsel %vm146, %v4704, 0
  %v4782 = vsel %vm146, %v4705, 0
  %v4785 = vsel %vm146, %v4706, 0
  %v4788 = vsel %vm146, %v4707, 0
  %v4791 = vsel %vm146, %v4708, 0
  %v4794 = vsel %vm146, %v4709, 0
  %v4797 = vsel %vm146, %v4710, 0
  %v4800 = vsel %vm146, %v4711, 0
  %v4803 = vsel %vm146, %v4712, 0
  %v4806 = vsel %vm146, %v4713, 0
  %v4809 = vsel %vm146, %v4714, 0
  %v4812 = vsel %vm146, %v4715, 0
  %v4815 = vsel %vm146, %v4716, 0
  %v4818 = vsel %vm146, %v4717, 0
  %v4821 = vsel %vm146, %v4718, 0
  %v4824 = vsel %vm146, %v4719, 0
  %v4827 = vsel %vm146, %v4720, 0
  %v4830 = vsel %vm146, %v4721, 0
  %v4833 = vsel %vm146, %v4722, 0
  %v4836 = vsel %vm146, %v4723, 0
  %v4839 = vsel %vm146, %v4724, 0
  %v4842 = vsel %vm146, %v4725, 0
  %v4845 = vsel %vm146, %v4726, 0
  %v4848 = vsel %vm146, %v4727, 0
  %v4851 = vsel %vm146, %v4728, 0
  %v4854 = vsel %vm146, %v4729, 0
  %v4857 = vsel %vm146, %v4730, 0
  %v4860 = vsel %vm146, %v4731, 0
  %v4863 = vsel %vm146, %v4732, 0
  %v4866 = vsel %vm146, %v4733, 0
  %v4869 = vsel %vm146, %v4734, 0
  %v4872 = vsel %vm146, %v4735, 0
  %v4875 = vsel %vm146, %v4736, 0
  %v4878 = vsel %vm146, %v4737, 0
  %v4881 = vsel %vm146, %v4738, 0
  %v4884 = vsel %vm146, %v4739, 0
  %v4887 = vsel %vm146, %v4740, 0
  %v4890 = vsel %vm146, %v4741, 0
  %v4893 = vsel %vm146, %v4742, 0
  %v4896 = vsel %vm146, %v4743, 0
  %v4899 = vsel %vm146, %v4744, 0
  %v4902 = vsel %vm146, %v4745, 0
  %v4905 = vsel %vm146, %v4746, 0
  %v4908 = vsel %vm146, %v4747, 0
  %v4911 = vsel %vm146, %v4748, 0
  %v4914 = vsel %vm146, %v4749, 0
  %v4917 = vsel %vm146, %v4750, 0
  %v4920 = vsel %vm146, %v4751, 0
  %v4923 = vsel %vm146, %v4752, 0
  %v4926 = vsel %vm146, %v4753, 0
  %v4929 = vsel %vm146, %v4754, 0
  %v4932 = vsel %vm146, %v4755, 0
  %v4935 = vsel %vm146, %v4756, 0
  %v4938 = vsel %vm146, %v4757, 0
  %v4941 = vsel %vm146, %v4758, 0
  %v4944 = vsel %vm146, %v4759, 0
  %v4947 = vsel %vm146, %v4760, 0
  %v4950 = vsel %vm146, %v4761, 0
  %v4953 = vsel %vm146, %v4762, 0
  %v4956 = vsel %vm146, %v4763, 0
  %v4959 = vsel %vm339, %v4765, 0
  %4961 = vmatpush.msra.mxu0 0.0
  %4962 = vmatpush.msra.mxu0 0.0
  %4963 = vmatpush.msra.mxu0 0.0
  %4964 = vmatpush.msra.mxu0 0.0
  %4965 = vmatpush.msra.mxu0 0.0
  %4966 = vmatpush.msra.mxu0 0.0
  %4967 = vmatpush.msra.mxu0 0.0
  %4968 = vmatpush.msra.mxu0 0.0
  %4969 = vmatpush.msra.mxu0 0.0
  %4970 = vmatpush.msra.mxu0 0.0
  %4971 = vmatpush.msra.mxu0 0.0
  %4972 = vmatpush.msra.mxu0 0.0
  %4973 = vmatpush.msra.mxu0 0.0
  %4974 = vmatpush.msra.mxu0 0.0
  %4975 = vmatpush.msra.mxu0 0.0
  %4976 = vmatpush.msra.mxu0 %v4959
  %4977 = vmatmul.f32.gmra.mxu0 %v4767
  %v4978 = vpop.f32.mrf.mxu0
  %v4979 = vadd.f32 0.0, %v4978
  %4980 = vmatmul.f32.gmra.mxu0 %v4770
  %v4981 = vpop.f32.mrf.mxu0
  %v4982 = vadd.f32 0.0, %v4981
  %4983 = vmatmul.f32.gmra.mxu0 %v4773
  %v4984 = vpop.f32.mrf.mxu0
  %v4985 = vadd.f32 0.0, %v4984
  %4986 = vmatmul.f32.gmra.mxu0 %v4776
  %v4987 = vpop.f32.mrf.mxu0
  %v4988 = vadd.f32 0.0, %v4987
  %4989 = vmatmul.f32.gmra.mxu0 %v4779
  %v4990 = vpop.f32.mrf.mxu0
  %v4991 = vadd.f32 0.0, %v4990
  %4992 = vmatmul.f32.gmra.mxu0 %v4782
  %v4993 = vpop.f32.mrf.mxu0
  %v4994 = vadd.f32 0.0, %v4993
  %4995 = vmatmul.f32.gmra.mxu0 %v4785
  %v4996 = vpop.f32.mrf.mxu0
  %v4997 = vadd.f32 0.0, %v4996
  %4998 = vmatmul.f32.gmra.mxu0 %v4788
  %v4999 = vpop.f32.mrf.mxu0
  %v5000 = vadd.f32 0.0, %v4999
  %5001 = vmatmul.f32.gmra.mxu0 %v4791
  %v5002 = vpop.f32.mrf.mxu0
  %v5003 = vadd.f32 0.0, %v5002
  %5004 = vmatmul.f32.gmra.mxu0 %v4794
  %v5005 = vpop.f32.mrf.mxu0
  %v5006 = vadd.f32 0.0, %v5005
  %5007 = vmatmul.f32.gmra.mxu0 %v4797
  %v5008 = vpop.f32.mrf.mxu0
  %v5009 = vadd.f32 0.0, %v5008
  %5010 = vmatmul.f32.gmra.mxu0 %v4800
  %v5011 = vpop.f32.mrf.mxu0
  %v5012 = vadd.f32 0.0, %v5011
  %5013 = vmatmul.f32.gmra.mxu0 %v4803
  %v5014 = vpop.f32.mrf.mxu0
  %v5015 = vadd.f32 0.0, %v5014
  %5016 = vmatmul.f32.gmra.mxu0 %v4806
  %v5017 = vpop.f32.mrf.mxu0
  %v5018 = vadd.f32 0.0, %v5017
  %5019 = vmatmul.f32.gmra.mxu0 %v4809
  %v5020 = vpop.f32.mrf.mxu0
  %v5021 = vadd.f32 0.0, %v5020
  %5022 = vmatmul.f32.gmra.mxu0 %v4812
  %v5023 = vpop.f32.mrf.mxu0
  %v5024 = vadd.f32 0.0, %v5023
  %5025 = vmatmul.f32.gmra.mxu0 %v4815
  %v5026 = vpop.f32.mrf.mxu0
  %v5027 = vadd.f32 0.0, %v5026
  %5028 = vmatmul.f32.gmra.mxu0 %v4818
  %v5029 = vpop.f32.mrf.mxu0
  %v5030 = vadd.f32 0.0, %v5029
  %5031 = vmatmul.f32.gmra.mxu0 %v4821
  %v5032 = vpop.f32.mrf.mxu0
  %v5033 = vadd.f32 0.0, %v5032
  %5034 = vmatmul.f32.gmra.mxu0 %v4824
  %v5035 = vpop.f32.mrf.mxu0
  %v5036 = vadd.f32 0.0, %v5035
  %5037 = vmatmul.f32.gmra.mxu0 %v4827
  %v5038 = vpop.f32.mrf.mxu0
  %v5039 = vadd.f32 0.0, %v5038
  %5040 = vmatmul.f32.gmra.mxu0 %v4830
  %v5041 = vpop.f32.mrf.mxu0
  %v5042 = vadd.f32 0.0, %v5041
  %5043 = vmatmul.f32.gmra.mxu0 %v4833
  %v5044 = vpop.f32.mrf.mxu0
  %v5045 = vadd.f32 0.0, %v5044
  %5046 = vmatmul.f32.gmra.mxu0 %v4836
  %v5047 = vpop.f32.mrf.mxu0
  %v5048 = vadd.f32 0.0, %v5047
  %5049 = vmatmul.f32.gmra.mxu0 %v4839
  %v5050 = vpop.f32.mrf.mxu0
  %v5051 = vadd.f32 0.0, %v5050
  %5052 = vmatmul.f32.gmra.mxu0 %v4842
  %v5053 = vpop.f32.mrf.mxu0
  %v5054 = vadd.f32 0.0, %v5053
  %5055 = vmatmul.f32.gmra.mxu0 %v4845
  %v5056 = vpop.f32.mrf.mxu0
  %v5057 = vadd.f32 0.0, %v5056
  %5058 = vmatmul.f32.gmra.mxu0 %v4848
  %v5059 = vpop.f32.mrf.mxu0
  %v5060 = vadd.f32 0.0, %v5059
  %5061 = vmatmul.f32.gmra.mxu0 %v4851
  %v5062 = vpop.f32.mrf.mxu0
  %v5063 = vadd.f32 0.0, %v5062
  %5064 = vmatmul.f32.gmra.mxu0 %v4854
  %v5065 = vpop.f32.mrf.mxu0
  %v5066 = vadd.f32 0.0, %v5065
  %5067 = vmatmul.f32.gmra.mxu0 %v4857
  %v5068 = vpop.f32.mrf.mxu0
  %v5069 = vadd.f32 0.0, %v5068
  %5070 = vmatmul.f32.gmra.mxu0 %v4860
  %v5071 = vpop.f32.mrf.mxu0
  %v5072 = vadd.f32 0.0, %v5071
  %5073 = vmatmul.f32.gmra.mxu0 %v4863
  %v5074 = vpop.f32.mrf.mxu0
  %v5075 = vadd.f32 0.0, %v5074
  %5076 = vmatmul.f32.gmra.mxu0 %v4866
  %v5077 = vpop.f32.mrf.mxu0
  %v5078 = vadd.f32 0.0, %v5077
  %5079 = vmatmul.f32.gmra.mxu0 %v4869
  %v5080 = vpop.f32.mrf.mxu0
  %v5081 = vadd.f32 0.0, %v5080
  %5082 = vmatmul.f32.gmra.mxu0 %v4872
  %v5083 = vpop.f32.mrf.mxu0
  %v5084 = vadd.f32 0.0, %v5083
  %5085 = vmatmul.f32.gmra.mxu0 %v4875
  %v5086 = vpop.f32.mrf.mxu0
  %v5087 = vadd.f32 0.0, %v5086
  %5088 = vmatmul.f32.gmra.mxu0 %v4878
  %v5089 = vpop.f32.mrf.mxu0
  %v5090 = vadd.f32 0.0, %v5089
  %5091 = vmatmul.f32.gmra.mxu0 %v4881
  %v5092 = vpop.f32.mrf.mxu0
  %v5093 = vadd.f32 0.0, %v5092
  %5094 = vmatmul.f32.gmra.mxu0 %v4884
  %v5095 = vpop.f32.mrf.mxu0
  %v5096 = vadd.f32 0.0, %v5095
  %5097 = vmatmul.f32.gmra.mxu0 %v4887
  %v5098 = vpop.f32.mrf.mxu0
  %v5099 = vadd.f32 0.0, %v5098
  %5100 = vmatmul.f32.gmra.mxu0 %v4890
  %v5101 = vpop.f32.mrf.mxu0
  %v5102 = vadd.f32 0.0, %v5101
  %5103 = vmatmul.f32.gmra.mxu0 %v4893
  %v5104 = vpop.f32.mrf.mxu0
  %v5105 = vadd.f32 0.0, %v5104
  %5106 = vmatmul.f32.gmra.mxu0 %v4896
  %v5107 = vpop.f32.mrf.mxu0
  %v5108 = vadd.f32 0.0, %v5107
  %5109 = vmatmul.f32.gmra.mxu0 %v4899
  %v5110 = vpop.f32.mrf.mxu0
  %v5111 = vadd.f32 0.0, %v5110
  %5112 = vmatmul.f32.gmra.mxu0 %v4902
  %v5113 = vpop.f32.mrf.mxu0
  %v5114 = vadd.f32 0.0, %v5113
  %5115 = vmatmul.f32.gmra.mxu0 %v4905
  %v5116 = vpop.f32.mrf.mxu0
  %v5117 = vadd.f32 0.0, %v5116
  %5118 = vmatmul.f32.gmra.mxu0 %v4908
  %v5119 = vpop.f32.mrf.mxu0
  %v5120 = vadd.f32 0.0, %v5119
  %5121 = vmatmul.f32.gmra.mxu0 %v4911
  %v5122 = vpop.f32.mrf.mxu0
  %v5123 = vadd.f32 0.0, %v5122
  %5124 = vmatmul.f32.gmra.mxu0 %v4914
  %v5125 = vpop.f32.mrf.mxu0
  %v5126 = vadd.f32 0.0, %v5125
  %5127 = vmatmul.f32.gmra.mxu0 %v4917
  %v5128 = vpop.f32.mrf.mxu0
  %v5129 = vadd.f32 0.0, %v5128
  %5130 = vmatmul.f32.gmra.mxu0 %v4920
  %v5131 = vpop.f32.mrf.mxu0
  %v5132 = vadd.f32 0.0, %v5131
  %5133 = vmatmul.f32.gmra.mxu0 %v4923
  %v5134 = vpop.f32.mrf.mxu0
  %v5135 = vadd.f32 0.0, %v5134
  %5136 = vmatmul.f32.gmra.mxu0 %v4926
  %v5137 = vpop.f32.mrf.mxu0
  %v5138 = vadd.f32 0.0, %v5137
  %5139 = vmatmul.f32.gmra.mxu0 %v4929
  %v5140 = vpop.f32.mrf.mxu0
  %v5141 = vadd.f32 0.0, %v5140
  %5142 = vmatmul.f32.gmra.mxu0 %v4932
  %v5143 = vpop.f32.mrf.mxu0
  %v5144 = vadd.f32 0.0, %v5143
  %5145 = vmatmul.f32.gmra.mxu0 %v4935
  %v5146 = vpop.f32.mrf.mxu0
  %v5147 = vadd.f32 0.0, %v5146
  %5148 = vmatmul.f32.gmra.mxu0 %v4938
  %v5149 = vpop.f32.mrf.mxu0
  %v5150 = vadd.f32 0.0, %v5149
  %5151 = vmatmul.f32.gmra.mxu0 %v4941
  %v5152 = vpop.f32.mrf.mxu0
  %v5153 = vadd.f32 0.0, %v5152
  %5154 = vmatmul.f32.gmra.mxu0 %v4944
  %v5155 = vpop.f32.mrf.mxu0
  %v5156 = vadd.f32 0.0, %v5155
  %5157 = vmatmul.f32.gmra.mxu0 %v4947
  %v5158 = vpop.f32.mrf.mxu0
  %v5159 = vadd.f32 0.0, %v5158
  %5160 = vmatmul.f32.gmra.mxu0 %v4950
  %v5161 = vpop.f32.mrf.mxu0
  %v5162 = vadd.f32 0.0, %v5161
  %5163 = vmatmul.f32.gmra.mxu0 %v4953
  %v5164 = vpop.f32.mrf.mxu0
  %v5165 = vadd.f32 0.0, %v5164
  %5166 = vmatmul.f32.gmra.mxu0 %v4956
  %v5167 = vpop.f32.mrf.mxu0
  %v5168 = vadd.f32 0.0, %v5167
  %5169 = vdwg.mxu0
  %v5170 = vadd.f32 %v4636, %v4979
  %v5171 = vadd.f32 %v4637, %v4982
  %v5172 = vadd.f32 %v4638, %v4985
  %v5173 = vadd.f32 %v4639, %v4988
  %v5174 = vadd.f32 %v4640, %v4991
  %v5175 = vadd.f32 %v4641, %v4994
  %v5176 = vadd.f32 %v4642, %v4997
  %v5177 = vadd.f32 %v4643, %v5000
  %v5178 = vadd.f32 %v4644, %v5003
  %v5179 = vadd.f32 %v4645, %v5006
  %v5180 = vadd.f32 %v4646, %v5009
  %v5181 = vadd.f32 %v4647, %v5012
  %v5182 = vadd.f32 %v4648, %v5015
  %v5183 = vadd.f32 %v4649, %v5018
  %v5184 = vadd.f32 %v4650, %v5021
  %v5185 = vadd.f32 %v4651, %v5024
  %v5186 = vadd.f32 %v4652, %v5027
  %v5187 = vadd.f32 %v4653, %v5030
  %v5188 = vadd.f32 %v4654, %v5033
  %v5189 = vadd.f32 %v4655, %v5036
  %v5190 = vadd.f32 %v4656, %v5039
  %v5191 = vadd.f32 %v4657, %v5042
  %v5192 = vadd.f32 %v4658, %v5045
  %v5193 = vadd.f32 %v4659, %v5048
  %v5194 = vadd.f32 %v4660, %v5051
  %v5195 = vadd.f32 %v4661, %v5054
  %v5196 = vadd.f32 %v4662, %v5057
  %v5197 = vadd.f32 %v4663, %v5060
  %v5198 = vadd.f32 %v4664, %v5063
  %v5199 = vadd.f32 %v4665, %v5066
  %v5200 = vadd.f32 %v4666, %v5069
  %v5201 = vadd.f32 %v4667, %v5072
  %v5202 = vadd.f32 %v4668, %v5075
  %v5203 = vadd.f32 %v4669, %v5078
  %v5204 = vadd.f32 %v4670, %v5081
  %v5205 = vadd.f32 %v4671, %v5084
  %v5206 = vadd.f32 %v4672, %v5087
  %v5207 = vadd.f32 %v4673, %v5090
  %v5208 = vadd.f32 %v4674, %v5093
  %v5209 = vadd.f32 %v4675, %v5096
  %v5210 = vadd.f32 %v4676, %v5099
  %v5211 = vadd.f32 %v4677, %v5102
  %v5212 = vadd.f32 %v4678, %v5105
  %v5213 = vadd.f32 %v4679, %v5108
  %v5214 = vadd.f32 %v4680, %v5111
  %v5215 = vadd.f32 %v4681, %v5114
  %v5216 = vadd.f32 %v4682, %v5117
  %v5217 = vadd.f32 %v4683, %v5120
  %v5218 = vadd.f32 %v4684, %v5123
  %v5219 = vadd.f32 %v4685, %v5126
  %v5220 = vadd.f32 %v4686, %v5129
  %v5221 = vadd.f32 %v4687, %v5132
  %v5222 = vadd.f32 %v4688, %v5135
  %v5223 = vadd.f32 %v4689, %v5138
  %v5224 = vadd.f32 %v4690, %v5141
  %v5225 = vadd.f32 %v4691, %v5144
  %v5226 = vadd.f32 %v4692, %v5147
  %v5227 = vadd.f32 %v4693, %v5150
  %v5228 = vadd.f32 %v4694, %v5153
  %v5229 = vadd.f32 %v4695, %v5156
  %v5230 = vadd.f32 %v4696, %v5159
  %v5231 = vadd.f32 %v4697, %v5162
  %v5232 = vadd.f32 %v4698, %v5165
  %v5233 = vadd.f32 %v4699, %v5168
  %v5234 = vld [vmem:[%s956 + $0x1] sm:$0xff]
  %v5235 = vld [vmem:[%s956 + $0x9] sm:$0xff]
  %v5236 = vld [vmem:[%s956 + $0x19] sm:$0xff]
  %v5237 = vld [vmem:[%s956 + $0x21] sm:$0xff]
  %v5238 = vld [vmem:[%s956 + $0x31] sm:$0xff]
  %v5239 = vld [vmem:[%s956 + $0x39] sm:$0xff]
  %v5240 = vld [vmem:[%s956 + $0x49] sm:$0xff]
  %v5241 = vld [vmem:[%s956 + $0x51] sm:$0xff]
  %v5242 = vld [vmem:[%s956 + $0x61] sm:$0xff]
  %v5243 = vld [vmem:[%s956 + $0x69] sm:$0xff]
  %v5244 = vld [vmem:[%s956 + $0x79] sm:$0xff]
  %v5245 = vld [vmem:[%s956 + $0x81] sm:$0xff]
  %v5246 = vld [vmem:[%s956 + $0x91] sm:$0xff]
  %v5247 = vld [vmem:[%s956 + $0x99] sm:$0xff]
  %v5248 = vld [vmem:[%s956 + $0xa9] sm:$0xff]
  %v5249 = vld [vmem:[%s956 + $0xb1] sm:$0xff]
  %v5250 = vld [vmem:[%s956 + $0xc1] sm:$0xff]
  %v5251 = vld [vmem:[%s956 + $0xc9] sm:$0xff]
  %v5252 = vld [vmem:[%s956 + $0xd9] sm:$0xff]
  %v5253 = vld [vmem:[%s956 + $0xe1] sm:$0xff]
  %v5254 = vld [vmem:[%s956 + $0xf1] sm:$0xff]
  %v5255 = vld [vmem:[%s956 + $0xf9] sm:$0xff]
  %v5256 = vld [vmem:[%s956 + $0x109] sm:$0xff]
  %v5257 = vld [vmem:[%s956 + $0x111] sm:$0xff]
  %v5258 = vld [vmem:[%s956 + $0x121] sm:$0xff]
  %v5259 = vld [vmem:[%s956 + $0x129] sm:$0xff]
  %v5260 = vld [vmem:[%s956 + $0x139] sm:$0xff]
  %v5261 = vld [vmem:[%s956 + $0x141] sm:$0xff]
  %v5262 = vld [vmem:[%s956 + $0x151] sm:$0xff]
  %v5263 = vld [vmem:[%s956 + $0x159] sm:$0xff]
  %v5264 = vld [vmem:[%s956 + $0x169] sm:$0xff]
  %v5265 = vld [vmem:[%s956 + $0x171] sm:$0xff]
  %v5266 = vld [vmem:[%s956 + $0x199] sm:$0xff]
  %v5267 = vld [vmem:[%s956 + $0x1a1] sm:$0xff]
  %v5268 = vld [vmem:[%s956 + $0x1b1] sm:$0xff]
  %v5269 = vld [vmem:[%s956 + $0x1b9] sm:$0xff]
  %v5270 = vld [vmem:[%s956 + $0x1c9] sm:$0xff]
  %v5271 = vld [vmem:[%s956 + $0x1d1] sm:$0xff]
  %v5272 = vld [vmem:[%s956 + $0x1e1] sm:$0xff]
  %v5273 = vld [vmem:[%s956 + $0x1e9] sm:$0xff]
  %v5274 = vld [vmem:[%s956 + $0x1f9] sm:$0xff]
  %v5275 = vld [vmem:[%s956 + $0x201] sm:$0xff]
  %v5276 = vld [vmem:[%s956 + $0x211] sm:$0xff]
  %v5277 = vld [vmem:[%s956 + $0x219] sm:$0xff]
  %v5278 = vld [vmem:[%s956 + $0x229] sm:$0xff]
  %v5279 = vld [vmem:[%s956 + $0x231] sm:$0xff]
  %v5280 = vld [vmem:[%s956 + $0x241] sm:$0xff]
  %v5281 = vld [vmem:[%s956 + $0x249] sm:$0xff]
  %v5282 = vld [vmem:[%s956 + $0x259] sm:$0xff]
  %v5283 = vld [vmem:[%s956 + $0x261] sm:$0xff]
  %v5284 = vld [vmem:[%s956 + $0x271] sm:$0xff]
  %v5285 = vld [vmem:[%s956 + $0x279] sm:$0xff]
  %v5286 = vld [vmem:[%s956 + $0x289] sm:$0xff]
  %v5287 = vld [vmem:[%s956 + $0x291] sm:$0xff]
  %v5288 = vld [vmem:[%s956 + $0x2a1] sm:$0xff]
  %v5289 = vld [vmem:[%s956 + $0x2a9] sm:$0xff]
  %v5290 = vld [vmem:[%s956 + $0x2b9] sm:$0xff]
  %v5291 = vld [vmem:[%s956 + $0x2c1] sm:$0xff]
  %v5292 = vld [vmem:[%s956 + $0x2d1] sm:$0xff]
  %v5293 = vld [vmem:[%s956 + $0x2d9] sm:$0xff]
  %v5294 = vld [vmem:[%s956 + $0x2e9] sm:$0xff]
  %v5295 = vld [vmem:[%s956 + $0x2f1] sm:$0xff]
  %v5296 = vld [vmem:[%s956 + $0x301] sm:$0xff]
  %v5297 = vld [vmem:[%s956 + $0x309] sm:$0xff]
  %s5298 = scalar_lea.vmem %s1, 40
  %v5299 = vld [vmem:[%s5298] sm:$0xf]
  %v5301 = vsel %vm146, %v5234, 0
  %v5304 = vsel %vm146, %v5235, 0
  %v5307 = vsel %vm146, %v5236, 0
  %v5310 = vsel %vm146, %v5237, 0
  %v5313 = vsel %vm146, %v5238, 0
  %v5316 = vsel %vm146, %v5239, 0
  %v5319 = vsel %vm146, %v5240, 0
  %v5322 = vsel %vm146, %v5241, 0
  %v5325 = vsel %vm146, %v5242, 0
  %v5328 = vsel %vm146, %v5243, 0
  %v5331 = vsel %vm146, %v5244, 0
  %v5334 = vsel %vm146, %v5245, 0
  %v5337 = vsel %vm146, %v5246, 0
  %v5340 = vsel %vm146, %v5247, 0
  %v5343 = vsel %vm146, %v5248, 0
  %v5346 = vsel %vm146, %v5249, 0
  %v5349 = vsel %vm146, %v5250, 0
  %v5352 = vsel %vm146, %v5251, 0
  %v5355 = vsel %vm146, %v5252, 0
  %v5358 = vsel %vm146, %v5253, 0
  %v5361 = vsel %vm146, %v5254, 0
  %v5364 = vsel %vm146, %v5255, 0
  %v5367 = vsel %vm146, %v5256, 0
  %v5370 = vsel %vm146, %v5257, 0
  %v5373 = vsel %vm146, %v5258, 0
  %v5376 = vsel %vm146, %v5259, 0
  %v5379 = vsel %vm146, %v5260, 0
  %v5382 = vsel %vm146, %v5261, 0
  %v5385 = vsel %vm146, %v5262, 0
  %v5388 = vsel %vm146, %v5263, 0
  %v5391 = vsel %vm146, %v5264, 0
  %v5394 = vsel %vm146, %v5265, 0
  %v5397 = vsel %vm146, %v5266, 0
  %v5400 = vsel %vm146, %v5267, 0
  %v5403 = vsel %vm146, %v5268, 0
  %v5406 = vsel %vm146, %v5269, 0
  %v5409 = vsel %vm146, %v5270, 0
  %v5412 = vsel %vm146, %v5271, 0
  %v5415 = vsel %vm146, %v5272, 0
  %v5418 = vsel %vm146, %v5273, 0
  %v5421 = vsel %vm146, %v5274, 0
  %v5424 = vsel %vm146, %v5275, 0
  %v5427 = vsel %vm146, %v5276, 0
  %v5430 = vsel %vm146, %v5277, 0
  %v5433 = vsel %vm146, %v5278, 0
  %v5436 = vsel %vm146, %v5279, 0
  %v5439 = vsel %vm146, %v5280, 0
  %v5442 = vsel %vm146, %v5281, 0
  %v5445 = vsel %vm146, %v5282, 0
  %v5448 = vsel %vm146, %v5283, 0
  %v5451 = vsel %vm146, %v5284, 0
  %v5454 = vsel %vm146, %v5285, 0
  %v5457 = vsel %vm146, %v5286, 0
  %v5460 = vsel %vm146, %v5287, 0
  %v5463 = vsel %vm146, %v5288, 0
  %v5466 = vsel %vm146, %v5289, 0
  %v5469 = vsel %vm146, %v5290, 0
  %v5472 = vsel %vm146, %v5291, 0
  %v5475 = vsel %vm146, %v5292, 0
  %v5478 = vsel %vm146, %v5293, 0
  %v5481 = vsel %vm146, %v5294, 0
  %v5484 = vsel %vm146, %v5295, 0
  %v5487 = vsel %vm146, %v5296, 0
  %v5490 = vsel %vm146, %v5297, 0
  %v5493 = vsel %vm339, %v5299, 0
  %5495 = vmatpush.msra.mxu0 0.0
  %5496 = vmatpush.msra.mxu0 0.0
  %5497 = vmatpush.msra.mxu0 0.0
  %5498 = vmatpush.msra.mxu0 0.0
  %5499 = vmatpush.msra.mxu0 0.0
  %5500 = vmatpush.msra.mxu0 0.0
  %5501 = vmatpush.msra.mxu0 0.0
  %5502 = vmatpush.msra.mxu0 0.0
  %5503 = vmatpush.msra.mxu0 0.0
  %5504 = vmatpush.msra.mxu0 0.0
  %5505 = vmatpush.msra.mxu0 0.0
  %5506 = vmatpush.msra.mxu0 0.0
  %5507 = vmatpush.msra.mxu0 0.0
  %5508 = vmatpush.msra.mxu0 0.0
  %5509 = vmatpush.msra.mxu0 0.0
  %5510 = vmatpush.msra.mxu0 %v5493
  %5511 = vmatmul.f32.gmra.mxu0 %v5301
  %v5512 = vpop.f32.mrf.mxu0
  %v5513 = vadd.f32 0.0, %v5512
  %5514 = vmatmul.f32.gmra.mxu0 %v5304
  %v5515 = vpop.f32.mrf.mxu0
  %v5516 = vadd.f32 0.0, %v5515
  %5517 = vmatmul.f32.gmra.mxu0 %v5307
  %v5518 = vpop.f32.mrf.mxu0
  %v5519 = vadd.f32 0.0, %v5518
  %5520 = vmatmul.f32.gmra.mxu0 %v5310
  %v5521 = vpop.f32.mrf.mxu0
  %v5522 = vadd.f32 0.0, %v5521
  %5523 = vmatmul.f32.gmra.mxu0 %v5313
  %v5524 = vpop.f32.mrf.mxu0
  %v5525 = vadd.f32 0.0, %v5524
  %5526 = vmatmul.f32.gmra.mxu0 %v5316
  %v5527 = vpop.f32.mrf.mxu0
  %v5528 = vadd.f32 0.0, %v5527
  %5529 = vmatmul.f32.gmra.mxu0 %v5319
  %v5530 = vpop.f32.mrf.mxu0
  %v5531 = vadd.f32 0.0, %v5530
  %5532 = vmatmul.f32.gmra.mxu0 %v5322
  %v5533 = vpop.f32.mrf.mxu0
  %v5534 = vadd.f32 0.0, %v5533
  %5535 = vmatmul.f32.gmra.mxu0 %v5325
  %v5536 = vpop.f32.mrf.mxu0
  %v5537 = vadd.f32 0.0, %v5536
  %5538 = vmatmul.f32.gmra.mxu0 %v5328
  %v5539 = vpop.f32.mrf.mxu0
  %v5540 = vadd.f32 0.0, %v5539
  %5541 = vmatmul.f32.gmra.mxu0 %v5331
  %v5542 = vpop.f32.mrf.mxu0
  %v5543 = vadd.f32 0.0, %v5542
  %5544 = vmatmul.f32.gmra.mxu0 %v5334
  %v5545 = vpop.f32.mrf.mxu0
  %v5546 = vadd.f32 0.0, %v5545
  %5547 = vmatmul.f32.gmra.mxu0 %v5337
  %v5548 = vpop.f32.mrf.mxu0
  %v5549 = vadd.f32 0.0, %v5548
  %5550 = vmatmul.f32.gmra.mxu0 %v5340
  %v5551 = vpop.f32.mrf.mxu0
  %v5552 = vadd.f32 0.0, %v5551
  %5553 = vmatmul.f32.gmra.mxu0 %v5343
  %v5554 = vpop.f32.mrf.mxu0
  %v5555 = vadd.f32 0.0, %v5554
  %5556 = vmatmul.f32.gmra.mxu0 %v5346
  %v5557 = vpop.f32.mrf.mxu0
  %v5558 = vadd.f32 0.0, %v5557
  %5559 = vmatmul.f32.gmra.mxu0 %v5349
  %v5560 = vpop.f32.mrf.mxu0
  %v5561 = vadd.f32 0.0, %v5560
  %5562 = vmatmul.f32.gmra.mxu0 %v5352
  %v5563 = vpop.f32.mrf.mxu0
  %v5564 = vadd.f32 0.0, %v5563
  %5565 = vmatmul.f32.gmra.mxu0 %v5355
  %v5566 = vpop.f32.mrf.mxu0
  %v5567 = vadd.f32 0.0, %v5566
  %5568 = vmatmul.f32.gmra.mxu0 %v5358
  %v5569 = vpop.f32.mrf.mxu0
  %v5570 = vadd.f32 0.0, %v5569
  %5571 = vmatmul.f32.gmra.mxu0 %v5361
  %v5572 = vpop.f32.mrf.mxu0
  %v5573 = vadd.f32 0.0, %v5572
  %5574 = vmatmul.f32.gmra.mxu0 %v5364
  %v5575 = vpop.f32.mrf.mxu0
  %v5576 = vadd.f32 0.0, %v5575
  %5577 = vmatmul.f32.gmra.mxu0 %v5367
  %v5578 = vpop.f32.mrf.mxu0
  %v5579 = vadd.f32 0.0, %v5578
  %5580 = vmatmul.f32.gmra.mxu0 %v5370
  %v5581 = vpop.f32.mrf.mxu0
  %v5582 = vadd.f32 0.0, %v5581
  %5583 = vmatmul.f32.gmra.mxu0 %v5373
  %v5584 = vpop.f32.mrf.mxu0
  %v5585 = vadd.f32 0.0, %v5584
  %5586 = vmatmul.f32.gmra.mxu0 %v5376
  %v5587 = vpop.f32.mrf.mxu0
  %v5588 = vadd.f32 0.0, %v5587
  %5589 = vmatmul.f32.gmra.mxu0 %v5379
  %v5590 = vpop.f32.mrf.mxu0
  %v5591 = vadd.f32 0.0, %v5590
  %5592 = vmatmul.f32.gmra.mxu0 %v5382
  %v5593 = vpop.f32.mrf.mxu0
  %v5594 = vadd.f32 0.0, %v5593
  %5595 = vmatmul.f32.gmra.mxu0 %v5385
  %v5596 = vpop.f32.mrf.mxu0
  %v5597 = vadd.f32 0.0, %v5596
  %5598 = vmatmul.f32.gmra.mxu0 %v5388
  %v5599 = vpop.f32.mrf.mxu0
  %v5600 = vadd.f32 0.0, %v5599
  %5601 = vmatmul.f32.gmra.mxu0 %v5391
  %v5602 = vpop.f32.mrf.mxu0
  %v5603 = vadd.f32 0.0, %v5602
  %5604 = vmatmul.f32.gmra.mxu0 %v5394
  %v5605 = vpop.f32.mrf.mxu0
  %v5606 = vadd.f32 0.0, %v5605
  %5607 = vmatmul.f32.gmra.mxu0 %v5397
  %v5608 = vpop.f32.mrf.mxu0
  %v5609 = vadd.f32 0.0, %v5608
  %5610 = vmatmul.f32.gmra.mxu0 %v5400
  %v5611 = vpop.f32.mrf.mxu0
  %v5612 = vadd.f32 0.0, %v5611
  %5613 = vmatmul.f32.gmra.mxu0 %v5403
  %v5614 = vpop.f32.mrf.mxu0
  %v5615 = vadd.f32 0.0, %v5614
  %5616 = vmatmul.f32.gmra.mxu0 %v5406
  %v5617 = vpop.f32.mrf.mxu0
  %v5618 = vadd.f32 0.0, %v5617
  %5619 = vmatmul.f32.gmra.mxu0 %v5409
  %v5620 = vpop.f32.mrf.mxu0
  %v5621 = vadd.f32 0.0, %v5620
  %5622 = vmatmul.f32.gmra.mxu0 %v5412
  %v5623 = vpop.f32.mrf.mxu0
  %v5624 = vadd.f32 0.0, %v5623
  %5625 = vmatmul.f32.gmra.mxu0 %v5415
  %v5626 = vpop.f32.mrf.mxu0
  %v5627 = vadd.f32 0.0, %v5626
  %5628 = vmatmul.f32.gmra.mxu0 %v5418
  %v5629 = vpop.f32.mrf.mxu0
  %v5630 = vadd.f32 0.0, %v5629
  %5631 = vmatmul.f32.gmra.mxu0 %v5421
  %v5632 = vpop.f32.mrf.mxu0
  %v5633 = vadd.f32 0.0, %v5632
  %5634 = vmatmul.f32.gmra.mxu0 %v5424
  %v5635 = vpop.f32.mrf.mxu0
  %v5636 = vadd.f32 0.0, %v5635
  %5637 = vmatmul.f32.gmra.mxu0 %v5427
  %v5638 = vpop.f32.mrf.mxu0
  %v5639 = vadd.f32 0.0, %v5638
  %5640 = vmatmul.f32.gmra.mxu0 %v5430
  %v5641 = vpop.f32.mrf.mxu0
  %v5642 = vadd.f32 0.0, %v5641
  %5643 = vmatmul.f32.gmra.mxu0 %v5433
  %v5644 = vpop.f32.mrf.mxu0
  %v5645 = vadd.f32 0.0, %v5644
  %5646 = vmatmul.f32.gmra.mxu0 %v5436
  %v5647 = vpop.f32.mrf.mxu0
  %v5648 = vadd.f32 0.0, %v5647
  %5649 = vmatmul.f32.gmra.mxu0 %v5439
  %v5650 = vpop.f32.mrf.mxu0
  %v5651 = vadd.f32 0.0, %v5650
  %5652 = vmatmul.f32.gmra.mxu0 %v5442
  %v5653 = vpop.f32.mrf.mxu0
  %v5654 = vadd.f32 0.0, %v5653
  %5655 = vmatmul.f32.gmra.mxu0 %v5445
  %v5656 = vpop.f32.mrf.mxu0
  %v5657 = vadd.f32 0.0, %v5656
  %5658 = vmatmul.f32.gmra.mxu0 %v5448
  %v5659 = vpop.f32.mrf.mxu0
  %v5660 = vadd.f32 0.0, %v5659
  %5661 = vmatmul.f32.gmra.mxu0 %v5451
  %v5662 = vpop.f32.mrf.mxu0
  %v5663 = vadd.f32 0.0, %v5662
  %5664 = vmatmul.f32.gmra.mxu0 %v5454
  %v5665 = vpop.f32.mrf.mxu0
  %v5666 = vadd.f32 0.0, %v5665
  %5667 = vmatmul.f32.gmra.mxu0 %v5457
  %v5668 = vpop.f32.mrf.mxu0
  %v5669 = vadd.f32 0.0, %v5668
  %5670 = vmatmul.f32.gmra.mxu0 %v5460
  %v5671 = vpop.f32.mrf.mxu0
  %v5672 = vadd.f32 0.0, %v5671
  %5673 = vmatmul.f32.gmra.mxu0 %v5463
  %v5674 = vpop.f32.mrf.mxu0
  %v5675 = vadd.f32 0.0, %v5674
  %5676 = vmatmul.f32.gmra.mxu0 %v5466
  %v5677 = vpop.f32.mrf.mxu0
  %v5678 = vadd.f32 0.0, %v5677
  %5679 = vmatmul.f32.gmra.mxu0 %v5469
  %v5680 = vpop.f32.mrf.mxu0
  %v5681 = vadd.f32 0.0, %v5680
  %5682 = vmatmul.f32.gmra.mxu0 %v5472
  %v5683 = vpop.f32.mrf.mxu0
  %v5684 = vadd.f32 0.0, %v5683
  %5685 = vmatmul.f32.gmra.mxu0 %v5475
  %v5686 = vpop.f32.mrf.mxu0
  %v5687 = vadd.f32 0.0, %v5686
  %5688 = vmatmul.f32.gmra.mxu0 %v5478
  %v5689 = vpop.f32.mrf.mxu0
  %v5690 = vadd.f32 0.0, %v5689
  %5691 = vmatmul.f32.gmra.mxu0 %v5481
  %v5692 = vpop.f32.mrf.mxu0
  %v5693 = vadd.f32 0.0, %v5692
  %5694 = vmatmul.f32.gmra.mxu0 %v5484
  %v5695 = vpop.f32.mrf.mxu0
  %v5696 = vadd.f32 0.0, %v5695
  %5697 = vmatmul.f32.gmra.mxu0 %v5487
  %v5698 = vpop.f32.mrf.mxu0
  %v5699 = vadd.f32 0.0, %v5698
  %5700 = vmatmul.f32.gmra.mxu0 %v5490
  %v5701 = vpop.f32.mrf.mxu0
  %v5702 = vadd.f32 0.0, %v5701
  %5703 = vdwg.mxu0
  %v5704 = vadd.f32 %v5170, %v5513
  %v5705 = vadd.f32 %v5171, %v5516
  %v5706 = vadd.f32 %v5172, %v5519
  %v5707 = vadd.f32 %v5173, %v5522
  %v5708 = vadd.f32 %v5174, %v5525
  %v5709 = vadd.f32 %v5175, %v5528
  %v5710 = vadd.f32 %v5176, %v5531
  %v5711 = vadd.f32 %v5177, %v5534
  %v5712 = vadd.f32 %v5178, %v5537
  %v5713 = vadd.f32 %v5179, %v5540
  %v5714 = vadd.f32 %v5180, %v5543
  %v5715 = vadd.f32 %v5181, %v5546
  %v5716 = vadd.f32 %v5182, %v5549
  %v5717 = vadd.f32 %v5183, %v5552
  %v5718 = vadd.f32 %v5184, %v5555
  %v5719 = vadd.f32 %v5185, %v5558
  %v5720 = vadd.f32 %v5186, %v5561
  %v5721 = vadd.f32 %v5187, %v5564
  %v5722 = vadd.f32 %v5188, %v5567
  %v5723 = vadd.f32 %v5189, %v5570
  %v5724 = vadd.f32 %v5190, %v5573
  %v5725 = vadd.f32 %v5191, %v5576
  %v5726 = vadd.f32 %v5192, %v5579
  %v5727 = vadd.f32 %v5193, %v5582
  %v5728 = vadd.f32 %v5194, %v5585
  %v5729 = vadd.f32 %v5195, %v5588
  %v5730 = vadd.f32 %v5196, %v5591
  %v5731 = vadd.f32 %v5197, %v5594
  %v5732 = vadd.f32 %v5198, %v5597
  %v5733 = vadd.f32 %v5199, %v5600
  %v5734 = vadd.f32 %v5200, %v5603
  %v5735 = vadd.f32 %v5201, %v5606
  %v5736 = vadd.f32 %v5202, %v5609
  %v5737 = vadd.f32 %v5203, %v5612
  %v5738 = vadd.f32 %v5204, %v5615
  %v5739 = vadd.f32 %v5205, %v5618
  %v5740 = vadd.f32 %v5206, %v5621
  %v5741 = vadd.f32 %v5207, %v5624
  %v5742 = vadd.f32 %v5208, %v5627
  %v5743 = vadd.f32 %v5209, %v5630
  %v5744 = vadd.f32 %v5210, %v5633
  %v5745 = vadd.f32 %v5211, %v5636
  %v5746 = vadd.f32 %v5212, %v5639
  %v5747 = vadd.f32 %v5213, %v5642
  %v5748 = vadd.f32 %v5214, %v5645
  %v5749 = vadd.f32 %v5215, %v5648
  %v5750 = vadd.f32 %v5216, %v5651
  %v5751 = vadd.f32 %v5217, %v5654
  %v5752 = vadd.f32 %v5218, %v5657
  %v5753 = vadd.f32 %v5219, %v5660
  %v5754 = vadd.f32 %v5220, %v5663
  %v5755 = vadd.f32 %v5221, %v5666
  %v5756 = vadd.f32 %v5222, %v5669
  %v5757 = vadd.f32 %v5223, %v5672
  %v5758 = vadd.f32 %v5224, %v5675
  %v5759 = vadd.f32 %v5225, %v5678
  %v5760 = vadd.f32 %v5226, %v5681
  %v5761 = vadd.f32 %v5227, %v5684
  %v5762 = vadd.f32 %v5228, %v5687
  %v5763 = vadd.f32 %v5229, %v5690
  %v5764 = vadd.f32 %v5230, %v5693
  %v5765 = vadd.f32 %v5231, %v5696
  %v5766 = vadd.f32 %v5232, %v5699
  %v5767 = vadd.f32 %v5233, %v5702
  %v5768 = vld [vmem:[%s1491 + $0x1] sm:$0xff]
  %v5769 = vld [vmem:[%s1491 + $0x9] sm:$0xff]
  %v5770 = vld [vmem:[%s1491 + $0x19] sm:$0xff]
  %v5771 = vld [vmem:[%s1491 + $0x21] sm:$0xff]
  %v5772 = vld [vmem:[%s1491 + $0x31] sm:$0xff]
  %v5773 = vld [vmem:[%s1491 + $0x39] sm:$0xff]
  %v5774 = vld [vmem:[%s1491 + $0x49] sm:$0xff]
  %v5775 = vld [vmem:[%s1491 + $0x51] sm:$0xff]
  %v5776 = vld [vmem:[%s1491 + $0x61] sm:$0xff]
  %v5777 = vld [vmem:[%s1491 + $0x69] sm:$0xff]
  %v5778 = vld [vmem:[%s1491 + $0x79] sm:$0xff]
  %v5779 = vld [vmem:[%s1491 + $0x81] sm:$0xff]
  %v5780 = vld [vmem:[%s1491 + $0x91] sm:$0xff]
  %v5781 = vld [vmem:[%s1491 + $0x99] sm:$0xff]
  %v5782 = vld [vmem:[%s1491 + $0xa9] sm:$0xff]
  %v5783 = vld [vmem:[%s1491 + $0xb1] sm:$0xff]
  %v5784 = vld [vmem:[%s1491 + $0xc1] sm:$0xff]
  %v5785 = vld [vmem:[%s1491 + $0xc9] sm:$0xff]
  %v5786 = vld [vmem:[%s1491 + $0xd9] sm:$0xff]
  %v5787 = vld [vmem:[%s1491 + $0xe1] sm:$0xff]
  %v5788 = vld [vmem:[%s1491 + $0xf1] sm:$0xff]
  %v5789 = vld [vmem:[%s1491 + $0xf9] sm:$0xff]
  %v5790 = vld [vmem:[%s1491 + $0x109] sm:$0xff]
  %v5791 = vld [vmem:[%s1491 + $0x111] sm:$0xff]
  %v5792 = vld [vmem:[%s1491 + $0x121] sm:$0xff]
  %v5793 = vld [vmem:[%s1491 + $0x129] sm:$0xff]
  %v5794 = vld [vmem:[%s1491 + $0x139] sm:$0xff]
  %v5795 = vld [vmem:[%s1491 + $0x141] sm:$0xff]
  %v5796 = vld [vmem:[%s1491 + $0x151] sm:$0xff]
  %v5797 = vld [vmem:[%s1491 + $0x159] sm:$0xff]
  %v5798 = vld [vmem:[%s1491 + $0x169] sm:$0xff]
  %v5799 = vld [vmem:[%s1491 + $0x171] sm:$0xff]
  %v5800 = vld [vmem:[%s1491 + $0x199] sm:$0xff]
  %v5801 = vld [vmem:[%s1491 + $0x1a1] sm:$0xff]
  %v5802 = vld [vmem:[%s1491 + $0x1b1] sm:$0xff]
  %v5803 = vld [vmem:[%s1491 + $0x1b9] sm:$0xff]
  %v5804 = vld [vmem:[%s1491 + $0x1c9] sm:$0xff]
  %v5805 = vld [vmem:[%s1491 + $0x1d1] sm:$0xff]
  %v5806 = vld [vmem:[%s1491 + $0x1e1] sm:$0xff]
  %v5807 = vld [vmem:[%s1491 + $0x1e9] sm:$0xff]
  %v5808 = vld [vmem:[%s1491 + $0x1f9] sm:$0xff]
  %v5809 = vld [vmem:[%s1491 + $0x201] sm:$0xff]
  %v5810 = vld [vmem:[%s1491 + $0x211] sm:$0xff]
  %v5811 = vld [vmem:[%s1491 + $0x219] sm:$0xff]
  %v5812 = vld [vmem:[%s1491 + $0x229] sm:$0xff]
  %v5813 = vld [vmem:[%s1491 + $0x231] sm:$0xff]
  %v5814 = vld [vmem:[%s1491 + $0x241] sm:$0xff]
  %v5815 = vld [vmem:[%s1491 + $0x249] sm:$0xff]
  %v5816 = vld [vmem:[%s1491 + $0x259] sm:$0xff]
  %v5817 = vld [vmem:[%s1491 + $0x261] sm:$0xff]
  %v5818 = vld [vmem:[%s1491 + $0x271] sm:$0xff]
  %v5819 = vld [vmem:[%s1491 + $0x279] sm:$0xff]
  %v5820 = vld [vmem:[%s1491 + $0x289] sm:$0xff]
  %v5821 = vld [vmem:[%s1491 + $0x291] sm:$0xff]
  %v5822 = vld [vmem:[%s1491 + $0x2a1] sm:$0xff]
  %v5823 = vld [vmem:[%s1491 + $0x2a9] sm:$0xff]
  %v5824 = vld [vmem:[%s1491 + $0x2b9] sm:$0xff]
  %v5825 = vld [vmem:[%s1491 + $0x2c1] sm:$0xff]
  %v5826 = vld [vmem:[%s1491 + $0x2d1] sm:$0xff]
  %v5827 = vld [vmem:[%s1491 + $0x2d9] sm:$0xff]
  %v5828 = vld [vmem:[%s1491 + $0x2e9] sm:$0xff]
  %v5829 = vld [vmem:[%s1491 + $0x2f1] sm:$0xff]
  %v5830 = vld [vmem:[%s1491 + $0x301] sm:$0xff]
  %v5831 = vld [vmem:[%s1491 + $0x309] sm:$0xff]
  %s5832 = scalar_lea.vmem %s1, 44
  %v5833 = vld [vmem:[%s5832] sm:$0xf]
  %v5835 = vsel %vm146, %v5768, 0
  %v5838 = vsel %vm146, %v5769, 0
  %v5841 = vsel %vm146, %v5770, 0
  %v5844 = vsel %vm146, %v5771, 0
  %v5847 = vsel %vm146, %v5772, 0
  %v5850 = vsel %vm146, %v5773, 0
  %v5853 = vsel %vm146, %v5774, 0
  %v5856 = vsel %vm146, %v5775, 0
  %v5859 = vsel %vm146, %v5776, 0
  %v5862 = vsel %vm146, %v5777, 0
  %v5865 = vsel %vm146, %v5778, 0
  %v5868 = vsel %vm146, %v5779, 0
  %v5871 = vsel %vm146, %v5780, 0
  %v5874 = vsel %vm146, %v5781, 0
  %v5877 = vsel %vm146, %v5782, 0
  %v5880 = vsel %vm146, %v5783, 0
  %v5883 = vsel %vm146, %v5784, 0
  %v5886 = vsel %vm146, %v5785, 0
  %v5889 = vsel %vm146, %v5786, 0
  %v5892 = vsel %vm146, %v5787, 0
  %v5895 = vsel %vm146, %v5788, 0
  %v5898 = vsel %vm146, %v5789, 0
  %v5901 = vsel %vm146, %v5790, 0
  %v5904 = vsel %vm146, %v5791, 0
  %v5907 = vsel %vm146, %v5792, 0
  %v5910 = vsel %vm146, %v5793, 0
  %v5913 = vsel %vm146, %v5794, 0
  %v5916 = vsel %vm146, %v5795, 0
  %v5919 = vsel %vm146, %v5796, 0
  %v5922 = vsel %vm146, %v5797, 0
  %v5925 = vsel %vm146, %v5798, 0
  %v5928 = vsel %vm146, %v5799, 0
  %v5931 = vsel %vm146, %v5800, 0
  %v5934 = vsel %vm146, %v5801, 0
  %v5937 = vsel %vm146, %v5802, 0
  %v5940 = vsel %vm146, %v5803, 0
  %v5943 = vsel %vm146, %v5804, 0
  %v5946 = vsel %vm146, %v5805, 0
  %v5949 = vsel %vm146, %v5806, 0
  %v5952 = vsel %vm146, %v5807, 0
  %v5955 = vsel %vm146, %v5808, 0
  %v5958 = vsel %vm146, %v5809, 0
  %v5961 = vsel %vm146, %v5810, 0
  %v5964 = vsel %vm146, %v5811, 0
  %v5967 = vsel %vm146, %v5812, 0
  %v5970 = vsel %vm146, %v5813, 0
  %v5973 = vsel %vm146, %v5814, 0
  %v5976 = vsel %vm146, %v5815, 0
  %v5979 = vsel %vm146, %v5816, 0
  %v5982 = vsel %vm146, %v5817, 0
  %v5985 = vsel %vm146, %v5818, 0
  %v5988 = vsel %vm146, %v5819, 0
  %v5991 = vsel %vm146, %v5820, 0
  %v5994 = vsel %vm146, %v5821, 0
  %v5997 = vsel %vm146, %v5822, 0
  %v6000 = vsel %vm146, %v5823, 0
  %v6003 = vsel %vm146, %v5824, 0
  %v6006 = vsel %vm146, %v5825, 0
  %v6009 = vsel %vm146, %v5826, 0
  %v6012 = vsel %vm146, %v5827, 0
  %v6015 = vsel %vm146, %v5828, 0
  %v6018 = vsel %vm146, %v5829, 0
  %v6021 = vsel %vm146, %v5830, 0
  %v6024 = vsel %vm146, %v5831, 0
  %v6027 = vsel %vm339, %v5833, 0
  %6029 = vmatpush.msra.mxu0 0.0
  %6030 = vmatpush.msra.mxu0 0.0
  %6031 = vmatpush.msra.mxu0 0.0
  %6032 = vmatpush.msra.mxu0 0.0
  %6033 = vmatpush.msra.mxu0 0.0
  %6034 = vmatpush.msra.mxu0 0.0
  %6035 = vmatpush.msra.mxu0 0.0
  %6036 = vmatpush.msra.mxu0 0.0
  %6037 = vmatpush.msra.mxu0 0.0
  %6038 = vmatpush.msra.mxu0 0.0
  %6039 = vmatpush.msra.mxu0 0.0
  %6040 = vmatpush.msra.mxu0 0.0
  %6041 = vmatpush.msra.mxu0 0.0
  %6042 = vmatpush.msra.mxu0 0.0
  %6043 = vmatpush.msra.mxu0 0.0
  %6044 = vmatpush.msra.mxu0 %v6027
  %6045 = vmatmul.f32.gmra.mxu0 %v5835
  %v6046 = vpop.f32.mrf.mxu0
  %v6047 = vadd.f32 0.0, %v6046
  %6048 = vmatmul.f32.gmra.mxu0 %v5838
  %v6049 = vpop.f32.mrf.mxu0
  %v6050 = vadd.f32 0.0, %v6049
  %6051 = vmatmul.f32.gmra.mxu0 %v5841
  %v6052 = vpop.f32.mrf.mxu0
  %v6053 = vadd.f32 0.0, %v6052
  %6054 = vmatmul.f32.gmra.mxu0 %v5844
  %v6055 = vpop.f32.mrf.mxu0
  %v6056 = vadd.f32 0.0, %v6055
  %6057 = vmatmul.f32.gmra.mxu0 %v5847
  %v6058 = vpop.f32.mrf.mxu0
  %v6059 = vadd.f32 0.0, %v6058
  %6060 = vmatmul.f32.gmra.mxu0 %v5850
  %v6061 = vpop.f32.mrf.mxu0
  %v6062 = vadd.f32 0.0, %v6061
  %6063 = vmatmul.f32.gmra.mxu0 %v5853
  %v6064 = vpop.f32.mrf.mxu0
  %v6065 = vadd.f32 0.0, %v6064
  %6066 = vmatmul.f32.gmra.mxu0 %v5856
  %v6067 = vpop.f32.mrf.mxu0
  %v6068 = vadd.f32 0.0, %v6067
  %6069 = vmatmul.f32.gmra.mxu0 %v5859
  %v6070 = vpop.f32.mrf.mxu0
  %v6071 = vadd.f32 0.0, %v6070
  %6072 = vmatmul.f32.gmra.mxu0 %v5862
  %v6073 = vpop.f32.mrf.mxu0
  %v6074 = vadd.f32 0.0, %v6073
  %6075 = vmatmul.f32.gmra.mxu0 %v5865
  %v6076 = vpop.f32.mrf.mxu0
  %v6077 = vadd.f32 0.0, %v6076
  %6078 = vmatmul.f32.gmra.mxu0 %v5868
  %v6079 = vpop.f32.mrf.mxu0
  %v6080 = vadd.f32 0.0, %v6079
  %6081 = vmatmul.f32.gmra.mxu0 %v5871
  %v6082 = vpop.f32.mrf.mxu0
  %v6083 = vadd.f32 0.0, %v6082
  %6084 = vmatmul.f32.gmra.mxu0 %v5874
  %v6085 = vpop.f32.mrf.mxu0
  %v6086 = vadd.f32 0.0, %v6085
  %6087 = vmatmul.f32.gmra.mxu0 %v5877
  %v6088 = vpop.f32.mrf.mxu0
  %v6089 = vadd.f32 0.0, %v6088
  %6090 = vmatmul.f32.gmra.mxu0 %v5880
  %v6091 = vpop.f32.mrf.mxu0
  %v6092 = vadd.f32 0.0, %v6091
  %6093 = vmatmul.f32.gmra.mxu0 %v5883
  %v6094 = vpop.f32.mrf.mxu0
  %v6095 = vadd.f32 0.0, %v6094
  %6096 = vmatmul.f32.gmra.mxu0 %v5886
  %v6097 = vpop.f32.mrf.mxu0
  %v6098 = vadd.f32 0.0, %v6097
  %6099 = vmatmul.f32.gmra.mxu0 %v5889
  %v6100 = vpop.f32.mrf.mxu0
  %v6101 = vadd.f32 0.0, %v6100
  %6102 = vmatmul.f32.gmra.mxu0 %v5892
  %v6103 = vpop.f32.mrf.mxu0
  %v6104 = vadd.f32 0.0, %v6103
  %6105 = vmatmul.f32.gmra.mxu0 %v5895
  %v6106 = vpop.f32.mrf.mxu0
  %v6107 = vadd.f32 0.0, %v6106
  %6108 = vmatmul.f32.gmra.mxu0 %v5898
  %v6109 = vpop.f32.mrf.mxu0
  %v6110 = vadd.f32 0.0, %v6109
  %6111 = vmatmul.f32.gmra.mxu0 %v5901
  %v6112 = vpop.f32.mrf.mxu0
  %v6113 = vadd.f32 0.0, %v6112
  %6114 = vmatmul.f32.gmra.mxu0 %v5904
  %v6115 = vpop.f32.mrf.mxu0
  %v6116 = vadd.f32 0.0, %v6115
  %6117 = vmatmul.f32.gmra.mxu0 %v5907
  %v6118 = vpop.f32.mrf.mxu0
  %v6119 = vadd.f32 0.0, %v6118
  %6120 = vmatmul.f32.gmra.mxu0 %v5910
  %v6121 = vpop.f32.mrf.mxu0
  %v6122 = vadd.f32 0.0, %v6121
  %6123 = vmatmul.f32.gmra.mxu0 %v5913
  %v6124 = vpop.f32.mrf.mxu0
  %v6125 = vadd.f32 0.0, %v6124
  %6126 = vmatmul.f32.gmra.mxu0 %v5916
  %v6127 = vpop.f32.mrf.mxu0
  %v6128 = vadd.f32 0.0, %v6127
  %6129 = vmatmul.f32.gmra.mxu0 %v5919
  %v6130 = vpop.f32.mrf.mxu0
  %v6131 = vadd.f32 0.0, %v6130
  %6132 = vmatmul.f32.gmra.mxu0 %v5922
  %v6133 = vpop.f32.mrf.mxu0
  %v6134 = vadd.f32 0.0, %v6133
  %6135 = vmatmul.f32.gmra.mxu0 %v5925
  %v6136 = vpop.f32.mrf.mxu0
  %v6137 = vadd.f32 0.0, %v6136
  %6138 = vmatmul.f32.gmra.mxu0 %v5928
  %v6139 = vpop.f32.mrf.mxu0
  %v6140 = vadd.f32 0.0, %v6139
  %6141 = vmatmul.f32.gmra.mxu0 %v5931
  %v6142 = vpop.f32.mrf.mxu0
  %v6143 = vadd.f32 0.0, %v6142
  %6144 = vmatmul.f32.gmra.mxu0 %v5934
  %v6145 = vpop.f32.mrf.mxu0
  %v6146 = vadd.f32 0.0, %v6145
  %6147 = vmatmul.f32.gmra.mxu0 %v5937
  %v6148 = vpop.f32.mrf.mxu0
  %v6149 = vadd.f32 0.0, %v6148
  %6150 = vmatmul.f32.gmra.mxu0 %v5940
  %v6151 = vpop.f32.mrf.mxu0
  %v6152 = vadd.f32 0.0, %v6151
  %6153 = vmatmul.f32.gmra.mxu0 %v5943
  %v6154 = vpop.f32.mrf.mxu0
  %v6155 = vadd.f32 0.0, %v6154
  %6156 = vmatmul.f32.gmra.mxu0 %v5946
  %v6157 = vpop.f32.mrf.mxu0
  %v6158 = vadd.f32 0.0, %v6157
  %6159 = vmatmul.f32.gmra.mxu0 %v5949
  %v6160 = vpop.f32.mrf.mxu0
  %v6161 = vadd.f32 0.0, %v6160
  %6162 = vmatmul.f32.gmra.mxu0 %v5952
  %v6163 = vpop.f32.mrf.mxu0
  %v6164 = vadd.f32 0.0, %v6163
  %6165 = vmatmul.f32.gmra.mxu0 %v5955
  %v6166 = vpop.f32.mrf.mxu0
  %v6167 = vadd.f32 0.0, %v6166
  %6168 = vmatmul.f32.gmra.mxu0 %v5958
  %v6169 = vpop.f32.mrf.mxu0
  %v6170 = vadd.f32 0.0, %v6169
  %6171 = vmatmul.f32.gmra.mxu0 %v5961
  %v6172 = vpop.f32.mrf.mxu0
  %v6173 = vadd.f32 0.0, %v6172
  %6174 = vmatmul.f32.gmra.mxu0 %v5964
  %v6175 = vpop.f32.mrf.mxu0
  %v6176 = vadd.f32 0.0, %v6175
  %6177 = vmatmul.f32.gmra.mxu0 %v5967
  %v6178 = vpop.f32.mrf.mxu0
  %v6179 = vadd.f32 0.0, %v6178
  %6180 = vmatmul.f32.gmra.mxu0 %v5970
  %v6181 = vpop.f32.mrf.mxu0
  %v6182 = vadd.f32 0.0, %v6181
  %6183 = vmatmul.f32.gmra.mxu0 %v5973
  %v6184 = vpop.f32.mrf.mxu0
  %v6185 = vadd.f32 0.0, %v6184
  %6186 = vmatmul.f32.gmra.mxu0 %v5976
  %v6187 = vpop.f32.mrf.mxu0
  %v6188 = vadd.f32 0.0, %v6187
  %6189 = vmatmul.f32.gmra.mxu0 %v5979
  %v6190 = vpop.f32.mrf.mxu0
  %v6191 = vadd.f32 0.0, %v6190
  %6192 = vmatmul.f32.gmra.mxu0 %v5982
  %v6193 = vpop.f32.mrf.mxu0
  %v6194 = vadd.f32 0.0, %v6193
  %6195 = vmatmul.f32.gmra.mxu0 %v5985
  %v6196 = vpop.f32.mrf.mxu0
  %v6197 = vadd.f32 0.0, %v6196
  %6198 = vmatmul.f32.gmra.mxu0 %v5988
  %v6199 = vpop.f32.mrf.mxu0
  %v6200 = vadd.f32 0.0, %v6199
  %6201 = vmatmul.f32.gmra.mxu0 %v5991
  %v6202 = vpop.f32.mrf.mxu0
  %v6203 = vadd.f32 0.0, %v6202
  %6204 = vmatmul.f32.gmra.mxu0 %v5994
  %v6205 = vpop.f32.mrf.mxu0
  %v6206 = vadd.f32 0.0, %v6205
  %6207 = vmatmul.f32.gmra.mxu0 %v5997
  %v6208 = vpop.f32.mrf.mxu0
  %v6209 = vadd.f32 0.0, %v6208
  %6210 = vmatmul.f32.gmra.mxu0 %v6000
  %v6211 = vpop.f32.mrf.mxu0
  %v6212 = vadd.f32 0.0, %v6211
  %6213 = vmatmul.f32.gmra.mxu0 %v6003
  %v6214 = vpop.f32.mrf.mxu0
  %v6215 = vadd.f32 0.0, %v6214
  %6216 = vmatmul.f32.gmra.mxu0 %v6006
  %v6217 = vpop.f32.mrf.mxu0
  %v6218 = vadd.f32 0.0, %v6217
  %6219 = vmatmul.f32.gmra.mxu0 %v6009
  %v6220 = vpop.f32.mrf.mxu0
  %v6221 = vadd.f32 0.0, %v6220
  %6222 = vmatmul.f32.gmra.mxu0 %v6012
  %v6223 = vpop.f32.mrf.mxu0
  %v6224 = vadd.f32 0.0, %v6223
  %6225 = vmatmul.f32.gmra.mxu0 %v6015
  %v6226 = vpop.f32.mrf.mxu0
  %v6227 = vadd.f32 0.0, %v6226
  %6228 = vmatmul.f32.gmra.mxu0 %v6018
  %v6229 = vpop.f32.mrf.mxu0
  %v6230 = vadd.f32 0.0, %v6229
  %6231 = vmatmul.f32.gmra.mxu0 %v6021
  %v6232 = vpop.f32.mrf.mxu0
  %v6233 = vadd.f32 0.0, %v6232
  %6234 = vmatmul.f32.gmra.mxu0 %v6024
  %v6235 = vpop.f32.mrf.mxu0
  %v6236 = vadd.f32 0.0, %v6235
  %6237 = vdwg.mxu0
  %v6238 = vadd.f32 %v5704, %v6047
  %v6239 = vadd.f32 %v5705, %v6050
  %v6240 = vadd.f32 %v5706, %v6053
  %v6241 = vadd.f32 %v5707, %v6056
  %v6242 = vadd.f32 %v5708, %v6059
  %v6243 = vadd.f32 %v5709, %v6062
  %v6244 = vadd.f32 %v5710, %v6065
  %v6245 = vadd.f32 %v5711, %v6068
  %v6246 = vadd.f32 %v5712, %v6071
  %v6247 = vadd.f32 %v5713, %v6074
  %v6248 = vadd.f32 %v5714, %v6077
  %v6249 = vadd.f32 %v5715, %v6080
  %v6250 = vadd.f32 %v5716, %v6083
  %v6251 = vadd.f32 %v5717, %v6086
  %v6252 = vadd.f32 %v5718, %v6089
  %v6253 = vadd.f32 %v5719, %v6092
  %v6254 = vadd.f32 %v5720, %v6095
  %v6255 = vadd.f32 %v5721, %v6098
  %v6256 = vadd.f32 %v5722, %v6101
  %v6257 = vadd.f32 %v5723, %v6104
  %v6258 = vadd.f32 %v5724, %v6107
  %v6259 = vadd.f32 %v5725, %v6110
  %v6260 = vadd.f32 %v5726, %v6113
  %v6261 = vadd.f32 %v5727, %v6116
  %v6262 = vadd.f32 %v5728, %v6119
  %v6263 = vadd.f32 %v5729, %v6122
  %v6264 = vadd.f32 %v5730, %v6125
  %v6265 = vadd.f32 %v5731, %v6128
  %v6266 = vadd.f32 %v5732, %v6131
  %v6267 = vadd.f32 %v5733, %v6134
  %v6268 = vadd.f32 %v5734, %v6137
  %v6269 = vadd.f32 %v5735, %v6140
  %v6270 = vadd.f32 %v5736, %v6143
  %v6271 = vadd.f32 %v5737, %v6146
  %v6272 = vadd.f32 %v5738, %v6149
  %v6273 = vadd.f32 %v5739, %v6152
  %v6274 = vadd.f32 %v5740, %v6155
  %v6275 = vadd.f32 %v5741, %v6158
  %v6276 = vadd.f32 %v5742, %v6161
  %v6277 = vadd.f32 %v5743, %v6164
  %v6278 = vadd.f32 %v5744, %v6167
  %v6279 = vadd.f32 %v5745, %v6170
  %v6280 = vadd.f32 %v5746, %v6173
  %v6281 = vadd.f32 %v5747, %v6176
  %v6282 = vadd.f32 %v5748, %v6179
  %v6283 = vadd.f32 %v5749, %v6182
  %v6284 = vadd.f32 %v5750, %v6185
  %v6285 = vadd.f32 %v5751, %v6188
  %v6286 = vadd.f32 %v5752, %v6191
  %v6287 = vadd.f32 %v5753, %v6194
  %v6288 = vadd.f32 %v5754, %v6197
  %v6289 = vadd.f32 %v5755, %v6200
  %v6290 = vadd.f32 %v5756, %v6203
  %v6291 = vadd.f32 %v5757, %v6206
  %v6292 = vadd.f32 %v5758, %v6209
  %v6293 = vadd.f32 %v5759, %v6212
  %v6294 = vadd.f32 %v5760, %v6215
  %v6295 = vadd.f32 %v5761, %v6218
  %v6296 = vadd.f32 %v5762, %v6221
  %v6297 = vadd.f32 %v5763, %v6224
  %v6298 = vadd.f32 %v5764, %v6227
  %v6299 = vadd.f32 %v5765, %v6230
  %v6300 = vadd.f32 %v5766, %v6233
  %v6301 = vadd.f32 %v5767, %v6236
  %v6302 = vld [vmem:[%s2026 + $0x1] sm:$0xff]
  %v6303 = vld [vmem:[%s2026 + $0x9] sm:$0xff]
  %v6304 = vld [vmem:[%s2026 + $0x19] sm:$0xff]
  %v6305 = vld [vmem:[%s2026 + $0x21] sm:$0xff]
  %v6306 = vld [vmem:[%s2026 + $0x31] sm:$0xff]
  %v6307 = vld [vmem:[%s2026 + $0x39] sm:$0xff]
  %v6308 = vld [vmem:[%s2026 + $0x49] sm:$0xff]
  %v6309 = vld [vmem:[%s2026 + $0x51] sm:$0xff]
  %v6310 = vld [vmem:[%s2026 + $0x61] sm:$0xff]
  %v6311 = vld [vmem:[%s2026 + $0x69] sm:$0xff]
  %v6312 = vld [vmem:[%s2026 + $0x79] sm:$0xff]
  %v6313 = vld [vmem:[%s2026 + $0x81] sm:$0xff]
  %v6314 = vld [vmem:[%s2026 + $0x91] sm:$0xff]
  %v6315 = vld [vmem:[%s2026 + $0x99] sm:$0xff]
  %v6316 = vld [vmem:[%s2026 + $0xa9] sm:$0xff]
  %v6317 = vld [vmem:[%s2026 + $0xb1] sm:$0xff]
  %v6318 = vld [vmem:[%s2026 + $0xc1] sm:$0xff]
  %v6319 = vld [vmem:[%s2026 + $0xc9] sm:$0xff]
  %v6320 = vld [vmem:[%s2026 + $0xd9] sm:$0xff]
  %v6321 = vld [vmem:[%s2026 + $0xe1] sm:$0xff]
  %v6322 = vld [vmem:[%s2026 + $0xf1] sm:$0xff]
  %v6323 = vld [vmem:[%s2026 + $0xf9] sm:$0xff]
  %v6324 = vld [vmem:[%s2026 + $0x109] sm:$0xff]
  %v6325 = vld [vmem:[%s2026 + $0x111] sm:$0xff]
  %v6326 = vld [vmem:[%s2026 + $0x121] sm:$0xff]
  %v6327 = vld [vmem:[%s2026 + $0x129] sm:$0xff]
  %v6328 = vld [vmem:[%s2026 + $0x139] sm:$0xff]
  %v6329 = vld [vmem:[%s2026 + $0x141] sm:$0xff]
  %v6330 = vld [vmem:[%s2026 + $0x151] sm:$0xff]
  %v6331 = vld [vmem:[%s2026 + $0x159] sm:$0xff]
  %v6332 = vld [vmem:[%s2026 + $0x169] sm:$0xff]
  %v6333 = vld [vmem:[%s2026 + $0x171] sm:$0xff]
  %v6334 = vld [vmem:[%s2026 + $0x199] sm:$0xff]
  %v6335 = vld [vmem:[%s2026 + $0x1a1] sm:$0xff]
  %v6336 = vld [vmem:[%s2026 + $0x1b1] sm:$0xff]
  %v6337 = vld [vmem:[%s2026 + $0x1b9] sm:$0xff]
  %v6338 = vld [vmem:[%s2026 + $0x1c9] sm:$0xff]
  %v6339 = vld [vmem:[%s2026 + $0x1d1] sm:$0xff]
  %v6340 = vld [vmem:[%s2026 + $0x1e1] sm:$0xff]
  %v6341 = vld [vmem:[%s2026 + $0x1e9] sm:$0xff]
  %v6342 = vld [vmem:[%s2026 + $0x1f9] sm:$0xff]
  %v6343 = vld [vmem:[%s2026 + $0x201] sm:$0xff]
  %v6344 = vld [vmem:[%s2026 + $0x211] sm:$0xff]
  %v6345 = vld [vmem:[%s2026 + $0x219] sm:$0xff]
  %v6346 = vld [vmem:[%s2026 + $0x229] sm:$0xff]
  %v6347 = vld [vmem:[%s2026 + $0x231] sm:$0xff]
  %v6348 = vld [vmem:[%s2026 + $0x241] sm:$0xff]
  %v6349 = vld [vmem:[%s2026 + $0x249] sm:$0xff]
  %v6350 = vld [vmem:[%s2026 + $0x259] sm:$0xff]
  %v6351 = vld [vmem:[%s2026 + $0x261] sm:$0xff]
  %v6352 = vld [vmem:[%s2026 + $0x271] sm:$0xff]
  %v6353 = vld [vmem:[%s2026 + $0x279] sm:$0xff]
  %v6354 = vld [vmem:[%s2026 + $0x289] sm:$0xff]
  %v6355 = vld [vmem:[%s2026 + $0x291] sm:$0xff]
  %v6356 = vld [vmem:[%s2026 + $0x2a1] sm:$0xff]
  %v6357 = vld [vmem:[%s2026 + $0x2a9] sm:$0xff]
  %v6358 = vld [vmem:[%s2026 + $0x2b9] sm:$0xff]
  %v6359 = vld [vmem:[%s2026 + $0x2c1] sm:$0xff]
  %v6360 = vld [vmem:[%s2026 + $0x2d1] sm:$0xff]
  %v6361 = vld [vmem:[%s2026 + $0x2d9] sm:$0xff]
  %v6362 = vld [vmem:[%s2026 + $0x2e9] sm:$0xff]
  %v6363 = vld [vmem:[%s2026 + $0x2f1] sm:$0xff]
  %v6364 = vld [vmem:[%s2026 + $0x301] sm:$0xff]
  %v6365 = vld [vmem:[%s2026 + $0x309] sm:$0xff]
  %s6366 = scalar_lea.vmem %s1, 48
  %v6367 = vld [vmem:[%s6366] sm:$0xf]
  %v6369 = vsel %vm146, %v6302, 0
  %v6372 = vsel %vm146, %v6303, 0
  %v6375 = vsel %vm146, %v6304, 0
  %v6378 = vsel %vm146, %v6305, 0
  %v6381 = vsel %vm146, %v6306, 0
  %v6384 = vsel %vm146, %v6307, 0
  %v6387 = vsel %vm146, %v6308, 0
  %v6390 = vsel %vm146, %v6309, 0
  %v6393 = vsel %vm146, %v6310, 0
  %v6396 = vsel %vm146, %v6311, 0
  %v6399 = vsel %vm146, %v6312, 0
  %v6402 = vsel %vm146, %v6313, 0
  %v6405 = vsel %vm146, %v6314, 0
  %v6408 = vsel %vm146, %v6315, 0
  %v6411 = vsel %vm146, %v6316, 0
  %v6414 = vsel %vm146, %v6317, 0
  %v6417 = vsel %vm146, %v6318, 0
  %v6420 = vsel %vm146, %v6319, 0
  %v6423 = vsel %vm146, %v6320, 0
  %v6426 = vsel %vm146, %v6321, 0
  %v6429 = vsel %vm146, %v6322, 0
  %v6432 = vsel %vm146, %v6323, 0
  %v6435 = vsel %vm146, %v6324, 0
  %v6438 = vsel %vm146, %v6325, 0
  %v6441 = vsel %vm146, %v6326, 0
  %v6444 = vsel %vm146, %v6327, 0
  %v6447 = vsel %vm146, %v6328, 0
  %v6450 = vsel %vm146, %v6329, 0
  %v6453 = vsel %vm146, %v6330, 0
  %v6456 = vsel %vm146, %v6331, 0
  %v6459 = vsel %vm146, %v6332, 0
  %v6462 = vsel %vm146, %v6333, 0
  %v6465 = vsel %vm146, %v6334, 0
  %v6468 = vsel %vm146, %v6335, 0
  %v6471 = vsel %vm146, %v6336, 0
  %v6474 = vsel %vm146, %v6337, 0
  %v6477 = vsel %vm146, %v6338, 0
  %v6480 = vsel %vm146, %v6339, 0
  %v6483 = vsel %vm146, %v6340, 0
  %v6486 = vsel %vm146, %v6341, 0
  %v6489 = vsel %vm146, %v6342, 0
  %v6492 = vsel %vm146, %v6343, 0
  %v6495 = vsel %vm146, %v6344, 0
  %v6498 = vsel %vm146, %v6345, 0
  %v6501 = vsel %vm146, %v6346, 0
  %v6504 = vsel %vm146, %v6347, 0
  %v6507 = vsel %vm146, %v6348, 0
  %v6510 = vsel %vm146, %v6349, 0
  %v6513 = vsel %vm146, %v6350, 0
  %v6516 = vsel %vm146, %v6351, 0
  %v6519 = vsel %vm146, %v6352, 0
  %v6522 = vsel %vm146, %v6353, 0
  %v6525 = vsel %vm146, %v6354, 0
  %v6528 = vsel %vm146, %v6355, 0
  %v6531 = vsel %vm146, %v6356, 0
  %v6534 = vsel %vm146, %v6357, 0
  %v6537 = vsel %vm146, %v6358, 0
  %v6540 = vsel %vm146, %v6359, 0
  %v6543 = vsel %vm146, %v6360, 0
  %v6546 = vsel %vm146, %v6361, 0
  %v6549 = vsel %vm146, %v6362, 0
  %v6552 = vsel %vm146, %v6363, 0
  %v6555 = vsel %vm146, %v6364, 0
  %v6558 = vsel %vm146, %v6365, 0
  %v6561 = vsel %vm339, %v6367, 0
  %6563 = vmatpush.msra.mxu0 0.0
  %6564 = vmatpush.msra.mxu0 0.0
  %6565 = vmatpush.msra.mxu0 0.0
  %6566 = vmatpush.msra.mxu0 0.0
  %6567 = vmatpush.msra.mxu0 0.0
  %6568 = vmatpush.msra.mxu0 0.0
  %6569 = vmatpush.msra.mxu0 0.0
  %6570 = vmatpush.msra.mxu0 0.0
  %6571 = vmatpush.msra.mxu0 0.0
  %6572 = vmatpush.msra.mxu0 0.0
  %6573 = vmatpush.msra.mxu0 0.0
  %6574 = vmatpush.msra.mxu0 0.0
  %6575 = vmatpush.msra.mxu0 0.0
  %6576 = vmatpush.msra.mxu0 0.0
  %6577 = vmatpush.msra.mxu0 0.0
  %6578 = vmatpush.msra.mxu0 %v6561
  %6579 = vmatmul.f32.gmra.mxu0 %v6369
  %v6580 = vpop.f32.mrf.mxu0
  %v6581 = vadd.f32 0.0, %v6580
  %6582 = vmatmul.f32.gmra.mxu0 %v6372
  %v6583 = vpop.f32.mrf.mxu0
  %v6584 = vadd.f32 0.0, %v6583
  %6585 = vmatmul.f32.gmra.mxu0 %v6375
  %v6586 = vpop.f32.mrf.mxu0
  %v6587 = vadd.f32 0.0, %v6586
  %6588 = vmatmul.f32.gmra.mxu0 %v6378
  %v6589 = vpop.f32.mrf.mxu0
  %v6590 = vadd.f32 0.0, %v6589
  %6591 = vmatmul.f32.gmra.mxu0 %v6381
  %v6592 = vpop.f32.mrf.mxu0
  %v6593 = vadd.f32 0.0, %v6592
  %6594 = vmatmul.f32.gmra.mxu0 %v6384
  %v6595 = vpop.f32.mrf.mxu0
  %v6596 = vadd.f32 0.0, %v6595
  %6597 = vmatmul.f32.gmra.mxu0 %v6387
  %v6598 = vpop.f32.mrf.mxu0
  %v6599 = vadd.f32 0.0, %v6598
  %6600 = vmatmul.f32.gmra.mxu0 %v6390
  %v6601 = vpop.f32.mrf.mxu0
  %v6602 = vadd.f32 0.0, %v6601
  %6603 = vmatmul.f32.gmra.mxu0 %v6393
  %v6604 = vpop.f32.mrf.mxu0
  %v6605 = vadd.f32 0.0, %v6604
  %6606 = vmatmul.f32.gmra.mxu0 %v6396
  %v6607 = vpop.f32.mrf.mxu0
  %v6608 = vadd.f32 0.0, %v6607
  %6609 = vmatmul.f32.gmra.mxu0 %v6399
  %v6610 = vpop.f32.mrf.mxu0
  %v6611 = vadd.f32 0.0, %v6610
  %6612 = vmatmul.f32.gmra.mxu0 %v6402
  %v6613 = vpop.f32.mrf.mxu0
  %v6614 = vadd.f32 0.0, %v6613
  %6615 = vmatmul.f32.gmra.mxu0 %v6405
  %v6616 = vpop.f32.mrf.mxu0
  %v6617 = vadd.f32 0.0, %v6616
  %6618 = vmatmul.f32.gmra.mxu0 %v6408
  %v6619 = vpop.f32.mrf.mxu0
  %v6620 = vadd.f32 0.0, %v6619
  %6621 = vmatmul.f32.gmra.mxu0 %v6411
  %v6622 = vpop.f32.mrf.mxu0
  %v6623 = vadd.f32 0.0, %v6622
  %6624 = vmatmul.f32.gmra.mxu0 %v6414
  %v6625 = vpop.f32.mrf.mxu0
  %v6626 = vadd.f32 0.0, %v6625
  %6627 = vmatmul.f32.gmra.mxu0 %v6417
  %v6628 = vpop.f32.mrf.mxu0
  %v6629 = vadd.f32 0.0, %v6628
  %6630 = vmatmul.f32.gmra.mxu0 %v6420
  %v6631 = vpop.f32.mrf.mxu0
  %v6632 = vadd.f32 0.0, %v6631
  %6633 = vmatmul.f32.gmra.mxu0 %v6423
  %v6634 = vpop.f32.mrf.mxu0
  %v6635 = vadd.f32 0.0, %v6634
  %6636 = vmatmul.f32.gmra.mxu0 %v6426
  %v6637 = vpop.f32.mrf.mxu0
  %v6638 = vadd.f32 0.0, %v6637
  %6639 = vmatmul.f32.gmra.mxu0 %v6429
  %v6640 = vpop.f32.mrf.mxu0
  %v6641 = vadd.f32 0.0, %v6640
  %6642 = vmatmul.f32.gmra.mxu0 %v6432
  %v6643 = vpop.f32.mrf.mxu0
  %v6644 = vadd.f32 0.0, %v6643
  %6645 = vmatmul.f32.gmra.mxu0 %v6435
  %v6646 = vpop.f32.mrf.mxu0
  %v6647 = vadd.f32 0.0, %v6646
  %6648 = vmatmul.f32.gmra.mxu0 %v6438
  %v6649 = vpop.f32.mrf.mxu0
  %v6650 = vadd.f32 0.0, %v6649
  %6651 = vmatmul.f32.gmra.mxu0 %v6441
  %v6652 = vpop.f32.mrf.mxu0
  %v6653 = vadd.f32 0.0, %v6652
  %6654 = vmatmul.f32.gmra.mxu0 %v6444
  %v6655 = vpop.f32.mrf.mxu0
  %v6656 = vadd.f32 0.0, %v6655
  %6657 = vmatmul.f32.gmra.mxu0 %v6447
  %v6658 = vpop.f32.mrf.mxu0
  %v6659 = vadd.f32 0.0, %v6658
  %6660 = vmatmul.f32.gmra.mxu0 %v6450
  %v6661 = vpop.f32.mrf.mxu0
  %v6662 = vadd.f32 0.0, %v6661
  %6663 = vmatmul.f32.gmra.mxu0 %v6453
  %v6664 = vpop.f32.mrf.mxu0
  %v6665 = vadd.f32 0.0, %v6664
  %6666 = vmatmul.f32.gmra.mxu0 %v6456
  %v6667 = vpop.f32.mrf.mxu0
  %v6668 = vadd.f32 0.0, %v6667
  %6669 = vmatmul.f32.gmra.mxu0 %v6459
  %v6670 = vpop.f32.mrf.mxu0
  %v6671 = vadd.f32 0.0, %v6670
  %6672 = vmatmul.f32.gmra.mxu0 %v6462
  %v6673 = vpop.f32.mrf.mxu0
  %v6674 = vadd.f32 0.0, %v6673
  %6675 = vmatmul.f32.gmra.mxu0 %v6465
  %v6676 = vpop.f32.mrf.mxu0
  %v6677 = vadd.f32 0.0, %v6676
  %6678 = vmatmul.f32.gmra.mxu0 %v6468
  %v6679 = vpop.f32.mrf.mxu0
  %v6680 = vadd.f32 0.0, %v6679
  %6681 = vmatmul.f32.gmra.mxu0 %v6471
  %v6682 = vpop.f32.mrf.mxu0
  %v6683 = vadd.f32 0.0, %v6682
  %6684 = vmatmul.f32.gmra.mxu0 %v6474
  %v6685 = vpop.f32.mrf.mxu0
  %v6686 = vadd.f32 0.0, %v6685
  %6687 = vmatmul.f32.gmra.mxu0 %v6477
  %v6688 = vpop.f32.mrf.mxu0
  %v6689 = vadd.f32 0.0, %v6688
  %6690 = vmatmul.f32.gmra.mxu0 %v6480
  %v6691 = vpop.f32.mrf.mxu0
  %v6692 = vadd.f32 0.0, %v6691
  %6693 = vmatmul.f32.gmra.mxu0 %v6483
  %v6694 = vpop.f32.mrf.mxu0
  %v6695 = vadd.f32 0.0, %v6694
  %6696 = vmatmul.f32.gmra.mxu0 %v6486
  %v6697 = vpop.f32.mrf.mxu0
  %v6698 = vadd.f32 0.0, %v6697
  %6699 = vmatmul.f32.gmra.mxu0 %v6489
  %v6700 = vpop.f32.mrf.mxu0
  %v6701 = vadd.f32 0.0, %v6700
  %6702 = vmatmul.f32.gmra.mxu0 %v6492
  %v6703 = vpop.f32.mrf.mxu0
  %v6704 = vadd.f32 0.0, %v6703
  %6705 = vmatmul.f32.gmra.mxu0 %v6495
  %v6706 = vpop.f32.mrf.mxu0
  %v6707 = vadd.f32 0.0, %v6706
  %6708 = vmatmul.f32.gmra.mxu0 %v6498
  %v6709 = vpop.f32.mrf.mxu0
  %v6710 = vadd.f32 0.0, %v6709
  %6711 = vmatmul.f32.gmra.mxu0 %v6501
  %v6712 = vpop.f32.mrf.mxu0
  %v6713 = vadd.f32 0.0, %v6712
  %6714 = vmatmul.f32.gmra.mxu0 %v6504
  %v6715 = vpop.f32.mrf.mxu0
  %v6716 = vadd.f32 0.0, %v6715
  %6717 = vmatmul.f32.gmra.mxu0 %v6507
  %v6718 = vpop.f32.mrf.mxu0
  %v6719 = vadd.f32 0.0, %v6718
  %6720 = vmatmul.f32.gmra.mxu0 %v6510
  %v6721 = vpop.f32.mrf.mxu0
  %v6722 = vadd.f32 0.0, %v6721
  %6723 = vmatmul.f32.gmra.mxu0 %v6513
  %v6724 = vpop.f32.mrf.mxu0
  %v6725 = vadd.f32 0.0, %v6724
  %6726 = vmatmul.f32.gmra.mxu0 %v6516
  %v6727 = vpop.f32.mrf.mxu0
  %v6728 = vadd.f32 0.0, %v6727
  %6729 = vmatmul.f32.gmra.mxu0 %v6519
  %v6730 = vpop.f32.mrf.mxu0
  %v6731 = vadd.f32 0.0, %v6730
  %6732 = vmatmul.f32.gmra.mxu0 %v6522
  %v6733 = vpop.f32.mrf.mxu0
  %v6734 = vadd.f32 0.0, %v6733
  %6735 = vmatmul.f32.gmra.mxu0 %v6525
  %v6736 = vpop.f32.mrf.mxu0
  %v6737 = vadd.f32 0.0, %v6736
  %6738 = vmatmul.f32.gmra.mxu0 %v6528
  %v6739 = vpop.f32.mrf.mxu0
  %v6740 = vadd.f32 0.0, %v6739
  %6741 = vmatmul.f32.gmra.mxu0 %v6531
  %v6742 = vpop.f32.mrf.mxu0
  %v6743 = vadd.f32 0.0, %v6742
  %6744 = vmatmul.f32.gmra.mxu0 %v6534
  %v6745 = vpop.f32.mrf.mxu0
  %v6746 = vadd.f32 0.0, %v6745
  %6747 = vmatmul.f32.gmra.mxu0 %v6537
  %v6748 = vpop.f32.mrf.mxu0
  %v6749 = vadd.f32 0.0, %v6748
  %6750 = vmatmul.f32.gmra.mxu0 %v6540
  %v6751 = vpop.f32.mrf.mxu0
  %v6752 = vadd.f32 0.0, %v6751
  %6753 = vmatmul.f32.gmra.mxu0 %v6543
  %v6754 = vpop.f32.mrf.mxu0
  %v6755 = vadd.f32 0.0, %v6754
  %6756 = vmatmul.f32.gmra.mxu0 %v6546
  %v6757 = vpop.f32.mrf.mxu0
  %v6758 = vadd.f32 0.0, %v6757
  %6759 = vmatmul.f32.gmra.mxu0 %v6549
  %v6760 = vpop.f32.mrf.mxu0
  %v6761 = vadd.f32 0.0, %v6760
  %6762 = vmatmul.f32.gmra.mxu0 %v6552
  %v6763 = vpop.f32.mrf.mxu0
  %v6764 = vadd.f32 0.0, %v6763
  %6765 = vmatmul.f32.gmra.mxu0 %v6555
  %v6766 = vpop.f32.mrf.mxu0
  %v6767 = vadd.f32 0.0, %v6766
  %6768 = vmatmul.f32.gmra.mxu0 %v6558
  %v6769 = vpop.f32.mrf.mxu0
  %v6770 = vadd.f32 0.0, %v6769
  %6771 = vdwg.mxu0
  %v6772 = vadd.f32 %v6238, %v6581
  %v6773 = vadd.f32 %v6239, %v6584
  %v6774 = vadd.f32 %v6240, %v6587
  %v6775 = vadd.f32 %v6241, %v6590
  %v6776 = vadd.f32 %v6242, %v6593
  %v6777 = vadd.f32 %v6243, %v6596
  %v6778 = vadd.f32 %v6244, %v6599
  %v6779 = vadd.f32 %v6245, %v6602
  %v6780 = vadd.f32 %v6246, %v6605
  %v6781 = vadd.f32 %v6247, %v6608
  %v6782 = vadd.f32 %v6248, %v6611
  %v6783 = vadd.f32 %v6249, %v6614
  %v6784 = vadd.f32 %v6250, %v6617
  %v6785 = vadd.f32 %v6251, %v6620
  %v6786 = vadd.f32 %v6252, %v6623
  %v6787 = vadd.f32 %v6253, %v6626
  %v6788 = vadd.f32 %v6254, %v6629
  %v6789 = vadd.f32 %v6255, %v6632
  %v6790 = vadd.f32 %v6256, %v6635
  %v6791 = vadd.f32 %v6257, %v6638
  %v6792 = vadd.f32 %v6258, %v6641
  %v6793 = vadd.f32 %v6259, %v6644
  %v6794 = vadd.f32 %v6260, %v6647
  %v6795 = vadd.f32 %v6261, %v6650
  %v6796 = vadd.f32 %v6262, %v6653
  %v6797 = vadd.f32 %v6263, %v6656
  %v6798 = vadd.f32 %v6264, %v6659
  %v6799 = vadd.f32 %v6265, %v6662
  %v6800 = vadd.f32 %v6266, %v6665
  %v6801 = vadd.f32 %v6267, %v6668
  %v6802 = vadd.f32 %v6268, %v6671
  %v6803 = vadd.f32 %v6269, %v6674
  %v6804 = vadd.f32 %v6270, %v6677
  %v6805 = vadd.f32 %v6271, %v6680
  %v6806 = vadd.f32 %v6272, %v6683
  %v6807 = vadd.f32 %v6273, %v6686
  %v6808 = vadd.f32 %v6274, %v6689
  %v6809 = vadd.f32 %v6275, %v6692
  %v6810 = vadd.f32 %v6276, %v6695
  %v6811 = vadd.f32 %v6277, %v6698
  %v6812 = vadd.f32 %v6278, %v6701
  %v6813 = vadd.f32 %v6279, %v6704
  %v6814 = vadd.f32 %v6280, %v6707
  %v6815 = vadd.f32 %v6281, %v6710
  %v6816 = vadd.f32 %v6282, %v6713
  %v6817 = vadd.f32 %v6283, %v6716
  %v6818 = vadd.f32 %v6284, %v6719
  %v6819 = vadd.f32 %v6285, %v6722
  %v6820 = vadd.f32 %v6286, %v6725
  %v6821 = vadd.f32 %v6287, %v6728
  %v6822 = vadd.f32 %v6288, %v6731
  %v6823 = vadd.f32 %v6289, %v6734
  %v6824 = vadd.f32 %v6290, %v6737
  %v6825 = vadd.f32 %v6291, %v6740
  %v6826 = vadd.f32 %v6292, %v6743
  %v6827 = vadd.f32 %v6293, %v6746
  %v6828 = vadd.f32 %v6294, %v6749
  %v6829 = vadd.f32 %v6295, %v6752
  %v6830 = vadd.f32 %v6296, %v6755
  %v6831 = vadd.f32 %v6297, %v6758
  %v6832 = vadd.f32 %v6298, %v6761
  %v6833 = vadd.f32 %v6299, %v6764
  %v6834 = vadd.f32 %v6300, %v6767
  %v6835 = vadd.f32 %v6301, %v6770
  %v6836 = vld [vmem:[%s2561 + $0x1] sm:$0xff]
  %v6837 = vld [vmem:[%s2561 + $0x9] sm:$0xff]
  %v6838 = vld [vmem:[%s2561 + $0x19] sm:$0xff]
  %v6839 = vld [vmem:[%s2561 + $0x21] sm:$0xff]
  %v6840 = vld [vmem:[%s2561 + $0x31] sm:$0xff]
  %v6841 = vld [vmem:[%s2561 + $0x39] sm:$0xff]
  %v6842 = vld [vmem:[%s2561 + $0x49] sm:$0xff]
  %v6843 = vld [vmem:[%s2561 + $0x51] sm:$0xff]
  %v6844 = vld [vmem:[%s2561 + $0x61] sm:$0xff]
  %v6845 = vld [vmem:[%s2561 + $0x69] sm:$0xff]
  %v6846 = vld [vmem:[%s2561 + $0x79] sm:$0xff]
  %v6847 = vld [vmem:[%s2561 + $0x81] sm:$0xff]
  %v6848 = vld [vmem:[%s2561 + $0x91] sm:$0xff]
  %v6849 = vld [vmem:[%s2561 + $0x99] sm:$0xff]
  %v6850 = vld [vmem:[%s2561 + $0xa9] sm:$0xff]
  %v6851 = vld [vmem:[%s2561 + $0xb1] sm:$0xff]
  %v6852 = vld [vmem:[%s2561 + $0xc1] sm:$0xff]
  %v6853 = vld [vmem:[%s2561 + $0xc9] sm:$0xff]
  %v6854 = vld [vmem:[%s2561 + $0xd9] sm:$0xff]
  %v6855 = vld [vmem:[%s2561 + $0xe1] sm:$0xff]
  %v6856 = vld [vmem:[%s2561 + $0xf1] sm:$0xff]
  %v6857 = vld [vmem:[%s2561 + $0xf9] sm:$0xff]
  %v6858 = vld [vmem:[%s2561 + $0x109] sm:$0xff]
  %v6859 = vld [vmem:[%s2561 + $0x111] sm:$0xff]
  %v6860 = vld [vmem:[%s2561 + $0x121] sm:$0xff]
  %v6861 = vld [vmem:[%s2561 + $0x129] sm:$0xff]
  %v6862 = vld [vmem:[%s2561 + $0x139] sm:$0xff]
  %v6863 = vld [vmem:[%s2561 + $0x141] sm:$0xff]
  %v6864 = vld [vmem:[%s2561 + $0x151] sm:$0xff]
  %v6865 = vld [vmem:[%s2561 + $0x159] sm:$0xff]
  %v6866 = vld [vmem:[%s2561 + $0x169] sm:$0xff]
  %v6867 = vld [vmem:[%s2561 + $0x171] sm:$0xff]
  %v6868 = vld [vmem:[%s2561 + $0x199] sm:$0xff]
  %v6869 = vld [vmem:[%s2561 + $0x1a1] sm:$0xff]
  %v6870 = vld [vmem:[%s2561 + $0x1b1] sm:$0xff]
  %v6871 = vld [vmem:[%s2561 + $0x1b9] sm:$0xff]
  %v6872 = vld [vmem:[%s2561 + $0x1c9] sm:$0xff]
  %v6873 = vld [vmem:[%s2561 + $0x1d1] sm:$0xff]
  %v6874 = vld [vmem:[%s2561 + $0x1e1] sm:$0xff]
  %v6875 = vld [vmem:[%s2561 + $0x1e9] sm:$0xff]
  %v6876 = vld [vmem:[%s2561 + $0x1f9] sm:$0xff]
  %v6877 = vld [vmem:[%s2561 + $0x201] sm:$0xff]
  %v6878 = vld [vmem:[%s2561 + $0x211] sm:$0xff]
  %v6879 = vld [vmem:[%s2561 + $0x219] sm:$0xff]
  %v6880 = vld [vmem:[%s2561 + $0x229] sm:$0xff]
  %v6881 = vld [vmem:[%s2561 + $0x231] sm:$0xff]
  %v6882 = vld [vmem:[%s2561 + $0x241] sm:$0xff]
  %v6883 = vld [vmem:[%s2561 + $0x249] sm:$0xff]
  %v6884 = vld [vmem:[%s2561 + $0x259] sm:$0xff]
  %v6885 = vld [vmem:[%s2561 + $0x261] sm:$0xff]
  %v6886 = vld [vmem:[%s2561 + $0x271] sm:$0xff]
  %v6887 = vld [vmem:[%s2561 + $0x279] sm:$0xff]
  %v6888 = vld [vmem:[%s2561 + $0x289] sm:$0xff]
  %v6889 = vld [vmem:[%s2561 + $0x291] sm:$0xff]
  %v6890 = vld [vmem:[%s2561 + $0x2a1] sm:$0xff]
  %v6891 = vld [vmem:[%s2561 + $0x2a9] sm:$0xff]
  %v6892 = vld [vmem:[%s2561 + $0x2b9] sm:$0xff]
  %v6893 = vld [vmem:[%s2561 + $0x2c1] sm:$0xff]
  %v6894 = vld [vmem:[%s2561 + $0x2d1] sm:$0xff]
  %v6895 = vld [vmem:[%s2561 + $0x2d9] sm:$0xff]
  %v6896 = vld [vmem:[%s2561 + $0x2e9] sm:$0xff]
  %v6897 = vld [vmem:[%s2561 + $0x2f1] sm:$0xff]
  %v6898 = vld [vmem:[%s2561 + $0x301] sm:$0xff]
  %v6899 = vld [vmem:[%s2561 + $0x309] sm:$0xff]
  %s6900 = scalar_lea.vmem %s1, 52
  %v6901 = vld [vmem:[%s6900] sm:$0xf]
  %v6903 = vsel %vm146, %v6836, 0
  %v6906 = vsel %vm146, %v6837, 0
  %v6909 = vsel %vm146, %v6838, 0
  %v6912 = vsel %vm146, %v6839, 0
  %v6915 = vsel %vm146, %v6840, 0
  %v6918 = vsel %vm146, %v6841, 0
  %v6921 = vsel %vm146, %v6842, 0
  %v6924 = vsel %vm146, %v6843, 0
  %v6927 = vsel %vm146, %v6844, 0
  %v6930 = vsel %vm146, %v6845, 0
  %v6933 = vsel %vm146, %v6846, 0
  %v6936 = vsel %vm146, %v6847, 0
  %v6939 = vsel %vm146, %v6848, 0
  %v6942 = vsel %vm146, %v6849, 0
  %v6945 = vsel %vm146, %v6850, 0
  %v6948 = vsel %vm146, %v6851, 0
  %v6951 = vsel %vm146, %v6852, 0
  %v6954 = vsel %vm146, %v6853, 0
  %v6957 = vsel %vm146, %v6854, 0
  %v6960 = vsel %vm146, %v6855, 0
  %v6963 = vsel %vm146, %v6856, 0
  %v6966 = vsel %vm146, %v6857, 0
  %v6969 = vsel %vm146, %v6858, 0
  %v6972 = vsel %vm146, %v6859, 0
  %v6975 = vsel %vm146, %v6860, 0
  %v6978 = vsel %vm146, %v6861, 0
  %v6981 = vsel %vm146, %v6862, 0
  %v6984 = vsel %vm146, %v6863, 0
  %v6987 = vsel %vm146, %v6864, 0
  %v6990 = vsel %vm146, %v6865, 0
  %v6993 = vsel %vm146, %v6866, 0
  %v6996 = vsel %vm146, %v6867, 0
  %v6999 = vsel %vm146, %v6868, 0
  %v7002 = vsel %vm146, %v6869, 0
  %v7005 = vsel %vm146, %v6870, 0
  %v7008 = vsel %vm146, %v6871, 0
  %v7011 = vsel %vm146, %v6872, 0
  %v7014 = vsel %vm146, %v6873, 0
  %v7017 = vsel %vm146, %v6874, 0
  %v7020 = vsel %vm146, %v6875, 0
  %v7023 = vsel %vm146, %v6876, 0
  %v7026 = vsel %vm146, %v6877, 0
  %v7029 = vsel %vm146, %v6878, 0
  %v7032 = vsel %vm146, %v6879, 0
  %v7035 = vsel %vm146, %v6880, 0
  %v7038 = vsel %vm146, %v6881, 0
  %v7041 = vsel %vm146, %v6882, 0
  %v7044 = vsel %vm146, %v6883, 0
  %v7047 = vsel %vm146, %v6884, 0
  %v7050 = vsel %vm146, %v6885, 0
  %v7053 = vsel %vm146, %v6886, 0
  %v7056 = vsel %vm146, %v6887, 0
  %v7059 = vsel %vm146, %v6888, 0
  %v7062 = vsel %vm146, %v6889, 0
  %v7065 = vsel %vm146, %v6890, 0
  %v7068 = vsel %vm146, %v6891, 0
  %v7071 = vsel %vm146, %v6892, 0
  %v7074 = vsel %vm146, %v6893, 0
  %v7077 = vsel %vm146, %v6894, 0
  %v7080 = vsel %vm146, %v6895, 0
  %v7083 = vsel %vm146, %v6896, 0
  %v7086 = vsel %vm146, %v6897, 0
  %v7089 = vsel %vm146, %v6898, 0
  %v7092 = vsel %vm146, %v6899, 0
  %v7095 = vsel %vm339, %v6901, 0
  %7097 = vmatpush.msra.mxu0 0.0
  %7098 = vmatpush.msra.mxu0 0.0
  %7099 = vmatpush.msra.mxu0 0.0
  %7100 = vmatpush.msra.mxu0 0.0
  %7101 = vmatpush.msra.mxu0 0.0
  %7102 = vmatpush.msra.mxu0 0.0
  %7103 = vmatpush.msra.mxu0 0.0
  %7104 = vmatpush.msra.mxu0 0.0
  %7105 = vmatpush.msra.mxu0 0.0
  %7106 = vmatpush.msra.mxu0 0.0
  %7107 = vmatpush.msra.mxu0 0.0
  %7108 = vmatpush.msra.mxu0 0.0
  %7109 = vmatpush.msra.mxu0 0.0
  %7110 = vmatpush.msra.mxu0 0.0
  %7111 = vmatpush.msra.mxu0 0.0
  %7112 = vmatpush.msra.mxu0 %v7095
  %7113 = vmatmul.f32.gmra.mxu0 %v6903
  %v7114 = vpop.f32.mrf.mxu0
  %v7115 = vadd.f32 0.0, %v7114
  %7116 = vmatmul.f32.gmra.mxu0 %v6906
  %v7117 = vpop.f32.mrf.mxu0
  %v7118 = vadd.f32 0.0, %v7117
  %7119 = vmatmul.f32.gmra.mxu0 %v6909
  %v7120 = vpop.f32.mrf.mxu0
  %v7121 = vadd.f32 0.0, %v7120
  %7122 = vmatmul.f32.gmra.mxu0 %v6912
  %v7123 = vpop.f32.mrf.mxu0
  %v7124 = vadd.f32 0.0, %v7123
  %7125 = vmatmul.f32.gmra.mxu0 %v6915
  %v7126 = vpop.f32.mrf.mxu0
  %v7127 = vadd.f32 0.0, %v7126
  %7128 = vmatmul.f32.gmra.mxu0 %v6918
  %v7129 = vpop.f32.mrf.mxu0
  %v7130 = vadd.f32 0.0, %v7129
  %7131 = vmatmul.f32.gmra.mxu0 %v6921
  %v7132 = vpop.f32.mrf.mxu0
  %v7133 = vadd.f32 0.0, %v7132
  %7134 = vmatmul.f32.gmra.mxu0 %v6924
  %v7135 = vpop.f32.mrf.mxu0
  %v7136 = vadd.f32 0.0, %v7135
  %7137 = vmatmul.f32.gmra.mxu0 %v6927
  %v7138 = vpop.f32.mrf.mxu0
  %v7139 = vadd.f32 0.0, %v7138
  %7140 = vmatmul.f32.gmra.mxu0 %v6930
  %v7141 = vpop.f32.mrf.mxu0
  %v7142 = vadd.f32 0.0, %v7141
  %7143 = vmatmul.f32.gmra.mxu0 %v6933
  %v7144 = vpop.f32.mrf.mxu0
  %v7145 = vadd.f32 0.0, %v7144
  %7146 = vmatmul.f32.gmra.mxu0 %v6936
  %v7147 = vpop.f32.mrf.mxu0
  %v7148 = vadd.f32 0.0, %v7147
  %7149 = vmatmul.f32.gmra.mxu0 %v6939
  %v7150 = vpop.f32.mrf.mxu0
  %v7151 = vadd.f32 0.0, %v7150
  %7152 = vmatmul.f32.gmra.mxu0 %v6942
  %v7153 = vpop.f32.mrf.mxu0
  %v7154 = vadd.f32 0.0, %v7153
  %7155 = vmatmul.f32.gmra.mxu0 %v6945
  %v7156 = vpop.f32.mrf.mxu0
  %v7157 = vadd.f32 0.0, %v7156
  %7158 = vmatmul.f32.gmra.mxu0 %v6948
  %v7159 = vpop.f32.mrf.mxu0
  %v7160 = vadd.f32 0.0, %v7159
  %7161 = vmatmul.f32.gmra.mxu0 %v6951
  %v7162 = vpop.f32.mrf.mxu0
  %v7163 = vadd.f32 0.0, %v7162
  %7164 = vmatmul.f32.gmra.mxu0 %v6954
  %v7165 = vpop.f32.mrf.mxu0
  %v7166 = vadd.f32 0.0, %v7165
  %7167 = vmatmul.f32.gmra.mxu0 %v6957
  %v7168 = vpop.f32.mrf.mxu0
  %v7169 = vadd.f32 0.0, %v7168
  %7170 = vmatmul.f32.gmra.mxu0 %v6960
  %v7171 = vpop.f32.mrf.mxu0
  %v7172 = vadd.f32 0.0, %v7171
  %7173 = vmatmul.f32.gmra.mxu0 %v6963
  %v7174 = vpop.f32.mrf.mxu0
  %v7175 = vadd.f32 0.0, %v7174
  %7176 = vmatmul.f32.gmra.mxu0 %v6966
  %v7177 = vpop.f32.mrf.mxu0
  %v7178 = vadd.f32 0.0, %v7177
  %7179 = vmatmul.f32.gmra.mxu0 %v6969
  %v7180 = vpop.f32.mrf.mxu0
  %v7181 = vadd.f32 0.0, %v7180
  %7182 = vmatmul.f32.gmra.mxu0 %v6972
  %v7183 = vpop.f32.mrf.mxu0
  %v7184 = vadd.f32 0.0, %v7183
  %7185 = vmatmul.f32.gmra.mxu0 %v6975
  %v7186 = vpop.f32.mrf.mxu0
  %v7187 = vadd.f32 0.0, %v7186
  %7188 = vmatmul.f32.gmra.mxu0 %v6978
  %v7189 = vpop.f32.mrf.mxu0
  %v7190 = vadd.f32 0.0, %v7189
  %7191 = vmatmul.f32.gmra.mxu0 %v6981
  %v7192 = vpop.f32.mrf.mxu0
  %v7193 = vadd.f32 0.0, %v7192
  %7194 = vmatmul.f32.gmra.mxu0 %v6984
  %v7195 = vpop.f32.mrf.mxu0
  %v7196 = vadd.f32 0.0, %v7195
  %7197 = vmatmul.f32.gmra.mxu0 %v6987
  %v7198 = vpop.f32.mrf.mxu0
  %v7199 = vadd.f32 0.0, %v7198
  %7200 = vmatmul.f32.gmra.mxu0 %v6990
  %v7201 = vpop.f32.mrf.mxu0
  %v7202 = vadd.f32 0.0, %v7201
  %7203 = vmatmul.f32.gmra.mxu0 %v6993
  %v7204 = vpop.f32.mrf.mxu0
  %v7205 = vadd.f32 0.0, %v7204
  %7206 = vmatmul.f32.gmra.mxu0 %v6996
  %v7207 = vpop.f32.mrf.mxu0
  %v7208 = vadd.f32 0.0, %v7207
  %7209 = vmatmul.f32.gmra.mxu0 %v6999
  %v7210 = vpop.f32.mrf.mxu0
  %v7211 = vadd.f32 0.0, %v7210
  %7212 = vmatmul.f32.gmra.mxu0 %v7002
  %v7213 = vpop.f32.mrf.mxu0
  %v7214 = vadd.f32 0.0, %v7213
  %7215 = vmatmul.f32.gmra.mxu0 %v7005
  %v7216 = vpop.f32.mrf.mxu0
  %v7217 = vadd.f32 0.0, %v7216
  %7218 = vmatmul.f32.gmra.mxu0 %v7008
  %v7219 = vpop.f32.mrf.mxu0
  %v7220 = vadd.f32 0.0, %v7219
  %7221 = vmatmul.f32.gmra.mxu0 %v7011
  %v7222 = vpop.f32.mrf.mxu0
  %v7223 = vadd.f32 0.0, %v7222
  %7224 = vmatmul.f32.gmra.mxu0 %v7014
  %v7225 = vpop.f32.mrf.mxu0
  %v7226 = vadd.f32 0.0, %v7225
  %7227 = vmatmul.f32.gmra.mxu0 %v7017
  %v7228 = vpop.f32.mrf.mxu0
  %v7229 = vadd.f32 0.0, %v7228
  %7230 = vmatmul.f32.gmra.mxu0 %v7020
  %v7231 = vpop.f32.mrf.mxu0
  %v7232 = vadd.f32 0.0, %v7231
  %7233 = vmatmul.f32.gmra.mxu0 %v7023
  %v7234 = vpop.f32.mrf.mxu0
  %v7235 = vadd.f32 0.0, %v7234
  %7236 = vmatmul.f32.gmra.mxu0 %v7026
  %v7237 = vpop.f32.mrf.mxu0
  %v7238 = vadd.f32 0.0, %v7237
  %7239 = vmatmul.f32.gmra.mxu0 %v7029
  %v7240 = vpop.f32.mrf.mxu0
  %v7241 = vadd.f32 0.0, %v7240
  %7242 = vmatmul.f32.gmra.mxu0 %v7032
  %v7243 = vpop.f32.mrf.mxu0
  %v7244 = vadd.f32 0.0, %v7243
  %7245 = vmatmul.f32.gmra.mxu0 %v7035
  %v7246 = vpop.f32.mrf.mxu0
  %v7247 = vadd.f32 0.0, %v7246
  %7248 = vmatmul.f32.gmra.mxu0 %v7038
  %v7249 = vpop.f32.mrf.mxu0
  %v7250 = vadd.f32 0.0, %v7249
  %7251 = vmatmul.f32.gmra.mxu0 %v7041
  %v7252 = vpop.f32.mrf.mxu0
  %v7253 = vadd.f32 0.0, %v7252
  %7254 = vmatmul.f32.gmra.mxu0 %v7044
  %v7255 = vpop.f32.mrf.mxu0
  %v7256 = vadd.f32 0.0, %v7255
  %7257 = vmatmul.f32.gmra.mxu0 %v7047
  %v7258 = vpop.f32.mrf.mxu0
  %v7259 = vadd.f32 0.0, %v7258
  %7260 = vmatmul.f32.gmra.mxu0 %v7050
  %v7261 = vpop.f32.mrf.mxu0
  %v7262 = vadd.f32 0.0, %v7261
  %7263 = vmatmul.f32.gmra.mxu0 %v7053
  %v7264 = vpop.f32.mrf.mxu0
  %v7265 = vadd.f32 0.0, %v7264
  %7266 = vmatmul.f32.gmra.mxu0 %v7056
  %v7267 = vpop.f32.mrf.mxu0
  %v7268 = vadd.f32 0.0, %v7267
  %7269 = vmatmul.f32.gmra.mxu0 %v7059
  %v7270 = vpop.f32.mrf.mxu0
  %v7271 = vadd.f32 0.0, %v7270
  %7272 = vmatmul.f32.gmra.mxu0 %v7062
  %v7273 = vpop.f32.mrf.mxu0
  %v7274 = vadd.f32 0.0, %v7273
  %7275 = vmatmul.f32.gmra.mxu0 %v7065
  %v7276 = vpop.f32.mrf.mxu0
  %v7277 = vadd.f32 0.0, %v7276
  %7278 = vmatmul.f32.gmra.mxu0 %v7068
  %v7279 = vpop.f32.mrf.mxu0
  %v7280 = vadd.f32 0.0, %v7279
  %7281 = vmatmul.f32.gmra.mxu0 %v7071
  %v7282 = vpop.f32.mrf.mxu0
  %v7283 = vadd.f32 0.0, %v7282
  %7284 = vmatmul.f32.gmra.mxu0 %v7074
  %v7285 = vpop.f32.mrf.mxu0
  %v7286 = vadd.f32 0.0, %v7285
  %7287 = vmatmul.f32.gmra.mxu0 %v7077
  %v7288 = vpop.f32.mrf.mxu0
  %v7289 = vadd.f32 0.0, %v7288
  %7290 = vmatmul.f32.gmra.mxu0 %v7080
  %v7291 = vpop.f32.mrf.mxu0
  %v7292 = vadd.f32 0.0, %v7291
  %7293 = vmatmul.f32.gmra.mxu0 %v7083
  %v7294 = vpop.f32.mrf.mxu0
  %v7295 = vadd.f32 0.0, %v7294
  %7296 = vmatmul.f32.gmra.mxu0 %v7086
  %v7297 = vpop.f32.mrf.mxu0
  %v7298 = vadd.f32 0.0, %v7297
  %7299 = vmatmul.f32.gmra.mxu0 %v7089
  %v7300 = vpop.f32.mrf.mxu0
  %v7301 = vadd.f32 0.0, %v7300
  %7302 = vmatmul.f32.gmra.mxu0 %v7092
  %v7303 = vpop.f32.mrf.mxu0
  %v7304 = vadd.f32 0.0, %v7303
  %7305 = vdwg.mxu0
  %v7306 = vadd.f32 %v6772, %v7115
  %v7307 = vadd.f32 %v6773, %v7118
  %v7308 = vadd.f32 %v6774, %v7121
  %v7309 = vadd.f32 %v6775, %v7124
  %v7310 = vadd.f32 %v6776, %v7127
  %v7311 = vadd.f32 %v6777, %v7130
  %v7312 = vadd.f32 %v6778, %v7133
  %v7313 = vadd.f32 %v6779, %v7136
  %v7314 = vadd.f32 %v6780, %v7139
  %v7315 = vadd.f32 %v6781, %v7142
  %v7316 = vadd.f32 %v6782, %v7145
  %v7317 = vadd.f32 %v6783, %v7148
  %v7318 = vadd.f32 %v6784, %v7151
  %v7319 = vadd.f32 %v6785, %v7154
  %v7320 = vadd.f32 %v6786, %v7157
  %v7321 = vadd.f32 %v6787, %v7160
  %v7322 = vadd.f32 %v6788, %v7163
  %v7323 = vadd.f32 %v6789, %v7166
  %v7324 = vadd.f32 %v6790, %v7169
  %v7325 = vadd.f32 %v6791, %v7172
  %v7326 = vadd.f32 %v6792, %v7175
  %v7327 = vadd.f32 %v6793, %v7178
  %v7328 = vadd.f32 %v6794, %v7181
  %v7329 = vadd.f32 %v6795, %v7184
  %v7330 = vadd.f32 %v6796, %v7187
  %v7331 = vadd.f32 %v6797, %v7190
  %v7332 = vadd.f32 %v6798, %v7193
  %v7333 = vadd.f32 %v6799, %v7196
  %v7334 = vadd.f32 %v6800, %v7199
  %v7335 = vadd.f32 %v6801, %v7202
  %v7336 = vadd.f32 %v6802, %v7205
  %v7337 = vadd.f32 %v6803, %v7208
  %v7338 = vadd.f32 %v6804, %v7211
  %v7339 = vadd.f32 %v6805, %v7214
  %v7340 = vadd.f32 %v6806, %v7217
  %v7341 = vadd.f32 %v6807, %v7220
  %v7342 = vadd.f32 %v6808, %v7223
  %v7343 = vadd.f32 %v6809, %v7226
  %v7344 = vadd.f32 %v6810, %v7229
  %v7345 = vadd.f32 %v6811, %v7232
  %v7346 = vadd.f32 %v6812, %v7235
  %v7347 = vadd.f32 %v6813, %v7238
  %v7348 = vadd.f32 %v6814, %v7241
  %v7349 = vadd.f32 %v6815, %v7244
  %v7350 = vadd.f32 %v6816, %v7247
  %v7351 = vadd.f32 %v6817, %v7250
  %v7352 = vadd.f32 %v6818, %v7253
  %v7353 = vadd.f32 %v6819, %v7256
  %v7354 = vadd.f32 %v6820, %v7259
  %v7355 = vadd.f32 %v6821, %v7262
  %v7356 = vadd.f32 %v6822, %v7265
  %v7357 = vadd.f32 %v6823, %v7268
  %v7358 = vadd.f32 %v6824, %v7271
  %v7359 = vadd.f32 %v6825, %v7274
  %v7360 = vadd.f32 %v6826, %v7277
  %v7361 = vadd.f32 %v6827, %v7280
  %v7362 = vadd.f32 %v6828, %v7283
  %v7363 = vadd.f32 %v6829, %v7286
  %v7364 = vadd.f32 %v6830, %v7289
  %v7365 = vadd.f32 %v6831, %v7292
  %v7366 = vadd.f32 %v6832, %v7295
  %v7367 = vadd.f32 %v6833, %v7298
  %v7368 = vadd.f32 %v6834, %v7301
  %v7369 = vadd.f32 %v6835, %v7304
  %v7370 = vld [vmem:[%s3096 + $0x1] sm:$0xff]
  %v7371 = vld [vmem:[%s3096 + $0x9] sm:$0xff]
  %v7372 = vld [vmem:[%s3096 + $0x19] sm:$0xff]
  %v7373 = vld [vmem:[%s3096 + $0x21] sm:$0xff]
  %v7374 = vld [vmem:[%s3096 + $0x31] sm:$0xff]
  %v7375 = vld [vmem:[%s3096 + $0x39] sm:$0xff]
  %v7376 = vld [vmem:[%s3096 + $0x49] sm:$0xff]
  %v7377 = vld [vmem:[%s3096 + $0x51] sm:$0xff]
  %v7378 = vld [vmem:[%s3096 + $0x61] sm:$0xff]
  %v7379 = vld [vmem:[%s3096 + $0x69] sm:$0xff]
  %v7380 = vld [vmem:[%s3096 + $0x79] sm:$0xff]
  %v7381 = vld [vmem:[%s3096 + $0x81] sm:$0xff]
  %v7382 = vld [vmem:[%s3096 + $0x91] sm:$0xff]
  %v7383 = vld [vmem:[%s3096 + $0x99] sm:$0xff]
  %v7384 = vld [vmem:[%s3096 + $0xa9] sm:$0xff]
  %v7385 = vld [vmem:[%s3096 + $0xb1] sm:$0xff]
  %v7386 = vld [vmem:[%s3096 + $0xc1] sm:$0xff]
  %v7387 = vld [vmem:[%s3096 + $0xc9] sm:$0xff]
  %v7388 = vld [vmem:[%s3096 + $0xd9] sm:$0xff]
  %v7389 = vld [vmem:[%s3096 + $0xe1] sm:$0xff]
  %v7390 = vld [vmem:[%s3096 + $0xf1] sm:$0xff]
  %v7391 = vld [vmem:[%s3096 + $0xf9] sm:$0xff]
  %v7392 = vld [vmem:[%s3096 + $0x109] sm:$0xff]
  %v7393 = vld [vmem:[%s3096 + $0x111] sm:$0xff]
  %v7394 = vld [vmem:[%s3096 + $0x121] sm:$0xff]
  %v7395 = vld [vmem:[%s3096 + $0x129] sm:$0xff]
  %v7396 = vld [vmem:[%s3096 + $0x139] sm:$0xff]
  %v7397 = vld [vmem:[%s3096 + $0x141] sm:$0xff]
  %v7398 = vld [vmem:[%s3096 + $0x151] sm:$0xff]
  %v7399 = vld [vmem:[%s3096 + $0x159] sm:$0xff]
  %v7400 = vld [vmem:[%s3096 + $0x169] sm:$0xff]
  %v7401 = vld [vmem:[%s3096 + $0x171] sm:$0xff]
  %v7402 = vld [vmem:[%s3096 + $0x199] sm:$0xff]
  %v7403 = vld [vmem:[%s3096 + $0x1a1] sm:$0xff]
  %v7404 = vld [vmem:[%s3096 + $0x1b1] sm:$0xff]
  %v7405 = vld [vmem:[%s3096 + $0x1b9] sm:$0xff]
  %v7406 = vld [vmem:[%s3096 + $0x1c9] sm:$0xff]
  %v7407 = vld [vmem:[%s3096 + $0x1d1] sm:$0xff]
  %v7408 = vld [vmem:[%s3096 + $0x1e1] sm:$0xff]
  %v7409 = vld [vmem:[%s3096 + $0x1e9] sm:$0xff]
  %v7410 = vld [vmem:[%s3096 + $0x1f9] sm:$0xff]
  %v7411 = vld [vmem:[%s3096 + $0x201] sm:$0xff]
  %v7412 = vld [vmem:[%s3096 + $0x211] sm:$0xff]
  %v7413 = vld [vmem:[%s3096 + $0x219] sm:$0xff]
  %v7414 = vld [vmem:[%s3096 + $0x229] sm:$0xff]
  %v7415 = vld [vmem:[%s3096 + $0x231] sm:$0xff]
  %v7416 = vld [vmem:[%s3096 + $0x241] sm:$0xff]
  %v7417 = vld [vmem:[%s3096 + $0x249] sm:$0xff]
  %v7418 = vld [vmem:[%s3096 + $0x259] sm:$0xff]
  %v7419 = vld [vmem:[%s3096 + $0x261] sm:$0xff]
  %v7420 = vld [vmem:[%s3096 + $0x271] sm:$0xff]
  %v7421 = vld [vmem:[%s3096 + $0x279] sm:$0xff]
  %v7422 = vld [vmem:[%s3096 + $0x289] sm:$0xff]
  %v7423 = vld [vmem:[%s3096 + $0x291] sm:$0xff]
  %v7424 = vld [vmem:[%s3096 + $0x2a1] sm:$0xff]
  %v7425 = vld [vmem:[%s3096 + $0x2a9] sm:$0xff]
  %v7426 = vld [vmem:[%s3096 + $0x2b9] sm:$0xff]
  %v7427 = vld [vmem:[%s3096 + $0x2c1] sm:$0xff]
  %v7428 = vld [vmem:[%s3096 + $0x2d1] sm:$0xff]
  %v7429 = vld [vmem:[%s3096 + $0x2d9] sm:$0xff]
  %v7430 = vld [vmem:[%s3096 + $0x2e9] sm:$0xff]
  %v7431 = vld [vmem:[%s3096 + $0x2f1] sm:$0xff]
  %v7432 = vld [vmem:[%s3096 + $0x301] sm:$0xff]
  %v7433 = vld [vmem:[%s3096 + $0x309] sm:$0xff]
  %s7434 = scalar_lea.vmem %s1, 56
  %v7435 = vld [vmem:[%s7434] sm:$0xf]
  %v7437 = vsel %vm146, %v7370, 0
  %v7440 = vsel %vm146, %v7371, 0
  %v7443 = vsel %vm146, %v7372, 0
  %v7446 = vsel %vm146, %v7373, 0
  %v7449 = vsel %vm146, %v7374, 0
  %v7452 = vsel %vm146, %v7375, 0
  %v7455 = vsel %vm146, %v7376, 0
  %v7458 = vsel %vm146, %v7377, 0
  %v7461 = vsel %vm146, %v7378, 0
  %v7464 = vsel %vm146, %v7379, 0
  %v7467 = vsel %vm146, %v7380, 0
  %v7470 = vsel %vm146, %v7381, 0
  %v7473 = vsel %vm146, %v7382, 0
  %v7476 = vsel %vm146, %v7383, 0
  %v7479 = vsel %vm146, %v7384, 0
  %v7482 = vsel %vm146, %v7385, 0
  %v7485 = vsel %vm146, %v7386, 0
  %v7488 = vsel %vm146, %v7387, 0
  %v7491 = vsel %vm146, %v7388, 0
  %v7494 = vsel %vm146, %v7389, 0
  %v7497 = vsel %vm146, %v7390, 0
  %v7500 = vsel %vm146, %v7391, 0
  %v7503 = vsel %vm146, %v7392, 0
  %v7506 = vsel %vm146, %v7393, 0
  %v7509 = vsel %vm146, %v7394, 0
  %v7512 = vsel %vm146, %v7395, 0
  %v7515 = vsel %vm146, %v7396, 0
  %v7518 = vsel %vm146, %v7397, 0
  %v7521 = vsel %vm146, %v7398, 0
  %v7524 = vsel %vm146, %v7399, 0
  %v7527 = vsel %vm146, %v7400, 0
  %v7530 = vsel %vm146, %v7401, 0
  %v7533 = vsel %vm146, %v7402, 0
  %v7536 = vsel %vm146, %v7403, 0
  %v7539 = vsel %vm146, %v7404, 0
  %v7542 = vsel %vm146, %v7405, 0
  %v7545 = vsel %vm146, %v7406, 0
  %v7548 = vsel %vm146, %v7407, 0
  %v7551 = vsel %vm146, %v7408, 0
  %v7554 = vsel %vm146, %v7409, 0
  %v7557 = vsel %vm146, %v7410, 0
  %v7560 = vsel %vm146, %v7411, 0
  %v7563 = vsel %vm146, %v7412, 0
  %v7566 = vsel %vm146, %v7413, 0
  %v7569 = vsel %vm146, %v7414, 0
  %v7572 = vsel %vm146, %v7415, 0
  %v7575 = vsel %vm146, %v7416, 0
  %v7578 = vsel %vm146, %v7417, 0
  %v7581 = vsel %vm146, %v7418, 0
  %v7584 = vsel %vm146, %v7419, 0
  %v7587 = vsel %vm146, %v7420, 0
  %v7590 = vsel %vm146, %v7421, 0
  %v7593 = vsel %vm146, %v7422, 0
  %v7596 = vsel %vm146, %v7423, 0
  %v7599 = vsel %vm146, %v7424, 0
  %v7602 = vsel %vm146, %v7425, 0
  %v7605 = vsel %vm146, %v7426, 0
  %v7608 = vsel %vm146, %v7427, 0
  %v7611 = vsel %vm146, %v7428, 0
  %v7614 = vsel %vm146, %v7429, 0
  %v7617 = vsel %vm146, %v7430, 0
  %v7620 = vsel %vm146, %v7431, 0
  %v7623 = vsel %vm146, %v7432, 0
  %v7626 = vsel %vm146, %v7433, 0
  %v7629 = vsel %vm339, %v7435, 0
  %7631 = vmatpush.msra.mxu0 0.0
  %7632 = vmatpush.msra.mxu0 0.0
  %7633 = vmatpush.msra.mxu0 0.0
  %7634 = vmatpush.msra.mxu0 0.0
  %7635 = vmatpush.msra.mxu0 0.0
  %7636 = vmatpush.msra.mxu0 0.0
  %7637 = vmatpush.msra.mxu0 0.0
  %7638 = vmatpush.msra.mxu0 0.0
  %7639 = vmatpush.msra.mxu0 0.0
  %7640 = vmatpush.msra.mxu0 0.0
  %7641 = vmatpush.msra.mxu0 0.0
  %7642 = vmatpush.msra.mxu0 0.0
  %7643 = vmatpush.msra.mxu0 0.0
  %7644 = vmatpush.msra.mxu0 0.0
  %7645 = vmatpush.msra.mxu0 0.0
  %7646 = vmatpush.msra.mxu0 %v7629
  %7647 = vmatmul.f32.gmra.mxu0 %v7437
  %v7648 = vpop.f32.mrf.mxu0
  %v7649 = vadd.f32 0.0, %v7648
  %7650 = vmatmul.f32.gmra.mxu0 %v7440
  %v7651 = vpop.f32.mrf.mxu0
  %v7652 = vadd.f32 0.0, %v7651
  %7653 = vmatmul.f32.gmra.mxu0 %v7443
  %v7654 = vpop.f32.mrf.mxu0
  %v7655 = vadd.f32 0.0, %v7654
  %7656 = vmatmul.f32.gmra.mxu0 %v7446
  %v7657 = vpop.f32.mrf.mxu0
  %v7658 = vadd.f32 0.0, %v7657
  %7659 = vmatmul.f32.gmra.mxu0 %v7449
  %v7660 = vpop.f32.mrf.mxu0
  %v7661 = vadd.f32 0.0, %v7660
  %7662 = vmatmul.f32.gmra.mxu0 %v7452
  %v7663 = vpop.f32.mrf.mxu0
  %v7664 = vadd.f32 0.0, %v7663
  %7665 = vmatmul.f32.gmra.mxu0 %v7455
  %v7666 = vpop.f32.mrf.mxu0
  %v7667 = vadd.f32 0.0, %v7666
  %7668 = vmatmul.f32.gmra.mxu0 %v7458
  %v7669 = vpop.f32.mrf.mxu0
  %v7670 = vadd.f32 0.0, %v7669
  %7671 = vmatmul.f32.gmra.mxu0 %v7461
  %v7672 = vpop.f32.mrf.mxu0
  %v7673 = vadd.f32 0.0, %v7672
  %7674 = vmatmul.f32.gmra.mxu0 %v7464
  %v7675 = vpop.f32.mrf.mxu0
  %v7676 = vadd.f32 0.0, %v7675
  %7677 = vmatmul.f32.gmra.mxu0 %v7467
  %v7678 = vpop.f32.mrf.mxu0
  %v7679 = vadd.f32 0.0, %v7678
  %7680 = vmatmul.f32.gmra.mxu0 %v7470
  %v7681 = vpop.f32.mrf.mxu0
  %v7682 = vadd.f32 0.0, %v7681
  %7683 = vmatmul.f32.gmra.mxu0 %v7473
  %v7684 = vpop.f32.mrf.mxu0
  %v7685 = vadd.f32 0.0, %v7684
  %7686 = vmatmul.f32.gmra.mxu0 %v7476
  %v7687 = vpop.f32.mrf.mxu0
  %v7688 = vadd.f32 0.0, %v7687
  %7689 = vmatmul.f32.gmra.mxu0 %v7479
  %v7690 = vpop.f32.mrf.mxu0
  %v7691 = vadd.f32 0.0, %v7690
  %7692 = vmatmul.f32.gmra.mxu0 %v7482
  %v7693 = vpop.f32.mrf.mxu0
  %v7694 = vadd.f32 0.0, %v7693
  %7695 = vmatmul.f32.gmra.mxu0 %v7485
  %v7696 = vpop.f32.mrf.mxu0
  %v7697 = vadd.f32 0.0, %v7696
  %7698 = vmatmul.f32.gmra.mxu0 %v7488
  %v7699 = vpop.f32.mrf.mxu0
  %v7700 = vadd.f32 0.0, %v7699
  %7701 = vmatmul.f32.gmra.mxu0 %v7491
  %v7702 = vpop.f32.mrf.mxu0
  %v7703 = vadd.f32 0.0, %v7702
  %7704 = vmatmul.f32.gmra.mxu0 %v7494
  %v7705 = vpop.f32.mrf.mxu0
  %v7706 = vadd.f32 0.0, %v7705
  %7707 = vmatmul.f32.gmra.mxu0 %v7497
  %v7708 = vpop.f32.mrf.mxu0
  %v7709 = vadd.f32 0.0, %v7708
  %7710 = vmatmul.f32.gmra.mxu0 %v7500
  %v7711 = vpop.f32.mrf.mxu0
  %v7712 = vadd.f32 0.0, %v7711
  %7713 = vmatmul.f32.gmra.mxu0 %v7503
  %v7714 = vpop.f32.mrf.mxu0
  %v7715 = vadd.f32 0.0, %v7714
  %7716 = vmatmul.f32.gmra.mxu0 %v7506
  %v7717 = vpop.f32.mrf.mxu0
  %v7718 = vadd.f32 0.0, %v7717
  %7719 = vmatmul.f32.gmra.mxu0 %v7509
  %v7720 = vpop.f32.mrf.mxu0
  %v7721 = vadd.f32 0.0, %v7720
  %7722 = vmatmul.f32.gmra.mxu0 %v7512
  %v7723 = vpop.f32.mrf.mxu0
  %v7724 = vadd.f32 0.0, %v7723
  %7725 = vmatmul.f32.gmra.mxu0 %v7515
  %v7726 = vpop.f32.mrf.mxu0
  %v7727 = vadd.f32 0.0, %v7726
  %7728 = vmatmul.f32.gmra.mxu0 %v7518
  %v7729 = vpop.f32.mrf.mxu0
  %v7730 = vadd.f32 0.0, %v7729
  %7731 = vmatmul.f32.gmra.mxu0 %v7521
  %v7732 = vpop.f32.mrf.mxu0
  %v7733 = vadd.f32 0.0, %v7732
  %7734 = vmatmul.f32.gmra.mxu0 %v7524
  %v7735 = vpop.f32.mrf.mxu0
  %v7736 = vadd.f32 0.0, %v7735
  %7737 = vmatmul.f32.gmra.mxu0 %v7527
  %v7738 = vpop.f32.mrf.mxu0
  %v7739 = vadd.f32 0.0, %v7738
  %7740 = vmatmul.f32.gmra.mxu0 %v7530
  %v7741 = vpop.f32.mrf.mxu0
  %v7742 = vadd.f32 0.0, %v7741
  %7743 = vmatmul.f32.gmra.mxu0 %v7533
  %v7744 = vpop.f32.mrf.mxu0
  %v7745 = vadd.f32 0.0, %v7744
  %7746 = vmatmul.f32.gmra.mxu0 %v7536
  %v7747 = vpop.f32.mrf.mxu0
  %v7748 = vadd.f32 0.0, %v7747
  %7749 = vmatmul.f32.gmra.mxu0 %v7539
  %v7750 = vpop.f32.mrf.mxu0
  %v7751 = vadd.f32 0.0, %v7750
  %7752 = vmatmul.f32.gmra.mxu0 %v7542
  %v7753 = vpop.f32.mrf.mxu0
  %v7754 = vadd.f32 0.0, %v7753
  %7755 = vmatmul.f32.gmra.mxu0 %v7545
  %v7756 = vpop.f32.mrf.mxu0
  %v7757 = vadd.f32 0.0, %v7756
  %7758 = vmatmul.f32.gmra.mxu0 %v7548
  %v7759 = vpop.f32.mrf.mxu0
  %v7760 = vadd.f32 0.0, %v7759
  %7761 = vmatmul.f32.gmra.mxu0 %v7551
  %v7762 = vpop.f32.mrf.mxu0
  %v7763 = vadd.f32 0.0, %v7762
  %7764 = vmatmul.f32.gmra.mxu0 %v7554
  %v7765 = vpop.f32.mrf.mxu0
  %v7766 = vadd.f32 0.0, %v7765
  %7767 = vmatmul.f32.gmra.mxu0 %v7557
  %v7768 = vpop.f32.mrf.mxu0
  %v7769 = vadd.f32 0.0, %v7768
  %7770 = vmatmul.f32.gmra.mxu0 %v7560
  %v7771 = vpop.f32.mrf.mxu0
  %v7772 = vadd.f32 0.0, %v7771
  %7773 = vmatmul.f32.gmra.mxu0 %v7563
  %v7774 = vpop.f32.mrf.mxu0
  %v7775 = vadd.f32 0.0, %v7774
  %7776 = vmatmul.f32.gmra.mxu0 %v7566
  %v7777 = vpop.f32.mrf.mxu0
  %v7778 = vadd.f32 0.0, %v7777
  %7779 = vmatmul.f32.gmra.mxu0 %v7569
  %v7780 = vpop.f32.mrf.mxu0
  %v7781 = vadd.f32 0.0, %v7780
  %7782 = vmatmul.f32.gmra.mxu0 %v7572
  %v7783 = vpop.f32.mrf.mxu0
  %v7784 = vadd.f32 0.0, %v7783
  %7785 = vmatmul.f32.gmra.mxu0 %v7575
  %v7786 = vpop.f32.mrf.mxu0
  %v7787 = vadd.f32 0.0, %v7786
  %7788 = vmatmul.f32.gmra.mxu0 %v7578
  %v7789 = vpop.f32.mrf.mxu0
  %v7790 = vadd.f32 0.0, %v7789
  %7791 = vmatmul.f32.gmra.mxu0 %v7581
  %v7792 = vpop.f32.mrf.mxu0
  %v7793 = vadd.f32 0.0, %v7792
  %7794 = vmatmul.f32.gmra.mxu0 %v7584
  %v7795 = vpop.f32.mrf.mxu0
  %v7796 = vadd.f32 0.0, %v7795
  %7797 = vmatmul.f32.gmra.mxu0 %v7587
  %v7798 = vpop.f32.mrf.mxu0
  %v7799 = vadd.f32 0.0, %v7798
  %7800 = vmatmul.f32.gmra.mxu0 %v7590
  %v7801 = vpop.f32.mrf.mxu0
  %v7802 = vadd.f32 0.0, %v7801
  %7803 = vmatmul.f32.gmra.mxu0 %v7593
  %v7804 = vpop.f32.mrf.mxu0
  %v7805 = vadd.f32 0.0, %v7804
  %7806 = vmatmul.f32.gmra.mxu0 %v7596
  %v7807 = vpop.f32.mrf.mxu0
  %v7808 = vadd.f32 0.0, %v7807
  %7809 = vmatmul.f32.gmra.mxu0 %v7599
  %v7810 = vpop.f32.mrf.mxu0
  %v7811 = vadd.f32 0.0, %v7810
  %7812 = vmatmul.f32.gmra.mxu0 %v7602
  %v7813 = vpop.f32.mrf.mxu0
  %v7814 = vadd.f32 0.0, %v7813
  %7815 = vmatmul.f32.gmra.mxu0 %v7605
  %v7816 = vpop.f32.mrf.mxu0
  %v7817 = vadd.f32 0.0, %v7816
  %7818 = vmatmul.f32.gmra.mxu0 %v7608
  %v7819 = vpop.f32.mrf.mxu0
  %v7820 = vadd.f32 0.0, %v7819
  %7821 = vmatmul.f32.gmra.mxu0 %v7611
  %v7822 = vpop.f32.mrf.mxu0
  %v7823 = vadd.f32 0.0, %v7822
  %7824 = vmatmul.f32.gmra.mxu0 %v7614
  %v7825 = vpop.f32.mrf.mxu0
  %v7826 = vadd.f32 0.0, %v7825
  %7827 = vmatmul.f32.gmra.mxu0 %v7617
  %v7828 = vpop.f32.mrf.mxu0
  %v7829 = vadd.f32 0.0, %v7828
  %7830 = vmatmul.f32.gmra.mxu0 %v7620
  %v7831 = vpop.f32.mrf.mxu0
  %v7832 = vadd.f32 0.0, %v7831
  %7833 = vmatmul.f32.gmra.mxu0 %v7623
  %v7834 = vpop.f32.mrf.mxu0
  %v7835 = vadd.f32 0.0, %v7834
  %7836 = vmatmul.f32.gmra.mxu0 %v7626
  %v7837 = vpop.f32.mrf.mxu0
  %v7838 = vadd.f32 0.0, %v7837
  %7839 = vdwg.mxu0
  %v7840 = vadd.f32 %v7306, %v7649
  %v7841 = vadd.f32 %v7307, %v7652
  %v7842 = vadd.f32 %v7308, %v7655
  %v7843 = vadd.f32 %v7309, %v7658
  %v7844 = vadd.f32 %v7310, %v7661
  %v7845 = vadd.f32 %v7311, %v7664
  %v7846 = vadd.f32 %v7312, %v7667
  %v7847 = vadd.f32 %v7313, %v7670
  %v7848 = vadd.f32 %v7314, %v7673
  %v7849 = vadd.f32 %v7315, %v7676
  %v7850 = vadd.f32 %v7316, %v7679
  %v7851 = vadd.f32 %v7317, %v7682
  %v7852 = vadd.f32 %v7318, %v7685
  %v7853 = vadd.f32 %v7319, %v7688
  %v7854 = vadd.f32 %v7320, %v7691
  %v7855 = vadd.f32 %v7321, %v7694
  %v7856 = vadd.f32 %v7322, %v7697
  %v7857 = vadd.f32 %v7323, %v7700
  %v7858 = vadd.f32 %v7324, %v7703
  %v7859 = vadd.f32 %v7325, %v7706
  %v7860 = vadd.f32 %v7326, %v7709
  %v7861 = vadd.f32 %v7327, %v7712
  %v7862 = vadd.f32 %v7328, %v7715
  %v7863 = vadd.f32 %v7329, %v7718
  %v7864 = vadd.f32 %v7330, %v7721
  %v7865 = vadd.f32 %v7331, %v7724
  %v7866 = vadd.f32 %v7332, %v7727
  %v7867 = vadd.f32 %v7333, %v7730
  %v7868 = vadd.f32 %v7334, %v7733
  %v7869 = vadd.f32 %v7335, %v7736
  %v7870 = vadd.f32 %v7336, %v7739
  %v7871 = vadd.f32 %v7337, %v7742
  %v7872 = vadd.f32 %v7338, %v7745
  %v7873 = vadd.f32 %v7339, %v7748
  %v7874 = vadd.f32 %v7340, %v7751
  %v7875 = vadd.f32 %v7341, %v7754
  %v7876 = vadd.f32 %v7342, %v7757
  %v7877 = vadd.f32 %v7343, %v7760
  %v7878 = vadd.f32 %v7344, %v7763
  %v7879 = vadd.f32 %v7345, %v7766
  %v7880 = vadd.f32 %v7346, %v7769
  %v7881 = vadd.f32 %v7347, %v7772
  %v7882 = vadd.f32 %v7348, %v7775
  %v7883 = vadd.f32 %v7349, %v7778
  %v7884 = vadd.f32 %v7350, %v7781
  %v7885 = vadd.f32 %v7351, %v7784
  %v7886 = vadd.f32 %v7352, %v7787
  %v7887 = vadd.f32 %v7353, %v7790
  %v7888 = vadd.f32 %v7354, %v7793
  %v7889 = vadd.f32 %v7355, %v7796
  %v7890 = vadd.f32 %v7356, %v7799
  %v7891 = vadd.f32 %v7357, %v7802
  %v7892 = vadd.f32 %v7358, %v7805
  %v7893 = vadd.f32 %v7359, %v7808
  %v7894 = vadd.f32 %v7360, %v7811
  %v7895 = vadd.f32 %v7361, %v7814
  %v7896 = vadd.f32 %v7362, %v7817
  %v7897 = vadd.f32 %v7363, %v7820
  %v7898 = vadd.f32 %v7364, %v7823
  %v7899 = vadd.f32 %v7365, %v7826
  %v7900 = vadd.f32 %v7366, %v7829
  %v7901 = vadd.f32 %v7367, %v7832
  %v7902 = vadd.f32 %v7368, %v7835
  %v7903 = vadd.f32 %v7369, %v7838
  %v7904 = vld [vmem:[%s3631 + $0x1] sm:$0xff]
  %v7905 = vld [vmem:[%s3631 + $0x9] sm:$0xff]
  %v7906 = vld [vmem:[%s3631 + $0x19] sm:$0xff]
  %v7907 = vld [vmem:[%s3631 + $0x21] sm:$0xff]
  %v7908 = vld [vmem:[%s3631 + $0x31] sm:$0xff]
  %v7909 = vld [vmem:[%s3631 + $0x39] sm:$0xff]
  %v7910 = vld [vmem:[%s3631 + $0x49] sm:$0xff]
  %v7911 = vld [vmem:[%s3631 + $0x51] sm:$0xff]
  %v7912 = vld [vmem:[%s3631 + $0x61] sm:$0xff]
  %v7913 = vld [vmem:[%s3631 + $0x69] sm:$0xff]
  %v7914 = vld [vmem:[%s3631 + $0x79] sm:$0xff]
  %v7915 = vld [vmem:[%s3631 + $0x81] sm:$0xff]
  %v7916 = vld [vmem:[%s3631 + $0x91] sm:$0xff]
  %v7917 = vld [vmem:[%s3631 + $0x99] sm:$0xff]
  %v7918 = vld [vmem:[%s3631 + $0xa9] sm:$0xff]
  %v7919 = vld [vmem:[%s3631 + $0xb1] sm:$0xff]
  %v7920 = vld [vmem:[%s3631 + $0xc1] sm:$0xff]
  %v7921 = vld [vmem:[%s3631 + $0xc9] sm:$0xff]
  %v7922 = vld [vmem:[%s3631 + $0xd9] sm:$0xff]
  %v7923 = vld [vmem:[%s3631 + $0xe1] sm:$0xff]
  %v7924 = vld [vmem:[%s3631 + $0xf1] sm:$0xff]
  %v7925 = vld [vmem:[%s3631 + $0xf9] sm:$0xff]
  %v7926 = vld [vmem:[%s3631 + $0x109] sm:$0xff]
  %v7927 = vld [vmem:[%s3631 + $0x111] sm:$0xff]
  %v7928 = vld [vmem:[%s3631 + $0x121] sm:$0xff]
  %v7929 = vld [vmem:[%s3631 + $0x129] sm:$0xff]
  %v7930 = vld [vmem:[%s3631 + $0x139] sm:$0xff]
  %v7931 = vld [vmem:[%s3631 + $0x141] sm:$0xff]
  %v7932 = vld [vmem:[%s3631 + $0x151] sm:$0xff]
  %v7933 = vld [vmem:[%s3631 + $0x159] sm:$0xff]
  %v7934 = vld [vmem:[%s3631 + $0x169] sm:$0xff]
  %v7935 = vld [vmem:[%s3631 + $0x171] sm:$0xff]
  %v7936 = vld [vmem:[%s3631 + $0x199] sm:$0xff]
  %v7937 = vld [vmem:[%s3631 + $0x1a1] sm:$0xff]
  %v7938 = vld [vmem:[%s3631 + $0x1b1] sm:$0xff]
  %v7939 = vld [vmem:[%s3631 + $0x1b9] sm:$0xff]
  %v7940 = vld [vmem:[%s3631 + $0x1c9] sm:$0xff]
  %v7941 = vld [vmem:[%s3631 + $0x1d1] sm:$0xff]
  %v7942 = vld [vmem:[%s3631 + $0x1e1] sm:$0xff]
  %v7943 = vld [vmem:[%s3631 + $0x1e9] sm:$0xff]
  %v7944 = vld [vmem:[%s3631 + $0x1f9] sm:$0xff]
  %v7945 = vld [vmem:[%s3631 + $0x201] sm:$0xff]
  %v7946 = vld [vmem:[%s3631 + $0x211] sm:$0xff]
  %v7947 = vld [vmem:[%s3631 + $0x219] sm:$0xff]
  %v7948 = vld [vmem:[%s3631 + $0x229] sm:$0xff]
  %v7949 = vld [vmem:[%s3631 + $0x231] sm:$0xff]
  %v7950 = vld [vmem:[%s3631 + $0x241] sm:$0xff]
  %v7951 = vld [vmem:[%s3631 + $0x249] sm:$0xff]
  %v7952 = vld [vmem:[%s3631 + $0x259] sm:$0xff]
  %v7953 = vld [vmem:[%s3631 + $0x261] sm:$0xff]
  %v7954 = vld [vmem:[%s3631 + $0x271] sm:$0xff]
  %v7955 = vld [vmem:[%s3631 + $0x279] sm:$0xff]
  %v7956 = vld [vmem:[%s3631 + $0x289] sm:$0xff]
  %v7957 = vld [vmem:[%s3631 + $0x291] sm:$0xff]
  %v7958 = vld [vmem:[%s3631 + $0x2a1] sm:$0xff]
  %v7959 = vld [vmem:[%s3631 + $0x2a9] sm:$0xff]
  %v7960 = vld [vmem:[%s3631 + $0x2b9] sm:$0xff]
  %v7961 = vld [vmem:[%s3631 + $0x2c1] sm:$0xff]
  %v7962 = vld [vmem:[%s3631 + $0x2d1] sm:$0xff]
  %v7963 = vld [vmem:[%s3631 + $0x2d9] sm:$0xff]
  %v7964 = vld [vmem:[%s3631 + $0x2e9] sm:$0xff]
  %v7965 = vld [vmem:[%s3631 + $0x2f1] sm:$0xff]
  %v7966 = vld [vmem:[%s3631 + $0x301] sm:$0xff]
  %v7967 = vld [vmem:[%s3631 + $0x309] sm:$0xff]
  %s7968 = scalar_lea.vmem %s1, 60
  %v7969 = vld [vmem:[%s7968] sm:$0xf]
  %v7971 = vsel %vm146, %v7904, 0
  %v7974 = vsel %vm146, %v7905, 0
  %v7977 = vsel %vm146, %v7906, 0
  %v7980 = vsel %vm146, %v7907, 0
  %v7983 = vsel %vm146, %v7908, 0
  %v7986 = vsel %vm146, %v7909, 0
  %v7989 = vsel %vm146, %v7910, 0
  %v7992 = vsel %vm146, %v7911, 0
  %v7995 = vsel %vm146, %v7912, 0
  %v7998 = vsel %vm146, %v7913, 0
  %v8001 = vsel %vm146, %v7914, 0
  %v8004 = vsel %vm146, %v7915, 0
  %v8007 = vsel %vm146, %v7916, 0
  %v8010 = vsel %vm146, %v7917, 0
  %v8013 = vsel %vm146, %v7918, 0
  %v8016 = vsel %vm146, %v7919, 0
  %v8019 = vsel %vm146, %v7920, 0
  %v8022 = vsel %vm146, %v7921, 0
  %v8025 = vsel %vm146, %v7922, 0
  %v8028 = vsel %vm146, %v7923, 0
  %v8031 = vsel %vm146, %v7924, 0
  %v8034 = vsel %vm146, %v7925, 0
  %v8037 = vsel %vm146, %v7926, 0
  %v8040 = vsel %vm146, %v7927, 0
  %v8043 = vsel %vm146, %v7928, 0
  %v8046 = vsel %vm146, %v7929, 0
  %v8049 = vsel %vm146, %v7930, 0
  %v8052 = vsel %vm146, %v7931, 0
  %v8055 = vsel %vm146, %v7932, 0
  %v8058 = vsel %vm146, %v7933, 0
  %v8061 = vsel %vm146, %v7934, 0
  %v8064 = vsel %vm146, %v7935, 0
  %v8067 = vsel %vm146, %v7936, 0
  %v8070 = vsel %vm146, %v7937, 0
  %v8073 = vsel %vm146, %v7938, 0
  %v8076 = vsel %vm146, %v7939, 0
  %v8079 = vsel %vm146, %v7940, 0
  %v8082 = vsel %vm146, %v7941, 0
  %v8085 = vsel %vm146, %v7942, 0
  %v8088 = vsel %vm146, %v7943, 0
  %v8091 = vsel %vm146, %v7944, 0
  %v8094 = vsel %vm146, %v7945, 0
  %v8097 = vsel %vm146, %v7946, 0
  %v8100 = vsel %vm146, %v7947, 0
  %v8103 = vsel %vm146, %v7948, 0
  %v8106 = vsel %vm146, %v7949, 0
  %v8109 = vsel %vm146, %v7950, 0
  %v8112 = vsel %vm146, %v7951, 0
  %v8115 = vsel %vm146, %v7952, 0
  %v8118 = vsel %vm146, %v7953, 0
  %v8121 = vsel %vm146, %v7954, 0
  %v8124 = vsel %vm146, %v7955, 0
  %v8127 = vsel %vm146, %v7956, 0
  %v8130 = vsel %vm146, %v7957, 0
  %v8133 = vsel %vm146, %v7958, 0
  %v8136 = vsel %vm146, %v7959, 0
  %v8139 = vsel %vm146, %v7960, 0
  %v8142 = vsel %vm146, %v7961, 0
  %v8145 = vsel %vm146, %v7962, 0
  %v8148 = vsel %vm146, %v7963, 0
  %v8151 = vsel %vm146, %v7964, 0
  %v8154 = vsel %vm146, %v7965, 0
  %v8157 = vsel %vm146, %v7966, 0
  %v8160 = vsel %vm146, %v7967, 0
  %v8163 = vsel %vm339, %v7969, 0
  %8165 = vmatpush.msra.mxu0 0.0
  %8166 = vmatpush.msra.mxu0 0.0
  %8167 = vmatpush.msra.mxu0 0.0
  %8168 = vmatpush.msra.mxu0 0.0
  %8169 = vmatpush.msra.mxu0 0.0
  %8170 = vmatpush.msra.mxu0 0.0
  %8171 = vmatpush.msra.mxu0 0.0
  %8172 = vmatpush.msra.mxu0 0.0
  %8173 = vmatpush.msra.mxu0 0.0
  %8174 = vmatpush.msra.mxu0 0.0
  %8175 = vmatpush.msra.mxu0 0.0
  %8176 = vmatpush.msra.mxu0 0.0
  %8177 = vmatpush.msra.mxu0 0.0
  %8178 = vmatpush.msra.mxu0 0.0
  %8179 = vmatpush.msra.mxu0 0.0
  %8180 = vmatpush.msra.mxu0 %v8163
  %8181 = vmatmul.f32.gmra.mxu0 %v7971
  %v8182 = vpop.f32.mrf.mxu0
  %v8183 = vadd.f32 0.0, %v8182
  %8184 = vmatmul.f32.gmra.mxu0 %v7974
  %v8185 = vpop.f32.mrf.mxu0
  %v8186 = vadd.f32 0.0, %v8185
  %8187 = vmatmul.f32.gmra.mxu0 %v7977
  %v8188 = vpop.f32.mrf.mxu0
  %v8189 = vadd.f32 0.0, %v8188
  %8190 = vmatmul.f32.gmra.mxu0 %v7980
  %v8191 = vpop.f32.mrf.mxu0
  %v8192 = vadd.f32 0.0, %v8191
  %8193 = vmatmul.f32.gmra.mxu0 %v7983
  %v8194 = vpop.f32.mrf.mxu0
  %v8195 = vadd.f32 0.0, %v8194
  %8196 = vmatmul.f32.gmra.mxu0 %v7986
  %v8197 = vpop.f32.mrf.mxu0
  %v8198 = vadd.f32 0.0, %v8197
  %8199 = vmatmul.f32.gmra.mxu0 %v7989
  %v8200 = vpop.f32.mrf.mxu0
  %v8201 = vadd.f32 0.0, %v8200
  %8202 = vmatmul.f32.gmra.mxu0 %v7992
  %v8203 = vpop.f32.mrf.mxu0
  %v8204 = vadd.f32 0.0, %v8203
  %8205 = vmatmul.f32.gmra.mxu0 %v7995
  %v8206 = vpop.f32.mrf.mxu0
  %v8207 = vadd.f32 0.0, %v8206
  %8208 = vmatmul.f32.gmra.mxu0 %v7998
  %v8209 = vpop.f32.mrf.mxu0
  %v8210 = vadd.f32 0.0, %v8209
  %8211 = vmatmul.f32.gmra.mxu0 %v8001
  %v8212 = vpop.f32.mrf.mxu0
  %v8213 = vadd.f32 0.0, %v8212
  %8214 = vmatmul.f32.gmra.mxu0 %v8004
  %v8215 = vpop.f32.mrf.mxu0
  %v8216 = vadd.f32 0.0, %v8215
  %8217 = vmatmul.f32.gmra.mxu0 %v8007
  %v8218 = vpop.f32.mrf.mxu0
  %v8219 = vadd.f32 0.0, %v8218
  %8220 = vmatmul.f32.gmra.mxu0 %v8010
  %v8221 = vpop.f32.mrf.mxu0
  %v8222 = vadd.f32 0.0, %v8221
  %8223 = vmatmul.f32.gmra.mxu0 %v8013
  %v8224 = vpop.f32.mrf.mxu0
  %v8225 = vadd.f32 0.0, %v8224
  %8226 = vmatmul.f32.gmra.mxu0 %v8016
  %v8227 = vpop.f32.mrf.mxu0
  %v8228 = vadd.f32 0.0, %v8227
  %8229 = vmatmul.f32.gmra.mxu0 %v8019
  %v8230 = vpop.f32.mrf.mxu0
  %v8231 = vadd.f32 0.0, %v8230
  %8232 = vmatmul.f32.gmra.mxu0 %v8022
  %v8233 = vpop.f32.mrf.mxu0
  %v8234 = vadd.f32 0.0, %v8233
  %8235 = vmatmul.f32.gmra.mxu0 %v8025
  %v8236 = vpop.f32.mrf.mxu0
  %v8237 = vadd.f32 0.0, %v8236
  %8238 = vmatmul.f32.gmra.mxu0 %v8028
  %v8239 = vpop.f32.mrf.mxu0
  %v8240 = vadd.f32 0.0, %v8239
  %8241 = vmatmul.f32.gmra.mxu0 %v8031
  %v8242 = vpop.f32.mrf.mxu0
  %v8243 = vadd.f32 0.0, %v8242
  %8244 = vmatmul.f32.gmra.mxu0 %v8034
  %v8245 = vpop.f32.mrf.mxu0
  %v8246 = vadd.f32 0.0, %v8245
  %8247 = vmatmul.f32.gmra.mxu0 %v8037
  %v8248 = vpop.f32.mrf.mxu0
  %v8249 = vadd.f32 0.0, %v8248
  %8250 = vmatmul.f32.gmra.mxu0 %v8040
  %v8251 = vpop.f32.mrf.mxu0
  %v8252 = vadd.f32 0.0, %v8251
  %8253 = vmatmul.f32.gmra.mxu0 %v8043
  %v8254 = vpop.f32.mrf.mxu0
  %v8255 = vadd.f32 0.0, %v8254
  %8256 = vmatmul.f32.gmra.mxu0 %v8046
  %v8257 = vpop.f32.mrf.mxu0
  %v8258 = vadd.f32 0.0, %v8257
  %8259 = vmatmul.f32.gmra.mxu0 %v8049
  %v8260 = vpop.f32.mrf.mxu0
  %v8261 = vadd.f32 0.0, %v8260
  %8262 = vmatmul.f32.gmra.mxu0 %v8052
  %v8263 = vpop.f32.mrf.mxu0
  %v8264 = vadd.f32 0.0, %v8263
  %8265 = vmatmul.f32.gmra.mxu0 %v8055
  %v8266 = vpop.f32.mrf.mxu0
  %v8267 = vadd.f32 0.0, %v8266
  %8268 = vmatmul.f32.gmra.mxu0 %v8058
  %v8269 = vpop.f32.mrf.mxu0
  %v8270 = vadd.f32 0.0, %v8269
  %8271 = vmatmul.f32.gmra.mxu0 %v8061
  %v8272 = vpop.f32.mrf.mxu0
  %v8273 = vadd.f32 0.0, %v8272
  %8274 = vmatmul.f32.gmra.mxu0 %v8064
  %v8275 = vpop.f32.mrf.mxu0
  %v8276 = vadd.f32 0.0, %v8275
  %8277 = vmatmul.f32.gmra.mxu0 %v8067
  %v8278 = vpop.f32.mrf.mxu0
  %v8279 = vadd.f32 0.0, %v8278
  %8280 = vmatmul.f32.gmra.mxu0 %v8070
  %v8281 = vpop.f32.mrf.mxu0
  %v8282 = vadd.f32 0.0, %v8281
  %8283 = vmatmul.f32.gmra.mxu0 %v8073
  %v8284 = vpop.f32.mrf.mxu0
  %v8285 = vadd.f32 0.0, %v8284
  %8286 = vmatmul.f32.gmra.mxu0 %v8076
  %v8287 = vpop.f32.mrf.mxu0
  %v8288 = vadd.f32 0.0, %v8287
  %8289 = vmatmul.f32.gmra.mxu0 %v8079
  %v8290 = vpop.f32.mrf.mxu0
  %v8291 = vadd.f32 0.0, %v8290
  %8292 = vmatmul.f32.gmra.mxu0 %v8082
  %v8293 = vpop.f32.mrf.mxu0
  %v8294 = vadd.f32 0.0, %v8293
  %8295 = vmatmul.f32.gmra.mxu0 %v8085
  %v8296 = vpop.f32.mrf.mxu0
  %v8297 = vadd.f32 0.0, %v8296
  %8298 = vmatmul.f32.gmra.mxu0 %v8088
  %v8299 = vpop.f32.mrf.mxu0
  %v8300 = vadd.f32 0.0, %v8299
  %8301 = vmatmul.f32.gmra.mxu0 %v8091
  %v8302 = vpop.f32.mrf.mxu0
  %v8303 = vadd.f32 0.0, %v8302
  %8304 = vmatmul.f32.gmra.mxu0 %v8094
  %v8305 = vpop.f32.mrf.mxu0
  %v8306 = vadd.f32 0.0, %v8305
  %8307 = vmatmul.f32.gmra.mxu0 %v8097
  %v8308 = vpop.f32.mrf.mxu0
  %v8309 = vadd.f32 0.0, %v8308
  %8310 = vmatmul.f32.gmra.mxu0 %v8100
  %v8311 = vpop.f32.mrf.mxu0
  %v8312 = vadd.f32 0.0, %v8311
  %8313 = vmatmul.f32.gmra.mxu0 %v8103
  %v8314 = vpop.f32.mrf.mxu0
  %v8315 = vadd.f32 0.0, %v8314
  %8316 = vmatmul.f32.gmra.mxu0 %v8106
  %v8317 = vpop.f32.mrf.mxu0
  %v8318 = vadd.f32 0.0, %v8317
  %8319 = vmatmul.f32.gmra.mxu0 %v8109
  %v8320 = vpop.f32.mrf.mxu0
  %v8321 = vadd.f32 0.0, %v8320
  %8322 = vmatmul.f32.gmra.mxu0 %v8112
  %v8323 = vpop.f32.mrf.mxu0
  %v8324 = vadd.f32 0.0, %v8323
  %8325 = vmatmul.f32.gmra.mxu0 %v8115
  %v8326 = vpop.f32.mrf.mxu0
  %v8327 = vadd.f32 0.0, %v8326
  %8328 = vmatmul.f32.gmra.mxu0 %v8118
  %v8329 = vpop.f32.mrf.mxu0
  %v8330 = vadd.f32 0.0, %v8329
  %8331 = vmatmul.f32.gmra.mxu0 %v8121
  %v8332 = vpop.f32.mrf.mxu0
  %v8333 = vadd.f32 0.0, %v8332
  %8334 = vmatmul.f32.gmra.mxu0 %v8124
  %v8335 = vpop.f32.mrf.mxu0
  %v8336 = vadd.f32 0.0, %v8335
  %8337 = vmatmul.f32.gmra.mxu0 %v8127
  %v8338 = vpop.f32.mrf.mxu0
  %v8339 = vadd.f32 0.0, %v8338
  %8340 = vmatmul.f32.gmra.mxu0 %v8130
  %v8341 = vpop.f32.mrf.mxu0
  %v8342 = vadd.f32 0.0, %v8341
  %8343 = vmatmul.f32.gmra.mxu0 %v8133
  %v8344 = vpop.f32.mrf.mxu0
  %v8345 = vadd.f32 0.0, %v8344
  %8346 = vmatmul.f32.gmra.mxu0 %v8136
  %v8347 = vpop.f32.mrf.mxu0
  %v8348 = vadd.f32 0.0, %v8347
  %8349 = vmatmul.f32.gmra.mxu0 %v8139
  %v8350 = vpop.f32.mrf.mxu0
  %v8351 = vadd.f32 0.0, %v8350
  %8352 = vmatmul.f32.gmra.mxu0 %v8142
  %v8353 = vpop.f32.mrf.mxu0
  %v8354 = vadd.f32 0.0, %v8353
  %8355 = vmatmul.f32.gmra.mxu0 %v8145
  %v8356 = vpop.f32.mrf.mxu0
  %v8357 = vadd.f32 0.0, %v8356
  %8358 = vmatmul.f32.gmra.mxu0 %v8148
  %v8359 = vpop.f32.mrf.mxu0
  %v8360 = vadd.f32 0.0, %v8359
  %8361 = vmatmul.f32.gmra.mxu0 %v8151
  %v8362 = vpop.f32.mrf.mxu0
  %v8363 = vadd.f32 0.0, %v8362
  %8364 = vmatmul.f32.gmra.mxu0 %v8154
  %v8365 = vpop.f32.mrf.mxu0
  %v8366 = vadd.f32 0.0, %v8365
  %8367 = vmatmul.f32.gmra.mxu0 %v8157
  %v8368 = vpop.f32.mrf.mxu0
  %v8369 = vadd.f32 0.0, %v8368
  %8370 = vmatmul.f32.gmra.mxu0 %v8160
  %v8371 = vpop.f32.mrf.mxu0
  %v8372 = vadd.f32 0.0, %v8371
  %8373 = vdwg.mxu0
  %v8374 = vadd.f32 %v7840, %v8183
  %v8375 = vadd.f32 %v7841, %v8186
  %v8376 = vadd.f32 %v7842, %v8189
  %v8377 = vadd.f32 %v7843, %v8192
  %v8378 = vadd.f32 %v7844, %v8195
  %v8379 = vadd.f32 %v7845, %v8198
  %v8380 = vadd.f32 %v7846, %v8201
  %v8381 = vadd.f32 %v7847, %v8204
  %v8382 = vadd.f32 %v7848, %v8207
  %v8383 = vadd.f32 %v7849, %v8210
  %v8384 = vadd.f32 %v7850, %v8213
  %v8385 = vadd.f32 %v7851, %v8216
  %v8386 = vadd.f32 %v7852, %v8219
  %v8387 = vadd.f32 %v7853, %v8222
  %v8388 = vadd.f32 %v7854, %v8225
  %v8389 = vadd.f32 %v7855, %v8228
  %v8390 = vadd.f32 %v7856, %v8231
  %v8391 = vadd.f32 %v7857, %v8234
  %v8392 = vadd.f32 %v7858, %v8237
  %v8393 = vadd.f32 %v7859, %v8240
  %v8394 = vadd.f32 %v7860, %v8243
  %v8395 = vadd.f32 %v7861, %v8246
  %v8396 = vadd.f32 %v7862, %v8249
  %v8397 = vadd.f32 %v7863, %v8252
  %v8398 = vadd.f32 %v7864, %v8255
  %v8399 = vadd.f32 %v7865, %v8258
  %v8400 = vadd.f32 %v7866, %v8261
  %v8401 = vadd.f32 %v7867, %v8264
  %v8402 = vadd.f32 %v7868, %v8267
  %v8403 = vadd.f32 %v7869, %v8270
  %v8404 = vadd.f32 %v7870, %v8273
  %v8405 = vadd.f32 %v7871, %v8276
  %v8406 = vadd.f32 %v7872, %v8279
  %v8407 = vadd.f32 %v7873, %v8282
  %v8408 = vadd.f32 %v7874, %v8285
  %v8409 = vadd.f32 %v7875, %v8288
  %v8410 = vadd.f32 %v7876, %v8291
  %v8411 = vadd.f32 %v7877, %v8294
  %v8412 = vadd.f32 %v7878, %v8297
  %v8413 = vadd.f32 %v7879, %v8300
  %v8414 = vadd.f32 %v7880, %v8303
  %v8415 = vadd.f32 %v7881, %v8306
  %v8416 = vadd.f32 %v7882, %v8309
  %v8417 = vadd.f32 %v7883, %v8312
  %v8418 = vadd.f32 %v7884, %v8315
  %v8419 = vadd.f32 %v7885, %v8318
  %v8420 = vadd.f32 %v7886, %v8321
  %v8421 = vadd.f32 %v7887, %v8324
  %v8422 = vadd.f32 %v7888, %v8327
  %v8423 = vadd.f32 %v7889, %v8330
  %v8424 = vadd.f32 %v7890, %v8333
  %v8425 = vadd.f32 %v7891, %v8336
  %v8426 = vadd.f32 %v7892, %v8339
  %v8427 = vadd.f32 %v7893, %v8342
  %v8428 = vadd.f32 %v7894, %v8345
  %v8429 = vadd.f32 %v7895, %v8348
  %v8430 = vadd.f32 %v7896, %v8351
  %v8431 = vadd.f32 %v7897, %v8354
  %v8432 = vadd.f32 %v7898, %v8357
  %v8433 = vadd.f32 %v7899, %v8360
  %v8434 = vadd.f32 %v7900, %v8363
  %v8435 = vadd.f32 %v7901, %v8366
  %v8436 = vadd.f32 %v7902, %v8369
  %v8437 = vadd.f32 %v7903, %v8372
  %v8438 = vld [vmem:[%s2] sm:$0x1]
  %v8440 = vperm.slane %v8438, 0
  %v8442 = vadd.f32 %v8374, %v8440
  %v8443 = vadd.f32 %v8375, %v8440
  %v8444 = vadd.f32 %v8376, %v8440
  %v8445 = vadd.f32 %v8377, %v8440
  %v8446 = vadd.f32 %v8378, %v8440
  %v8447 = vadd.f32 %v8379, %v8440
  %v8448 = vadd.f32 %v8380, %v8440
  %v8449 = vadd.f32 %v8381, %v8440
  %v8450 = vadd.f32 %v8382, %v8440
  %v8451 = vadd.f32 %v8383, %v8440
  %v8452 = vadd.f32 %v8384, %v8440
  %v8453 = vadd.f32 %v8385, %v8440
  %v8454 = vadd.f32 %v8386, %v8440
  %v8455 = vadd.f32 %v8387, %v8440
  %v8456 = vadd.f32 %v8388, %v8440
  %v8457 = vadd.f32 %v8389, %v8440
  %v8458 = vadd.f32 %v8390, %v8440
  %v8459 = vadd.f32 %v8391, %v8440
  %v8460 = vadd.f32 %v8392, %v8440
  %v8461 = vadd.f32 %v8393, %v8440
  %v8462 = vadd.f32 %v8394, %v8440
  %v8463 = vadd.f32 %v8395, %v8440
  %v8464 = vadd.f32 %v8396, %v8440
  %v8465 = vadd.f32 %v8397, %v8440
  %v8466 = vadd.f32 %v8398, %v8440
  %v8467 = vadd.f32 %v8399, %v8440
  %v8468 = vadd.f32 %v8400, %v8440
  %v8469 = vadd.f32 %v8401, %v8440
  %v8470 = vadd.f32 %v8402, %v8440
  %v8471 = vadd.f32 %v8403, %v8440
  %v8472 = vadd.f32 %v8404, %v8440
  %v8473 = vadd.f32 %v8405, %v8440
  %v8474 = vadd.f32 %v8406, %v8440
  %v8475 = vadd.f32 %v8407, %v8440
  %v8476 = vadd.f32 %v8408, %v8440
  %v8477 = vadd.f32 %v8409, %v8440
  %v8478 = vadd.f32 %v8410, %v8440
  %v8479 = vadd.f32 %v8411, %v8440
  %v8480 = vadd.f32 %v8412, %v8440
  %v8481 = vadd.f32 %v8413, %v8440
  %v8482 = vadd.f32 %v8414, %v8440
  %v8483 = vadd.f32 %v8415, %v8440
  %v8484 = vadd.f32 %v8416, %v8440
  %v8485 = vadd.f32 %v8417, %v8440
  %v8486 = vadd.f32 %v8418, %v8440
  %v8487 = vadd.f32 %v8419, %v8440
  %v8488 = vadd.f32 %v8420, %v8440
  %v8489 = vadd.f32 %v8421, %v8440
  %v8490 = vadd.f32 %v8422, %v8440
  %v8491 = vadd.f32 %v8423, %v8440
  %v8492 = vadd.f32 %v8424, %v8440
  %v8493 = vadd.f32 %v8425, %v8440
  %v8494 = vadd.f32 %v8426, %v8440
  %v8495 = vadd.f32 %v8427, %v8440
  %v8496 = vadd.f32 %v8428, %v8440
  %v8497 = vadd.f32 %v8429, %v8440
  %v8498 = vadd.f32 %v8430, %v8440
  %v8499 = vadd.f32 %v8431, %v8440
  %v8500 = vadd.f32 %v8432, %v8440
  %v8501 = vadd.f32 %v8433, %v8440
  %v8502 = vadd.f32 %v8434, %v8440
  %v8503 = vadd.f32 %v8435, %v8440
  %v8504 = vadd.f32 %v8436, %v8440
  %v8505 = vadd.f32 %v8437, %v8440
  %8506 = vadd.xlane.f32.xlu0 %v8442
  %v8507 = vpop.xlane.xlu0 %8506
  %8508 = vadd.xlane.f32.xlu0 %v8443
  %v8509 = vpop.xlane.xlu0 %8508
  %8510 = vadd.xlane.f32.xlu0 %v8444
  %v8511 = vpop.xlane.xlu0 %8510
  %8512 = vadd.xlane.f32.xlu0 %v8445
  %v8513 = vpop.xlane.xlu0 %8512
  %8514 = vadd.xlane.f32.xlu0 %v8446
  %v8515 = vpop.xlane.xlu0 %8514
  %8516 = vadd.xlane.f32.xlu0 %v8447
  %v8517 = vpop.xlane.xlu0 %8516
  %8518 = vadd.xlane.f32.xlu0 %v8448
  %v8519 = vpop.xlane.xlu0 %8518
  %8520 = vadd.xlane.f32.xlu0 %v8449
  %v8521 = vpop.xlane.xlu0 %8520
  %8522 = vadd.xlane.f32.xlu0 %v8450
  %v8523 = vpop.xlane.xlu0 %8522
  %8524 = vadd.xlane.f32.xlu0 %v8451
  %v8525 = vpop.xlane.xlu0 %8524
  %8526 = vadd.xlane.f32.xlu0 %v8452
  %v8527 = vpop.xlane.xlu0 %8526
  %8528 = vadd.xlane.f32.xlu0 %v8453
  %v8529 = vpop.xlane.xlu0 %8528
  %8530 = vadd.xlane.f32.xlu0 %v8454
  %v8531 = vpop.xlane.xlu0 %8530
  %8532 = vadd.xlane.f32.xlu0 %v8455
  %v8533 = vpop.xlane.xlu0 %8532
  %8534 = vadd.xlane.f32.xlu0 %v8456
  %v8535 = vpop.xlane.xlu0 %8534
  %8536 = vadd.xlane.f32.xlu0 %v8457
  %v8537 = vpop.xlane.xlu0 %8536
  %8538 = vadd.xlane.f32.xlu0 %v8458
  %v8539 = vpop.xlane.xlu0 %8538
  %8540 = vadd.xlane.f32.xlu0 %v8459
  %v8541 = vpop.xlane.xlu0 %8540
  %8542 = vadd.xlane.f32.xlu0 %v8460
  %v8543 = vpop.xlane.xlu0 %8542
  %8544 = vadd.xlane.f32.xlu0 %v8461
  %v8545 = vpop.xlane.xlu0 %8544
  %8546 = vadd.xlane.f32.xlu0 %v8462
  %v8547 = vpop.xlane.xlu0 %8546
  %8548 = vadd.xlane.f32.xlu0 %v8463
  %v8549 = vpop.xlane.xlu0 %8548
  %8550 = vadd.xlane.f32.xlu0 %v8464
  %v8551 = vpop.xlane.xlu0 %8550
  %8552 = vadd.xlane.f32.xlu0 %v8465
  %v8553 = vpop.xlane.xlu0 %8552
  %8554 = vadd.xlane.f32.xlu0 %v8466
  %v8555 = vpop.xlane.xlu0 %8554
  %8556 = vadd.xlane.f32.xlu0 %v8467
  %v8557 = vpop.xlane.xlu0 %8556
  %8558 = vadd.xlane.f32.xlu0 %v8468
  %v8559 = vpop.xlane.xlu0 %8558
  %8560 = vadd.xlane.f32.xlu0 %v8469
  %v8561 = vpop.xlane.xlu0 %8560
  %8562 = vadd.xlane.f32.xlu0 %v8470
  %v8563 = vpop.xlane.xlu0 %8562
  %8564 = vadd.xlane.f32.xlu0 %v8471
  %v8565 = vpop.xlane.xlu0 %8564
  %8566 = vadd.xlane.f32.xlu0 %v8472
  %v8567 = vpop.xlane.xlu0 %8566
  %8568 = vadd.xlane.f32.xlu0 %v8473
  %v8569 = vpop.xlane.xlu0 %8568
  %8570 = vadd.xlane.f32.xlu0 %v8474
  %v8571 = vpop.xlane.xlu0 %8570
  %8572 = vadd.xlane.f32.xlu0 %v8475
  %v8573 = vpop.xlane.xlu0 %8572
  %8574 = vadd.xlane.f32.xlu0 %v8476
  %v8575 = vpop.xlane.xlu0 %8574
  %8576 = vadd.xlane.f32.xlu0 %v8477
  %v8577 = vpop.xlane.xlu0 %8576
  %8578 = vadd.xlane.f32.xlu0 %v8478
  %v8579 = vpop.xlane.xlu0 %8578
  %8580 = vadd.xlane.f32.xlu0 %v8479
  %v8581 = vpop.xlane.xlu0 %8580
  %8582 = vadd.xlane.f32.xlu0 %v8480
  %v8583 = vpop.xlane.xlu0 %8582
  %8584 = vadd.xlane.f32.xlu0 %v8481
  %v8585 = vpop.xlane.xlu0 %8584
  %8586 = vadd.xlane.f32.xlu0 %v8482
  %v8587 = vpop.xlane.xlu0 %8586
  %8588 = vadd.xlane.f32.xlu0 %v8483
  %v8589 = vpop.xlane.xlu0 %8588
  %8590 = vadd.xlane.f32.xlu0 %v8484
  %v8591 = vpop.xlane.xlu0 %8590
  %8592 = vadd.xlane.f32.xlu0 %v8485
  %v8593 = vpop.xlane.xlu0 %8592
  %8594 = vadd.xlane.f32.xlu0 %v8486
  %v8595 = vpop.xlane.xlu0 %8594
  %8596 = vadd.xlane.f32.xlu0 %v8487
  %v8597 = vpop.xlane.xlu0 %8596
  %8598 = vadd.xlane.f32.xlu0 %v8488
  %v8599 = vpop.xlane.xlu0 %8598
  %8600 = vadd.xlane.f32.xlu0 %v8489
  %v8601 = vpop.xlane.xlu0 %8600
  %8602 = vadd.xlane.f32.xlu0 %v8490
  %v8603 = vpop.xlane.xlu0 %8602
  %8604 = vadd.xlane.f32.xlu0 %v8491
  %v8605 = vpop.xlane.xlu0 %8604
  %8606 = vadd.xlane.f32.xlu0 %v8492
  %v8607 = vpop.xlane.xlu0 %8606
  %8608 = vadd.xlane.f32.xlu0 %v8493
  %v8609 = vpop.xlane.xlu0 %8608
  %8610 = vadd.xlane.f32.xlu0 %v8494
  %v8611 = vpop.xlane.xlu0 %8610
  %8612 = vadd.xlane.f32.xlu0 %v8495
  %v8613 = vpop.xlane.xlu0 %8612
  %8614 = vadd.xlane.f32.xlu0 %v8496
  %v8615 = vpop.xlane.xlu0 %8614
  %8616 = vadd.xlane.f32.xlu0 %v8497
  %v8617 = vpop.xlane.xlu0 %8616
  %8618 = vadd.xlane.f32.xlu0 %v8498
  %v8619 = vpop.xlane.xlu0 %8618
  %8620 = vadd.xlane.f32.xlu0 %v8499
  %v8621 = vpop.xlane.xlu0 %8620
  %8622 = vadd.xlane.f32.xlu0 %v8500
  %v8623 = vpop.xlane.xlu0 %8622
  %8624 = vadd.xlane.f32.xlu0 %v8501
  %v8625 = vpop.xlane.xlu0 %8624
  %8626 = vadd.xlane.f32.xlu0 %v8502
  %v8627 = vpop.xlane.xlu0 %8626
  %8628 = vadd.xlane.f32.xlu0 %v8503
  %v8629 = vpop.xlane.xlu0 %8628
  %8630 = vadd.xlane.f32.xlu0 %v8504
  %v8631 = vpop.xlane.xlu0 %8630
  %8632 = vadd.xlane.f32.xlu0 %v8505
  %v8633 = vpop.xlane.xlu0 %8632
  %v8634 = vadd.f32 %v8507, %v8509
  %v8635 = vadd.f32 %v8634, %v8511
  %v8636 = vadd.f32 %v8635, %v8513
  %v8637 = vadd.f32 %v8636, %v8515
  %v8638 = vadd.f32 %v8637, %v8517
  %v8639 = vadd.f32 %v8638, %v8519
  %v8640 = vadd.f32 %v8639, %v8521
  %v8641 = vadd.f32 %v8640, %v8523
  %v8642 = vadd.f32 %v8641, %v8525
  %v8643 = vadd.f32 %v8642, %v8527
  %v8644 = vadd.f32 %v8643, %v8529
  %v8645 = vadd.f32 %v8644, %v8531
  %v8646 = vadd.f32 %v8645, %v8533
  %v8647 = vadd.f32 %v8646, %v8535
  %v8648 = vadd.f32 %v8647, %v8537
  %v8649 = vadd.f32 %v8648, %v8539
  %v8650 = vadd.f32 %v8649, %v8541
  %v8651 = vadd.f32 %v8650, %v8543
  %v8652 = vadd.f32 %v8651, %v8545
  %v8653 = vadd.f32 %v8652, %v8547
  %v8654 = vadd.f32 %v8653, %v8549
  %v8655 = vadd.f32 %v8654, %v8551
  %v8656 = vadd.f32 %v8655, %v8553
  %v8657 = vadd.f32 %v8656, %v8555
  %v8658 = vadd.f32 %v8657, %v8557
  %v8659 = vadd.f32 %v8658, %v8559
  %v8660 = vadd.f32 %v8659, %v8561
  %v8661 = vadd.f32 %v8660, %v8563
  %v8662 = vadd.f32 %v8661, %v8565
  %v8663 = vadd.f32 %v8662, %v8567
  %v8664 = vadd.f32 %v8663, %v8569
  %v8665 = vrot.slane %v8664, 4
  %v8666 = vadd.f32 %v8664, %v8665
  %v8667 = vrot.slane %v8666, 2
  %v8668 = vadd.f32 %v8666, %v8667
  %v8669 = vrot.slane %v8668, 1
  %v8670 = vadd.f32 %v8668, %v8669
  %v8671 = vadd.f32 %v8571, %v8573
  %v8672 = vadd.f32 %v8671, %v8575
  %v8673 = vadd.f32 %v8672, %v8577
  %v8674 = vadd.f32 %v8673, %v8579
  %v8675 = vadd.f32 %v8674, %v8581
  %v8676 = vadd.f32 %v8675, %v8583
  %v8677 = vadd.f32 %v8676, %v8585
  %v8678 = vadd.f32 %v8677, %v8587
  %v8679 = vadd.f32 %v8678, %v8589
  %v8680 = vadd.f32 %v8679, %v8591
  %v8681 = vadd.f32 %v8680, %v8593
  %v8682 = vadd.f32 %v8681, %v8595
  %v8683 = vadd.f32 %v8682, %v8597
  %v8684 = vadd.f32 %v8683, %v8599
  %v8685 = vadd.f32 %v8684, %v8601
  %v8686 = vadd.f32 %v8685, %v8603
  %v8687 = vadd.f32 %v8686, %v8605
  %v8688 = vadd.f32 %v8687, %v8607
  %v8689 = vadd.f32 %v8688, %v8609
  %v8690 = vadd.f32 %v8689, %v8611
  %v8691 = vadd.f32 %v8690, %v8613
  %v8692 = vadd.f32 %v8691, %v8615
  %v8693 = vadd.f32 %v8692, %v8617
  %v8694 = vadd.f32 %v8693, %v8619
  %v8695 = vadd.f32 %v8694, %v8621
  %v8696 = vadd.f32 %v8695, %v8623
  %v8697 = vadd.f32 %v8696, %v8625
  %v8698 = vadd.f32 %v8697, %v8627
  %v8699 = vadd.f32 %v8698, %v8629
  %v8700 = vadd.f32 %v8699, %v8631
  %v8701 = vadd.f32 %v8700, %v8633
  %v8702 = vrot.slane %v8701, 4
  %v8703 = vadd.f32 %v8701, %v8702
  %v8704 = vrot.slane %v8703, 2
  %v8705 = vadd.f32 %v8703, %v8704
  %v8706 = vrot.slane %v8705, 1
  %v8707 = vadd.f32 %v8705, %v8706
  %v8708 = vmul.f32 %v8442, %v8442
  %v8709 = vmul.f32 %v8443, %v8443
  %v8710 = vmul.f32 %v8444, %v8444
  %v8711 = vmul.f32 %v8445, %v8445
  %v8712 = vmul.f32 %v8446, %v8446
  %v8713 = vmul.f32 %v8447, %v8447
  %v8714 = vmul.f32 %v8448, %v8448
  %v8715 = vmul.f32 %v8449, %v8449
  %v8716 = vmul.f32 %v8450, %v8450
  %v8717 = vmul.f32 %v8451, %v8451
  %v8718 = vmul.f32 %v8452, %v8452
  %v8719 = vmul.f32 %v8453, %v8453
  %v8720 = vmul.f32 %v8454, %v8454
  %v8721 = vmul.f32 %v8455, %v8455
  %v8722 = vmul.f32 %v8456, %v8456
  %v8723 = vmul.f32 %v8457, %v8457
  %v8724 = vmul.f32 %v8458, %v8458
  %v8725 = vmul.f32 %v8459, %v8459
  %v8726 = vmul.f32 %v8460, %v8460
  %v8727 = vmul.f32 %v8461, %v8461
  %v8728 = vmul.f32 %v8462, %v8462
  %v8729 = vmul.f32 %v8463, %v8463
  %v8730 = vmul.f32 %v8464, %v8464
  %v8731 = vmul.f32 %v8465, %v8465
  %v8732 = vmul.f32 %v8466, %v8466
  %v8733 = vmul.f32 %v8467, %v8467
  %v8734 = vmul.f32 %v8468, %v8468
  %v8735 = vmul.f32 %v8469, %v8469
  %v8736 = vmul.f32 %v8470, %v8470
  %v8737 = vmul.f32 %v8471, %v8471
  %v8738 = vmul.f32 %v8472, %v8472
  %v8739 = vmul.f32 %v8473, %v8473
  %v8740 = vmul.f32 %v8474, %v8474
  %v8741 = vmul.f32 %v8475, %v8475
  %v8742 = vmul.f32 %v8476, %v8476
  %v8743 = vmul.f32 %v8477, %v8477
  %v8744 = vmul.f32 %v8478, %v8478
  %v8745 = vmul.f32 %v8479, %v8479
  %v8746 = vmul.f32 %v8480, %v8480
  %v8747 = vmul.f32 %v8481, %v8481
  %v8748 = vmul.f32 %v8482, %v8482
  %v8749 = vmul.f32 %v8483, %v8483
  %v8750 = vmul.f32 %v8484, %v8484
  %v8751 = vmul.f32 %v8485, %v8485
  %v8752 = vmul.f32 %v8486, %v8486
  %v8753 = vmul.f32 %v8487, %v8487
  %v8754 = vmul.f32 %v8488, %v8488
  %v8755 = vmul.f32 %v8489, %v8489
  %v8756 = vmul.f32 %v8490, %v8490
  %v8757 = vmul.f32 %v8491, %v8491
  %v8758 = vmul.f32 %v8492, %v8492
  %v8759 = vmul.f32 %v8493, %v8493
  %v8760 = vmul.f32 %v8494, %v8494
  %v8761 = vmul.f32 %v8495, %v8495
  %v8762 = vmul.f32 %v8496, %v8496
  %v8763 = vmul.f32 %v8497, %v8497
  %v8764 = vmul.f32 %v8498, %v8498
  %v8765 = vmul.f32 %v8499, %v8499
  %v8766 = vmul.f32 %v8500, %v8500
  %v8767 = vmul.f32 %v8501, %v8501
  %v8768 = vmul.f32 %v8502, %v8502
  %v8769 = vmul.f32 %v8503, %v8503
  %v8770 = vmul.f32 %v8504, %v8504
  %v8771 = vmul.f32 %v8505, %v8505
  %8772 = vadd.xlane.f32.xlu0 %v8708
  %v8773 = vpop.xlane.xlu0 %8772
  %8774 = vadd.xlane.f32.xlu0 %v8709
  %v8775 = vpop.xlane.xlu0 %8774
  %8776 = vadd.xlane.f32.xlu0 %v8710
  %v8777 = vpop.xlane.xlu0 %8776
  %8778 = vadd.xlane.f32.xlu0 %v8711
  %v8779 = vpop.xlane.xlu0 %8778
  %8780 = vadd.xlane.f32.xlu0 %v8712
  %v8781 = vpop.xlane.xlu0 %8780
  %8782 = vadd.xlane.f32.xlu0 %v8713
  %v8783 = vpop.xlane.xlu0 %8782
  %8784 = vadd.xlane.f32.xlu0 %v8714
  %v8785 = vpop.xlane.xlu0 %8784
  %8786 = vadd.xlane.f32.xlu0 %v8715
  %v8787 = vpop.xlane.xlu0 %8786
  %8788 = vadd.xlane.f32.xlu0 %v8716
  %v8789 = vpop.xlane.xlu0 %8788
  %8790 = vadd.xlane.f32.xlu0 %v8717
  %v8791 = vpop.xlane.xlu0 %8790
  %8792 = vadd.xlane.f32.xlu0 %v8718
  %v8793 = vpop.xlane.xlu0 %8792
  %8794 = vadd.xlane.f32.xlu0 %v8719
  %v8795 = vpop.xlane.xlu0 %8794
  %8796 = vadd.xlane.f32.xlu0 %v8720
  %v8797 = vpop.xlane.xlu0 %8796
  %8798 = vadd.xlane.f32.xlu0 %v8721
  %v8799 = vpop.xlane.xlu0 %8798
  %8800 = vadd.xlane.f32.xlu0 %v8722
  %v8801 = vpop.xlane.xlu0 %8800
  %8802 = vadd.xlane.f32.xlu0 %v8723
  %v8803 = vpop.xlane.xlu0 %8802
  %8804 = vadd.xlane.f32.xlu0 %v8724
  %v8805 = vpop.xlane.xlu0 %8804
  %8806 = vadd.xlane.f32.xlu0 %v8725
  %v8807 = vpop.xlane.xlu0 %8806
  %8808 = vadd.xlane.f32.xlu0 %v8726
  %v8809 = vpop.xlane.xlu0 %8808
  %8810 = vadd.xlane.f32.xlu0 %v8727
  %v8811 = vpop.xlane.xlu0 %8810
  %8812 = vadd.xlane.f32.xlu0 %v8728
  %v8813 = vpop.xlane.xlu0 %8812
  %8814 = vadd.xlane.f32.xlu0 %v8729
  %v8815 = vpop.xlane.xlu0 %8814
  %8816 = vadd.xlane.f32.xlu0 %v8730
  %v8817 = vpop.xlane.xlu0 %8816
  %8818 = vadd.xlane.f32.xlu0 %v8731
  %v8819 = vpop.xlane.xlu0 %8818
  %8820 = vadd.xlane.f32.xlu0 %v8732
  %v8821 = vpop.xlane.xlu0 %8820
  %8822 = vadd.xlane.f32.xlu0 %v8733
  %v8823 = vpop.xlane.xlu0 %8822
  %8824 = vadd.xlane.f32.xlu0 %v8734
  %v8825 = vpop.xlane.xlu0 %8824
  %8826 = vadd.xlane.f32.xlu0 %v8735
  %v8827 = vpop.xlane.xlu0 %8826
  %8828 = vadd.xlane.f32.xlu0 %v8736
  %v8829 = vpop.xlane.xlu0 %8828
  %8830 = vadd.xlane.f32.xlu0 %v8737
  %v8831 = vpop.xlane.xlu0 %8830
  %8832 = vadd.xlane.f32.xlu0 %v8738
  %v8833 = vpop.xlane.xlu0 %8832
  %8834 = vadd.xlane.f32.xlu0 %v8739
  %v8835 = vpop.xlane.xlu0 %8834
  %8836 = vadd.xlane.f32.xlu0 %v8740
  %v8837 = vpop.xlane.xlu0 %8836
  %8838 = vadd.xlane.f32.xlu0 %v8741
  %v8839 = vpop.xlane.xlu0 %8838
  %8840 = vadd.xlane.f32.xlu0 %v8742
  %v8841 = vpop.xlane.xlu0 %8840
  %8842 = vadd.xlane.f32.xlu0 %v8743
  %v8843 = vpop.xlane.xlu0 %8842
  %8844 = vadd.xlane.f32.xlu0 %v8744
  %v8845 = vpop.xlane.xlu0 %8844
  %8846 = vadd.xlane.f32.xlu0 %v8745
  %v8847 = vpop.xlane.xlu0 %8846
  %8848 = vadd.xlane.f32.xlu0 %v8746
  %v8849 = vpop.xlane.xlu0 %8848
  %8850 = vadd.xlane.f32.xlu0 %v8747
  %v8851 = vpop.xlane.xlu0 %8850
  %8852 = vadd.xlane.f32.xlu0 %v8748
  %v8853 = vpop.xlane.xlu0 %8852
  %8854 = vadd.xlane.f32.xlu0 %v8749
  %v8855 = vpop.xlane.xlu0 %8854
  %8856 = vadd.xlane.f32.xlu0 %v8750
  %v8857 = vpop.xlane.xlu0 %8856
  %8858 = vadd.xlane.f32.xlu0 %v8751
  %v8859 = vpop.xlane.xlu0 %8858
  %8860 = vadd.xlane.f32.xlu0 %v8752
  %v8861 = vpop.xlane.xlu0 %8860
  %8862 = vadd.xlane.f32.xlu0 %v8753
  %v8863 = vpop.xlane.xlu0 %8862
  %8864 = vadd.xlane.f32.xlu0 %v8754
  %v8865 = vpop.xlane.xlu0 %8864
  %8866 = vadd.xlane.f32.xlu0 %v8755
  %v8867 = vpop.xlane.xlu0 %8866
  %8868 = vadd.xlane.f32.xlu0 %v8756
  %v8869 = vpop.xlane.xlu0 %8868
  %8870 = vadd.xlane.f32.xlu0 %v8757
  %v8871 = vpop.xlane.xlu0 %8870
  %8872 = vadd.xlane.f32.xlu0 %v8758
  %v8873 = vpop.xlane.xlu0 %8872
  %8874 = vadd.xlane.f32.xlu0 %v8759
  %v8875 = vpop.xlane.xlu0 %8874
  %8876 = vadd.xlane.f32.xlu0 %v8760
  %v8877 = vpop.xlane.xlu0 %8876
  %8878 = vadd.xlane.f32.xlu0 %v8761
  %v8879 = vpop.xlane.xlu0 %8878
  %8880 = vadd.xlane.f32.xlu0 %v8762
  %v8881 = vpop.xlane.xlu0 %8880
  %8882 = vadd.xlane.f32.xlu0 %v8763
  %v8883 = vpop.xlane.xlu0 %8882
  %8884 = vadd.xlane.f32.xlu0 %v8764
  %v8885 = vpop.xlane.xlu0 %8884
  %8886 = vadd.xlane.f32.xlu0 %v8765
  %v8887 = vpop.xlane.xlu0 %8886
  %8888 = vadd.xlane.f32.xlu0 %v8766
  %v8889 = vpop.xlane.xlu0 %8888
  %8890 = vadd.xlane.f32.xlu0 %v8767
  %v8891 = vpop.xlane.xlu0 %8890
  %8892 = vadd.xlane.f32.xlu0 %v8768
  %v8893 = vpop.xlane.xlu0 %8892
  %8894 = vadd.xlane.f32.xlu0 %v8769
  %v8895 = vpop.xlane.xlu0 %8894
  %8896 = vadd.xlane.f32.xlu0 %v8770
  %v8897 = vpop.xlane.xlu0 %8896
  %8898 = vadd.xlane.f32.xlu0 %v8771
  %v8899 = vpop.xlane.xlu0 %8898
  %v8900 = vadd.f32 %v8773, %v8775
  %v8901 = vadd.f32 %v8900, %v8777
  %v8902 = vadd.f32 %v8901, %v8779
  %v8903 = vadd.f32 %v8902, %v8781
  %v8904 = vadd.f32 %v8903, %v8783
  %v8905 = vadd.f32 %v8904, %v8785
  %v8906 = vadd.f32 %v8905, %v8787
  %v8907 = vadd.f32 %v8906, %v8789
  %v8908 = vadd.f32 %v8907, %v8791
  %v8909 = vadd.f32 %v8908, %v8793
  %v8910 = vadd.f32 %v8909, %v8795
  %v8911 = vadd.f32 %v8910, %v8797
  %v8912 = vadd.f32 %v8911, %v8799
  %v8913 = vadd.f32 %v8912, %v8801
  %v8914 = vadd.f32 %v8913, %v8803
  %v8915 = vadd.f32 %v8914, %v8805
  %v8916 = vadd.f32 %v8915, %v8807
  %v8917 = vadd.f32 %v8916, %v8809
  %v8918 = vadd.f32 %v8917, %v8811
  %v8919 = vadd.f32 %v8918, %v8813
  %v8920 = vadd.f32 %v8919, %v8815
  %v8921 = vadd.f32 %v8920, %v8817
  %v8922 = vadd.f32 %v8921, %v8819
  %v8923 = vadd.f32 %v8922, %v8821
  %v8924 = vadd.f32 %v8923, %v8823
  %v8925 = vadd.f32 %v8924, %v8825
  %v8926 = vadd.f32 %v8925, %v8827
  %v8927 = vadd.f32 %v8926, %v8829
  %v8928 = vadd.f32 %v8927, %v8831
  %v8929 = vadd.f32 %v8928, %v8833
  %v8930 = vadd.f32 %v8929, %v8835
  %v8931 = vrot.slane %v8930, 4
  %v8932 = vadd.f32 %v8930, %v8931
  %v8933 = vrot.slane %v8932, 2
  %v8934 = vadd.f32 %v8932, %v8933
  %v8935 = vrot.slane %v8934, 1
  %v8936 = vadd.f32 %v8934, %v8935
  %v8937 = vadd.f32 %v8837, %v8839
  %v8938 = vadd.f32 %v8937, %v8841
  %v8939 = vadd.f32 %v8938, %v8843
  %v8940 = vadd.f32 %v8939, %v8845
  %v8941 = vadd.f32 %v8940, %v8847
  %v8942 = vadd.f32 %v8941, %v8849
  %v8943 = vadd.f32 %v8942, %v8851
  %v8944 = vadd.f32 %v8943, %v8853
  %v8945 = vadd.f32 %v8944, %v8855
  %v8946 = vadd.f32 %v8945, %v8857
  %v8947 = vadd.f32 %v8946, %v8859
  %v8948 = vadd.f32 %v8947, %v8861
  %v8949 = vadd.f32 %v8948, %v8863
  %v8950 = vadd.f32 %v8949, %v8865
  %v8951 = vadd.f32 %v8950, %v8867
  %v8952 = vadd.f32 %v8951, %v8869
  %v8953 = vadd.f32 %v8952, %v8871
  %v8954 = vadd.f32 %v8953, %v8873
  %v8955 = vadd.f32 %v8954, %v8875
  %v8956 = vadd.f32 %v8955, %v8877
  %v8957 = vadd.f32 %v8956, %v8879
  %v8958 = vadd.f32 %v8957, %v8881
  %v8959 = vadd.f32 %v8958, %v8883
  %v8960 = vadd.f32 %v8959, %v8885
  %v8961 = vadd.f32 %v8960, %v8887
  %v8962 = vadd.f32 %v8961, %v8889
  %v8963 = vadd.f32 %v8962, %v8891
  %v8964 = vadd.f32 %v8963, %v8893
  %v8965 = vadd.f32 %v8964, %v8895
  %v8966 = vadd.f32 %v8965, %v8897
  %v8967 = vadd.f32 %v8966, %v8899
  %v8968 = vrot.slane %v8967, 4
  %v8969 = vadd.f32 %v8967, %v8968
  %v8970 = vrot.slane %v8969, 2
  %v8971 = vadd.f32 %v8969, %v8970
  %v8972 = vrot.slane %v8971, 1
  %v8973 = vadd.f32 %v8971, %v8972
  %v8974 = vmul.f32 %v8670, 0.00048828125
  %v8975 = vmul.f32 %v8707, 0.00048828125
  %v8976 = vmul.f32 %v8936, 0.00048828125
  %v8977 = vmul.f32 %v8973, 0.00048828125
  %v8978 = vmul.f32 %v8974, %v8974
  %v8979 = vmul.f32 %v8975, %v8975
  %v8980 = vsub.f32 %v8976, %v8978
  %v8981 = vsub.f32 %v8977, %v8979
  %v8982 = vmax.f32 %v8980, 0.0
  %v8983 = vmax.f32 %v8981, 0.0
  %v8984 = vsub.f32 %v8442, %v8974
  %v8985 = vsub.f32 %v8443, %v8974
  %v8986 = vsub.f32 %v8444, %v8974
  %v8987 = vsub.f32 %v8445, %v8974
  %v8988 = vsub.f32 %v8446, %v8974
  %v8989 = vsub.f32 %v8447, %v8974
  %v8990 = vsub.f32 %v8448, %v8974
  %v8991 = vsub.f32 %v8449, %v8974
  %v8992 = vsub.f32 %v8450, %v8974
  %v8993 = vsub.f32 %v8451, %v8974
  %v8994 = vsub.f32 %v8452, %v8974
  %v8995 = vsub.f32 %v8453, %v8974
  %v8996 = vsub.f32 %v8454, %v8974
  %v8997 = vsub.f32 %v8455, %v8974
  %v8998 = vsub.f32 %v8456, %v8974
  %v8999 = vsub.f32 %v8457, %v8974
  %v9000 = vsub.f32 %v8458, %v8974
  %v9001 = vsub.f32 %v8459, %v8974
  %v9002 = vsub.f32 %v8460, %v8974
  %v9003 = vsub.f32 %v8461, %v8974
  %v9004 = vsub.f32 %v8462, %v8974
  %v9005 = vsub.f32 %v8463, %v8974
  %v9006 = vsub.f32 %v8464, %v8974
  %v9007 = vsub.f32 %v8465, %v8974
  %v9008 = vsub.f32 %v8466, %v8974
  %v9009 = vsub.f32 %v8467, %v8974
  %v9010 = vsub.f32 %v8468, %v8974
  %v9011 = vsub.f32 %v8469, %v8974
  %v9012 = vsub.f32 %v8470, %v8974
  %v9013 = vsub.f32 %v8471, %v8974
  %v9014 = vsub.f32 %v8472, %v8974
  %v9015 = vsub.f32 %v8473, %v8974
  %v9016 = vsub.f32 %v8474, %v8975
  %v9017 = vsub.f32 %v8475, %v8975
  %v9018 = vsub.f32 %v8476, %v8975
  %v9019 = vsub.f32 %v8477, %v8975
  %v9020 = vsub.f32 %v8478, %v8975
  %v9021 = vsub.f32 %v8479, %v8975
  %v9022 = vsub.f32 %v8480, %v8975
  %v9023 = vsub.f32 %v8481, %v8975
  %v9024 = vsub.f32 %v8482, %v8975
  %v9025 = vsub.f32 %v8483, %v8975
  %v9026 = vsub.f32 %v8484, %v8975
  %v9027 = vsub.f32 %v8485, %v8975
  %v9028 = vsub.f32 %v8486, %v8975
  %v9029 = vsub.f32 %v8487, %v8975
  %v9030 = vsub.f32 %v8488, %v8975
  %v9031 = vsub.f32 %v8489, %v8975
  %v9032 = vsub.f32 %v8490, %v8975
  %v9033 = vsub.f32 %v8491, %v8975
  %v9034 = vsub.f32 %v8492, %v8975
  %v9035 = vsub.f32 %v8493, %v8975
  %v9036 = vsub.f32 %v8494, %v8975
  %v9037 = vsub.f32 %v8495, %v8975
  %v9038 = vsub.f32 %v8496, %v8975
  %v9039 = vsub.f32 %v8497, %v8975
  %v9040 = vsub.f32 %v8498, %v8975
  %v9041 = vsub.f32 %v8499, %v8975
  %v9042 = vsub.f32 %v8500, %v8975
  %v9043 = vsub.f32 %v8501, %v8975
  %v9044 = vsub.f32 %v8502, %v8975
  %v9045 = vsub.f32 %v8503, %v8975
  %v9046 = vsub.f32 %v8504, %v8975
  %v9047 = vsub.f32 %v8505, %v8975
  %v9048 = vadd.f32 %v8982, 1e-05
  %v9049 = vadd.f32 %v8983, 1e-05
  %v9050 = vrsqrt.pop %v9048
  %v9051 = vmul.f32 %v9050, %v9048
  %v9052 = vmul.f32 %v9051, %v9050
  %v9053 = vmul.f32 0.5, %v9052
  %v9054 = vsub.f32 1.5, %v9053
  %v9055 = vmul.f32 %v9050, %v9054
  %vm9056 = vweird.f32 %v9048
  %vm9057 = vweird.f32 %v9050
  %vm9058 = vmor %vm9056, %vm9057
  %v9059 = vsel %vm9058, %v9050, %v9055
  %v9060 = vrsqrt.pop %v9049
  %v9061 = vmul.f32 %v9060, %v9049
  %v9062 = vmul.f32 %v9061, %v9060
  %v9063 = vmul.f32 0.5, %v9062
  %v9064 = vsub.f32 1.5, %v9063
  %v9065 = vmul.f32 %v9060, %v9064
  %vm9066 = vweird.f32 %v9049
  %vm9067 = vweird.f32 %v9060
  %vm9068 = vmor %vm9066, %vm9067
  %v9069 = vsel %vm9068, %v9060, %v9065
  %v9070 = vmul.f32 %v8984, %v9059
  %v9071 = vmul.f32 %v8985, %v9059
  %v9072 = vmul.f32 %v8986, %v9059
  %v9073 = vmul.f32 %v8987, %v9059
  %v9074 = vmul.f32 %v8988, %v9059
  %v9075 = vmul.f32 %v8989, %v9059
  %v9076 = vmul.f32 %v8990, %v9059
  %v9077 = vmul.f32 %v8991, %v9059
  %v9078 = vmul.f32 %v8992, %v9059
  %v9079 = vmul.f32 %v8993, %v9059
  %v9080 = vmul.f32 %v8994, %v9059
  %v9081 = vmul.f32 %v8995, %v9059
  %v9082 = vmul.f32 %v8996, %v9059
  %v9083 = vmul.f32 %v8997, %v9059
  %v9084 = vmul.f32 %v8998, %v9059
  %v9085 = vmul.f32 %v8999, %v9059
  %v9086 = vmul.f32 %v9000, %v9059
  %v9087 = vmul.f32 %v9001, %v9059
  %v9088 = vmul.f32 %v9002, %v9059
  %v9089 = vmul.f32 %v9003, %v9059
  %v9090 = vmul.f32 %v9004, %v9059
  %v9091 = vmul.f32 %v9005, %v9059
  %v9092 = vmul.f32 %v9006, %v9059
  %v9093 = vmul.f32 %v9007, %v9059
  %v9094 = vmul.f32 %v9008, %v9059
  %v9095 = vmul.f32 %v9009, %v9059
  %v9096 = vmul.f32 %v9010, %v9059
  %v9097 = vmul.f32 %v9011, %v9059
  %v9098 = vmul.f32 %v9012, %v9059
  %v9099 = vmul.f32 %v9013, %v9059
  %v9100 = vmul.f32 %v9014, %v9059
  %v9101 = vmul.f32 %v9015, %v9059
  %v9102 = vmul.f32 %v9016, %v9069
  %v9103 = vmul.f32 %v9017, %v9069
  %v9104 = vmul.f32 %v9018, %v9069
  %v9105 = vmul.f32 %v9019, %v9069
  %v9106 = vmul.f32 %v9020, %v9069
  %v9107 = vmul.f32 %v9021, %v9069
  %v9108 = vmul.f32 %v9022, %v9069
  %v9109 = vmul.f32 %v9023, %v9069
  %v9110 = vmul.f32 %v9024, %v9069
  %v9111 = vmul.f32 %v9025, %v9069
  %v9112 = vmul.f32 %v9026, %v9069
  %v9113 = vmul.f32 %v9027, %v9069
  %v9114 = vmul.f32 %v9028, %v9069
  %v9115 = vmul.f32 %v9029, %v9069
  %v9116 = vmul.f32 %v9030, %v9069
  %v9117 = vmul.f32 %v9031, %v9069
  %v9118 = vmul.f32 %v9032, %v9069
  %v9119 = vmul.f32 %v9033, %v9069
  %v9120 = vmul.f32 %v9034, %v9069
  %v9121 = vmul.f32 %v9035, %v9069
  %v9122 = vmul.f32 %v9036, %v9069
  %v9123 = vmul.f32 %v9037, %v9069
  %v9124 = vmul.f32 %v9038, %v9069
  %v9125 = vmul.f32 %v9039, %v9069
  %v9126 = vmul.f32 %v9040, %v9069
  %v9127 = vmul.f32 %v9041, %v9069
  %v9128 = vmul.f32 %v9042, %v9069
  %v9129 = vmul.f32 %v9043, %v9069
  %v9130 = vmul.f32 %v9044, %v9069
  %v9131 = vmul.f32 %v9045, %v9069
  %v9132 = vmul.f32 %v9046, %v9069
  %v9133 = vmul.f32 %v9047, %v9069
  %v9134 = vmax.f32 %v9070, 0.0
  %v9135 = vmax.f32 %v9071, 0.0
  %v9136 = vmax.f32 %v9072, 0.0
  %v9137 = vmax.f32 %v9073, 0.0
  %v9138 = vmax.f32 %v9074, 0.0
  %v9139 = vmax.f32 %v9075, 0.0
  %v9140 = vmax.f32 %v9076, 0.0
  %v9141 = vmax.f32 %v9077, 0.0
  %v9142 = vmax.f32 %v9078, 0.0
  %v9143 = vmax.f32 %v9079, 0.0
  %v9144 = vmax.f32 %v9080, 0.0
  %v9145 = vmax.f32 %v9081, 0.0
  %v9146 = vmax.f32 %v9082, 0.0
  %v9147 = vmax.f32 %v9083, 0.0
  %v9148 = vmax.f32 %v9084, 0.0
  %v9149 = vmax.f32 %v9085, 0.0
  %v9150 = vmax.f32 %v9086, 0.0
  %v9151 = vmax.f32 %v9087, 0.0
  %v9152 = vmax.f32 %v9088, 0.0
  %v9153 = vmax.f32 %v9089, 0.0
  %v9154 = vmax.f32 %v9090, 0.0
  %v9155 = vmax.f32 %v9091, 0.0
  %v9156 = vmax.f32 %v9092, 0.0
  %v9157 = vmax.f32 %v9093, 0.0
  %v9158 = vmax.f32 %v9094, 0.0
  %v9159 = vmax.f32 %v9095, 0.0
  %v9160 = vmax.f32 %v9096, 0.0
  %v9161 = vmax.f32 %v9097, 0.0
  %v9162 = vmax.f32 %v9098, 0.0
  %v9163 = vmax.f32 %v9099, 0.0
  %v9164 = vmax.f32 %v9100, 0.0
  %v9165 = vmax.f32 %v9101, 0.0
  %v9166 = vmax.f32 %v9102, 0.0
  %v9167 = vmax.f32 %v9103, 0.0
  %v9168 = vmax.f32 %v9104, 0.0
  %v9169 = vmax.f32 %v9105, 0.0
  %v9170 = vmax.f32 %v9106, 0.0
  %v9171 = vmax.f32 %v9107, 0.0
  %v9172 = vmax.f32 %v9108, 0.0
  %v9173 = vmax.f32 %v9109, 0.0
  %v9174 = vmax.f32 %v9110, 0.0
  %v9175 = vmax.f32 %v9111, 0.0
  %v9176 = vmax.f32 %v9112, 0.0
  %v9177 = vmax.f32 %v9113, 0.0
  %v9178 = vmax.f32 %v9114, 0.0
  %v9179 = vmax.f32 %v9115, 0.0
  %v9180 = vmax.f32 %v9116, 0.0
  %v9181 = vmax.f32 %v9117, 0.0
  %v9182 = vmax.f32 %v9118, 0.0
  %v9183 = vmax.f32 %v9119, 0.0
  %v9184 = vmax.f32 %v9120, 0.0
  %v9185 = vmax.f32 %v9121, 0.0
  %v9186 = vmax.f32 %v9122, 0.0
  %v9187 = vmax.f32 %v9123, 0.0
  %v9188 = vmax.f32 %v9124, 0.0
  %v9189 = vmax.f32 %v9125, 0.0
  %v9190 = vmax.f32 %v9126, 0.0
  %v9191 = vmax.f32 %v9127, 0.0
  %v9192 = vmax.f32 %v9128, 0.0
  %v9193 = vmax.f32 %v9129, 0.0
  %v9194 = vmax.f32 %v9130, 0.0
  %v9195 = vmax.f32 %v9131, 0.0
  %v9196 = vmax.f32 %v9132, 0.0
  %v9197 = vmax.f32 %v9133, 0.0
  %9198 = vst [vmem:[%s3] sm:$0xff] %v9134
  %9199 = vst [vmem:[%s3 + $0x8] sm:$0xff] %v9135
  %9200 = vst [vmem:[%s3 + $0x10] sm:$0xff] %v9136
  %9201 = vst [vmem:[%s3 + $0x18] sm:$0xff] %v9137
  %9202 = vst [vmem:[%s3 + $0x20] sm:$0xff] %v9138
  %9203 = vst [vmem:[%s3 + $0x28] sm:$0xff] %v9139
  %9204 = vst [vmem:[%s3 + $0x30] sm:$0xff] %v9140
  %9205 = vst [vmem:[%s3 + $0x38] sm:$0xff] %v9141
  %9206 = vst [vmem:[%s3 + $0x40] sm:$0xff] %v9142
  %9207 = vst [vmem:[%s3 + $0x48] sm:$0xff] %v9143
  %9208 = vst [vmem:[%s3 + $0x50] sm:$0xff] %v9144
  %9209 = vst [vmem:[%s3 + $0x58] sm:$0xff] %v9145
  %9210 = vst [vmem:[%s3 + $0x60] sm:$0xff] %v9146
  %9211 = vst [vmem:[%s3 + $0x68] sm:$0xff] %v9147
  %9212 = vst [vmem:[%s3 + $0x70] sm:$0xff] %v9148
  %9213 = vst [vmem:[%s3 + $0x78] sm:$0xff] %v9149
  %9214 = vst [vmem:[%s3 + $0x80] sm:$0xff] %v9150
  %9215 = vst [vmem:[%s3 + $0x88] sm:$0xff] %v9151
  %9216 = vst [vmem:[%s3 + $0x90] sm:$0xff] %v9152
  %9217 = vst [vmem:[%s3 + $0x98] sm:$0xff] %v9153
  %9218 = vst [vmem:[%s3 + $0xa0] sm:$0xff] %v9154
  %9219 = vst [vmem:[%s3 + $0xa8] sm:$0xff] %v9155
  %9220 = vst [vmem:[%s3 + $0xb0] sm:$0xff] %v9156
  %9221 = vst [vmem:[%s3 + $0xb8] sm:$0xff] %v9157
  %9222 = vst [vmem:[%s3 + $0xc0] sm:$0xff] %v9158
  %9223 = vst [vmem:[%s3 + $0xc8] sm:$0xff] %v9159
  %9224 = vst [vmem:[%s3 + $0xd0] sm:$0xff] %v9160
  %9225 = vst [vmem:[%s3 + $0xd8] sm:$0xff] %v9161
  %9226 = vst [vmem:[%s3 + $0xe0] sm:$0xff] %v9162
  %9227 = vst [vmem:[%s3 + $0xe8] sm:$0xff] %v9163
  %9228 = vst [vmem:[%s3 + $0xf0] sm:$0xff] %v9164
  %9229 = vst [vmem:[%s3 + $0xf8] sm:$0xff] %v9165
  %9230 = vst [vmem:[%s3 + $0x100] sm:$0xff] %v9166
  %9231 = vst [vmem:[%s3 + $0x108] sm:$0xff] %v9167
  %9232 = vst [vmem:[%s3 + $0x110] sm:$0xff] %v9168
  %9233 = vst [vmem:[%s3 + $0x118] sm:$0xff] %v9169
  %9234 = vst [vmem:[%s3 + $0x120] sm:$0xff] %v9170
  %9235 = vst [vmem:[%s3 + $0x128] sm:$0xff] %v9171
  %9236 = vst [vmem:[%s3 + $0x130] sm:$0xff] %v9172
  %9237 = vst [vmem:[%s3 + $0x138] sm:$0xff] %v9173
  %9238 = vst [vmem:[%s3 + $0x140] sm:$0xff] %v9174
  %9239 = vst [vmem:[%s3 + $0x148] sm:$0xff] %v9175
  %9240 = vst [vmem:[%s3 + $0x150] sm:$0xff] %v9176
  %9241 = vst [vmem:[%s3 + $0x158] sm:$0xff] %v9177
  %9242 = vst [vmem:[%s3 + $0x160] sm:$0xff] %v9178
  %9243 = vst [vmem:[%s3 + $0x168] sm:$0xff] %v9179
  %9244 = vst [vmem:[%s3 + $0x170] sm:$0xff] %v9180
  %9245 = vst [vmem:[%s3 + $0x178] sm:$0xff] %v9181
  %9246 = vst [vmem:[%s3 + $0x180] sm:$0xff] %v9182
  %9247 = vst [vmem:[%s3 + $0x188] sm:$0xff] %v9183
  %9248 = vst [vmem:[%s3 + $0x190] sm:$0xff] %v9184
  %9249 = vst [vmem:[%s3 + $0x198] sm:$0xff] %v9185
  %9250 = vst [vmem:[%s3 + $0x1a0] sm:$0xff] %v9186
  %9251 = vst [vmem:[%s3 + $0x1a8] sm:$0xff] %v9187
  %9252 = vst [vmem:[%s3 + $0x1b0] sm:$0xff] %v9188
  %9253 = vst [vmem:[%s3 + $0x1b8] sm:$0xff] %v9189
  %9254 = vst [vmem:[%s3 + $0x1c0] sm:$0xff] %v9190
  %9255 = vst [vmem:[%s3 + $0x1c8] sm:$0xff] %v9191
  %9256 = vst [vmem:[%s3 + $0x1d0] sm:$0xff] %v9192
  %9257 = vst [vmem:[%s3 + $0x1d8] sm:$0xff] %v9193
  %9258 = vst [vmem:[%s3 + $0x1e0] sm:$0xff] %v9194
  %9259 = vst [vmem:[%s3 + $0x1e8] sm:$0xff] %v9195
  %9260 = vst [vmem:[%s3 + $0x1f0] sm:$0xff] %v9196
  %9261 = vst [vmem:[%s3 + $0x1f8] sm:$0xff] %v9197
  // Predicated region
  $region14: #{output_wrapper_conv.1} parent=0 // pred_check
    _
  $region15: #{output_wrapper_conv.1} parent=0 // pred_check_branch
    %9263 = sbr.rel (0) target = $region17
  $region16: #{output_wrapper_conv.1} parent=0 // pred_region
    _
  $region17: #{output_wrapper_conv.1} parent=0 // pred_fallthru
    _
  // Predicated region
  $region18: #{output_wrapper_conv.1} parent=0 // pred_check
    _
  $region19: #{output_wrapper_conv.1} parent=0 // pred_check_branch
    %9265 = sbr.rel (0) target = $region21
  $region20: #{output_wrapper_conv.1} parent=0 // pred_region
    _
  $region21: #{output_wrapper_conv.1} parent=0 // pred_fallthru
    _

</llo_original>
